<compile_context>
chip_gen: v7x
topology: tpu7x:2x2x1
jax: 0.10.0
libtpu: 0.0.40
codegen_flags: <defaults>
</compile_context>

<pallas_src>
import math
from functools import partial

import jax
import jax.numpy as jnp
from jax.experimental import pallas as pl
from jax.experimental.pallas import tpu as pltpu  # noqa: F401  (TPU backend)

# -------------------- model dims (small, deterministic) --------------------
NUM_LAYERS = 2
D_MODEL    = 32
NUM_HEADS  = 4
D_K        = D_MODEL // NUM_HEADS
D_FF       = 64
LN_EPS     = 1e-6          # LayerNormalization eps
NEG_INF    = 1e9           # matches `self.inf = 1e9` in reference MultiheadAttention

# slab layout constants
_N_PROJ    = NUM_LAYERS * 2 * 3 * NUM_HEADS   # per-head q/k/v projection tiles (48)
_W_OUT_OFF = _N_PROJ                          # per-head output-projection tiles follow
_N_VEC     = NUM_LAYERS * 9 + 2               # width-D vectors (LN g/b, b_0's, ff_b2, final LN)


# ------------------------------ fused Pallas kernel ------------------------------
def _decoder_kernel(x_ref, e_ref, dmask_ref, emask_ref,
                    wh_ref, wff1_ref, wff2_ref, bproj_ref, bff1_ref, vec_ref,
                    o_ref, *, B, L, Le):
    scale = 1.0 / math.sqrt(D_K)

    def layer_norm(x2d, gi, bi):
        # single-pass stats: the two reductions are independent -> overlap on XLU
        mean = jnp.mean(x2d, axis=-1, keepdims=True)
        msq  = jnp.mean(x2d * x2d, axis=-1, keepdims=True)
        var  = msq - mean * mean
        return (x2d - mean) * jax.lax.rsqrt(var + LN_EPS) * vec_ref[gi] + vec_ref[bi]

    def softmax(s):
        m = jnp.max(s, axis=-1, keepdims=True)
        z = jnp.exp(s - m)
        return z * pl.reciprocal(jnp.sum(z, axis=-1, keepdims=True), approx=True)

    def mha(q_in_b, kv_in_b, mask, Lq, Lk, slot, b0_idx):
        # q_in_b: (B*Lq, D) bf16; kv_in_b: (B*Lk, D) bf16; mask: (B, 1|Lq, Lk) f32
        keep = jnp.broadcast_to(mask, (B, Lq, Lk)) > 0.0      # hoisted out of head loop
        acc = jnp.zeros((B * Lq, D_MODEL), jnp.float32)
        for h in range(NUM_HEADS):
            iq = (slot * 3 + 0) * NUM_HEADS + h
            ik = (slot * 3 + 1) * NUM_HEADS + h
            iv = (slot * 3 + 2) * NUM_HEADS + h
            io = _W_OUT_OFF + slot * NUM_HEADS + h
            # per-head projections: lane-dense (B*L, D) inputs against weight tiles
            # that were carved to (D, D_K) at pack time -> no activation lane slices.
            qh = jnp.dot(q_in_b, wh_ref[iq], preferred_element_type=jnp.float32) + bproj_ref[iq]
            kh = jnp.dot(kv_in_b, wh_ref[ik], preferred_element_type=jnp.float32) + bproj_ref[ik]
            vh = jnp.dot(kv_in_b, wh_ref[iv], preferred_element_type=jnp.float32) + bproj_ref[iv]
            # leading-dim-only reshapes (free): (B*Lx, D_K) -> (B, Lx, D_K)
            q3 = qh.reshape(B, Lq, D_K).astype(jnp.bfloat16)
            k3 = kh.reshape(B, Lk, D_K).astype(jnp.bfloat16)
            v3 = vh.reshape(B, Lk, D_K).astype(jnp.bfloat16)
            s = jnp.einsum('bqd,bkd->bqk', q3, k3,
                           preferred_element_type=jnp.float32) * scale
            s = jnp.where(keep, s, -NEG_INF)                  # matches reference masked_fill
            p = softmax(s).astype(jnp.bfloat16)
            o3 = jnp.einsum('bqk,bkd->bqd', p, v3, preferred_element_type=jnp.float32)
            oh = o3.reshape(B * Lq, D_K).astype(jnp.bfloat16)
            # fold this head straight through its W0 slice (stored (D, D_K), so we
            # contract both dim-1's) and accumulate -> no head/lane concatenation.
            acc = acc + jax.lax.dot_general(
                oh, wh_ref[io], (((1,), (1,)), ((), ())),
                preferred_element_type=jnp.float32)
        return acc + vec_ref[b0_idx]

    x = x_ref[...]                                # (B*L, D) f32, resident whole forward
    e_b = e_ref[...].astype(jnp.bfloat16)         # encoder output, cast once for the MXU
    dmask = dmask_ref[...]                        # (B, L, L)  f32 (1=keep, 0=mask)
    emask = emask_ref[...]                        # (B, 1, Le) f32

    for l in range(NUM_LAYERS):
        v0 = l * 9
        # ---- sublayer 1: masked multi-head self-attention (LN1 fused) ----
        xb = layer_norm(x, v0 + 0, v0 + 1).astype(jnp.bfloat16)
        x = x + mha(xb, xb, dmask, L, L, slot=l * 2 + 0, b0_idx=v0 + 6)
        # ---- sublayer 2: encoder-decoder cross attention (LN2 fused) ----
        xb = layer_norm(x, v0 + 2, v0 + 3).astype(jnp.bfloat16)
        x = x + mha(xb, e_b, emask, L, Le, slot=l * 2 + 1, b0_idx=v0 + 7)
        # ---- sublayer 3: feed-forward (LN3 fused) ----
        xb = layer_norm(x, v0 + 4, v0 + 5).astype(jnp.bfloat16)
        h1 = jnp.dot(xb, wff1_ref[l], preferred_element_type=jnp.float32) + bff1_ref[l]
        h1 = jnp.maximum(h1, 0.0).astype(jnp.bfloat16)
        x = x + jnp.dot(h1, wff2_ref[l], preferred_element_type=jnp.float32) + vec_ref[v0 + 8]

    # ---- final decoder LayerNorm ----
    o_ref[...] = layer_norm(x, NUM_LAYERS * 9, NUM_LAYERS * 9 + 1)


# ------------------------------ weight packing ------------------------------
def pack_decoder_params(params):
    """Pack all decoder weights once into a handful of slabs.

    w_heads (bf16, (_N_PROJ + NL*2*H, D, D_K)):
        [((l*2+a)*3 + p)*H + h]          : per-head q/k/v projection (w.T column slice)
        [_W_OUT_OFF + (l*2+a)*H + h]     : per-head W0 slice stored as (D, D_K)
    w_ff1 / w_ff2 (bf16): FFN weights, pre-transposed to (d_in, d_out).
    b_proj (f32, (_N_PROJ,1,D_K)), b_ff1 (f32, (NL,1,D_FF)),
    vec_d  (f32, (_N_VEC,1,D)): per layer [ln1_g, ln1_b, ln2_g, ln2_b, ln3_g,
        ln3_b, sa_b0, ca_b0, ff_b2]; then [final ln_g, final ln_b].
    """
    Ls = params["layers"]
    w_proj, w_out, b_proj = [], [], []
    w_ff1, w_ff2, b_ff1, vec_d = [], [], [], []

    for p in Ls:
        for a_key in ("self_attn", "cross_attn"):
            a = p[a_key]
            for w_key, b_key in (("w_q", "b_q"), ("w_k", "b_k"), ("w_v", "b_v")):
                wt = a[w_key].T                         # (d_in, d_out) = (D, D)
                bt = a[b_key]
                for h in range(NUM_HEADS):
                    w_proj.append(wt[:, h * D_K:(h + 1) * D_K])        # (D, D_K)
                    b_proj.append(bt[h * D_K:(h + 1) * D_K][None, :])  # (1, D_K)
            w0 = a["w_0"]                               # torch (out, in) = (D, D)
            for h in range(NUM_HEADS):
                # stored as (D, D_K); kernel contracts dim 1 of both operands
                w_out.append(w0[:, h * D_K:(h + 1) * D_K])
        w_ff1.append(p["ff_w1"].T)                      # (D, D_FF)
        w_ff2.append(p["ff_w2"].T)                      # (D_FF, D)
        b_ff1.append(p["ff_b1"][None, :])               # (1, D_FF)
        vec_d.extend([
            p["ln1_g"][None, :], p["ln1_b"][None, :],
            p["ln2_g"][None, :], p["ln2_b"][None, :],
            p["ln3_g"][None, :], p["ln3_b"][None, :],
            p["self_attn"]["b_0"][None, :],
            p["cross_attn"]["b_0"][None, :],
            p["ff_b2"][None, :],
        ])
    vec_d.extend([params["ln_g"][None, :], params["ln_b"][None, :]])

    return (jnp.stack(w_proj + w_out).astype(jnp.bfloat16),   # (64, D, D_K)
            jnp.stack(w_ff1).astype(jnp.bfloat16),            # (NL, D, D_FF)
            jnp.stack(w_ff2).astype(jnp.bfloat16),            # (NL, D_FF, D)
            jnp.stack(b_proj),                                 # (48, 1, D_K) f32
            jnp.stack(b_ff1),                                  # (NL, 1, D_FF) f32
            jnp.stack(vec_d))                                  # (_N_VEC, 1, D) f32


# ------------------------------ wrapper ------------------------------
def decoder_forward(x, e_output, e_mask, d_mask, packed):
    """Single fused Pallas kernel for the whole decoder forward (eval mode)."""
    B, L, D = x.shape
    Le = e_output.shape[1]
    # Masks go in nearly raw (single astype; applied in-kernel with jnp.where).
    dm = d_mask.astype(jnp.float32)                    # (B, L, L)
    em = e_mask.astype(jnp.float32)                    # (B, 1, Le)

    kernel = partial(_decoder_kernel, B=B, L=L, Le=Le)
    out2d = pl.pallas_call(
        kernel,
        out_shape=jax.ShapeDtypeStruct((B * L, D), jnp.float32),
        # No grid / no tiling: the whole problem (<1 MiB of weights + activations)
        # fits in VMEM; whole-array blocks, single invocation.
    )(x.reshape(B * L, D), e_output.reshape(B * Le, D), dm, em, *packed)
    return out2d.reshape(B, L, D)


# --------------------------- pure-JAX reference ---------------------------
def _ref_ln(x, g, b):
    mean = x.mean(-1, keepdims=True)
    var = ((x - mean) ** 2).mean(-1, keepdims=True)
    return (x - mean) / jnp.sqrt(var + LN_EPS) * g + b


def _ref_linear(x, w, b):
    return jnp.einsum("...i,oi->...o", x, w, precision="highest") + b


def _ref_mha(q_in, k_in, v_in, mask, p):
    B, Lq, _ = q_in.shape
    Lk = k_in.shape[1]
    q = _ref_linear(q_in, p["w_q"], p["b_q"]).reshape(B, Lq, NUM_HEADS, D_K).transpose(0, 2, 1, 3)
    k = _ref_linear(k_in, p["w_k"], p["b_k"]).reshape(B, Lk, NUM_HEADS, D_K).transpose(0, 2, 1, 3)
    v = _ref_linear(v_in, p["w_v"], p["b_v"]).reshape(B, Lk, NUM_HEADS, D_K).transpose(0, 2, 1, 3)
    s = jnp.einsum("bhqd,bhkd->bhqk", q, k, precision="highest") / math.sqrt(D_K)
    s = jnp.where(mask[:, None] == 0.0, -NEG_INF, s)
    a = jnp.einsum("bhqk,bhkd->bhqd", jax.nn.softmax(s, -1), v, precision="highest")
    concat = a.transpose(0, 2, 1, 3).reshape(B, Lq, D_MODEL)
    return _ref_linear(concat, p["w_0"], p["b_0"])


def decoder_reference(x, e_output, e_mask, d_mask, params):
    B, Lq, _ = x.shape
    Lk = e_output.shape[1]
    d_mask_b = jnp.broadcast_to(d_mask.astype(jnp.float32), (B, Lq, Lq))
    e_mask_b = jnp.broadcast_to(e_mask.astype(jnp.float32), (B, Lq, Lk))
    for i in range(NUM_LAYERS):
        p = params["layers"][i]
        x1 = _ref_ln(x, p["ln1_g"], p["ln1_b"])
        x = x + _ref_mha(x1, x1, x1, d_mask_b, p["self_attn"])
        x2 = _ref_ln(x, p["ln2_g"], p["ln2_b"])
        x = x + _ref_mha(x2, e_output, e_output, e_mask_b, p["cross_attn"])
        x3 = _ref_ln(x, p["ln3_g"], p["ln3_b"])
        h = jnp.maximum(_ref_linear(x3, p["ff_w1"], p["ff_b1"]), 0.0)
        x = x + _ref_linear(h, p["ff_w2"], p["ff_b2"])
    return _ref_ln(x, params["ln_g"], params["ln_b"])


# ------------------------------ param init ------------------------------
def _dense(key, d_out, d_in, scale=0.05):
    kw, kb = jax.random.split(key)
    return (scale * jax.random.normal(kw, (d_out, d_in), jnp.float32),
            scale * jax.random.normal(kb, (d_out,), jnp.float32))


def _attn_params(key):
    ks = jax.random.split(key, 4)
    wq, bq = _dense(ks[0], D_MODEL, D_MODEL)
    wk, bk = _dense(ks[1], D_MODEL, D_MODEL)
    wv, bv = _dense(ks[2], D_MODEL, D_MODEL)
    w0, b0 = _dense(ks[3], D_MODEL, D_MODEL)
    return {"w_q": wq, "b_q": bq, "w_k": wk, "b_k": bk,
            "w_v": wv, "b_v": bv, "w_0": w0, "b_0": b0}


def _ln_params(key):
    kg, kb = jax.random.split(key)
    g = 1.0 + 0.02 * jax.random.normal(kg, (D_MODEL,), jnp.float32)
    b = 0.02 * jax.random.normal(kb, (D_MODEL,), jnp.float32)
    return g, b


def init_params(key):
    layers = []
    keys = jax.random.split(key, NUM_LAYERS + 1)
    for i in range(NUM_LAYERS):
        k = jax.random.split(keys[i], 7)
        ln1_g, ln1_b = _ln_params(k[0])
        ln2_g, ln2_b = _ln_params(k[1])
        ln3_g, ln3_b = _ln_params(k[2])
        ff_w1, ff_b1 = _dense(k[5], D_FF, D_MODEL)
        ff_w2, ff_b2 = _dense(k[6], D_MODEL, D_FF)
        layers.append({
            "ln1_g": ln1_g, "ln1_b": ln1_b,
            "ln2_g": ln2_g, "ln2_b": ln2_b,
            "ln3_g": ln3_g, "ln3_b": ln3_b,
            "self_attn": _attn_params(k[3]),
            "cross_attn": _attn_params(k[4]),
            "ff_w1": ff_w1, "ff_b1": ff_b1,
            "ff_w2": ff_w2, "ff_b2": ff_b2,
        })
    ln_g, ln_b = _ln_params(keys[-1])
    return {"layers": layers, "ln_g": ln_g, "ln_b": ln_b}


# ------------------------------ main ------------------------------
if __name__ == "__main__":
    B, L_DEC, L_ENC = 2, 8, 16
    key = jax.random.PRNGKey(0)
    kx, ke, kp = jax.random.split(key, 3)

    x = jax.random.normal(kx, (B, L_DEC, D_MODEL), jnp.float32)
    e_output = jax.random.normal(ke, (B, L_ENC, D_MODEL), jnp.float32)

    # encoder padding mask: (B, 1, L_ENC); decoder mask: padding & causal (B, L_DEC, L_DEC)
    e_valid = jnp.array([[1] * L_ENC, [1] * (L_ENC - 4) + [0] * 4], dtype=bool)
    e_mask = e_valid[:, None, :]
    d_valid = jnp.array([[1] * L_DEC, [1] * (L_DEC - 2) + [0] * 2], dtype=bool)
    nopeak = jnp.tril(jnp.ones((L_DEC, L_DEC), dtype=bool))
    d_mask = d_valid[:, None, :] & nopeak[None]

    params = init_params(kp)
    packed = pack_decoder_params(params)   # pre-transpose / per-head carve / bf16 once

    fused = jax.jit(decoder_forward)
    out = fused(x, e_output, e_mask, d_mask, packed)
    out = jax.block_until_ready(out)

    ref = decoder_reference(x, e_output, e_mask, d_mask, params)
    assert out.shape == (B, L_DEC, D_MODEL)
    # bf16 MXU operands + approx reciprocal vs "highest"-precision f32 reference
    assert bool(jnp.allclose(out, ref, atol=3e-2, rtol=3e-2)), "mismatch vs reference"

    print("KERNEL_OK")
</pallas_src>

<mosaic_0001>
module attributes {stable_mosaic.version = 11 : i64} {
  func.func @_decoder_kernel(%arg0: memref<16x32xf32, #tpu.memory_space<vmem>>, %arg1: memref<32x32xf32, #tpu.memory_space<vmem>>, %arg2: memref<2x8x8xf32, #tpu.memory_space<vmem>>, %arg3: memref<2x1x16xf32, #tpu.memory_space<vmem>>, %arg4: memref<64x32x8xbf16, #tpu.memory_space<vmem>>, %arg5: memref<2x32x64xbf16, #tpu.memory_space<vmem>>, %arg6: memref<2x64x32xbf16, #tpu.memory_space<vmem>>, %arg7: memref<48x1x8xf32, #tpu.memory_space<vmem>>, %arg8: memref<2x1x64xf32, #tpu.memory_space<vmem>>, %arg9: memref<20x1x32xf32, #tpu.memory_space<vmem>>, %arg10: memref<16x32xf32, #tpu.memory_space<vmem>>) attributes {dimension_semantics = [], scalar_prefetch = 0 : i64, scratch_operands = 0 : i64, tpu.core_type = #tpu.core_type<tc>} {
    %c0 = arith.constant 0 : index
    %c0_0 = arith.constant 0 : index
    %0 = vector.load %arg0[%c0, %c0_0] : memref<16x32xf32, #tpu.memory_space<vmem>>, vector<16x32xf32>
    %c0_1 = arith.constant 0 : index
    %c0_2 = arith.constant 0 : index
    %1 = vector.load %arg1[%c0_1, %c0_2] : memref<32x32xf32, #tpu.memory_space<vmem>>, vector<32x32xf32>
    %2 = arith.truncf %1 : vector<32x32xf32> to vector<32x32xbf16>
    %c0_3 = arith.constant 0 : index
    %c0_4 = arith.constant 0 : index
    %c0_5 = arith.constant 0 : index
    %3 = vector.load %arg2[%c0_3, %c0_4, %c0_5] : memref<2x8x8xf32, #tpu.memory_space<vmem>>, vector<2x8x8xf32>
    %c0_6 = arith.constant 0 : index
    %c0_7 = arith.constant 0 : index
    %c0_8 = arith.constant 0 : index
    %4 = vector.load %arg3[%c0_6, %c0_7, %c0_8] : memref<2x1x16xf32, #tpu.memory_space<vmem>>, vector<2x1x16xf32>
    %cst = arith.constant dense<0.000000e+00> : vector<16xf32>
    %5 = vector.multi_reduction <add>, %0, %cst [1] : vector<16x32xf32> to vector<16xf32>
    %6 = vector.shape_cast %5 : vector<16xf32> to vector<16x1xf32>
    %cst_9 = arith.constant 3.200000e+01 : f32
    %7 = vector.broadcast %cst_9 : f32 to vector<16x1xf32>
    %8 = arith.divf %6, %7 : vector<16x1xf32>
    %9 = arith.mulf %0, %0 : vector<16x32xf32>
    %cst_10 = arith.constant dense<0.000000e+00> : vector<16xf32>
    %10 = vector.multi_reduction <add>, %9, %cst_10 [1] : vector<16x32xf32> to vector<16xf32>
    %11 = vector.shape_cast %10 : vector<16xf32> to vector<16x1xf32>
    %cst_11 = arith.constant 3.200000e+01 : f32
    %12 = vector.broadcast %cst_11 : f32 to vector<16x1xf32>
    %13 = arith.divf %11, %12 : vector<16x1xf32>
    %14 = arith.mulf %8, %8 : vector<16x1xf32>
    %15 = arith.subf %13, %14 : vector<16x1xf32>
    %16 = vector.broadcast %8 : vector<16x1xf32> to vector<16x32xf32>
    %17 = arith.subf %0, %16 : vector<16x32xf32>
    %cst_12 = arith.constant 9.99999997E-7 : f32
    %18 = vector.broadcast %cst_12 : f32 to vector<16x1xf32>
    %19 = arith.addf %15, %18 : vector<16x1xf32>
    %20 = math.rsqrt %19 : vector<16x1xf32>
    %21 = vector.broadcast %20 : vector<16x1xf32> to vector<16x32xf32>
    %22 = arith.mulf %17, %21 : vector<16x32xf32>
    %c0_13 = arith.constant 0 : index
    %c0_14 = arith.constant 0 : index
    %c0_15 = arith.constant 0 : index
    %23 = vector.load %arg9[%c0_13, %c0_14, %c0_15] : memref<20x1x32xf32, #tpu.memory_space<vmem>>, vector<1x1x32xf32>
    %24 = vector.shape_cast %23 : vector<1x1x32xf32> to vector<1x32xf32>
    %25 = vector.broadcast %24 : vector<1x32xf32> to vector<16x32xf32>
    %26 = arith.mulf %22, %25 : vector<16x32xf32>
    %c1 = arith.constant 1 : index
    %c0_16 = arith.constant 0 : index
    %c0_17 = arith.constant 0 : index
    %27 = vector.load %arg9[%c1, %c0_16, %c0_17] : memref<20x1x32xf32, #tpu.memory_space<vmem>>, vector<1x1x32xf32>
    %28 = vector.shape_cast %27 : vector<1x1x32xf32> to vector<1x32xf32>
    %29 = vector.broadcast %28 : vector<1x32xf32> to vector<16x32xf32>
    %30 = arith.addf %26, %29 : vector<16x32xf32>
    %31 = arith.truncf %30 : vector<16x32xf32> to vector<16x32xbf16>
    %cst_18 = arith.constant 0.000000e+00 : f32
    %32 = vector.broadcast %cst_18 : f32 to vector<2x8x8xf32>
    %33 = arith.cmpf ogt, %3, %32 : vector<2x8x8xf32>
    %cst_19 = arith.constant 0.000000e+00 : f32
    %34 = vector.broadcast %cst_19 : f32 to vector<16x32xf32>
    %c0_20 = arith.constant 0 : index
    %c0_21 = arith.constant 0 : index
    %c0_22 = arith.constant 0 : index
    %35 = vector.load %arg4[%c0_20, %c0_21, %c0_22] : memref<64x32x8xbf16, #tpu.memory_space<vmem>>, vector<1x32x8xbf16>
    %36 = vector.shape_cast %35 : vector<1x32x8xbf16> to vector<32x8xbf16>
    %cst_23 = arith.constant dense<0.000000e+00> : vector<16x8xf32>
    %37 = tpu.matmul %31, %36, %cst_23 {dimension_numbers = #tpu.dot_dimension_numbers<[1], [0], [0], [1], [0, 0, 1, 1], [], []>} : vector<16x32xbf16>, vector<32x8xbf16>, vector<16x8xf32> -> vector<16x8xf32>
    %c0_24 = arith.constant 0 : index
    %c0_25 = arith.constant 0 : index
    %c0_26 = arith.constant 0 : index
    %38 = vector.load %arg7[%c0_24, %c0_25, %c0_26] : memref<48x1x8xf32, #tpu.memory_space<vmem>>, vector<1x1x8xf32>
    %39 = vector.shape_cast %38 : vector<1x1x8xf32> to vector<1x8xf32>
    %40 = vector.broadcast %39 : vector<1x8xf32> to vector<16x8xf32>
    %41 = arith.addf %37, %40 : vector<16x8xf32>
    %c4 = arith.constant 4 : index
    %c0_27 = arith.constant 0 : index
    %c0_28 = arith.constant 0 : index
    %42 = vector.load %arg4[%c4, %c0_27, %c0_28] : memref<64x32x8xbf16, #tpu.memory_space<vmem>>, vector<1x32x8xbf16>
    %43 = vector.shape_cast %42 : vector<1x32x8xbf16> to vector<32x8xbf16>
    %cst_29 = arith.constant dense<0.000000e+00> : vector<16x8xf32>
    %44 = tpu.matmul %31, %43, %cst_29 {dimension_numbers = #tpu.dot_dimension_numbers<[1], [0], [0], [1], [0, 0, 1, 1], [], []>} : vector<16x32xbf16>, vector<32x8xbf16>, vector<16x8xf32> -> vector<16x8xf32>
    %c4_30 = arith.constant 4 : index
    %c0_31 = arith.constant 0 : index
    %c0_32 = arith.constant 0 : index
    %45 = vector.load %arg7[%c4_30, %c0_31, %c0_32] : memref<48x1x8xf32, #tpu.memory_space<vmem>>, vector<1x1x8xf32>
    %46 = vector.shape_cast %45 : vector<1x1x8xf32> to vector<1x8xf32>
    %47 = vector.broadcast %46 : vector<1x8xf32> to vector<16x8xf32>
    %48 = arith.addf %44, %47 : vector<16x8xf32>
    %c8 = arith.constant 8 : index
    %c0_33 = arith.constant 0 : index
    %c0_34 = arith.constant 0 : index
    %49 = vector.load %arg4[%c8, %c0_33, %c0_34] : memref<64x32x8xbf16, #tpu.memory_space<vmem>>, vector<1x32x8xbf16>
    %50 = vector.shape_cast %49 : vector<1x32x8xbf16> to vector<32x8xbf16>
    %cst_35 = arith.constant dense<0.000000e+00> : vector<16x8xf32>
    %51 = tpu.matmul %31, %50, %cst_35 {dimension_numbers = #tpu.dot_dimension_numbers<[1], [0], [0], [1], [0, 0, 1, 1], [], []>} : vector<16x32xbf16>, vector<32x8xbf16>, vector<16x8xf32> -> vector<16x8xf32>
    %c8_36 = arith.constant 8 : index
    %c0_37 = arith.constant 0 : index
    %c0_38 = arith.constant 0 : index
    %52 = vector.load %arg7[%c8_36, %c0_37, %c0_38] : memref<48x1x8xf32, #tpu.memory_space<vmem>>, vector<1x1x8xf32>
    %53 = vector.shape_cast %52 : vector<1x1x8xf32> to vector<1x8xf32>
    %54 = vector.broadcast %53 : vector<1x8xf32> to vector<16x8xf32>
    %55 = arith.addf %51, %54 : vector<16x8xf32>
    %56 = vector.shape_cast %41 : vector<16x8xf32> to vector<2x8x8xf32>
    %57 = arith.truncf %56 : vector<2x8x8xf32> to vector<2x8x8xbf16>
    %58 = vector.shape_cast %48 : vector<16x8xf32> to vector<2x8x8xf32>
    %59 = arith.truncf %58 : vector<2x8x8xf32> to vector<2x8x8xbf16>
    %60 = vector.shape_cast %55 : vector<16x8xf32> to vector<2x8x8xf32>
    %61 = arith.truncf %60 : vector<2x8x8xf32> to vector<2x8x8xbf16>
    "tpu.trace_start"() <{level = 10 : i32, message = "bqd,bkd->bqk"}> : () -> ()
    %cst_39 = arith.constant dense<0.000000e+00> : vector<2x8x8xf32>
    %62 = tpu.matmul %57, %59, %cst_39 {dimension_numbers = #tpu.dot_dimension_numbers<[2], [2], [1], [1], [0, 0, 0, 1, 1, 1], [0], [0]>} : vector<2x8x8xbf16>, vector<2x8x8xbf16>, vector<2x8x8xf32> -> vector<2x8x8xf32>
    "tpu.trace_stop"() : () -> ()
    %cst_40 = arith.constant 0.353553385 : f32
    %63 = vector.broadcast %cst_40 : f32 to vector<2x8x8xf32>
    %64 = arith.mulf %62, %63 : vector<2x8x8xf32>
    %cst_41 = arith.constant -1.000000e+09 : f32
    %65 = vector.broadcast %cst_41 : f32 to vector<2x8x8xf32>
    %66 = arith.select %33, %64, %65 : vector<2x8x8xi1>, vector<2x8x8xf32>
    %cst_42 = arith.constant dense<0xFF800000> : vector<2x8xf32>
    %67 = vector.multi_reduction <maximumf>, %66, %cst_42 [2] : vector<2x8x8xf32> to vector<2x8xf32>
    %68 = vector.shape_cast %67 : vector<2x8xf32> to vector<2x8x1xf32>
    %69 = vector.broadcast %68 : vector<2x8x1xf32> to vector<2x8x8xf32>
    %70 = arith.subf %66, %69 : vector<2x8x8xf32>
    %71 = math.exp %70 : vector<2x8x8xf32>
    %cst_43 = arith.constant dense<0.000000e+00> : vector<2x8xf32>
    %72 = vector.multi_reduction <add>, %71, %cst_43 [2] : vector<2x8x8xf32> to vector<2x8xf32>
    %73 = vector.shape_cast %72 : vector<2x8xf32> to vector<2x8x1xf32>
    %74 = tpu.reciprocal %73 {approx = true} : vector<2x8x1xf32> -> vector<2x8x1xf32>
    %75 = vector.broadcast %74 : vector<2x8x1xf32> to vector<2x8x8xf32>
    %76 = arith.mulf %71, %75 : vector<2x8x8xf32>
    %77 = arith.truncf %76 : vector<2x8x8xf32> to vector<2x8x8xbf16>
    "tpu.trace_start"() <{level = 10 : i32, message = "bqk,bkd->bqd"}> : () -> ()
    %cst_44 = arith.constant dense<0.000000e+00> : vector<2x8x8xf32>
    %78 = tpu.matmul %77, %61, %cst_44 {dimension_numbers = #tpu.dot_dimension_numbers<[2], [1], [1], [2], [0, 0, 0, 1, 1, 2], [0], [0]>} : vector<2x8x8xbf16>, vector<2x8x8xbf16>, vector<2x8x8xf32> -> vector<2x8x8xf32>
    "tpu.trace_stop"() : () -> ()
    %79 = vector.shape_cast %78 : vector<2x8x8xf32> to vector<16x8xf32>
    %80 = arith.truncf %79 : vector<16x8xf32> to vector<16x8xbf16>
    %c48 = arith.constant 48 : index
    %c0_45 = arith.constant 0 : index
    %c0_46 = arith.constant 0 : index
    %81 = vector.load %arg4[%c48, %c0_45, %c0_46] : memref<64x32x8xbf16, #tpu.memory_space<vmem>>, vector<1x32x8xbf16>
    %82 = vector.shape_cast %81 : vector<1x32x8xbf16> to vector<32x8xbf16>
    %cst_47 = arith.constant dense<0.000000e+00> : vector<16x32xf32>
    %83 = tpu.matmul %80, %82, %cst_47 {dimension_numbers = #tpu.dot_dimension_numbers<[1], [1], [0], [0], [0, 0, 1, 0], [], []>} : vector<16x8xbf16>, vector<32x8xbf16>, vector<16x32xf32> -> vector<16x32xf32>
    %84 = arith.addf %34, %83 : vector<16x32xf32>
    %c1_48 = arith.constant 1 : index
    %c0_49 = arith.constant 0 : index
    %c0_50 = arith.constant 0 : index
    %85 = vector.load %arg4[%c1_48, %c0_49, %c0_50] : memref<64x32x8xbf16, #tpu.memory_space<vmem>>, vector<1x32x8xbf16>
    %86 = vector.shape_cast %85 : vector<1x32x8xbf16> to vector<32x8xbf16>
    %cst_51 = arith.constant dense<0.000000e+00> : vector<16x8xf32>
    %87 = tpu.matmul %31, %86, %cst_51 {dimension_numbers = #tpu.dot_dimension_numbers<[1], [0], [0], [1], [0, 0, 1, 1], [], []>} : vector<16x32xbf16>, vector<32x8xbf16>, vector<16x8xf32> -> vector<16x8xf32>
    %c1_52 = arith.constant 1 : index
    %c0_53 = arith.constant 0 : index
    %c0_54 = arith.constant 0 : index
    %88 = vector.load %arg7[%c1_52, %c0_53, %c0_54] : memref<48x1x8xf32, #tpu.memory_space<vmem>>, vector<1x1x8xf32>
    %89 = vector.shape_cast %88 : vector<1x1x8xf32> to vector<1x8xf32>
    %90 = vector.broadcast %89 : vector<1x8xf32> to vector<16x8xf32>
    %91 = arith.addf %87, %90 : vector<16x8xf32>
    %c5 = arith.constant 5 : index
    %c0_55 = arith.constant 0 : index
    %c0_56 = arith.constant 0 : index
    %92 = vector.load %arg4[%c5, %c0_55, %c0_56] : memref<64x32x8xbf16, #tpu.memory_space<vmem>>, vector<1x32x8xbf16>
    %93 = vector.shape_cast %92 : vector<1x32x8xbf16> to vector<32x8xbf16>
    %cst_57 = arith.constant dense<0.000000e+00> : vector<16x8xf32>
    %94 = tpu.matmul %31, %93, %cst_57 {dimension_numbers = #tpu.dot_dimension_numbers<[1], [0], [0], [1], [0, 0, 1, 1], [], []>} : vector<16x32xbf16>, vector<32x8xbf16>, vector<16x8xf32> -> vector<16x8xf32>
    %c5_58 = arith.constant 5 : index
    %c0_59 = arith.constant 0 : index
    %c0_60 = arith.constant 0 : index
    %95 = vector.load %arg7[%c5_58, %c0_59, %c0_60] : memref<48x1x8xf32, #tpu.memory_space<vmem>>, vector<1x1x8xf32>
    %96 = vector.shape_cast %95 : vector<1x1x8xf32> to vector<1x8xf32>
    %97 = vector.broadcast %96 : vector<1x8xf32> to vector<16x8xf32>
    %98 = arith.addf %94, %97 : vector<16x8xf32>
    %c9 = arith.constant 9 : index
    %c0_61 = arith.constant 0 : index
    %c0_62 = arith.constant 0 : index
    %99 = vector.load %arg4[%c9, %c0_61, %c0_62] : memref<64x32x8xbf16, #tpu.memory_space<vmem>>, vector<1x32x8xbf16>
    %100 = vector.shape_cast %99 : vector<1x32x8xbf16> to vector<32x8xbf16>
    %cst_63 = arith.constant dense<0.000000e+00> : vector<16x8xf32>
    %101 = tpu.matmul %31, %100, %cst_63 {dimension_numbers = #tpu.dot_dimension_numbers<[1], [0], [0], [1], [0, 0, 1, 1], [], []>} : vector<16x32xbf16>, vector<32x8xbf16>, vector<16x8xf32> -> vector<16x8xf32>
    %c9_64 = arith.constant 9 : index
    %c0_65 = arith.constant 0 : index
    %c0_66 = arith.constant 0 : index
    %102 = vector.load %arg7[%c9_64, %c0_65, %c0_66] : memref<48x1x8xf32, #tpu.memory_space<vmem>>, vector<1x1x8xf32>
    %103 = vector.shape_cast %102 : vector<1x1x8xf32> to vector<1x8xf32>
    %104 = vector.broadcast %103 : vector<1x8xf32> to vector<16x8xf32>
    %105 = arith.addf %101, %104 : vector<16x8xf32>
    %106 = vector.shape_cast %91 : vector<16x8xf32> to vector<2x8x8xf32>
    %107 = arith.truncf %106 : vector<2x8x8xf32> to vector<2x8x8xbf16>
    %108 = vector.shape_cast %98 : vector<16x8xf32> to vector<2x8x8xf32>
    %109 = arith.truncf %108 : vector<2x8x8xf32> to vector<2x8x8xbf16>
    %110 = vector.shape_cast %105 : vector<16x8xf32> to vector<2x8x8xf32>
    %111 = arith.truncf %110 : vector<2x8x8xf32> to vector<2x8x8xbf16>
    "tpu.trace_start"() <{level = 10 : i32, message = "bqd,bkd->bqk"}> : () -> ()
    %cst_67 = arith.constant dense<0.000000e+00> : vector<2x8x8xf32>
    %112 = tpu.matmul %107, %109, %cst_67 {dimension_numbers = #tpu.dot_dimension_numbers<[2], [2], [1], [1], [0, 0, 0, 1, 1, 1], [0], [0]>} : vector<2x8x8xbf16>, vector<2x8x8xbf16>, vector<2x8x8xf32> -> vector<2x8x8xf32>
    "tpu.trace_stop"() : () -> ()
    %cst_68 = arith.constant 0.353553385 : f32
    %113 = vector.broadcast %cst_68 : f32 to vector<2x8x8xf32>
    %114 = arith.mulf %112, %113 : vector<2x8x8xf32>
    %cst_69 = arith.constant -1.000000e+09 : f32
    %115 = vector.broadcast %cst_69 : f32 to vector<2x8x8xf32>
    %116 = arith.select %33, %114, %115 : vector<2x8x8xi1>, vector<2x8x8xf32>
    %cst_70 = arith.constant dense<0xFF800000> : vector<2x8xf32>
    %117 = vector.multi_reduction <maximumf>, %116, %cst_70 [2] : vector<2x8x8xf32> to vector<2x8xf32>
    %118 = vector.shape_cast %117 : vector<2x8xf32> to vector<2x8x1xf32>
    %119 = vector.broadcast %118 : vector<2x8x1xf32> to vector<2x8x8xf32>
    %120 = arith.subf %116, %119 : vector<2x8x8xf32>
    %121 = math.exp %120 : vector<2x8x8xf32>
    %cst_71 = arith.constant dense<0.000000e+00> : vector<2x8xf32>
    %122 = vector.multi_reduction <add>, %121, %cst_71 [2] : vector<2x8x8xf32> to vector<2x8xf32>
    %123 = vector.shape_cast %122 : vector<2x8xf32> to vector<2x8x1xf32>
    %124 = tpu.reciprocal %123 {approx = true} : vector<2x8x1xf32> -> vector<2x8x1xf32>
    %125 = vector.broadcast %124 : vector<2x8x1xf32> to vector<2x8x8xf32>
    %126 = arith.mulf %121, %125 : vector<2x8x8xf32>
    %127 = arith.truncf %126 : vector<2x8x8xf32> to vector<2x8x8xbf16>
    "tpu.trace_start"() <{level = 10 : i32, message = "bqk,bkd->bqd"}> : () -> ()
    %cst_72 = arith.constant dense<0.000000e+00> : vector<2x8x8xf32>
    %128 = tpu.matmul %127, %111, %cst_72 {dimension_numbers = #tpu.dot_dimension_numbers<[2], [1], [1], [2], [0, 0, 0, 1, 1, 2], [0], [0]>} : vector<2x8x8xbf16>, vector<2x8x8xbf16>, vector<2x8x8xf32> -> vector<2x8x8xf32>
    "tpu.trace_stop"() : () -> ()
    %129 = vector.shape_cast %128 : vector<2x8x8xf32> to vector<16x8xf32>
    %130 = arith.truncf %129 : vector<16x8xf32> to vector<16x8xbf16>
    %c49 = arith.constant 49 : index
    %c0_73 = arith.constant 0 : index
    %c0_74 = arith.constant 0 : index
    %131 = vector.load %arg4[%c49, %c0_73, %c0_74] : memref<64x32x8xbf16, #tpu.memory_space<vmem>>, vector<1x32x8xbf16>
    %132 = vector.shape_cast %131 : vector<1x32x8xbf16> to vector<32x8xbf16>
    %cst_75 = arith.constant dense<0.000000e+00> : vector<16x32xf32>
    %133 = tpu.matmul %130, %132, %cst_75 {dimension_numbers = #tpu.dot_dimension_numbers<[1], [1], [0], [0], [0, 0, 1, 0], [], []>} : vector<16x8xbf16>, vector<32x8xbf16>, vector<16x32xf32> -> vector<16x32xf32>
    %134 = arith.addf %84, %133 : vector<16x32xf32>
    %c2 = arith.constant 2 : index
    %c0_76 = arith.constant 0 : index
    %c0_77 = arith.constant 0 : index
    %135 = vector.load %arg4[%c2, %c0_76, %c0_77] : memref<64x32x8xbf16, #tpu.memory_space<vmem>>, vector<1x32x8xbf16>
    %136 = vector.shape_cast %135 : vector<1x32x8xbf16> to vector<32x8xbf16>
    %cst_78 = arith.constant dense<0.000000e+00> : vector<16x8xf32>
    %137 = tpu.matmul %31, %136, %cst_78 {dimension_numbers = #tpu.dot_dimension_numbers<[1], [0], [0], [1], [0, 0, 1, 1], [], []>} : vector<16x32xbf16>, vector<32x8xbf16>, vector<16x8xf32> -> vector<16x8xf32>
    %c2_79 = arith.constant 2 : index
    %c0_80 = arith.constant 0 : index
    %c0_81 = arith.constant 0 : index
    %138 = vector.load %arg7[%c2_79, %c0_80, %c0_81] : memref<48x1x8xf32, #tpu.memory_space<vmem>>, vector<1x1x8xf32>
    %139 = vector.shape_cast %138 : vector<1x1x8xf32> to vector<1x8xf32>
    %140 = vector.broadcast %139 : vector<1x8xf32> to vector<16x8xf32>
    %141 = arith.addf %137, %140 : vector<16x8xf32>
    %c6 = arith.constant 6 : index
    %c0_82 = arith.constant 0 : index
    %c0_83 = arith.constant 0 : index
    %142 = vector.load %arg4[%c6, %c0_82, %c0_83] : memref<64x32x8xbf16, #tpu.memory_space<vmem>>, vector<1x32x8xbf16>
    %143 = vector.shape_cast %142 : vector<1x32x8xbf16> to vector<32x8xbf16>
    %cst_84 = arith.constant dense<0.000000e+00> : vector<16x8xf32>
    %144 = tpu.matmul %31, %143, %cst_84 {dimension_numbers = #tpu.dot_dimension_numbers<[1], [0], [0], [1], [0, 0, 1, 1], [], []>} : vector<16x32xbf16>, vector<32x8xbf16>, vector<16x8xf32> -> vector<16x8xf32>
    %c6_85 = arith.constant 6 : index
    %c0_86 = arith.constant 0 : index
    %c0_87 = arith.constant 0 : index
    %145 = vector.load %arg7[%c6_85, %c0_86, %c0_87] : memref<48x1x8xf32, #tpu.memory_space<vmem>>, vector<1x1x8xf32>
    %146 = vector.shape_cast %145 : vector<1x1x8xf32> to vector<1x8xf32>
    %147 = vector.broadcast %146 : vector<1x8xf32> to vector<16x8xf32>
    %148 = arith.addf %144, %147 : vector<16x8xf32>
    %c10 = arith.constant 10 : index
    %c0_88 = arith.constant 0 : index
    %c0_89 = arith.constant 0 : index
    %149 = vector.load %arg4[%c10, %c0_88, %c0_89] : memref<64x32x8xbf16, #tpu.memory_space<vmem>>, vector<1x32x8xbf16>
    %150 = vector.shape_cast %149 : vector<1x32x8xbf16> to vector<32x8xbf16>
    %cst_90 = arith.constant dense<0.000000e+00> : vector<16x8xf32>
    %151 = tpu.matmul %31, %150, %cst_90 {dimension_numbers = #tpu.dot_dimension_numbers<[1], [0], [0], [1], [0, 0, 1, 1], [], []>} : vector<16x32xbf16>, vector<32x8xbf16>, vector<16x8xf32> -> vector<16x8xf32>
    %c10_91 = arith.constant 10 : index
    %c0_92 = arith.constant 0 : index
    %c0_93 = arith.constant 0 : index
    %152 = vector.load %arg7[%c10_91, %c0_92, %c0_93] : memref<48x1x8xf32, #tpu.memory_space<vmem>>, vector<1x1x8xf32>
    %153 = vector.shape_cast %152 : vector<1x1x8xf32> to vector<1x8xf32>
    %154 = vector.broadcast %153 : vector<1x8xf32> to vector<16x8xf32>
    %155 = arith.addf %151, %154 : vector<16x8xf32>
    %156 = vector.shape_cast %141 : vector<16x8xf32> to vector<2x8x8xf32>
    %157 = arith.truncf %156 : vector<2x8x8xf32> to vector<2x8x8xbf16>
    %158 = vector.shape_cast %148 : vector<16x8xf32> to vector<2x8x8xf32>
    %159 = arith.truncf %158 : vector<2x8x8xf32> to vector<2x8x8xbf16>
    %160 = vector.shape_cast %155 : vector<16x8xf32> to vector<2x8x8xf32>
    %161 = arith.truncf %160 : vector<2x8x8xf32> to vector<2x8x8xbf16>
    "tpu.trace_start"() <{level = 10 : i32, message = "bqd,bkd->bqk"}> : () -> ()
    %cst_94 = arith.constant dense<0.000000e+00> : vector<2x8x8xf32>
    %162 = tpu.matmul %157, %159, %cst_94 {dimension_numbers = #tpu.dot_dimension_numbers<[2], [2], [1], [1], [0, 0, 0, 1, 1, 1], [0], [0]>} : vector<2x8x8xbf16>, vector<2x8x8xbf16>, vector<2x8x8xf32> -> vector<2x8x8xf32>
    "tpu.trace_stop"() : () -> ()
    %cst_95 = arith.constant 0.353553385 : f32
    %163 = vector.broadcast %cst_95 : f32 to vector<2x8x8xf32>
    %164 = arith.mulf %162, %163 : vector<2x8x8xf32>
    %cst_96 = arith.constant -1.000000e+09 : f32
    %165 = vector.broadcast %cst_96 : f32 to vector<2x8x8xf32>
    %166 = arith.select %33, %164, %165 : vector<2x8x8xi1>, vector<2x8x8xf32>
    %cst_97 = arith.constant dense<0xFF800000> : vector<2x8xf32>
    %167 = vector.multi_reduction <maximumf>, %166, %cst_97 [2] : vector<2x8x8xf32> to vector<2x8xf32>
    %168 = vector.shape_cast %167 : vector<2x8xf32> to vector<2x8x1xf32>
    %169 = vector.broadcast %168 : vector<2x8x1xf32> to vector<2x8x8xf32>
    %170 = arith.subf %166, %169 : vector<2x8x8xf32>
    %171 = math.exp %170 : vector<2x8x8xf32>
    %cst_98 = arith.constant dense<0.000000e+00> : vector<2x8xf32>
    %172 = vector.multi_reduction <add>, %171, %cst_98 [2] : vector<2x8x8xf32> to vector<2x8xf32>
    %173 = vector.shape_cast %172 : vector<2x8xf32> to vector<2x8x1xf32>
    %174 = tpu.reciprocal %173 {approx = true} : vector<2x8x1xf32> -> vector<2x8x1xf32>
    %175 = vector.broadcast %174 : vector<2x8x1xf32> to vector<2x8x8xf32>
    %176 = arith.mulf %171, %175 : vector<2x8x8xf32>
    %177 = arith.truncf %176 : vector<2x8x8xf32> to vector<2x8x8xbf16>
    "tpu.trace_start"() <{level = 10 : i32, message = "bqk,bkd->bqd"}> : () -> ()
    %cst_99 = arith.constant dense<0.000000e+00> : vector<2x8x8xf32>
    %178 = tpu.matmul %177, %161, %cst_99 {dimension_numbers = #tpu.dot_dimension_numbers<[2], [1], [1], [2], [0, 0, 0, 1, 1, 2], [0], [0]>} : vector<2x8x8xbf16>, vector<2x8x8xbf16>, vector<2x8x8xf32> -> vector<2x8x8xf32>
    "tpu.trace_stop"() : () -> ()
    %179 = vector.shape_cast %178 : vector<2x8x8xf32> to vector<16x8xf32>
    %180 = arith.truncf %179 : vector<16x8xf32> to vector<16x8xbf16>
    %c50 = arith.constant 50 : index
    %c0_100 = arith.constant 0 : index
    %c0_101 = arith.constant 0 : index
    %181 = vector.load %arg4[%c50, %c0_100, %c0_101] : memref<64x32x8xbf16, #tpu.memory_space<vmem>>, vector<1x32x8xbf16>
    %182 = vector.shape_cast %181 : vector<1x32x8xbf16> to vector<32x8xbf16>
    %cst_102 = arith.constant dense<0.000000e+00> : vector<16x32xf32>
    %183 = tpu.matmul %180, %182, %cst_102 {dimension_numbers = #tpu.dot_dimension_numbers<[1], [1], [0], [0], [0, 0, 1, 0], [], []>} : vector<16x8xbf16>, vector<32x8xbf16>, vector<16x32xf32> -> vector<16x32xf32>
    %184 = arith.addf %134, %183 : vector<16x32xf32>
    %c3 = arith.constant 3 : index
    %c0_103 = arith.constant 0 : index
    %c0_104 = arith.constant 0 : index
    %185 = vector.load %arg4[%c3, %c0_103, %c0_104] : memref<64x32x8xbf16, #tpu.memory_space<vmem>>, vector<1x32x8xbf16>
    %186 = vector.shape_cast %185 : vector<1x32x8xbf16> to vector<32x8xbf16>
    %cst_105 = arith.constant dense<0.000000e+00> : vector<16x8xf32>
    %187 = tpu.matmul %31, %186, %cst_105 {dimension_numbers = #tpu.dot_dimension_numbers<[1], [0], [0], [1], [0, 0, 1, 1], [], []>} : vector<16x32xbf16>, vector<32x8xbf16>, vector<16x8xf32> -> vector<16x8xf32>
    %c3_106 = arith.constant 3 : index
    %c0_107 = arith.constant 0 : index
    %c0_108 = arith.constant 0 : index
    %188 = vector.load %arg7[%c3_106, %c0_107, %c0_108] : memref<48x1x8xf32, #tpu.memory_space<vmem>>, vector<1x1x8xf32>
    %189 = vector.shape_cast %188 : vector<1x1x8xf32> to vector<1x8xf32>
    %190 = vector.broadcast %189 : vector<1x8xf32> to vector<16x8xf32>
    %191 = arith.addf %187, %190 : vector<16x8xf32>
    %c7 = arith.constant 7 : index
    %c0_109 = arith.constant 0 : index
    %c0_110 = arith.constant 0 : index
    %192 = vector.load %arg4[%c7, %c0_109, %c0_110] : memref<64x32x8xbf16, #tpu.memory_space<vmem>>, vector<1x32x8xbf16>
    %193 = vector.shape_cast %192 : vector<1x32x8xbf16> to vector<32x8xbf16>
    %cst_111 = arith.constant dense<0.000000e+00> : vector<16x8xf32>
    %194 = tpu.matmul %31, %193, %cst_111 {dimension_numbers = #tpu.dot_dimension_numbers<[1], [0], [0], [1], [0, 0, 1, 1], [], []>} : vector<16x32xbf16>, vector<32x8xbf16>, vector<16x8xf32> -> vector<16x8xf32>
    %c7_112 = arith.constant 7 : index
    %c0_113 = arith.constant 0 : index
    %c0_114 = arith.constant 0 : index
    %195 = vector.load %arg7[%c7_112, %c0_113, %c0_114] : memref<48x1x8xf32, #tpu.memory_space<vmem>>, vector<1x1x8xf32>
    %196 = vector.shape_cast %195 : vector<1x1x8xf32> to vector<1x8xf32>
    %197 = vector.broadcast %196 : vector<1x8xf32> to vector<16x8xf32>
    %198 = arith.addf %194, %197 : vector<16x8xf32>
    %c11 = arith.constant 11 : index
    %c0_115 = arith.constant 0 : index
    %c0_116 = arith.constant 0 : index
    %199 = vector.load %arg4[%c11, %c0_115, %c0_116] : memref<64x32x8xbf16, #tpu.memory_space<vmem>>, vector<1x32x8xbf16>
    %200 = vector.shape_cast %199 : vector<1x32x8xbf16> to vector<32x8xbf16>
    %cst_117 = arith.constant dense<0.000000e+00> : vector<16x8xf32>
    %201 = tpu.matmul %31, %200, %cst_117 {dimension_numbers = #tpu.dot_dimension_numbers<[1], [0], [0], [1], [0, 0, 1, 1], [], []>} : vector<16x32xbf16>, vector<32x8xbf16>, vector<16x8xf32> -> vector<16x8xf32>
    %c11_118 = arith.constant 11 : index
    %c0_119 = arith.constant 0 : index
    %c0_120 = arith.constant 0 : index
    %202 = vector.load %arg7[%c11_118, %c0_119, %c0_120] : memref<48x1x8xf32, #tpu.memory_space<vmem>>, vector<1x1x8xf32>
    %203 = vector.shape_cast %202 : vector<1x1x8xf32> to vector<1x8xf32>
    %204 = vector.broadcast %203 : vector<1x8xf32> to vector<16x8xf32>
    %205 = arith.addf %201, %204 : vector<16x8xf32>
    %206 = vector.shape_cast %191 : vector<16x8xf32> to vector<2x8x8xf32>
    %207 = arith.truncf %206 : vector<2x8x8xf32> to vector<2x8x8xbf16>
    %208 = vector.shape_cast %198 : vector<16x8xf32> to vector<2x8x8xf32>
    %209 = arith.truncf %208 : vector<2x8x8xf32> to vector<2x8x8xbf16>
    %210 = vector.shape_cast %205 : vector<16x8xf32> to vector<2x8x8xf32>
    %211 = arith.truncf %210 : vector<2x8x8xf32> to vector<2x8x8xbf16>
    "tpu.trace_start"() <{level = 10 : i32, message = "bqd,bkd->bqk"}> : () -> ()
    %cst_121 = arith.constant dense<0.000000e+00> : vector<2x8x8xf32>
    %212 = tpu.matmul %207, %209, %cst_121 {dimension_numbers = #tpu.dot_dimension_numbers<[2], [2], [1], [1], [0, 0, 0, 1, 1, 1], [0], [0]>} : vector<2x8x8xbf16>, vector<2x8x8xbf16>, vector<2x8x8xf32> -> vector<2x8x8xf32>
    "tpu.trace_stop"() : () -> ()
    %cst_122 = arith.constant 0.353553385 : f32
    %213 = vector.broadcast %cst_122 : f32 to vector<2x8x8xf32>
    %214 = arith.mulf %212, %213 : vector<2x8x8xf32>
    %cst_123 = arith.constant -1.000000e+09 : f32
    %215 = vector.broadcast %cst_123 : f32 to vector<2x8x8xf32>
    %216 = arith.select %33, %214, %215 : vector<2x8x8xi1>, vector<2x8x8xf32>
    %cst_124 = arith.constant dense<0xFF800000> : vector<2x8xf32>
    %217 = vector.multi_reduction <maximumf>, %216, %cst_124 [2] : vector<2x8x8xf32> to vector<2x8xf32>
    %218 = vector.shape_cast %217 : vector<2x8xf32> to vector<2x8x1xf32>
    %219 = vector.broadcast %218 : vector<2x8x1xf32> to vector<2x8x8xf32>
    %220 = arith.subf %216, %219 : vector<2x8x8xf32>
    %221 = math.exp %220 : vector<2x8x8xf32>
    %cst_125 = arith.constant dense<0.000000e+00> : vector<2x8xf32>
    %222 = vector.multi_reduction <add>, %221, %cst_125 [2] : vector<2x8x8xf32> to vector<2x8xf32>
    %223 = vector.shape_cast %222 : vector<2x8xf32> to vector<2x8x1xf32>
    %224 = tpu.reciprocal %223 {approx = true} : vector<2x8x1xf32> -> vector<2x8x1xf32>
    %225 = vector.broadcast %224 : vector<2x8x1xf32> to vector<2x8x8xf32>
    %226 = arith.mulf %221, %225 : vector<2x8x8xf32>
    %227 = arith.truncf %226 : vector<2x8x8xf32> to vector<2x8x8xbf16>
    "tpu.trace_start"() <{level = 10 : i32, message = "bqk,bkd->bqd"}> : () -> ()
    %cst_126 = arith.constant dense<0.000000e+00> : vector<2x8x8xf32>
    %228 = tpu.matmul %227, %211, %cst_126 {dimension_numbers = #tpu.dot_dimension_numbers<[2], [1], [1], [2], [0, 0, 0, 1, 1, 2], [0], [0]>} : vector<2x8x8xbf16>, vector<2x8x8xbf16>, vector<2x8x8xf32> -> vector<2x8x8xf32>
    "tpu.trace_stop"() : () -> ()
    %229 = vector.shape_cast %228 : vector<2x8x8xf32> to vector<16x8xf32>
    %230 = arith.truncf %229 : vector<16x8xf32> to vector<16x8xbf16>
    %c51 = arith.constant 51 : index
    %c0_127 = arith.constant 0 : index
    %c0_128 = arith.constant 0 : index
    %231 = vector.load %arg4[%c51, %c0_127, %c0_128] : memref<64x32x8xbf16, #tpu.memory_space<vmem>>, vector<1x32x8xbf16>
    %232 = vector.shape_cast %231 : vector<1x32x8xbf16> to vector<32x8xbf16>
    %cst_129 = arith.constant dense<0.000000e+00> : vector<16x32xf32>
    %233 = tpu.matmul %230, %232, %cst_129 {dimension_numbers = #tpu.dot_dimension_numbers<[1], [1], [0], [0], [0, 0, 1, 0], [], []>} : vector<16x8xbf16>, vector<32x8xbf16>, vector<16x32xf32> -> vector<16x32xf32>
    %234 = arith.addf %184, %233 : vector<16x32xf32>
    %c6_130 = arith.constant 6 : index
    %c0_131 = arith.constant 0 : index
    %c0_132 = arith.constant 0 : index
    %235 = vector.load %arg9[%c6_130, %c0_131, %c0_132] : memref<20x1x32xf32, #tpu.memory_space<vmem>>, vector<1x1x32xf32>
    %236 = vector.shape_cast %235 : vector<1x1x32xf32> to vector<1x32xf32>
    %237 = vector.broadcast %236 : vector<1x32xf32> to vector<16x32xf32>
    %238 = arith.addf %234, %237 : vector<16x32xf32>
    %239 = arith.addf %0, %238 : vector<16x32xf32>
    %cst_133 = arith.constant dense<0.000000e+00> : vector<16xf32>
    %240 = vector.multi_reduction <add>, %239, %cst_133 [1] : vector<16x32xf32> to vector<16xf32>
    %241 = vector.shape_cast %240 : vector<16xf32> to vector<16x1xf32>
    %cst_134 = arith.constant 3.200000e+01 : f32
    %242 = vector.broadcast %cst_134 : f32 to vector<16x1xf32>
    %243 = arith.divf %241, %242 : vector<16x1xf32>
    %244 = arith.mulf %239, %239 : vector<16x32xf32>
    %cst_135 = arith.constant dense<0.000000e+00> : vector<16xf32>
    %245 = vector.multi_reduction <add>, %244, %cst_135 [1] : vector<16x32xf32> to vector<16xf32>
    %246 = vector.shape_cast %245 : vector<16xf32> to vector<16x1xf32>
    %cst_136 = arith.constant 3.200000e+01 : f32
    %247 = vector.broadcast %cst_136 : f32 to vector<16x1xf32>
    %248 = arith.divf %246, %247 : vector<16x1xf32>
    %249 = arith.mulf %243, %243 : vector<16x1xf32>
    %250 = arith.subf %248, %249 : vector<16x1xf32>
    %251 = vector.broadcast %243 : vector<16x1xf32> to vector<16x32xf32>
    %252 = arith.subf %239, %251 : vector<16x32xf32>
    %cst_137 = arith.constant 9.99999997E-7 : f32
    %253 = vector.broadcast %cst_137 : f32 to vector<16x1xf32>
    %254 = arith.addf %250, %253 : vector<16x1xf32>
    %255 = math.rsqrt %254 : vector<16x1xf32>
    %256 = vector.broadcast %255 : vector<16x1xf32> to vector<16x32xf32>
    %257 = arith.mulf %252, %256 : vector<16x32xf32>
    %c2_138 = arith.constant 2 : index
    %c0_139 = arith.constant 0 : index
    %c0_140 = arith.constant 0 : index
    %258 = vector.load %arg9[%c2_138, %c0_139, %c0_140] : memref<20x1x32xf32, #tpu.memory_space<vmem>>, vector<1x1x32xf32>
    %259 = vector.shape_cast %258 : vector<1x1x32xf32> to vector<1x32xf32>
    %260 = vector.broadcast %259 : vector<1x32xf32> to vector<16x32xf32>
    %261 = arith.mulf %257, %260 : vector<16x32xf32>
    %c3_141 = arith.constant 3 : index
    %c0_142 = arith.constant 0 : index
    %c0_143 = arith.constant 0 : index
    %262 = vector.load %arg9[%c3_141, %c0_142, %c0_143] : memref<20x1x32xf32, #tpu.memory_space<vmem>>, vector<1x1x32xf32>
    %263 = vector.shape_cast %262 : vector<1x1x32xf32> to vector<1x32xf32>
    %264 = vector.broadcast %263 : vector<1x32xf32> to vector<16x32xf32>
    %265 = arith.addf %261, %264 : vector<16x32xf32>
    %266 = arith.truncf %265 : vector<16x32xf32> to vector<16x32xbf16>
    %267 = vector.shape_cast %4 : vector<2x1x16xf32> to vector<2x1x16xf32>
    %268 = vector.broadcast %267 : vector<2x1x16xf32> to vector<2x8x16xf32>
    %cst_144 = arith.constant 0.000000e+00 : f32
    %269 = vector.broadcast %cst_144 : f32 to vector<2x8x16xf32>
    %270 = arith.cmpf ogt, %268, %269 : vector<2x8x16xf32>
    %cst_145 = arith.constant 0.000000e+00 : f32
    %271 = vector.broadcast %cst_145 : f32 to vector<16x32xf32>
    %c12 = arith.constant 12 : index
    %c0_146 = arith.constant 0 : index
    %c0_147 = arith.constant 0 : index
    %272 = vector.load %arg4[%c12, %c0_146, %c0_147] : memref<64x32x8xbf16, #tpu.memory_space<vmem>>, vector<1x32x8xbf16>
    %273 = vector.shape_cast %272 : vector<1x32x8xbf16> to vector<32x8xbf16>
    %cst_148 = arith.constant dense<0.000000e+00> : vector<16x8xf32>
    %274 = tpu.matmul %266, %273, %cst_148 {dimension_numbers = #tpu.dot_dimension_numbers<[1], [0], [0], [1], [0, 0, 1, 1], [], []>} : vector<16x32xbf16>, vector<32x8xbf16>, vector<16x8xf32> -> vector<16x8xf32>
    %c12_149 = arith.constant 12 : index
    %c0_150 = arith.constant 0 : index
    %c0_151 = arith.constant 0 : index
    %275 = vector.load %arg7[%c12_149, %c0_150, %c0_151] : memref<48x1x8xf32, #tpu.memory_space<vmem>>, vector<1x1x8xf32>
    %276 = vector.shape_cast %275 : vector<1x1x8xf32> to vector<1x8xf32>
    %277 = vector.broadcast %276 : vector<1x8xf32> to vector<16x8xf32>
    %278 = arith.addf %274, %277 : vector<16x8xf32>
    %c16 = arith.constant 16 : index
    %c0_152 = arith.constant 0 : index
    %c0_153 = arith.constant 0 : index
    %279 = vector.load %arg4[%c16, %c0_152, %c0_153] : memref<64x32x8xbf16, #tpu.memory_space<vmem>>, vector<1x32x8xbf16>
    %280 = vector.shape_cast %279 : vector<1x32x8xbf16> to vector<32x8xbf16>
    %cst_154 = arith.constant dense<0.000000e+00> : vector<32x8xf32>
    %281 = tpu.matmul %2, %280, %cst_154 {dimension_numbers = #tpu.dot_dimension_numbers<[1], [0], [0], [1], [0, 0, 1, 1], [], []>} : vector<32x32xbf16>, vector<32x8xbf16>, vector<32x8xf32> -> vector<32x8xf32>
    %c16_155 = arith.constant 16 : index
    %c0_156 = arith.constant 0 : index
    %c0_157 = arith.constant 0 : index
    %282 = vector.load %arg7[%c16_155, %c0_156, %c0_157] : memref<48x1x8xf32, #tpu.memory_space<vmem>>, vector<1x1x8xf32>
    %283 = vector.shape_cast %282 : vector<1x1x8xf32> to vector<1x8xf32>
    %284 = vector.broadcast %283 : vector<1x8xf32> to vector<32x8xf32>
    %285 = arith.addf %281, %284 : vector<32x8xf32>
    %c20 = arith.constant 20 : index
    %c0_158 = arith.constant 0 : index
    %c0_159 = arith.constant 0 : index
    %286 = vector.load %arg4[%c20, %c0_158, %c0_159] : memref<64x32x8xbf16, #tpu.memory_space<vmem>>, vector<1x32x8xbf16>
    %287 = vector.shape_cast %286 : vector<1x32x8xbf16> to vector<32x8xbf16>
    %cst_160 = arith.constant dense<0.000000e+00> : vector<32x8xf32>
    %288 = tpu.matmul %2, %287, %cst_160 {dimension_numbers = #tpu.dot_dimension_numbers<[1], [0], [0], [1], [0, 0, 1, 1], [], []>} : vector<32x32xbf16>, vector<32x8xbf16>, vector<32x8xf32> -> vector<32x8xf32>
    %c20_161 = arith.constant 20 : index
    %c0_162 = arith.constant 0 : index
    %c0_163 = arith.constant 0 : index
    %289 = vector.load %arg7[%c20_161, %c0_162, %c0_163] : memref<48x1x8xf32, #tpu.memory_space<vmem>>, vector<1x1x8xf32>
    %290 = vector.shape_cast %289 : vector<1x1x8xf32> to vector<1x8xf32>
    %291 = vector.broadcast %290 : vector<1x8xf32> to vector<32x8xf32>
    %292 = arith.addf %288, %291 : vector<32x8xf32>
    %293 = vector.shape_cast %278 : vector<16x8xf32> to vector<2x8x8xf32>
    %294 = arith.truncf %293 : vector<2x8x8xf32> to vector<2x8x8xbf16>
    %295 = vector.shape_cast %285 : vector<32x8xf32> to vector<2x16x8xf32>
    %296 = arith.truncf %295 : vector<2x16x8xf32> to vector<2x16x8xbf16>
    %297 = vector.shape_cast %292 : vector<32x8xf32> to vector<2x16x8xf32>
    %298 = arith.truncf %297 : vector<2x16x8xf32> to vector<2x16x8xbf16>
    "tpu.trace_start"() <{level = 10 : i32, message = "bqd,bkd->bqk"}> : () -> ()
    %cst_164 = arith.constant dense<0.000000e+00> : vector<2x8x16xf32>
    %299 = tpu.matmul %294, %296, %cst_164 {dimension_numbers = #tpu.dot_dimension_numbers<[2], [2], [1], [1], [0, 0, 0, 1, 1, 1], [0], [0]>} : vector<2x8x8xbf16>, vector<2x16x8xbf16>, vector<2x8x16xf32> -> vector<2x8x16xf32>
    "tpu.trace_stop"() : () -> ()
    %cst_165 = arith.constant 0.353553385 : f32
    %300 = vector.broadcast %cst_165 : f32 to vector<2x8x16xf32>
    %301 = arith.mulf %299, %300 : vector<2x8x16xf32>
    %cst_166 = arith.constant -1.000000e+09 : f32
    %302 = vector.broadcast %cst_166 : f32 to vector<2x8x16xf32>
    %303 = arith.select %270, %301, %302 : vector<2x8x16xi1>, vector<2x8x16xf32>
    %cst_167 = arith.constant dense<0xFF800000> : vector<2x8xf32>
    %304 = vector.multi_reduction <maximumf>, %303, %cst_167 [2] : vector<2x8x16xf32> to vector<2x8xf32>
    %305 = vector.shape_cast %304 : vector<2x8xf32> to vector<2x8x1xf32>
    %306 = vector.broadcast %305 : vector<2x8x1xf32> to vector<2x8x16xf32>
    %307 = arith.subf %303, %306 : vector<2x8x16xf32>
    %308 = math.exp %307 : vector<2x8x16xf32>
    %cst_168 = arith.constant dense<0.000000e+00> : vector<2x8xf32>
    %309 = vector.multi_reduction <add>, %308, %cst_168 [2] : vector<2x8x16xf32> to vector<2x8xf32>
    %310 = vector.shape_cast %309 : vector<2x8xf32> to vector<2x8x1xf32>
    %311 = tpu.reciprocal %310 {approx = true} : vector<2x8x1xf32> -> vector<2x8x1xf32>
    %312 = vector.broadcast %311 : vector<2x8x1xf32> to vector<2x8x16xf32>
    %313 = arith.mulf %308, %312 : vector<2x8x16xf32>
    %314 = arith.truncf %313 : vector<2x8x16xf32> to vector<2x8x16xbf16>
    "tpu.trace_start"() <{level = 10 : i32, message = "bqk,bkd->bqd"}> : () -> ()
    %cst_169 = arith.constant dense<0.000000e+00> : vector<2x8x8xf32>
    %315 = tpu.matmul %314, %298, %cst_169 {dimension_numbers = #tpu.dot_dimension_numbers<[2], [1], [1], [2], [0, 0, 0, 1, 1, 2], [0], [0]>} : vector<2x8x16xbf16>, vector<2x16x8xbf16>, vector<2x8x8xf32> -> vector<2x8x8xf32>
    "tpu.trace_stop"() : () -> ()
    %316 = vector.shape_cast %315 : vector<2x8x8xf32> to vector<16x8xf32>
    %317 = arith.truncf %316 : vector<16x8xf32> to vector<16x8xbf16>
    %c52 = arith.constant 52 : index
    %c0_170 = arith.constant 0 : index
    %c0_171 = arith.constant 0 : index
    %318 = vector.load %arg4[%c52, %c0_170, %c0_171] : memref<64x32x8xbf16, #tpu.memory_space<vmem>>, vector<1x32x8xbf16>
    %319 = vector.shape_cast %318 : vector<1x32x8xbf16> to vector<32x8xbf16>
    %cst_172 = arith.constant dense<0.000000e+00> : vector<16x32xf32>
    %320 = tpu.matmul %317, %319, %cst_172 {dimension_numbers = #tpu.dot_dimension_numbers<[1], [1], [0], [0], [0, 0, 1, 0], [], []>} : vector<16x8xbf16>, vector<32x8xbf16>, vector<16x32xf32> -> vector<16x32xf32>
    %321 = arith.addf %271, %320 : vector<16x32xf32>
    %c13 = arith.constant 13 : index
    %c0_173 = arith.constant 0 : index
    %c0_174 = arith.constant 0 : index
    %322 = vector.load %arg4[%c13, %c0_173, %c0_174] : memref<64x32x8xbf16, #tpu.memory_space<vmem>>, vector<1x32x8xbf16>
    %323 = vector.shape_cast %322 : vector<1x32x8xbf16> to vector<32x8xbf16>
    %cst_175 = arith.constant dense<0.000000e+00> : vector<16x8xf32>
    %324 = tpu.matmul %266, %323, %cst_175 {dimension_numbers = #tpu.dot_dimension_numbers<[1], [0], [0], [1], [0, 0, 1, 1], [], []>} : vector<16x32xbf16>, vector<32x8xbf16>, vector<16x8xf32> -> vector<16x8xf32>
    %c13_176 = arith.constant 13 : index
    %c0_177 = arith.constant 0 : index
    %c0_178 = arith.constant 0 : index
    %325 = vector.load %arg7[%c13_176, %c0_177, %c0_178] : memref<48x1x8xf32, #tpu.memory_space<vmem>>, vector<1x1x8xf32>
    %326 = vector.shape_cast %325 : vector<1x1x8xf32> to vector<1x8xf32>
    %327 = vector.broadcast %326 : vector<1x8xf32> to vector<16x8xf32>
    %328 = arith.addf %324, %327 : vector<16x8xf32>
    %c17 = arith.constant 17 : index
    %c0_179 = arith.constant 0 : index
    %c0_180 = arith.constant 0 : index
    %329 = vector.load %arg4[%c17, %c0_179, %c0_180] : memref<64x32x8xbf16, #tpu.memory_space<vmem>>, vector<1x32x8xbf16>
    %330 = vector.shape_cast %329 : vector<1x32x8xbf16> to vector<32x8xbf16>
    %cst_181 = arith.constant dense<0.000000e+00> : vector<32x8xf32>
    %331 = tpu.matmul %2, %330, %cst_181 {dimension_numbers = #tpu.dot_dimension_numbers<[1], [0], [0], [1], [0, 0, 1, 1], [], []>} : vector<32x32xbf16>, vector<32x8xbf16>, vector<32x8xf32> -> vector<32x8xf32>
    %c17_182 = arith.constant 17 : index
    %c0_183 = arith.constant 0 : index
    %c0_184 = arith.constant 0 : index
    %332 = vector.load %arg7[%c17_182, %c0_183, %c0_184] : memref<48x1x8xf32, #tpu.memory_space<vmem>>, vector<1x1x8xf32>
    %333 = vector.shape_cast %332 : vector<1x1x8xf32> to vector<1x8xf32>
    %334 = vector.broadcast %333 : vector<1x8xf32> to vector<32x8xf32>
    %335 = arith.addf %331, %334 : vector<32x8xf32>
    %c21 = arith.constant 21 : index
    %c0_185 = arith.constant 0 : index
    %c0_186 = arith.constant 0 : index
    %336 = vector.load %arg4[%c21, %c0_185, %c0_186] : memref<64x32x8xbf16, #tpu.memory_space<vmem>>, vector<1x32x8xbf16>
    %337 = vector.shape_cast %336 : vector<1x32x8xbf16> to vector<32x8xbf16>
    %cst_187 = arith.constant dense<0.000000e+00> : vector<32x8xf32>
    %338 = tpu.matmul %2, %337, %cst_187 {dimension_numbers = #tpu.dot_dimension_numbers<[1], [0], [0], [1], [0, 0, 1, 1], [], []>} : vector<32x32xbf16>, vector<32x8xbf16>, vector<32x8xf32> -> vector<32x8xf32>
    %c21_188 = arith.constant 21 : index
    %c0_189 = arith.constant 0 : index
    %c0_190 = arith.constant 0 : index
    %339 = vector.load %arg7[%c21_188, %c0_189, %c0_190] : memref<48x1x8xf32, #tpu.memory_space<vmem>>, vector<1x1x8xf32>
    %340 = vector.shape_cast %339 : vector<1x1x8xf32> to vector<1x8xf32>
    %341 = vector.broadcast %340 : vector<1x8xf32> to vector<32x8xf32>
    %342 = arith.addf %338, %341 : vector<32x8xf32>
    %343 = vector.shape_cast %328 : vector<16x8xf32> to vector<2x8x8xf32>
    %344 = arith.truncf %343 : vector<2x8x8xf32> to vector<2x8x8xbf16>
    %345 = vector.shape_cast %335 : vector<32x8xf32> to vector<2x16x8xf32>
    %346 = arith.truncf %345 : vector<2x16x8xf32> to vector<2x16x8xbf16>
    %347 = vector.shape_cast %342 : vector<32x8xf32> to vector<2x16x8xf32>
    %348 = arith.truncf %347 : vector<2x16x8xf32> to vector<2x16x8xbf16>
    "tpu.trace_start"() <{level = 10 : i32, message = "bqd,bkd->bqk"}> : () -> ()
    %cst_191 = arith.constant dense<0.000000e+00> : vector<2x8x16xf32>
    %349 = tpu.matmul %344, %346, %cst_191 {dimension_numbers = #tpu.dot_dimension_numbers<[2], [2], [1], [1], [0, 0, 0, 1, 1, 1], [0], [0]>} : vector<2x8x8xbf16>, vector<2x16x8xbf16>, vector<2x8x16xf32> -> vector<2x8x16xf32>
    "tpu.trace_stop"() : () -> ()
    %cst_192 = arith.constant 0.353553385 : f32
    %350 = vector.broadcast %cst_192 : f32 to vector<2x8x16xf32>
    %351 = arith.mulf %349, %350 : vector<2x8x16xf32>
    %cst_193 = arith.constant -1.000000e+09 : f32
    %352 = vector.broadcast %cst_193 : f32 to vector<2x8x16xf32>
    %353 = arith.select %270, %351, %352 : vector<2x8x16xi1>, vector<2x8x16xf32>
    %cst_194 = arith.constant dense<0xFF800000> : vector<2x8xf32>
    %354 = vector.multi_reduction <maximumf>, %353, %cst_194 [2] : vector<2x8x16xf32> to vector<2x8xf32>
    %355 = vector.shape_cast %354 : vector<2x8xf32> to vector<2x8x1xf32>
    %356 = vector.broadcast %355 : vector<2x8x1xf32> to vector<2x8x16xf32>
    %357 = arith.subf %353, %356 : vector<2x8x16xf32>
    %358 = math.exp %357 : vector<2x8x16xf32>
    %cst_195 = arith.constant dense<0.000000e+00> : vector<2x8xf32>
    %359 = vector.multi_reduction <add>, %358, %cst_195 [2] : vector<2x8x16xf32> to vector<2x8xf32>
    %360 = vector.shape_cast %359 : vector<2x8xf32> to vector<2x8x1xf32>
    %361 = tpu.reciprocal %360 {approx = true} : vector<2x8x1xf32> -> vector<2x8x1xf32>
    %362 = vector.broadcast %361 : vector<2x8x1xf32> to vector<2x8x16xf32>
    %363 = arith.mulf %358, %362 : vector<2x8x16xf32>
    %364 = arith.truncf %363 : vector<2x8x16xf32> to vector<2x8x16xbf16>
    "tpu.trace_start"() <{level = 10 : i32, message = "bqk,bkd->bqd"}> : () -> ()
    %cst_196 = arith.constant dense<0.000000e+00> : vector<2x8x8xf32>
    %365 = tpu.matmul %364, %348, %cst_196 {dimension_numbers = #tpu.dot_dimension_numbers<[2], [1], [1], [2], [0, 0, 0, 1, 1, 2], [0], [0]>} : vector<2x8x16xbf16>, vector<2x16x8xbf16>, vector<2x8x8xf32> -> vector<2x8x8xf32>
    "tpu.trace_stop"() : () -> ()
    %366 = vector.shape_cast %365 : vector<2x8x8xf32> to vector<16x8xf32>
    %367 = arith.truncf %366 : vector<16x8xf32> to vector<16x8xbf16>
    %c53 = arith.constant 53 : index
    %c0_197 = arith.constant 0 : index
    %c0_198 = arith.constant 0 : index
    %368 = vector.load %arg4[%c53, %c0_197, %c0_198] : memref<64x32x8xbf16, #tpu.memory_space<vmem>>, vector<1x32x8xbf16>
    %369 = vector.shape_cast %368 : vector<1x32x8xbf16> to vector<32x8xbf16>
    %cst_199 = arith.constant dense<0.000000e+00> : vector<16x32xf32>
    %370 = tpu.matmul %367, %369, %cst_199 {dimension_numbers = #tpu.dot_dimension_numbers<[1], [1], [0], [0], [0, 0, 1, 0], [], []>} : vector<16x8xbf16>, vector<32x8xbf16>, vector<16x32xf32> -> vector<16x32xf32>
    %371 = arith.addf %321, %370 : vector<16x32xf32>
    %c14 = arith.constant 14 : index
    %c0_200 = arith.constant 0 : index
    %c0_201 = arith.constant 0 : index
    %372 = vector.load %arg4[%c14, %c0_200, %c0_201] : memref<64x32x8xbf16, #tpu.memory_space<vmem>>, vector<1x32x8xbf16>
    %373 = vector.shape_cast %372 : vector<1x32x8xbf16> to vector<32x8xbf16>
    %cst_202 = arith.constant dense<0.000000e+00> : vector<16x8xf32>
    %374 = tpu.matmul %266, %373, %cst_202 {dimension_numbers = #tpu.dot_dimension_numbers<[1], [0], [0], [1], [0, 0, 1, 1], [], []>} : vector<16x32xbf16>, vector<32x8xbf16>, vector<16x8xf32> -> vector<16x8xf32>
    %c14_203 = arith.constant 14 : index
    %c0_204 = arith.constant 0 : index
    %c0_205 = arith.constant 0 : index
    %375 = vector.load %arg7[%c14_203, %c0_204, %c0_205] : memref<48x1x8xf32, #tpu.memory_space<vmem>>, vector<1x1x8xf32>
    %376 = vector.shape_cast %375 : vector<1x1x8xf32> to vector<1x8xf32>
    %377 = vector.broadcast %376 : vector<1x8xf32> to vector<16x8xf32>
    %378 = arith.addf %374, %377 : vector<16x8xf32>
    %c18 = arith.constant 18 : index
    %c0_206 = arith.constant 0 : index
    %c0_207 = arith.constant 0 : index
    %379 = vector.load %arg4[%c18, %c0_206, %c0_207] : memref<64x32x8xbf16, #tpu.memory_space<vmem>>, vector<1x32x8xbf16>
    %380 = vector.shape_cast %379 : vector<1x32x8xbf16> to vector<32x8xbf16>
    %cst_208 = arith.constant dense<0.000000e+00> : vector<32x8xf32>
    %381 = tpu.matmul %2, %380, %cst_208 {dimension_numbers = #tpu.dot_dimension_numbers<[1], [0], [0], [1], [0, 0, 1, 1], [], []>} : vector<32x32xbf16>, vector<32x8xbf16>, vector<32x8xf32> -> vector<32x8xf32>
    %c18_209 = arith.constant 18 : index
    %c0_210 = arith.constant 0 : index
    %c0_211 = arith.constant 0 : index
    %382 = vector.load %arg7[%c18_209, %c0_210, %c0_211] : memref<48x1x8xf32, #tpu.memory_space<vmem>>, vector<1x1x8xf32>
    %383 = vector.shape_cast %382 : vector<1x1x8xf32> to vector<1x8xf32>
    %384 = vector.broadcast %383 : vector<1x8xf32> to vector<32x8xf32>
    %385 = arith.addf %381, %384 : vector<32x8xf32>
    %c22 = arith.constant 22 : index
    %c0_212 = arith.constant 0 : index
    %c0_213 = arith.constant 0 : index
    %386 = vector.load %arg4[%c22, %c0_212, %c0_213] : memref<64x32x8xbf16, #tpu.memory_space<vmem>>, vector<1x32x8xbf16>
    %387 = vector.shape_cast %386 : vector<1x32x8xbf16> to vector<32x8xbf16>
    %cst_214 = arith.constant dense<0.000000e+00> : vector<32x8xf32>
    %388 = tpu.matmul %2, %387, %cst_214 {dimension_numbers = #tpu.dot_dimension_numbers<[1], [0], [0], [1], [0, 0, 1, 1], [], []>} : vector<32x32xbf16>, vector<32x8xbf16>, vector<32x8xf32> -> vector<32x8xf32>
    %c22_215 = arith.constant 22 : index
    %c0_216 = arith.constant 0 : index
    %c0_217 = arith.constant 0 : index
    %389 = vector.load %arg7[%c22_215, %c0_216, %c0_217] : memref<48x1x8xf32, #tpu.memory_space<vmem>>, vector<1x1x8xf32>
    %390 = vector.shape_cast %389 : vector<1x1x8xf32> to vector<1x8xf32>
    %391 = vector.broadcast %390 : vector<1x8xf32> to vector<32x8xf32>
    %392 = arith.addf %388, %391 : vector<32x8xf32>
    %393 = vector.shape_cast %378 : vector<16x8xf32> to vector<2x8x8xf32>
    %394 = arith.truncf %393 : vector<2x8x8xf32> to vector<2x8x8xbf16>
    %395 = vector.shape_cast %385 : vector<32x8xf32> to vector<2x16x8xf32>
    %396 = arith.truncf %395 : vector<2x16x8xf32> to vector<2x16x8xbf16>
    %397 = vector.shape_cast %392 : vector<32x8xf32> to vector<2x16x8xf32>
    %398 = arith.truncf %397 : vector<2x16x8xf32> to vector<2x16x8xbf16>
    "tpu.trace_start"() <{level = 10 : i32, message = "bqd,bkd->bqk"}> : () -> ()
    %cst_218 = arith.constant dense<0.000000e+00> : vector<2x8x16xf32>
    %399 = tpu.matmul %394, %396, %cst_218 {dimension_numbers = #tpu.dot_dimension_numbers<[2], [2], [1], [1], [0, 0, 0, 1, 1, 1], [0], [0]>} : vector<2x8x8xbf16>, vector<2x16x8xbf16>, vector<2x8x16xf32> -> vector<2x8x16xf32>
    "tpu.trace_stop"() : () -> ()
    %cst_219 = arith.constant 0.353553385 : f32
    %400 = vector.broadcast %cst_219 : f32 to vector<2x8x16xf32>
    %401 = arith.mulf %399, %400 : vector<2x8x16xf32>
    %cst_220 = arith.constant -1.000000e+09 : f32
    %402 = vector.broadcast %cst_220 : f32 to vector<2x8x16xf32>
    %403 = arith.select %270, %401, %402 : vector<2x8x16xi1>, vector<2x8x16xf32>
    %cst_221 = arith.constant dense<0xFF800000> : vector<2x8xf32>
    %404 = vector.multi_reduction <maximumf>, %403, %cst_221 [2] : vector<2x8x16xf32> to vector<2x8xf32>
    %405 = vector.shape_cast %404 : vector<2x8xf32> to vector<2x8x1xf32>
    %406 = vector.broadcast %405 : vector<2x8x1xf32> to vector<2x8x16xf32>
    %407 = arith.subf %403, %406 : vector<2x8x16xf32>
    %408 = math.exp %407 : vector<2x8x16xf32>
    %cst_222 = arith.constant dense<0.000000e+00> : vector<2x8xf32>
    %409 = vector.multi_reduction <add>, %408, %cst_222 [2] : vector<2x8x16xf32> to vector<2x8xf32>
    %410 = vector.shape_cast %409 : vector<2x8xf32> to vector<2x8x1xf32>
    %411 = tpu.reciprocal %410 {approx = true} : vector<2x8x1xf32> -> vector<2x8x1xf32>
    %412 = vector.broadcast %411 : vector<2x8x1xf32> to vector<2x8x16xf32>
    %413 = arith.mulf %408, %412 : vector<2x8x16xf32>
    %414 = arith.truncf %413 : vector<2x8x16xf32> to vector<2x8x16xbf16>
    "tpu.trace_start"() <{level = 10 : i32, message = "bqk,bkd->bqd"}> : () -> ()
    %cst_223 = arith.constant dense<0.000000e+00> : vector<2x8x8xf32>
    %415 = tpu.matmul %414, %398, %cst_223 {dimension_numbers = #tpu.dot_dimension_numbers<[2], [1], [1], [2], [0, 0, 0, 1, 1, 2], [0], [0]>} : vector<2x8x16xbf16>, vector<2x16x8xbf16>, vector<2x8x8xf32> -> vector<2x8x8xf32>
    "tpu.trace_stop"() : () -> ()
    %416 = vector.shape_cast %415 : vector<2x8x8xf32> to vector<16x8xf32>
    %417 = arith.truncf %416 : vector<16x8xf32> to vector<16x8xbf16>
    %c54 = arith.constant 54 : index
    %c0_224 = arith.constant 0 : index
    %c0_225 = arith.constant 0 : index
    %418 = vector.load %arg4[%c54, %c0_224, %c0_225] : memref<64x32x8xbf16, #tpu.memory_space<vmem>>, vector<1x32x8xbf16>
    %419 = vector.shape_cast %418 : vector<1x32x8xbf16> to vector<32x8xbf16>
    %cst_226 = arith.constant dense<0.000000e+00> : vector<16x32xf32>
    %420 = tpu.matmul %417, %419, %cst_226 {dimension_numbers = #tpu.dot_dimension_numbers<[1], [1], [0], [0], [0, 0, 1, 0], [], []>} : vector<16x8xbf16>, vector<32x8xbf16>, vector<16x32xf32> -> vector<16x32xf32>
    %421 = arith.addf %371, %420 : vector<16x32xf32>
    %c15 = arith.constant 15 : index
    %c0_227 = arith.constant 0 : index
    %c0_228 = arith.constant 0 : index
    %422 = vector.load %arg4[%c15, %c0_227, %c0_228] : memref<64x32x8xbf16, #tpu.memory_space<vmem>>, vector<1x32x8xbf16>
    %423 = vector.shape_cast %422 : vector<1x32x8xbf16> to vector<32x8xbf16>
    %cst_229 = arith.constant dense<0.000000e+00> : vector<16x8xf32>
    %424 = tpu.matmul %266, %423, %cst_229 {dimension_numbers = #tpu.dot_dimension_numbers<[1], [0], [0], [1], [0, 0, 1, 1], [], []>} : vector<16x32xbf16>, vector<32x8xbf16>, vector<16x8xf32> -> vector<16x8xf32>
    %c15_230 = arith.constant 15 : index
    %c0_231 = arith.constant 0 : index
    %c0_232 = arith.constant 0 : index
    %425 = vector.load %arg7[%c15_230, %c0_231, %c0_232] : memref<48x1x8xf32, #tpu.memory_space<vmem>>, vector<1x1x8xf32>
    %426 = vector.shape_cast %425 : vector<1x1x8xf32> to vector<1x8xf32>
    %427 = vector.broadcast %426 : vector<1x8xf32> to vector<16x8xf32>
    %428 = arith.addf %424, %427 : vector<16x8xf32>
    %c19 = arith.constant 19 : index
    %c0_233 = arith.constant 0 : index
    %c0_234 = arith.constant 0 : index
    %429 = vector.load %arg4[%c19, %c0_233, %c0_234] : memref<64x32x8xbf16, #tpu.memory_space<vmem>>, vector<1x32x8xbf16>
    %430 = vector.shape_cast %429 : vector<1x32x8xbf16> to vector<32x8xbf16>
    %cst_235 = arith.constant dense<0.000000e+00> : vector<32x8xf32>
    %431 = tpu.matmul %2, %430, %cst_235 {dimension_numbers = #tpu.dot_dimension_numbers<[1], [0], [0], [1], [0, 0, 1, 1], [], []>} : vector<32x32xbf16>, vector<32x8xbf16>, vector<32x8xf32> -> vector<32x8xf32>
    %c19_236 = arith.constant 19 : index
    %c0_237 = arith.constant 0 : index
    %c0_238 = arith.constant 0 : index
    %432 = vector.load %arg7[%c19_236, %c0_237, %c0_238] : memref<48x1x8xf32, #tpu.memory_space<vmem>>, vector<1x1x8xf32>
    %433 = vector.shape_cast %432 : vector<1x1x8xf32> to vector<1x8xf32>
    %434 = vector.broadcast %433 : vector<1x8xf32> to vector<32x8xf32>
    %435 = arith.addf %431, %434 : vector<32x8xf32>
    %c23 = arith.constant 23 : index
    %c0_239 = arith.constant 0 : index
    %c0_240 = arith.constant 0 : index
    %436 = vector.load %arg4[%c23, %c0_239, %c0_240] : memref<64x32x8xbf16, #tpu.memory_space<vmem>>, vector<1x32x8xbf16>
    %437 = vector.shape_cast %436 : vector<1x32x8xbf16> to vector<32x8xbf16>
    %cst_241 = arith.constant dense<0.000000e+00> : vector<32x8xf32>
    %438 = tpu.matmul %2, %437, %cst_241 {dimension_numbers = #tpu.dot_dimension_numbers<[1], [0], [0], [1], [0, 0, 1, 1], [], []>} : vector<32x32xbf16>, vector<32x8xbf16>, vector<32x8xf32> -> vector<32x8xf32>
    %c23_242 = arith.constant 23 : index
    %c0_243 = arith.constant 0 : index
    %c0_244 = arith.constant 0 : index
    %439 = vector.load %arg7[%c23_242, %c0_243, %c0_244] : memref<48x1x8xf32, #tpu.memory_space<vmem>>, vector<1x1x8xf32>
    %440 = vector.shape_cast %439 : vector<1x1x8xf32> to vector<1x8xf32>
    %441 = vector.broadcast %440 : vector<1x8xf32> to vector<32x8xf32>
    %442 = arith.addf %438, %441 : vector<32x8xf32>
    %443 = vector.shape_cast %428 : vector<16x8xf32> to vector<2x8x8xf32>
    %444 = arith.truncf %443 : vector<2x8x8xf32> to vector<2x8x8xbf16>
    %445 = vector.shape_cast %435 : vector<32x8xf32> to vector<2x16x8xf32>
    %446 = arith.truncf %445 : vector<2x16x8xf32> to vector<2x16x8xbf16>
    %447 = vector.shape_cast %442 : vector<32x8xf32> to vector<2x16x8xf32>
    %448 = arith.truncf %447 : vector<2x16x8xf32> to vector<2x16x8xbf16>
    "tpu.trace_start"() <{level = 10 : i32, message = "bqd,bkd->bqk"}> : () -> ()
    %cst_245 = arith.constant dense<0.000000e+00> : vector<2x8x16xf32>
    %449 = tpu.matmul %444, %446, %cst_245 {dimension_numbers = #tpu.dot_dimension_numbers<[2], [2], [1], [1], [0, 0, 0, 1, 1, 1], [0], [0]>} : vector<2x8x8xbf16>, vector<2x16x8xbf16>, vector<2x8x16xf32> -> vector<2x8x16xf32>
    "tpu.trace_stop"() : () -> ()
    %cst_246 = arith.constant 0.353553385 : f32
    %450 = vector.broadcast %cst_246 : f32 to vector<2x8x16xf32>
    %451 = arith.mulf %449, %450 : vector<2x8x16xf32>
    %cst_247 = arith.constant -1.000000e+09 : f32
    %452 = vector.broadcast %cst_247 : f32 to vector<2x8x16xf32>
    %453 = arith.select %270, %451, %452 : vector<2x8x16xi1>, vector<2x8x16xf32>
    %cst_248 = arith.constant dense<0xFF800000> : vector<2x8xf32>
    %454 = vector.multi_reduction <maximumf>, %453, %cst_248 [2] : vector<2x8x16xf32> to vector<2x8xf32>
    %455 = vector.shape_cast %454 : vector<2x8xf32> to vector<2x8x1xf32>
    %456 = vector.broadcast %455 : vector<2x8x1xf32> to vector<2x8x16xf32>
    %457 = arith.subf %453, %456 : vector<2x8x16xf32>
    %458 = math.exp %457 : vector<2x8x16xf32>
    %cst_249 = arith.constant dense<0.000000e+00> : vector<2x8xf32>
    %459 = vector.multi_reduction <add>, %458, %cst_249 [2] : vector<2x8x16xf32> to vector<2x8xf32>
    %460 = vector.shape_cast %459 : vector<2x8xf32> to vector<2x8x1xf32>
    %461 = tpu.reciprocal %460 {approx = true} : vector<2x8x1xf32> -> vector<2x8x1xf32>
    %462 = vector.broadcast %461 : vector<2x8x1xf32> to vector<2x8x16xf32>
    %463 = arith.mulf %458, %462 : vector<2x8x16xf32>
    %464 = arith.truncf %463 : vector<2x8x16xf32> to vector<2x8x16xbf16>
    "tpu.trace_start"() <{level = 10 : i32, message = "bqk,bkd->bqd"}> : () -> ()
    %cst_250 = arith.constant dense<0.000000e+00> : vector<2x8x8xf32>
    %465 = tpu.matmul %464, %448, %cst_250 {dimension_numbers = #tpu.dot_dimension_numbers<[2], [1], [1], [2], [0, 0, 0, 1, 1, 2], [0], [0]>} : vector<2x8x16xbf16>, vector<2x16x8xbf16>, vector<2x8x8xf32> -> vector<2x8x8xf32>
    "tpu.trace_stop"() : () -> ()
    %466 = vector.shape_cast %465 : vector<2x8x8xf32> to vector<16x8xf32>
    %467 = arith.truncf %466 : vector<16x8xf32> to vector<16x8xbf16>
    %c55 = arith.constant 55 : index
    %c0_251 = arith.constant 0 : index
    %c0_252 = arith.constant 0 : index
    %468 = vector.load %arg4[%c55, %c0_251, %c0_252] : memref<64x32x8xbf16, #tpu.memory_space<vmem>>, vector<1x32x8xbf16>
    %469 = vector.shape_cast %468 : vector<1x32x8xbf16> to vector<32x8xbf16>
    %cst_253 = arith.constant dense<0.000000e+00> : vector<16x32xf32>
    %470 = tpu.matmul %467, %469, %cst_253 {dimension_numbers = #tpu.dot_dimension_numbers<[1], [1], [0], [0], [0, 0, 1, 0], [], []>} : vector<16x8xbf16>, vector<32x8xbf16>, vector<16x32xf32> -> vector<16x32xf32>
    %471 = arith.addf %421, %470 : vector<16x32xf32>
    %c7_254 = arith.constant 7 : index
    %c0_255 = arith.constant 0 : index
    %c0_256 = arith.constant 0 : index
    %472 = vector.load %arg9[%c7_254, %c0_255, %c0_256] : memref<20x1x32xf32, #tpu.memory_space<vmem>>, vector<1x1x32xf32>
    %473 = vector.shape_cast %472 : vector<1x1x32xf32> to vector<1x32xf32>
    %474 = vector.broadcast %473 : vector<1x32xf32> to vector<16x32xf32>
    %475 = arith.addf %471, %474 : vector<16x32xf32>
    %476 = arith.addf %239, %475 : vector<16x32xf32>
    %cst_257 = arith.constant dense<0.000000e+00> : vector<16xf32>
    %477 = vector.multi_reduction <add>, %476, %cst_257 [1] : vector<16x32xf32> to vector<16xf32>
    %478 = vector.shape_cast %477 : vector<16xf32> to vector<16x1xf32>
    %cst_258 = arith.constant 3.200000e+01 : f32
    %479 = vector.broadcast %cst_258 : f32 to vector<16x1xf32>
    %480 = arith.divf %478, %479 : vector<16x1xf32>
    %481 = arith.mulf %476, %476 : vector<16x32xf32>
    %cst_259 = arith.constant dense<0.000000e+00> : vector<16xf32>
    %482 = vector.multi_reduction <add>, %481, %cst_259 [1] : vector<16x32xf32> to vector<16xf32>
    %483 = vector.shape_cast %482 : vector<16xf32> to vector<16x1xf32>
    %cst_260 = arith.constant 3.200000e+01 : f32
    %484 = vector.broadcast %cst_260 : f32 to vector<16x1xf32>
    %485 = arith.divf %483, %484 : vector<16x1xf32>
    %486 = arith.mulf %480, %480 : vector<16x1xf32>
    %487 = arith.subf %485, %486 : vector<16x1xf32>
    %488 = vector.broadcast %480 : vector<16x1xf32> to vector<16x32xf32>
    %489 = arith.subf %476, %488 : vector<16x32xf32>
    %cst_261 = arith.constant 9.99999997E-7 : f32
    %490 = vector.broadcast %cst_261 : f32 to vector<16x1xf32>
    %491 = arith.addf %487, %490 : vector<16x1xf32>
    %492 = math.rsqrt %491 : vector<16x1xf32>
    %493 = vector.broadcast %492 : vector<16x1xf32> to vector<16x32xf32>
    %494 = arith.mulf %489, %493 : vector<16x32xf32>
    %c4_262 = arith.constant 4 : index
    %c0_263 = arith.constant 0 : index
    %c0_264 = arith.constant 0 : index
    %495 = vector.load %arg9[%c4_262, %c0_263, %c0_264] : memref<20x1x32xf32, #tpu.memory_space<vmem>>, vector<1x1x32xf32>
    %496 = vector.shape_cast %495 : vector<1x1x32xf32> to vector<1x32xf32>
    %497 = vector.broadcast %496 : vector<1x32xf32> to vector<16x32xf32>
    %498 = arith.mulf %494, %497 : vector<16x32xf32>
    %c5_265 = arith.constant 5 : index
    %c0_266 = arith.constant 0 : index
    %c0_267 = arith.constant 0 : index
    %499 = vector.load %arg9[%c5_265, %c0_266, %c0_267] : memref<20x1x32xf32, #tpu.memory_space<vmem>>, vector<1x1x32xf32>
    %500 = vector.shape_cast %499 : vector<1x1x32xf32> to vector<1x32xf32>
    %501 = vector.broadcast %500 : vector<1x32xf32> to vector<16x32xf32>
    %502 = arith.addf %498, %501 : vector<16x32xf32>
    %503 = arith.truncf %502 : vector<16x32xf32> to vector<16x32xbf16>
    %c0_268 = arith.constant 0 : index
    %c0_269 = arith.constant 0 : index
    %c0_270 = arith.constant 0 : index
    %504 = vector.load %arg5[%c0_268, %c0_269, %c0_270] : memref<2x32x64xbf16, #tpu.memory_space<vmem>>, vector<1x32x64xbf16>
    %505 = vector.shape_cast %504 : vector<1x32x64xbf16> to vector<32x64xbf16>
    %cst_271 = arith.constant dense<0.000000e+00> : vector<16x64xf32>
    %506 = tpu.matmul %503, %505, %cst_271 {dimension_numbers = #tpu.dot_dimension_numbers<[1], [0], [0], [1], [0, 0, 1, 1], [], []>} : vector<16x32xbf16>, vector<32x64xbf16>, vector<16x64xf32> -> vector<16x64xf32>
    %c0_272 = arith.constant 0 : index
    %c0_273 = arith.constant 0 : index
    %c0_274 = arith.constant 0 : index
    %507 = vector.load %arg8[%c0_272, %c0_273, %c0_274] : memref<2x1x64xf32, #tpu.memory_space<vmem>>, vector<1x1x64xf32>
    %508 = vector.shape_cast %507 : vector<1x1x64xf32> to vector<1x64xf32>
    %509 = vector.broadcast %508 : vector<1x64xf32> to vector<16x64xf32>
    %510 = arith.addf %506, %509 : vector<16x64xf32>
    %cst_275 = arith.constant 0.000000e+00 : f32
    %511 = vector.broadcast %cst_275 : f32 to vector<16x64xf32>
    %512 = arith.maximumf %510, %511 : vector<16x64xf32>
    %513 = arith.truncf %512 : vector<16x64xf32> to vector<16x64xbf16>
    %c0_276 = arith.constant 0 : index
    %c0_277 = arith.constant 0 : index
    %c0_278 = arith.constant 0 : index
    %514 = vector.load %arg6[%c0_276, %c0_277, %c0_278] : memref<2x64x32xbf16, #tpu.memory_space<vmem>>, vector<1x64x32xbf16>
    %515 = vector.shape_cast %514 : vector<1x64x32xbf16> to vector<64x32xbf16>
    %cst_279 = arith.constant dense<0.000000e+00> : vector<16x32xf32>
    %516 = tpu.matmul %513, %515, %cst_279 {dimension_numbers = #tpu.dot_dimension_numbers<[1], [0], [0], [1], [0, 0, 1, 1], [], []>} : vector<16x64xbf16>, vector<64x32xbf16>, vector<16x32xf32> -> vector<16x32xf32>
    %517 = arith.addf %476, %516 : vector<16x32xf32>
    %c8_280 = arith.constant 8 : index
    %c0_281 = arith.constant 0 : index
    %c0_282 = arith.constant 0 : index
    %518 = vector.load %arg9[%c8_280, %c0_281, %c0_282] : memref<20x1x32xf32, #tpu.memory_space<vmem>>, vector<1x1x32xf32>
    %519 = vector.shape_cast %518 : vector<1x1x32xf32> to vector<1x32xf32>
    %520 = vector.broadcast %519 : vector<1x32xf32> to vector<16x32xf32>
    %521 = arith.addf %517, %520 : vector<16x32xf32>
    %cst_283 = arith.constant dense<0.000000e+00> : vector<16xf32>
    %522 = vector.multi_reduction <add>, %521, %cst_283 [1] : vector<16x32xf32> to vector<16xf32>
    %523 = vector.shape_cast %522 : vector<16xf32> to vector<16x1xf32>
    %cst_284 = arith.constant 3.200000e+01 : f32
    %524 = vector.broadcast %cst_284 : f32 to vector<16x1xf32>
    %525 = arith.divf %523, %524 : vector<16x1xf32>
    %526 = arith.mulf %521, %521 : vector<16x32xf32>
    %cst_285 = arith.constant dense<0.000000e+00> : vector<16xf32>
    %527 = vector.multi_reduction <add>, %526, %cst_285 [1] : vector<16x32xf32> to vector<16xf32>
    %528 = vector.shape_cast %527 : vector<16xf32> to vector<16x1xf32>
    %cst_286 = arith.constant 3.200000e+01 : f32
    %529 = vector.broadcast %cst_286 : f32 to vector<16x1xf32>
    %530 = arith.divf %528, %529 : vector<16x1xf32>
    %531 = arith.mulf %525, %525 : vector<16x1xf32>
    %532 = arith.subf %530, %531 : vector<16x1xf32>
    %533 = vector.broadcast %525 : vector<16x1xf32> to vector<16x32xf32>
    %534 = arith.subf %521, %533 : vector<16x32xf32>
    %cst_287 = arith.constant 9.99999997E-7 : f32
    %535 = vector.broadcast %cst_287 : f32 to vector<16x1xf32>
    %536 = arith.addf %532, %535 : vector<16x1xf32>
    %537 = math.rsqrt %536 : vector<16x1xf32>
    %538 = vector.broadcast %537 : vector<16x1xf32> to vector<16x32xf32>
    %539 = arith.mulf %534, %538 : vector<16x32xf32>
    %c9_288 = arith.constant 9 : index
    %c0_289 = arith.constant 0 : index
    %c0_290 = arith.constant 0 : index
    %540 = vector.load %arg9[%c9_288, %c0_289, %c0_290] : memref<20x1x32xf32, #tpu.memory_space<vmem>>, vector<1x1x32xf32>
    %541 = vector.shape_cast %540 : vector<1x1x32xf32> to vector<1x32xf32>
    %542 = vector.broadcast %541 : vector<1x32xf32> to vector<16x32xf32>
    %543 = arith.mulf %539, %542 : vector<16x32xf32>
    %c10_291 = arith.constant 10 : index
    %c0_292 = arith.constant 0 : index
    %c0_293 = arith.constant 0 : index
    %544 = vector.load %arg9[%c10_291, %c0_292, %c0_293] : memref<20x1x32xf32, #tpu.memory_space<vmem>>, vector<1x1x32xf32>
    %545 = vector.shape_cast %544 : vector<1x1x32xf32> to vector<1x32xf32>
    %546 = vector.broadcast %545 : vector<1x32xf32> to vector<16x32xf32>
    %547 = arith.addf %543, %546 : vector<16x32xf32>
    %548 = arith.truncf %547 : vector<16x32xf32> to vector<16x32xbf16>
    %cst_294 = arith.constant 0.000000e+00 : f32
    %549 = vector.broadcast %cst_294 : f32 to vector<2x8x8xf32>
    %550 = arith.cmpf ogt, %3, %549 : vector<2x8x8xf32>
    %cst_295 = arith.constant 0.000000e+00 : f32
    %551 = vector.broadcast %cst_295 : f32 to vector<16x32xf32>
    %c24 = arith.constant 24 : index
    %c0_296 = arith.constant 0 : index
    %c0_297 = arith.constant 0 : index
    %552 = vector.load %arg4[%c24, %c0_296, %c0_297] : memref<64x32x8xbf16, #tpu.memory_space<vmem>>, vector<1x32x8xbf16>
    %553 = vector.shape_cast %552 : vector<1x32x8xbf16> to vector<32x8xbf16>
    %cst_298 = arith.constant dense<0.000000e+00> : vector<16x8xf32>
    %554 = tpu.matmul %548, %553, %cst_298 {dimension_numbers = #tpu.dot_dimension_numbers<[1], [0], [0], [1], [0, 0, 1, 1], [], []>} : vector<16x32xbf16>, vector<32x8xbf16>, vector<16x8xf32> -> vector<16x8xf32>
    %c24_299 = arith.constant 24 : index
    %c0_300 = arith.constant 0 : index
    %c0_301 = arith.constant 0 : index
    %555 = vector.load %arg7[%c24_299, %c0_300, %c0_301] : memref<48x1x8xf32, #tpu.memory_space<vmem>>, vector<1x1x8xf32>
    %556 = vector.shape_cast %555 : vector<1x1x8xf32> to vector<1x8xf32>
    %557 = vector.broadcast %556 : vector<1x8xf32> to vector<16x8xf32>
    %558 = arith.addf %554, %557 : vector<16x8xf32>
    %c28 = arith.constant 28 : index
    %c0_302 = arith.constant 0 : index
    %c0_303 = arith.constant 0 : index
    %559 = vector.load %arg4[%c28, %c0_302, %c0_303] : memref<64x32x8xbf16, #tpu.memory_space<vmem>>, vector<1x32x8xbf16>
    %560 = vector.shape_cast %559 : vector<1x32x8xbf16> to vector<32x8xbf16>
    %cst_304 = arith.constant dense<0.000000e+00> : vector<16x8xf32>
    %561 = tpu.matmul %548, %560, %cst_304 {dimension_numbers = #tpu.dot_dimension_numbers<[1], [0], [0], [1], [0, 0, 1, 1], [], []>} : vector<16x32xbf16>, vector<32x8xbf16>, vector<16x8xf32> -> vector<16x8xf32>
    %c28_305 = arith.constant 28 : index
    %c0_306 = arith.constant 0 : index
    %c0_307 = arith.constant 0 : index
    %562 = vector.load %arg7[%c28_305, %c0_306, %c0_307] : memref<48x1x8xf32, #tpu.memory_space<vmem>>, vector<1x1x8xf32>
    %563 = vector.shape_cast %562 : vector<1x1x8xf32> to vector<1x8xf32>
    %564 = vector.broadcast %563 : vector<1x8xf32> to vector<16x8xf32>
    %565 = arith.addf %561, %564 : vector<16x8xf32>
    %c32 = arith.constant 32 : index
    %c0_308 = arith.constant 0 : index
    %c0_309 = arith.constant 0 : index
    %566 = vector.load %arg4[%c32, %c0_308, %c0_309] : memref<64x32x8xbf16, #tpu.memory_space<vmem>>, vector<1x32x8xbf16>
    %567 = vector.shape_cast %566 : vector<1x32x8xbf16> to vector<32x8xbf16>
    %cst_310 = arith.constant dense<0.000000e+00> : vector<16x8xf32>
    %568 = tpu.matmul %548, %567, %cst_310 {dimension_numbers = #tpu.dot_dimension_numbers<[1], [0], [0], [1], [0, 0, 1, 1], [], []>} : vector<16x32xbf16>, vector<32x8xbf16>, vector<16x8xf32> -> vector<16x8xf32>
    %c32_311 = arith.constant 32 : index
    %c0_312 = arith.constant 0 : index
    %c0_313 = arith.constant 0 : index
    %569 = vector.load %arg7[%c32_311, %c0_312, %c0_313] : memref<48x1x8xf32, #tpu.memory_space<vmem>>, vector<1x1x8xf32>
    %570 = vector.shape_cast %569 : vector<1x1x8xf32> to vector<1x8xf32>
    %571 = vector.broadcast %570 : vector<1x8xf32> to vector<16x8xf32>
    %572 = arith.addf %568, %571 : vector<16x8xf32>
    %573 = vector.shape_cast %558 : vector<16x8xf32> to vector<2x8x8xf32>
    %574 = arith.truncf %573 : vector<2x8x8xf32> to vector<2x8x8xbf16>
    %575 = vector.shape_cast %565 : vector<16x8xf32> to vector<2x8x8xf32>
    %576 = arith.truncf %575 : vector<2x8x8xf32> to vector<2x8x8xbf16>
    %577 = vector.shape_cast %572 : vector<16x8xf32> to vector<2x8x8xf32>
    %578 = arith.truncf %577 : vector<2x8x8xf32> to vector<2x8x8xbf16>
    "tpu.trace_start"() <{level = 10 : i32, message = "bqd,bkd->bqk"}> : () -> ()
    %cst_314 = arith.constant dense<0.000000e+00> : vector<2x8x8xf32>
    %579 = tpu.matmul %574, %576, %cst_314 {dimension_numbers = #tpu.dot_dimension_numbers<[2], [2], [1], [1], [0, 0, 0, 1, 1, 1], [0], [0]>} : vector<2x8x8xbf16>, vector<2x8x8xbf16>, vector<2x8x8xf32> -> vector<2x8x8xf32>
    "tpu.trace_stop"() : () -> ()
    %cst_315 = arith.constant 0.353553385 : f32
    %580 = vector.broadcast %cst_315 : f32 to vector<2x8x8xf32>
    %581 = arith.mulf %579, %580 : vector<2x8x8xf32>
    %cst_316 = arith.constant -1.000000e+09 : f32
    %582 = vector.broadcast %cst_316 : f32 to vector<2x8x8xf32>
    %583 = arith.select %550, %581, %582 : vector<2x8x8xi1>, vector<2x8x8xf32>
    %cst_317 = arith.constant dense<0xFF800000> : vector<2x8xf32>
    %584 = vector.multi_reduction <maximumf>, %583, %cst_317 [2] : vector<2x8x8xf32> to vector<2x8xf32>
    %585 = vector.shape_cast %584 : vector<2x8xf32> to vector<2x8x1xf32>
    %586 = vector.broadcast %585 : vector<2x8x1xf32> to vector<2x8x8xf32>
    %587 = arith.subf %583, %586 : vector<2x8x8xf32>
    %588 = math.exp %587 : vector<2x8x8xf32>
    %cst_318 = arith.constant dense<0.000000e+00> : vector<2x8xf32>
    %589 = vector.multi_reduction <add>, %588, %cst_318 [2] : vector<2x8x8xf32> to vector<2x8xf32>
    %590 = vector.shape_cast %589 : vector<2x8xf32> to vector<2x8x1xf32>
    %591 = tpu.reciprocal %590 {approx = true} : vector<2x8x1xf32> -> vector<2x8x1xf32>
    %592 = vector.broadcast %591 : vector<2x8x1xf32> to vector<2x8x8xf32>
    %593 = arith.mulf %588, %592 : vector<2x8x8xf32>
    %594 = arith.truncf %593 : vector<2x8x8xf32> to vector<2x8x8xbf16>
    "tpu.trace_start"() <{level = 10 : i32, message = "bqk,bkd->bqd"}> : () -> ()
    %cst_319 = arith.constant dense<0.000000e+00> : vector<2x8x8xf32>
    %595 = tpu.matmul %594, %578, %cst_319 {dimension_numbers = #tpu.dot_dimension_numbers<[2], [1], [1], [2], [0, 0, 0, 1, 1, 2], [0], [0]>} : vector<2x8x8xbf16>, vector<2x8x8xbf16>, vector<2x8x8xf32> -> vector<2x8x8xf32>
    "tpu.trace_stop"() : () -> ()
    %596 = vector.shape_cast %595 : vector<2x8x8xf32> to vector<16x8xf32>
    %597 = arith.truncf %596 : vector<16x8xf32> to vector<16x8xbf16>
    %c56 = arith.constant 56 : index
    %c0_320 = arith.constant 0 : index
    %c0_321 = arith.constant 0 : index
    %598 = vector.load %arg4[%c56, %c0_320, %c0_321] : memref<64x32x8xbf16, #tpu.memory_space<vmem>>, vector<1x32x8xbf16>
    %599 = vector.shape_cast %598 : vector<1x32x8xbf16> to vector<32x8xbf16>
    %cst_322 = arith.constant dense<0.000000e+00> : vector<16x32xf32>
    %600 = tpu.matmul %597, %599, %cst_322 {dimension_numbers = #tpu.dot_dimension_numbers<[1], [1], [0], [0], [0, 0, 1, 0], [], []>} : vector<16x8xbf16>, vector<32x8xbf16>, vector<16x32xf32> -> vector<16x32xf32>
    %601 = arith.addf %551, %600 : vector<16x32xf32>
    %c25 = arith.constant 25 : index
    %c0_323 = arith.constant 0 : index
    %c0_324 = arith.constant 0 : index
    %602 = vector.load %arg4[%c25, %c0_323, %c0_324] : memref<64x32x8xbf16, #tpu.memory_space<vmem>>, vector<1x32x8xbf16>
    %603 = vector.shape_cast %602 : vector<1x32x8xbf16> to vector<32x8xbf16>
    %cst_325 = arith.constant dense<0.000000e+00> : vector<16x8xf32>
    %604 = tpu.matmul %548, %603, %cst_325 {dimension_numbers = #tpu.dot_dimension_numbers<[1], [0], [0], [1], [0, 0, 1, 1], [], []>} : vector<16x32xbf16>, vector<32x8xbf16>, vector<16x8xf32> -> vector<16x8xf32>
    %c25_326 = arith.constant 25 : index
    %c0_327 = arith.constant 0 : index
    %c0_328 = arith.constant 0 : index
    %605 = vector.load %arg7[%c25_326, %c0_327, %c0_328] : memref<48x1x8xf32, #tpu.memory_space<vmem>>, vector<1x1x8xf32>
    %606 = vector.shape_cast %605 : vector<1x1x8xf32> to vector<1x8xf32>
    %607 = vector.broadcast %606 : vector<1x8xf32> to vector<16x8xf32>
    %608 = arith.addf %604, %607 : vector<16x8xf32>
    %c29 = arith.constant 29 : index
    %c0_329 = arith.constant 0 : index
    %c0_330 = arith.constant 0 : index
    %609 = vector.load %arg4[%c29, %c0_329, %c0_330] : memref<64x32x8xbf16, #tpu.memory_space<vmem>>, vector<1x32x8xbf16>
    %610 = vector.shape_cast %609 : vector<1x32x8xbf16> to vector<32x8xbf16>
    %cst_331 = arith.constant dense<0.000000e+00> : vector<16x8xf32>
    %611 = tpu.matmul %548, %610, %cst_331 {dimension_numbers = #tpu.dot_dimension_numbers<[1], [0], [0], [1], [0, 0, 1, 1], [], []>} : vector<16x32xbf16>, vector<32x8xbf16>, vector<16x8xf32> -> vector<16x8xf32>
    %c29_332 = arith.constant 29 : index
    %c0_333 = arith.constant 0 : index
    %c0_334 = arith.constant 0 : index
    %612 = vector.load %arg7[%c29_332, %c0_333, %c0_334] : memref<48x1x8xf32, #tpu.memory_space<vmem>>, vector<1x1x8xf32>
    %613 = vector.shape_cast %612 : vector<1x1x8xf32> to vector<1x8xf32>
    %614 = vector.broadcast %613 : vector<1x8xf32> to vector<16x8xf32>
    %615 = arith.addf %611, %614 : vector<16x8xf32>
    %c33 = arith.constant 33 : index
    %c0_335 = arith.constant 0 : index
    %c0_336 = arith.constant 0 : index
    %616 = vector.load %arg4[%c33, %c0_335, %c0_336] : memref<64x32x8xbf16, #tpu.memory_space<vmem>>, vector<1x32x8xbf16>
    %617 = vector.shape_cast %616 : vector<1x32x8xbf16> to vector<32x8xbf16>
    %cst_337 = arith.constant dense<0.000000e+00> : vector<16x8xf32>
    %618 = tpu.matmul %548, %617, %cst_337 {dimension_numbers = #tpu.dot_dimension_numbers<[1], [0], [0], [1], [0, 0, 1, 1], [], []>} : vector<16x32xbf16>, vector<32x8xbf16>, vector<16x8xf32> -> vector<16x8xf32>
    %c33_338 = arith.constant 33 : index
    %c0_339 = arith.constant 0 : index
    %c0_340 = arith.constant 0 : index
    %619 = vector.load %arg7[%c33_338, %c0_339, %c0_340] : memref<48x1x8xf32, #tpu.memory_space<vmem>>, vector<1x1x8xf32>
    %620 = vector.shape_cast %619 : vector<1x1x8xf32> to vector<1x8xf32>
    %621 = vector.broadcast %620 : vector<1x8xf32> to vector<16x8xf32>
    %622 = arith.addf %618, %621 : vector<16x8xf32>
    %623 = vector.shape_cast %608 : vector<16x8xf32> to vector<2x8x8xf32>
    %624 = arith.truncf %623 : vector<2x8x8xf32> to vector<2x8x8xbf16>
    %625 = vector.shape_cast %615 : vector<16x8xf32> to vector<2x8x8xf32>
    %626 = arith.truncf %625 : vector<2x8x8xf32> to vector<2x8x8xbf16>
    %627 = vector.shape_cast %622 : vector<16x8xf32> to vector<2x8x8xf32>
    %628 = arith.truncf %627 : vector<2x8x8xf32> to vector<2x8x8xbf16>
    "tpu.trace_start"() <{level = 10 : i32, message = "bqd,bkd->bqk"}> : () -> ()
    %cst_341 = arith.constant dense<0.000000e+00> : vector<2x8x8xf32>
    %629 = tpu.matmul %624, %626, %cst_341 {dimension_numbers = #tpu.dot_dimension_numbers<[2], [2], [1], [1], [0, 0, 0, 1, 1, 1], [0], [0]>} : vector<2x8x8xbf16>, vector<2x8x8xbf16>, vector<2x8x8xf32> -> vector<2x8x8xf32>
    "tpu.trace_stop"() : () -> ()
    %cst_342 = arith.constant 0.353553385 : f32
    %630 = vector.broadcast %cst_342 : f32 to vector<2x8x8xf32>
    %631 = arith.mulf %629, %630 : vector<2x8x8xf32>
    %cst_343 = arith.constant -1.000000e+09 : f32
    %632 = vector.broadcast %cst_343 : f32 to vector<2x8x8xf32>
    %633 = arith.select %550, %631, %632 : vector<2x8x8xi1>, vector<2x8x8xf32>
    %cst_344 = arith.constant dense<0xFF800000> : vector<2x8xf32>
    %634 = vector.multi_reduction <maximumf>, %633, %cst_344 [2] : vector<2x8x8xf32> to vector<2x8xf32>
    %635 = vector.shape_cast %634 : vector<2x8xf32> to vector<2x8x1xf32>
    %636 = vector.broadcast %635 : vector<2x8x1xf32> to vector<2x8x8xf32>
    %637 = arith.subf %633, %636 : vector<2x8x8xf32>
    %638 = math.exp %637 : vector<2x8x8xf32>
    %cst_345 = arith.constant dense<0.000000e+00> : vector<2x8xf32>
    %639 = vector.multi_reduction <add>, %638, %cst_345 [2] : vector<2x8x8xf32> to vector<2x8xf32>
    %640 = vector.shape_cast %639 : vector<2x8xf32> to vector<2x8x1xf32>
    %641 = tpu.reciprocal %640 {approx = true} : vector<2x8x1xf32> -> vector<2x8x1xf32>
    %642 = vector.broadcast %641 : vector<2x8x1xf32> to vector<2x8x8xf32>
    %643 = arith.mulf %638, %642 : vector<2x8x8xf32>
    %644 = arith.truncf %643 : vector<2x8x8xf32> to vector<2x8x8xbf16>
    "tpu.trace_start"() <{level = 10 : i32, message = "bqk,bkd->bqd"}> : () -> ()
    %cst_346 = arith.constant dense<0.000000e+00> : vector<2x8x8xf32>
    %645 = tpu.matmul %644, %628, %cst_346 {dimension_numbers = #tpu.dot_dimension_numbers<[2], [1], [1], [2], [0, 0, 0, 1, 1, 2], [0], [0]>} : vector<2x8x8xbf16>, vector<2x8x8xbf16>, vector<2x8x8xf32> -> vector<2x8x8xf32>
    "tpu.trace_stop"() : () -> ()
    %646 = vector.shape_cast %645 : vector<2x8x8xf32> to vector<16x8xf32>
    %647 = arith.truncf %646 : vector<16x8xf32> to vector<16x8xbf16>
    %c57 = arith.constant 57 : index
    %c0_347 = arith.constant 0 : index
    %c0_348 = arith.constant 0 : index
    %648 = vector.load %arg4[%c57, %c0_347, %c0_348] : memref<64x32x8xbf16, #tpu.memory_space<vmem>>, vector<1x32x8xbf16>
    %649 = vector.shape_cast %648 : vector<1x32x8xbf16> to vector<32x8xbf16>
    %cst_349 = arith.constant dense<0.000000e+00> : vector<16x32xf32>
    %650 = tpu.matmul %647, %649, %cst_349 {dimension_numbers = #tpu.dot_dimension_numbers<[1], [1], [0], [0], [0, 0, 1, 0], [], []>} : vector<16x8xbf16>, vector<32x8xbf16>, vector<16x32xf32> -> vector<16x32xf32>
    %651 = arith.addf %601, %650 : vector<16x32xf32>
    %c26 = arith.constant 26 : index
    %c0_350 = arith.constant 0 : index
    %c0_351 = arith.constant 0 : index
    %652 = vector.load %arg4[%c26, %c0_350, %c0_351] : memref<64x32x8xbf16, #tpu.memory_space<vmem>>, vector<1x32x8xbf16>
    %653 = vector.shape_cast %652 : vector<1x32x8xbf16> to vector<32x8xbf16>
    %cst_352 = arith.constant dense<0.000000e+00> : vector<16x8xf32>
    %654 = tpu.matmul %548, %653, %cst_352 {dimension_numbers = #tpu.dot_dimension_numbers<[1], [0], [0], [1], [0, 0, 1, 1], [], []>} : vector<16x32xbf16>, vector<32x8xbf16>, vector<16x8xf32> -> vector<16x8xf32>
    %c26_353 = arith.constant 26 : index
    %c0_354 = arith.constant 0 : index
    %c0_355 = arith.constant 0 : index
    %655 = vector.load %arg7[%c26_353, %c0_354, %c0_355] : memref<48x1x8xf32, #tpu.memory_space<vmem>>, vector<1x1x8xf32>
    %656 = vector.shape_cast %655 : vector<1x1x8xf32> to vector<1x8xf32>
    %657 = vector.broadcast %656 : vector<1x8xf32> to vector<16x8xf32>
    %658 = arith.addf %654, %657 : vector<16x8xf32>
    %c30 = arith.constant 30 : index
    %c0_356 = arith.constant 0 : index
    %c0_357 = arith.constant 0 : index
    %659 = vector.load %arg4[%c30, %c0_356, %c0_357] : memref<64x32x8xbf16, #tpu.memory_space<vmem>>, vector<1x32x8xbf16>
    %660 = vector.shape_cast %659 : vector<1x32x8xbf16> to vector<32x8xbf16>
    %cst_358 = arith.constant dense<0.000000e+00> : vector<16x8xf32>
    %661 = tpu.matmul %548, %660, %cst_358 {dimension_numbers = #tpu.dot_dimension_numbers<[1], [0], [0], [1], [0, 0, 1, 1], [], []>} : vector<16x32xbf16>, vector<32x8xbf16>, vector<16x8xf32> -> vector<16x8xf32>
    %c30_359 = arith.constant 30 : index
    %c0_360 = arith.constant 0 : index
    %c0_361 = arith.constant 0 : index
    %662 = vector.load %arg7[%c30_359, %c0_360, %c0_361] : memref<48x1x8xf32, #tpu.memory_space<vmem>>, vector<1x1x8xf32>
    %663 = vector.shape_cast %662 : vector<1x1x8xf32> to vector<1x8xf32>
    %664 = vector.broadcast %663 : vector<1x8xf32> to vector<16x8xf32>
    %665 = arith.addf %661, %664 : vector<16x8xf32>
    %c34 = arith.constant 34 : index
    %c0_362 = arith.constant 0 : index
    %c0_363 = arith.constant 0 : index
    %666 = vector.load %arg4[%c34, %c0_362, %c0_363] : memref<64x32x8xbf16, #tpu.memory_space<vmem>>, vector<1x32x8xbf16>
    %667 = vector.shape_cast %666 : vector<1x32x8xbf16> to vector<32x8xbf16>
    %cst_364 = arith.constant dense<0.000000e+00> : vector<16x8xf32>
    %668 = tpu.matmul %548, %667, %cst_364 {dimension_numbers = #tpu.dot_dimension_numbers<[1], [0], [0], [1], [0, 0, 1, 1], [], []>} : vector<16x32xbf16>, vector<32x8xbf16>, vector<16x8xf32> -> vector<16x8xf32>
    %c34_365 = arith.constant 34 : index
    %c0_366 = arith.constant 0 : index
    %c0_367 = arith.constant 0 : index
    %669 = vector.load %arg7[%c34_365, %c0_366, %c0_367] : memref<48x1x8xf32, #tpu.memory_space<vmem>>, vector<1x1x8xf32>
    %670 = vector.shape_cast %669 : vector<1x1x8xf32> to vector<1x8xf32>
    %671 = vector.broadcast %670 : vector<1x8xf32> to vector<16x8xf32>
    %672 = arith.addf %668, %671 : vector<16x8xf32>
    %673 = vector.shape_cast %658 : vector<16x8xf32> to vector<2x8x8xf32>
    %674 = arith.truncf %673 : vector<2x8x8xf32> to vector<2x8x8xbf16>
    %675 = vector.shape_cast %665 : vector<16x8xf32> to vector<2x8x8xf32>
    %676 = arith.truncf %675 : vector<2x8x8xf32> to vector<2x8x8xbf16>
    %677 = vector.shape_cast %672 : vector<16x8xf32> to vector<2x8x8xf32>
    %678 = arith.truncf %677 : vector<2x8x8xf32> to vector<2x8x8xbf16>
    "tpu.trace_start"() <{level = 10 : i32, message = "bqd,bkd->bqk"}> : () -> ()
    %cst_368 = arith.constant dense<0.000000e+00> : vector<2x8x8xf32>
    %679 = tpu.matmul %674, %676, %cst_368 {dimension_numbers = #tpu.dot_dimension_numbers<[2], [2], [1], [1], [0, 0, 0, 1, 1, 1], [0], [0]>} : vector<2x8x8xbf16>, vector<2x8x8xbf16>, vector<2x8x8xf32> -> vector<2x8x8xf32>
    "tpu.trace_stop"() : () -> ()
    %cst_369 = arith.constant 0.353553385 : f32
    %680 = vector.broadcast %cst_369 : f32 to vector<2x8x8xf32>
    %681 = arith.mulf %679, %680 : vector<2x8x8xf32>
    %cst_370 = arith.constant -1.000000e+09 : f32
    %682 = vector.broadcast %cst_370 : f32 to vector<2x8x8xf32>
    %683 = arith.select %550, %681, %682 : vector<2x8x8xi1>, vector<2x8x8xf32>
    %cst_371 = arith.constant dense<0xFF800000> : vector<2x8xf32>
    %684 = vector.multi_reduction <maximumf>, %683, %cst_371 [2] : vector<2x8x8xf32> to vector<2x8xf32>
    %685 = vector.shape_cast %684 : vector<2x8xf32> to vector<2x8x1xf32>
    %686 = vector.broadcast %685 : vector<2x8x1xf32> to vector<2x8x8xf32>
    %687 = arith.subf %683, %686 : vector<2x8x8xf32>
    %688 = math.exp %687 : vector<2x8x8xf32>
    %cst_372 = arith.constant dense<0.000000e+00> : vector<2x8xf32>
    %689 = vector.multi_reduction <add>, %688, %cst_372 [2] : vector<2x8x8xf32> to vector<2x8xf32>
    %690 = vector.shape_cast %689 : vector<2x8xf32> to vector<2x8x1xf32>
    %691 = tpu.reciprocal %690 {approx = true} : vector<2x8x1xf32> -> vector<2x8x1xf32>
    %692 = vector.broadcast %691 : vector<2x8x1xf32> to vector<2x8x8xf32>
    %693 = arith.mulf %688, %692 : vector<2x8x8xf32>
    %694 = arith.truncf %693 : vector<2x8x8xf32> to vector<2x8x8xbf16>
    "tpu.trace_start"() <{level = 10 : i32, message = "bqk,bkd->bqd"}> : () -> ()
    %cst_373 = arith.constant dense<0.000000e+00> : vector<2x8x8xf32>
    %695 = tpu.matmul %694, %678, %cst_373 {dimension_numbers = #tpu.dot_dimension_numbers<[2], [1], [1], [2], [0, 0, 0, 1, 1, 2], [0], [0]>} : vector<2x8x8xbf16>, vector<2x8x8xbf16>, vector<2x8x8xf32> -> vector<2x8x8xf32>
    "tpu.trace_stop"() : () -> ()
    %696 = vector.shape_cast %695 : vector<2x8x8xf32> to vector<16x8xf32>
    %697 = arith.truncf %696 : vector<16x8xf32> to vector<16x8xbf16>
    %c58 = arith.constant 58 : index
    %c0_374 = arith.constant 0 : index
    %c0_375 = arith.constant 0 : index
    %698 = vector.load %arg4[%c58, %c0_374, %c0_375] : memref<64x32x8xbf16, #tpu.memory_space<vmem>>, vector<1x32x8xbf16>
    %699 = vector.shape_cast %698 : vector<1x32x8xbf16> to vector<32x8xbf16>
    %cst_376 = arith.constant dense<0.000000e+00> : vector<16x32xf32>
    %700 = tpu.matmul %697, %699, %cst_376 {dimension_numbers = #tpu.dot_dimension_numbers<[1], [1], [0], [0], [0, 0, 1, 0], [], []>} : vector<16x8xbf16>, vector<32x8xbf16>, vector<16x32xf32> -> vector<16x32xf32>
    %701 = arith.addf %651, %700 : vector<16x32xf32>
    %c27 = arith.constant 27 : index
    %c0_377 = arith.constant 0 : index
    %c0_378 = arith.constant 0 : index
    %702 = vector.load %arg4[%c27, %c0_377, %c0_378] : memref<64x32x8xbf16, #tpu.memory_space<vmem>>, vector<1x32x8xbf16>
    %703 = vector.shape_cast %702 : vector<1x32x8xbf16> to vector<32x8xbf16>
    %cst_379 = arith.constant dense<0.000000e+00> : vector<16x8xf32>
    %704 = tpu.matmul %548, %703, %cst_379 {dimension_numbers = #tpu.dot_dimension_numbers<[1], [0], [0], [1], [0, 0, 1, 1], [], []>} : vector<16x32xbf16>, vector<32x8xbf16>, vector<16x8xf32> -> vector<16x8xf32>
    %c27_380 = arith.constant 27 : index
    %c0_381 = arith.constant 0 : index
    %c0_382 = arith.constant 0 : index
    %705 = vector.load %arg7[%c27_380, %c0_381, %c0_382] : memref<48x1x8xf32, #tpu.memory_space<vmem>>, vector<1x1x8xf32>
    %706 = vector.shape_cast %705 : vector<1x1x8xf32> to vector<1x8xf32>
    %707 = vector.broadcast %706 : vector<1x8xf32> to vector<16x8xf32>
    %708 = arith.addf %704, %707 : vector<16x8xf32>
    %c31 = arith.constant 31 : index
    %c0_383 = arith.constant 0 : index
    %c0_384 = arith.constant 0 : index
    %709 = vector.load %arg4[%c31, %c0_383, %c0_384] : memref<64x32x8xbf16, #tpu.memory_space<vmem>>, vector<1x32x8xbf16>
    %710 = vector.shape_cast %709 : vector<1x32x8xbf16> to vector<32x8xbf16>
    %cst_385 = arith.constant dense<0.000000e+00> : vector<16x8xf32>
    %711 = tpu.matmul %548, %710, %cst_385 {dimension_numbers = #tpu.dot_dimension_numbers<[1], [0], [0], [1], [0, 0, 1, 1], [], []>} : vector<16x32xbf16>, vector<32x8xbf16>, vector<16x8xf32> -> vector<16x8xf32>
    %c31_386 = arith.constant 31 : index
    %c0_387 = arith.constant 0 : index
    %c0_388 = arith.constant 0 : index
    %712 = vector.load %arg7[%c31_386, %c0_387, %c0_388] : memref<48x1x8xf32, #tpu.memory_space<vmem>>, vector<1x1x8xf32>
    %713 = vector.shape_cast %712 : vector<1x1x8xf32> to vector<1x8xf32>
    %714 = vector.broadcast %713 : vector<1x8xf32> to vector<16x8xf32>
    %715 = arith.addf %711, %714 : vector<16x8xf32>
    %c35 = arith.constant 35 : index
    %c0_389 = arith.constant 0 : index
    %c0_390 = arith.constant 0 : index
    %716 = vector.load %arg4[%c35, %c0_389, %c0_390] : memref<64x32x8xbf16, #tpu.memory_space<vmem>>, vector<1x32x8xbf16>
    %717 = vector.shape_cast %716 : vector<1x32x8xbf16> to vector<32x8xbf16>
    %cst_391 = arith.constant dense<0.000000e+00> : vector<16x8xf32>
    %718 = tpu.matmul %548, %717, %cst_391 {dimension_numbers = #tpu.dot_dimension_numbers<[1], [0], [0], [1], [0, 0, 1, 1], [], []>} : vector<16x32xbf16>, vector<32x8xbf16>, vector<16x8xf32> -> vector<16x8xf32>
    %c35_392 = arith.constant 35 : index
    %c0_393 = arith.constant 0 : index
    %c0_394 = arith.constant 0 : index
    %719 = vector.load %arg7[%c35_392, %c0_393, %c0_394] : memref<48x1x8xf32, #tpu.memory_space<vmem>>, vector<1x1x8xf32>
    %720 = vector.shape_cast %719 : vector<1x1x8xf32> to vector<1x8xf32>
    %721 = vector.broadcast %720 : vector<1x8xf32> to vector<16x8xf32>
    %722 = arith.addf %718, %721 : vector<16x8xf32>
    %723 = vector.shape_cast %708 : vector<16x8xf32> to vector<2x8x8xf32>
    %724 = arith.truncf %723 : vector<2x8x8xf32> to vector<2x8x8xbf16>
    %725 = vector.shape_cast %715 : vector<16x8xf32> to vector<2x8x8xf32>
    %726 = arith.truncf %725 : vector<2x8x8xf32> to vector<2x8x8xbf16>
    %727 = vector.shape_cast %722 : vector<16x8xf32> to vector<2x8x8xf32>
    %728 = arith.truncf %727 : vector<2x8x8xf32> to vector<2x8x8xbf16>
    "tpu.trace_start"() <{level = 10 : i32, message = "bqd,bkd->bqk"}> : () -> ()
    %cst_395 = arith.constant dense<0.000000e+00> : vector<2x8x8xf32>
    %729 = tpu.matmul %724, %726, %cst_395 {dimension_numbers = #tpu.dot_dimension_numbers<[2], [2], [1], [1], [0, 0, 0, 1, 1, 1], [0], [0]>} : vector<2x8x8xbf16>, vector<2x8x8xbf16>, vector<2x8x8xf32> -> vector<2x8x8xf32>
    "tpu.trace_stop"() : () -> ()
    %cst_396 = arith.constant 0.353553385 : f32
    %730 = vector.broadcast %cst_396 : f32 to vector<2x8x8xf32>
    %731 = arith.mulf %729, %730 : vector<2x8x8xf32>
    %cst_397 = arith.constant -1.000000e+09 : f32
    %732 = vector.broadcast %cst_397 : f32 to vector<2x8x8xf32>
    %733 = arith.select %550, %731, %732 : vector<2x8x8xi1>, vector<2x8x8xf32>
    %cst_398 = arith.constant dense<0xFF800000> : vector<2x8xf32>
    %734 = vector.multi_reduction <maximumf>, %733, %cst_398 [2] : vector<2x8x8xf32> to vector<2x8xf32>
    %735 = vector.shape_cast %734 : vector<2x8xf32> to vector<2x8x1xf32>
    %736 = vector.broadcast %735 : vector<2x8x1xf32> to vector<2x8x8xf32>
    %737 = arith.subf %733, %736 : vector<2x8x8xf32>
    %738 = math.exp %737 : vector<2x8x8xf32>
    %cst_399 = arith.constant dense<0.000000e+00> : vector<2x8xf32>
    %739 = vector.multi_reduction <add>, %738, %cst_399 [2] : vector<2x8x8xf32> to vector<2x8xf32>
    %740 = vector.shape_cast %739 : vector<2x8xf32> to vector<2x8x1xf32>
    %741 = tpu.reciprocal %740 {approx = true} : vector<2x8x1xf32> -> vector<2x8x1xf32>
    %742 = vector.broadcast %741 : vector<2x8x1xf32> to vector<2x8x8xf32>
    %743 = arith.mulf %738, %742 : vector<2x8x8xf32>
    %744 = arith.truncf %743 : vector<2x8x8xf32> to vector<2x8x8xbf16>
    "tpu.trace_start"() <{level = 10 : i32, message = "bqk,bkd->bqd"}> : () -> ()
    %cst_400 = arith.constant dense<0.000000e+00> : vector<2x8x8xf32>
    %745 = tpu.matmul %744, %728, %cst_400 {dimension_numbers = #tpu.dot_dimension_numbers<[2], [1], [1], [2], [0, 0, 0, 1, 1, 2], [0], [0]>} : vector<2x8x8xbf16>, vector<2x8x8xbf16>, vector<2x8x8xf32> -> vector<2x8x8xf32>
    "tpu.trace_stop"() : () -> ()
    %746 = vector.shape_cast %745 : vector<2x8x8xf32> to vector<16x8xf32>
    %747 = arith.truncf %746 : vector<16x8xf32> to vector<16x8xbf16>
    %c59 = arith.constant 59 : index
    %c0_401 = arith.constant 0 : index
    %c0_402 = arith.constant 0 : index
    %748 = vector.load %arg4[%c59, %c0_401, %c0_402] : memref<64x32x8xbf16, #tpu.memory_space<vmem>>, vector<1x32x8xbf16>
    %749 = vector.shape_cast %748 : vector<1x32x8xbf16> to vector<32x8xbf16>
    %cst_403 = arith.constant dense<0.000000e+00> : vector<16x32xf32>
    %750 = tpu.matmul %747, %749, %cst_403 {dimension_numbers = #tpu.dot_dimension_numbers<[1], [1], [0], [0], [0, 0, 1, 0], [], []>} : vector<16x8xbf16>, vector<32x8xbf16>, vector<16x32xf32> -> vector<16x32xf32>
    %751 = arith.addf %701, %750 : vector<16x32xf32>
    %c15_404 = arith.constant 15 : index
    %c0_405 = arith.constant 0 : index
    %c0_406 = arith.constant 0 : index
    %752 = vector.load %arg9[%c15_404, %c0_405, %c0_406] : memref<20x1x32xf32, #tpu.memory_space<vmem>>, vector<1x1x32xf32>
    %753 = vector.shape_cast %752 : vector<1x1x32xf32> to vector<1x32xf32>
    %754 = vector.broadcast %753 : vector<1x32xf32> to vector<16x32xf32>
    %755 = arith.addf %751, %754 : vector<16x32xf32>
    %756 = arith.addf %521, %755 : vector<16x32xf32>
    %cst_407 = arith.constant dense<0.000000e+00> : vector<16xf32>
    %757 = vector.multi_reduction <add>, %756, %cst_407 [1] : vector<16x32xf32> to vector<16xf32>
    %758 = vector.shape_cast %757 : vector<16xf32> to vector<16x1xf32>
    %cst_408 = arith.constant 3.200000e+01 : f32
    %759 = vector.broadcast %cst_408 : f32 to vector<16x1xf32>
    %760 = arith.divf %758, %759 : vector<16x1xf32>
    %761 = arith.mulf %756, %756 : vector<16x32xf32>
    %cst_409 = arith.constant dense<0.000000e+00> : vector<16xf32>
    %762 = vector.multi_reduction <add>, %761, %cst_409 [1] : vector<16x32xf32> to vector<16xf32>
    %763 = vector.shape_cast %762 : vector<16xf32> to vector<16x1xf32>
    %cst_410 = arith.constant 3.200000e+01 : f32
    %764 = vector.broadcast %cst_410 : f32 to vector<16x1xf32>
    %765 = arith.divf %763, %764 : vector<16x1xf32>
    %766 = arith.mulf %760, %760 : vector<16x1xf32>
    %767 = arith.subf %765, %766 : vector<16x1xf32>
    %768 = vector.broadcast %760 : vector<16x1xf32> to vector<16x32xf32>
    %769 = arith.subf %756, %768 : vector<16x32xf32>
    %cst_411 = arith.constant 9.99999997E-7 : f32
    %770 = vector.broadcast %cst_411 : f32 to vector<16x1xf32>
    %771 = arith.addf %767, %770 : vector<16x1xf32>
    %772 = math.rsqrt %771 : vector<16x1xf32>
    %773 = vector.broadcast %772 : vector<16x1xf32> to vector<16x32xf32>
    %774 = arith.mulf %769, %773 : vector<16x32xf32>
    %c11_412 = arith.constant 11 : index
    %c0_413 = arith.constant 0 : index
    %c0_414 = arith.constant 0 : index
    %775 = vector.load %arg9[%c11_412, %c0_413, %c0_414] : memref<20x1x32xf32, #tpu.memory_space<vmem>>, vector<1x1x32xf32>
    %776 = vector.shape_cast %775 : vector<1x1x32xf32> to vector<1x32xf32>
    %777 = vector.broadcast %776 : vector<1x32xf32> to vector<16x32xf32>
    %778 = arith.mulf %774, %777 : vector<16x32xf32>
    %c12_415 = arith.constant 12 : index
    %c0_416 = arith.constant 0 : index
    %c0_417 = arith.constant 0 : index
    %779 = vector.load %arg9[%c12_415, %c0_416, %c0_417] : memref<20x1x32xf32, #tpu.memory_space<vmem>>, vector<1x1x32xf32>
    %780 = vector.shape_cast %779 : vector<1x1x32xf32> to vector<1x32xf32>
    %781 = vector.broadcast %780 : vector<1x32xf32> to vector<16x32xf32>
    %782 = arith.addf %778, %781 : vector<16x32xf32>
    %783 = arith.truncf %782 : vector<16x32xf32> to vector<16x32xbf16>
    %784 = vector.shape_cast %4 : vector<2x1x16xf32> to vector<2x1x16xf32>
    %785 = vector.broadcast %784 : vector<2x1x16xf32> to vector<2x8x16xf32>
    %cst_418 = arith.constant 0.000000e+00 : f32
    %786 = vector.broadcast %cst_418 : f32 to vector<2x8x16xf32>
    %787 = arith.cmpf ogt, %785, %786 : vector<2x8x16xf32>
    %cst_419 = arith.constant 0.000000e+00 : f32
    %788 = vector.broadcast %cst_419 : f32 to vector<16x32xf32>
    %c36 = arith.constant 36 : index
    %c0_420 = arith.constant 0 : index
    %c0_421 = arith.constant 0 : index
    %789 = vector.load %arg4[%c36, %c0_420, %c0_421] : memref<64x32x8xbf16, #tpu.memory_space<vmem>>, vector<1x32x8xbf16>
    %790 = vector.shape_cast %789 : vector<1x32x8xbf16> to vector<32x8xbf16>
    %cst_422 = arith.constant dense<0.000000e+00> : vector<16x8xf32>
    %791 = tpu.matmul %783, %790, %cst_422 {dimension_numbers = #tpu.dot_dimension_numbers<[1], [0], [0], [1], [0, 0, 1, 1], [], []>} : vector<16x32xbf16>, vector<32x8xbf16>, vector<16x8xf32> -> vector<16x8xf32>
    %c36_423 = arith.constant 36 : index
    %c0_424 = arith.constant 0 : index
    %c0_425 = arith.constant 0 : index
    %792 = vector.load %arg7[%c36_423, %c0_424, %c0_425] : memref<48x1x8xf32, #tpu.memory_space<vmem>>, vector<1x1x8xf32>
    %793 = vector.shape_cast %792 : vector<1x1x8xf32> to vector<1x8xf32>
    %794 = vector.broadcast %793 : vector<1x8xf32> to vector<16x8xf32>
    %795 = arith.addf %791, %794 : vector<16x8xf32>
    %c40 = arith.constant 40 : index
    %c0_426 = arith.constant 0 : index
    %c0_427 = arith.constant 0 : index
    %796 = vector.load %arg4[%c40, %c0_426, %c0_427] : memref<64x32x8xbf16, #tpu.memory_space<vmem>>, vector<1x32x8xbf16>
    %797 = vector.shape_cast %796 : vector<1x32x8xbf16> to vector<32x8xbf16>
    %cst_428 = arith.constant dense<0.000000e+00> : vector<32x8xf32>
    %798 = tpu.matmul %2, %797, %cst_428 {dimension_numbers = #tpu.dot_dimension_numbers<[1], [0], [0], [1], [0, 0, 1, 1], [], []>} : vector<32x32xbf16>, vector<32x8xbf16>, vector<32x8xf32> -> vector<32x8xf32>
    %c40_429 = arith.constant 40 : index
    %c0_430 = arith.constant 0 : index
    %c0_431 = arith.constant 0 : index
    %799 = vector.load %arg7[%c40_429, %c0_430, %c0_431] : memref<48x1x8xf32, #tpu.memory_space<vmem>>, vector<1x1x8xf32>
    %800 = vector.shape_cast %799 : vector<1x1x8xf32> to vector<1x8xf32>
    %801 = vector.broadcast %800 : vector<1x8xf32> to vector<32x8xf32>
    %802 = arith.addf %798, %801 : vector<32x8xf32>
    %c44 = arith.constant 44 : index
    %c0_432 = arith.constant 0 : index
    %c0_433 = arith.constant 0 : index
    %803 = vector.load %arg4[%c44, %c0_432, %c0_433] : memref<64x32x8xbf16, #tpu.memory_space<vmem>>, vector<1x32x8xbf16>
    %804 = vector.shape_cast %803 : vector<1x32x8xbf16> to vector<32x8xbf16>
    %cst_434 = arith.constant dense<0.000000e+00> : vector<32x8xf32>
    %805 = tpu.matmul %2, %804, %cst_434 {dimension_numbers = #tpu.dot_dimension_numbers<[1], [0], [0], [1], [0, 0, 1, 1], [], []>} : vector<32x32xbf16>, vector<32x8xbf16>, vector<32x8xf32> -> vector<32x8xf32>
    %c44_435 = arith.constant 44 : index
    %c0_436 = arith.constant 0 : index
    %c0_437 = arith.constant 0 : index
    %806 = vector.load %arg7[%c44_435, %c0_436, %c0_437] : memref<48x1x8xf32, #tpu.memory_space<vmem>>, vector<1x1x8xf32>
    %807 = vector.shape_cast %806 : vector<1x1x8xf32> to vector<1x8xf32>
    %808 = vector.broadcast %807 : vector<1x8xf32> to vector<32x8xf32>
    %809 = arith.addf %805, %808 : vector<32x8xf32>
    %810 = vector.shape_cast %795 : vector<16x8xf32> to vector<2x8x8xf32>
    %811 = arith.truncf %810 : vector<2x8x8xf32> to vector<2x8x8xbf16>
    %812 = vector.shape_cast %802 : vector<32x8xf32> to vector<2x16x8xf32>
    %813 = arith.truncf %812 : vector<2x16x8xf32> to vector<2x16x8xbf16>
    %814 = vector.shape_cast %809 : vector<32x8xf32> to vector<2x16x8xf32>
    %815 = arith.truncf %814 : vector<2x16x8xf32> to vector<2x16x8xbf16>
    "tpu.trace_start"() <{level = 10 : i32, message = "bqd,bkd->bqk"}> : () -> ()
    %cst_438 = arith.constant dense<0.000000e+00> : vector<2x8x16xf32>
    %816 = tpu.matmul %811, %813, %cst_438 {dimension_numbers = #tpu.dot_dimension_numbers<[2], [2], [1], [1], [0, 0, 0, 1, 1, 1], [0], [0]>} : vector<2x8x8xbf16>, vector<2x16x8xbf16>, vector<2x8x16xf32> -> vector<2x8x16xf32>
    "tpu.trace_stop"() : () -> ()
    %cst_439 = arith.constant 0.353553385 : f32
    %817 = vector.broadcast %cst_439 : f32 to vector<2x8x16xf32>
    %818 = arith.mulf %816, %817 : vector<2x8x16xf32>
    %cst_440 = arith.constant -1.000000e+09 : f32
    %819 = vector.broadcast %cst_440 : f32 to vector<2x8x16xf32>
    %820 = arith.select %787, %818, %819 : vector<2x8x16xi1>, vector<2x8x16xf32>
    %cst_441 = arith.constant dense<0xFF800000> : vector<2x8xf32>
    %821 = vector.multi_reduction <maximumf>, %820, %cst_441 [2] : vector<2x8x16xf32> to vector<2x8xf32>
    %822 = vector.shape_cast %821 : vector<2x8xf32> to vector<2x8x1xf32>
    %823 = vector.broadcast %822 : vector<2x8x1xf32> to vector<2x8x16xf32>
    %824 = arith.subf %820, %823 : vector<2x8x16xf32>
    %825 = math.exp %824 : vector<2x8x16xf32>
    %cst_442 = arith.constant dense<0.000000e+00> : vector<2x8xf32>
    %826 = vector.multi_reduction <add>, %825, %cst_442 [2] : vector<2x8x16xf32> to vector<2x8xf32>
    %827 = vector.shape_cast %826 : vector<2x8xf32> to vector<2x8x1xf32>
    %828 = tpu.reciprocal %827 {approx = true} : vector<2x8x1xf32> -> vector<2x8x1xf32>
    %829 = vector.broadcast %828 : vector<2x8x1xf32> to vector<2x8x16xf32>
    %830 = arith.mulf %825, %829 : vector<2x8x16xf32>
    %831 = arith.truncf %830 : vector<2x8x16xf32> to vector<2x8x16xbf16>
    "tpu.trace_start"() <{level = 10 : i32, message = "bqk,bkd->bqd"}> : () -> ()
    %cst_443 = arith.constant dense<0.000000e+00> : vector<2x8x8xf32>
    %832 = tpu.matmul %831, %815, %cst_443 {dimension_numbers = #tpu.dot_dimension_numbers<[2], [1], [1], [2], [0, 0, 0, 1, 1, 2], [0], [0]>} : vector<2x8x16xbf16>, vector<2x16x8xbf16>, vector<2x8x8xf32> -> vector<2x8x8xf32>
    "tpu.trace_stop"() : () -> ()
    %833 = vector.shape_cast %832 : vector<2x8x8xf32> to vector<16x8xf32>
    %834 = arith.truncf %833 : vector<16x8xf32> to vector<16x8xbf16>
    %c60 = arith.constant 60 : index
    %c0_444 = arith.constant 0 : index
    %c0_445 = arith.constant 0 : index
    %835 = vector.load %arg4[%c60, %c0_444, %c0_445] : memref<64x32x8xbf16, #tpu.memory_space<vmem>>, vector<1x32x8xbf16>
    %836 = vector.shape_cast %835 : vector<1x32x8xbf16> to vector<32x8xbf16>
    %cst_446 = arith.constant dense<0.000000e+00> : vector<16x32xf32>
    %837 = tpu.matmul %834, %836, %cst_446 {dimension_numbers = #tpu.dot_dimension_numbers<[1], [1], [0], [0], [0, 0, 1, 0], [], []>} : vector<16x8xbf16>, vector<32x8xbf16>, vector<16x32xf32> -> vector<16x32xf32>
    %838 = arith.addf %788, %837 : vector<16x32xf32>
    %c37 = arith.constant 37 : index
    %c0_447 = arith.constant 0 : index
    %c0_448 = arith.constant 0 : index
    %839 = vector.load %arg4[%c37, %c0_447, %c0_448] : memref<64x32x8xbf16, #tpu.memory_space<vmem>>, vector<1x32x8xbf16>
    %840 = vector.shape_cast %839 : vector<1x32x8xbf16> to vector<32x8xbf16>
    %cst_449 = arith.constant dense<0.000000e+00> : vector<16x8xf32>
    %841 = tpu.matmul %783, %840, %cst_449 {dimension_numbers = #tpu.dot_dimension_numbers<[1], [0], [0], [1], [0, 0, 1, 1], [], []>} : vector<16x32xbf16>, vector<32x8xbf16>, vector<16x8xf32> -> vector<16x8xf32>
    %c37_450 = arith.constant 37 : index
    %c0_451 = arith.constant 0 : index
    %c0_452 = arith.constant 0 : index
    %842 = vector.load %arg7[%c37_450, %c0_451, %c0_452] : memref<48x1x8xf32, #tpu.memory_space<vmem>>, vector<1x1x8xf32>
    %843 = vector.shape_cast %842 : vector<1x1x8xf32> to vector<1x8xf32>
    %844 = vector.broadcast %843 : vector<1x8xf32> to vector<16x8xf32>
    %845 = arith.addf %841, %844 : vector<16x8xf32>
    %c41 = arith.constant 41 : index
    %c0_453 = arith.constant 0 : index
    %c0_454 = arith.constant 0 : index
    %846 = vector.load %arg4[%c41, %c0_453, %c0_454] : memref<64x32x8xbf16, #tpu.memory_space<vmem>>, vector<1x32x8xbf16>
    %847 = vector.shape_cast %846 : vector<1x32x8xbf16> to vector<32x8xbf16>
    %cst_455 = arith.constant dense<0.000000e+00> : vector<32x8xf32>
    %848 = tpu.matmul %2, %847, %cst_455 {dimension_numbers = #tpu.dot_dimension_numbers<[1], [0], [0], [1], [0, 0, 1, 1], [], []>} : vector<32x32xbf16>, vector<32x8xbf16>, vector<32x8xf32> -> vector<32x8xf32>
    %c41_456 = arith.constant 41 : index
    %c0_457 = arith.constant 0 : index
    %c0_458 = arith.constant 0 : index
    %849 = vector.load %arg7[%c41_456, %c0_457, %c0_458] : memref<48x1x8xf32, #tpu.memory_space<vmem>>, vector<1x1x8xf32>
    %850 = vector.shape_cast %849 : vector<1x1x8xf32> to vector<1x8xf32>
    %851 = vector.broadcast %850 : vector<1x8xf32> to vector<32x8xf32>
    %852 = arith.addf %848, %851 : vector<32x8xf32>
    %c45 = arith.constant 45 : index
    %c0_459 = arith.constant 0 : index
    %c0_460 = arith.constant 0 : index
    %853 = vector.load %arg4[%c45, %c0_459, %c0_460] : memref<64x32x8xbf16, #tpu.memory_space<vmem>>, vector<1x32x8xbf16>
    %854 = vector.shape_cast %853 : vector<1x32x8xbf16> to vector<32x8xbf16>
    %cst_461 = arith.constant dense<0.000000e+00> : vector<32x8xf32>
    %855 = tpu.matmul %2, %854, %cst_461 {dimension_numbers = #tpu.dot_dimension_numbers<[1], [0], [0], [1], [0, 0, 1, 1], [], []>} : vector<32x32xbf16>, vector<32x8xbf16>, vector<32x8xf32> -> vector<32x8xf32>
    %c45_462 = arith.constant 45 : index
    %c0_463 = arith.constant 0 : index
    %c0_464 = arith.constant 0 : index
    %856 = vector.load %arg7[%c45_462, %c0_463, %c0_464] : memref<48x1x8xf32, #tpu.memory_space<vmem>>, vector<1x1x8xf32>
    %857 = vector.shape_cast %856 : vector<1x1x8xf32> to vector<1x8xf32>
    %858 = vector.broadcast %857 : vector<1x8xf32> to vector<32x8xf32>
    %859 = arith.addf %855, %858 : vector<32x8xf32>
    %860 = vector.shape_cast %845 : vector<16x8xf32> to vector<2x8x8xf32>
    %861 = arith.truncf %860 : vector<2x8x8xf32> to vector<2x8x8xbf16>
    %862 = vector.shape_cast %852 : vector<32x8xf32> to vector<2x16x8xf32>
    %863 = arith.truncf %862 : vector<2x16x8xf32> to vector<2x16x8xbf16>
    %864 = vector.shape_cast %859 : vector<32x8xf32> to vector<2x16x8xf32>
    %865 = arith.truncf %864 : vector<2x16x8xf32> to vector<2x16x8xbf16>
    "tpu.trace_start"() <{level = 10 : i32, message = "bqd,bkd->bqk"}> : () -> ()
    %cst_465 = arith.constant dense<0.000000e+00> : vector<2x8x16xf32>
    %866 = tpu.matmul %861, %863, %cst_465 {dimension_numbers = #tpu.dot_dimension_numbers<[2], [2], [1], [1], [0, 0, 0, 1, 1, 1], [0], [0]>} : vector<2x8x8xbf16>, vector<2x16x8xbf16>, vector<2x8x16xf32> -> vector<2x8x16xf32>
    "tpu.trace_stop"() : () -> ()
    %cst_466 = arith.constant 0.353553385 : f32
    %867 = vector.broadcast %cst_466 : f32 to vector<2x8x16xf32>
    %868 = arith.mulf %866, %867 : vector<2x8x16xf32>
    %cst_467 = arith.constant -1.000000e+09 : f32
    %869 = vector.broadcast %cst_467 : f32 to vector<2x8x16xf32>
    %870 = arith.select %787, %868, %869 : vector<2x8x16xi1>, vector<2x8x16xf32>
    %cst_468 = arith.constant dense<0xFF800000> : vector<2x8xf32>
    %871 = vector.multi_reduction <maximumf>, %870, %cst_468 [2] : vector<2x8x16xf32> to vector<2x8xf32>
    %872 = vector.shape_cast %871 : vector<2x8xf32> to vector<2x8x1xf32>
    %873 = vector.broadcast %872 : vector<2x8x1xf32> to vector<2x8x16xf32>
    %874 = arith.subf %870, %873 : vector<2x8x16xf32>
    %875 = math.exp %874 : vector<2x8x16xf32>
    %cst_469 = arith.constant dense<0.000000e+00> : vector<2x8xf32>
    %876 = vector.multi_reduction <add>, %875, %cst_469 [2] : vector<2x8x16xf32> to vector<2x8xf32>
    %877 = vector.shape_cast %876 : vector<2x8xf32> to vector<2x8x1xf32>
    %878 = tpu.reciprocal %877 {approx = true} : vector<2x8x1xf32> -> vector<2x8x1xf32>
    %879 = vector.broadcast %878 : vector<2x8x1xf32> to vector<2x8x16xf32>
    %880 = arith.mulf %875, %879 : vector<2x8x16xf32>
    %881 = arith.truncf %880 : vector<2x8x16xf32> to vector<2x8x16xbf16>
    "tpu.trace_start"() <{level = 10 : i32, message = "bqk,bkd->bqd"}> : () -> ()
    %cst_470 = arith.constant dense<0.000000e+00> : vector<2x8x8xf32>
    %882 = tpu.matmul %881, %865, %cst_470 {dimension_numbers = #tpu.dot_dimension_numbers<[2], [1], [1], [2], [0, 0, 0, 1, 1, 2], [0], [0]>} : vector<2x8x16xbf16>, vector<2x16x8xbf16>, vector<2x8x8xf32> -> vector<2x8x8xf32>
    "tpu.trace_stop"() : () -> ()
    %883 = vector.shape_cast %882 : vector<2x8x8xf32> to vector<16x8xf32>
    %884 = arith.truncf %883 : vector<16x8xf32> to vector<16x8xbf16>
    %c61 = arith.constant 61 : index
    %c0_471 = arith.constant 0 : index
    %c0_472 = arith.constant 0 : index
    %885 = vector.load %arg4[%c61, %c0_471, %c0_472] : memref<64x32x8xbf16, #tpu.memory_space<vmem>>, vector<1x32x8xbf16>
    %886 = vector.shape_cast %885 : vector<1x32x8xbf16> to vector<32x8xbf16>
    %cst_473 = arith.constant dense<0.000000e+00> : vector<16x32xf32>
    %887 = tpu.matmul %884, %886, %cst_473 {dimension_numbers = #tpu.dot_dimension_numbers<[1], [1], [0], [0], [0, 0, 1, 0], [], []>} : vector<16x8xbf16>, vector<32x8xbf16>, vector<16x32xf32> -> vector<16x32xf32>
    %888 = arith.addf %838, %887 : vector<16x32xf32>
    %c38 = arith.constant 38 : index
    %c0_474 = arith.constant 0 : index
    %c0_475 = arith.constant 0 : index
    %889 = vector.load %arg4[%c38, %c0_474, %c0_475] : memref<64x32x8xbf16, #tpu.memory_space<vmem>>, vector<1x32x8xbf16>
    %890 = vector.shape_cast %889 : vector<1x32x8xbf16> to vector<32x8xbf16>
    %cst_476 = arith.constant dense<0.000000e+00> : vector<16x8xf32>
    %891 = tpu.matmul %783, %890, %cst_476 {dimension_numbers = #tpu.dot_dimension_numbers<[1], [0], [0], [1], [0, 0, 1, 1], [], []>} : vector<16x32xbf16>, vector<32x8xbf16>, vector<16x8xf32> -> vector<16x8xf32>
    %c38_477 = arith.constant 38 : index
    %c0_478 = arith.constant 0 : index
    %c0_479 = arith.constant 0 : index
    %892 = vector.load %arg7[%c38_477, %c0_478, %c0_479] : memref<48x1x8xf32, #tpu.memory_space<vmem>>, vector<1x1x8xf32>
    %893 = vector.shape_cast %892 : vector<1x1x8xf32> to vector<1x8xf32>
    %894 = vector.broadcast %893 : vector<1x8xf32> to vector<16x8xf32>
    %895 = arith.addf %891, %894 : vector<16x8xf32>
    %c42 = arith.constant 42 : index
    %c0_480 = arith.constant 0 : index
    %c0_481 = arith.constant 0 : index
    %896 = vector.load %arg4[%c42, %c0_480, %c0_481] : memref<64x32x8xbf16, #tpu.memory_space<vmem>>, vector<1x32x8xbf16>
    %897 = vector.shape_cast %896 : vector<1x32x8xbf16> to vector<32x8xbf16>
    %cst_482 = arith.constant dense<0.000000e+00> : vector<32x8xf32>
    %898 = tpu.matmul %2, %897, %cst_482 {dimension_numbers = #tpu.dot_dimension_numbers<[1], [0], [0], [1], [0, 0, 1, 1], [], []>} : vector<32x32xbf16>, vector<32x8xbf16>, vector<32x8xf32> -> vector<32x8xf32>
    %c42_483 = arith.constant 42 : index
    %c0_484 = arith.constant 0 : index
    %c0_485 = arith.constant 0 : index
    %899 = vector.load %arg7[%c42_483, %c0_484, %c0_485] : memref<48x1x8xf32, #tpu.memory_space<vmem>>, vector<1x1x8xf32>
    %900 = vector.shape_cast %899 : vector<1x1x8xf32> to vector<1x8xf32>
    %901 = vector.broadcast %900 : vector<1x8xf32> to vector<32x8xf32>
    %902 = arith.addf %898, %901 : vector<32x8xf32>
    %c46 = arith.constant 46 : index
    %c0_486 = arith.constant 0 : index
    %c0_487 = arith.constant 0 : index
    %903 = vector.load %arg4[%c46, %c0_486, %c0_487] : memref<64x32x8xbf16, #tpu.memory_space<vmem>>, vector<1x32x8xbf16>
    %904 = vector.shape_cast %903 : vector<1x32x8xbf16> to vector<32x8xbf16>
    %cst_488 = arith.constant dense<0.000000e+00> : vector<32x8xf32>
    %905 = tpu.matmul %2, %904, %cst_488 {dimension_numbers = #tpu.dot_dimension_numbers<[1], [0], [0], [1], [0, 0, 1, 1], [], []>} : vector<32x32xbf16>, vector<32x8xbf16>, vector<32x8xf32> -> vector<32x8xf32>
    %c46_489 = arith.constant 46 : index
    %c0_490 = arith.constant 0 : index
    %c0_491 = arith.constant 0 : index
    %906 = vector.load %arg7[%c46_489, %c0_490, %c0_491] : memref<48x1x8xf32, #tpu.memory_space<vmem>>, vector<1x1x8xf32>
    %907 = vector.shape_cast %906 : vector<1x1x8xf32> to vector<1x8xf32>
    %908 = vector.broadcast %907 : vector<1x8xf32> to vector<32x8xf32>
    %909 = arith.addf %905, %908 : vector<32x8xf32>
    %910 = vector.shape_cast %895 : vector<16x8xf32> to vector<2x8x8xf32>
    %911 = arith.truncf %910 : vector<2x8x8xf32> to vector<2x8x8xbf16>
    %912 = vector.shape_cast %902 : vector<32x8xf32> to vector<2x16x8xf32>
    %913 = arith.truncf %912 : vector<2x16x8xf32> to vector<2x16x8xbf16>
    %914 = vector.shape_cast %909 : vector<32x8xf32> to vector<2x16x8xf32>
    %915 = arith.truncf %914 : vector<2x16x8xf32> to vector<2x16x8xbf16>
    "tpu.trace_start"() <{level = 10 : i32, message = "bqd,bkd->bqk"}> : () -> ()
    %cst_492 = arith.constant dense<0.000000e+00> : vector<2x8x16xf32>
    %916 = tpu.matmul %911, %913, %cst_492 {dimension_numbers = #tpu.dot_dimension_numbers<[2], [2], [1], [1], [0, 0, 0, 1, 1, 1], [0], [0]>} : vector<2x8x8xbf16>, vector<2x16x8xbf16>, vector<2x8x16xf32> -> vector<2x8x16xf32>
    "tpu.trace_stop"() : () -> ()
    %cst_493 = arith.constant 0.353553385 : f32
    %917 = vector.broadcast %cst_493 : f32 to vector<2x8x16xf32>
    %918 = arith.mulf %916, %917 : vector<2x8x16xf32>
    %cst_494 = arith.constant -1.000000e+09 : f32
    %919 = vector.broadcast %cst_494 : f32 to vector<2x8x16xf32>
    %920 = arith.select %787, %918, %919 : vector<2x8x16xi1>, vector<2x8x16xf32>
    %cst_495 = arith.constant dense<0xFF800000> : vector<2x8xf32>
    %921 = vector.multi_reduction <maximumf>, %920, %cst_495 [2] : vector<2x8x16xf32> to vector<2x8xf32>
    %922 = vector.shape_cast %921 : vector<2x8xf32> to vector<2x8x1xf32>
    %923 = vector.broadcast %922 : vector<2x8x1xf32> to vector<2x8x16xf32>
    %924 = arith.subf %920, %923 : vector<2x8x16xf32>
    %925 = math.exp %924 : vector<2x8x16xf32>
    %cst_496 = arith.constant dense<0.000000e+00> : vector<2x8xf32>
    %926 = vector.multi_reduction <add>, %925, %cst_496 [2] : vector<2x8x16xf32> to vector<2x8xf32>
    %927 = vector.shape_cast %926 : vector<2x8xf32> to vector<2x8x1xf32>
    %928 = tpu.reciprocal %927 {approx = true} : vector<2x8x1xf32> -> vector<2x8x1xf32>
    %929 = vector.broadcast %928 : vector<2x8x1xf32> to vector<2x8x16xf32>
    %930 = arith.mulf %925, %929 : vector<2x8x16xf32>
    %931 = arith.truncf %930 : vector<2x8x16xf32> to vector<2x8x16xbf16>
    "tpu.trace_start"() <{level = 10 : i32, message = "bqk,bkd->bqd"}> : () -> ()
    %cst_497 = arith.constant dense<0.000000e+00> : vector<2x8x8xf32>
    %932 = tpu.matmul %931, %915, %cst_497 {dimension_numbers = #tpu.dot_dimension_numbers<[2], [1], [1], [2], [0, 0, 0, 1, 1, 2], [0], [0]>} : vector<2x8x16xbf16>, vector<2x16x8xbf16>, vector<2x8x8xf32> -> vector<2x8x8xf32>
    "tpu.trace_stop"() : () -> ()
    %933 = vector.shape_cast %932 : vector<2x8x8xf32> to vector<16x8xf32>
    %934 = arith.truncf %933 : vector<16x8xf32> to vector<16x8xbf16>
    %c62 = arith.constant 62 : index
    %c0_498 = arith.constant 0 : index
    %c0_499 = arith.constant 0 : index
    %935 = vector.load %arg4[%c62, %c0_498, %c0_499] : memref<64x32x8xbf16, #tpu.memory_space<vmem>>, vector<1x32x8xbf16>
    %936 = vector.shape_cast %935 : vector<1x32x8xbf16> to vector<32x8xbf16>
    %cst_500 = arith.constant dense<0.000000e+00> : vector<16x32xf32>
    %937 = tpu.matmul %934, %936, %cst_500 {dimension_numbers = #tpu.dot_dimension_numbers<[1], [1], [0], [0], [0, 0, 1, 0], [], []>} : vector<16x8xbf16>, vector<32x8xbf16>, vector<16x32xf32> -> vector<16x32xf32>
    %938 = arith.addf %888, %937 : vector<16x32xf32>
    %c39 = arith.constant 39 : index
    %c0_501 = arith.constant 0 : index
    %c0_502 = arith.constant 0 : index
    %939 = vector.load %arg4[%c39, %c0_501, %c0_502] : memref<64x32x8xbf16, #tpu.memory_space<vmem>>, vector<1x32x8xbf16>
    %940 = vector.shape_cast %939 : vector<1x32x8xbf16> to vector<32x8xbf16>
    %cst_503 = arith.constant dense<0.000000e+00> : vector<16x8xf32>
    %941 = tpu.matmul %783, %940, %cst_503 {dimension_numbers = #tpu.dot_dimension_numbers<[1], [0], [0], [1], [0, 0, 1, 1], [], []>} : vector<16x32xbf16>, vector<32x8xbf16>, vector<16x8xf32> -> vector<16x8xf32>
    %c39_504 = arith.constant 39 : index
    %c0_505 = arith.constant 0 : index
    %c0_506 = arith.constant 0 : index
    %942 = vector.load %arg7[%c39_504, %c0_505, %c0_506] : memref<48x1x8xf32, #tpu.memory_space<vmem>>, vector<1x1x8xf32>
    %943 = vector.shape_cast %942 : vector<1x1x8xf32> to vector<1x8xf32>
    %944 = vector.broadcast %943 : vector<1x8xf32> to vector<16x8xf32>
    %945 = arith.addf %941, %944 : vector<16x8xf32>
    %c43 = arith.constant 43 : index
    %c0_507 = arith.constant 0 : index
    %c0_508 = arith.constant 0 : index
    %946 = vector.load %arg4[%c43, %c0_507, %c0_508] : memref<64x32x8xbf16, #tpu.memory_space<vmem>>, vector<1x32x8xbf16>
    %947 = vector.shape_cast %946 : vector<1x32x8xbf16> to vector<32x8xbf16>
    %cst_509 = arith.constant dense<0.000000e+00> : vector<32x8xf32>
    %948 = tpu.matmul %2, %947, %cst_509 {dimension_numbers = #tpu.dot_dimension_numbers<[1], [0], [0], [1], [0, 0, 1, 1], [], []>} : vector<32x32xbf16>, vector<32x8xbf16>, vector<32x8xf32> -> vector<32x8xf32>
    %c43_510 = arith.constant 43 : index
    %c0_511 = arith.constant 0 : index
    %c0_512 = arith.constant 0 : index
    %949 = vector.load %arg7[%c43_510, %c0_511, %c0_512] : memref<48x1x8xf32, #tpu.memory_space<vmem>>, vector<1x1x8xf32>
    %950 = vector.shape_cast %949 : vector<1x1x8xf32> to vector<1x8xf32>
    %951 = vector.broadcast %950 : vector<1x8xf32> to vector<32x8xf32>
    %952 = arith.addf %948, %951 : vector<32x8xf32>
    %c47 = arith.constant 47 : index
    %c0_513 = arith.constant 0 : index
    %c0_514 = arith.constant 0 : index
    %953 = vector.load %arg4[%c47, %c0_513, %c0_514] : memref<64x32x8xbf16, #tpu.memory_space<vmem>>, vector<1x32x8xbf16>
    %954 = vector.shape_cast %953 : vector<1x32x8xbf16> to vector<32x8xbf16>
    %cst_515 = arith.constant dense<0.000000e+00> : vector<32x8xf32>
    %955 = tpu.matmul %2, %954, %cst_515 {dimension_numbers = #tpu.dot_dimension_numbers<[1], [0], [0], [1], [0, 0, 1, 1], [], []>} : vector<32x32xbf16>, vector<32x8xbf16>, vector<32x8xf32> -> vector<32x8xf32>
    %c47_516 = arith.constant 47 : index
    %c0_517 = arith.constant 0 : index
    %c0_518 = arith.constant 0 : index
    %956 = vector.load %arg7[%c47_516, %c0_517, %c0_518] : memref<48x1x8xf32, #tpu.memory_space<vmem>>, vector<1x1x8xf32>
    %957 = vector.shape_cast %956 : vector<1x1x8xf32> to vector<1x8xf32>
    %958 = vector.broadcast %957 : vector<1x8xf32> to vector<32x8xf32>
    %959 = arith.addf %955, %958 : vector<32x8xf32>
    %960 = vector.shape_cast %945 : vector<16x8xf32> to vector<2x8x8xf32>
    %961 = arith.truncf %960 : vector<2x8x8xf32> to vector<2x8x8xbf16>
    %962 = vector.shape_cast %952 : vector<32x8xf32> to vector<2x16x8xf32>
    %963 = arith.truncf %962 : vector<2x16x8xf32> to vector<2x16x8xbf16>
    %964 = vector.shape_cast %959 : vector<32x8xf32> to vector<2x16x8xf32>
    %965 = arith.truncf %964 : vector<2x16x8xf32> to vector<2x16x8xbf16>
    "tpu.trace_start"() <{level = 10 : i32, message = "bqd,bkd->bqk"}> : () -> ()
    %cst_519 = arith.constant dense<0.000000e+00> : vector<2x8x16xf32>
    %966 = tpu.matmul %961, %963, %cst_519 {dimension_numbers = #tpu.dot_dimension_numbers<[2], [2], [1], [1], [0, 0, 0, 1, 1, 1], [0], [0]>} : vector<2x8x8xbf16>, vector<2x16x8xbf16>, vector<2x8x16xf32> -> vector<2x8x16xf32>
    "tpu.trace_stop"() : () -> ()
    %cst_520 = arith.constant 0.353553385 : f32
    %967 = vector.broadcast %cst_520 : f32 to vector<2x8x16xf32>
    %968 = arith.mulf %966, %967 : vector<2x8x16xf32>
    %cst_521 = arith.constant -1.000000e+09 : f32
    %969 = vector.broadcast %cst_521 : f32 to vector<2x8x16xf32>
    %970 = arith.select %787, %968, %969 : vector<2x8x16xi1>, vector<2x8x16xf32>
    %cst_522 = arith.constant dense<0xFF800000> : vector<2x8xf32>
    %971 = vector.multi_reduction <maximumf>, %970, %cst_522 [2] : vector<2x8x16xf32> to vector<2x8xf32>
    %972 = vector.shape_cast %971 : vector<2x8xf32> to vector<2x8x1xf32>
    %973 = vector.broadcast %972 : vector<2x8x1xf32> to vector<2x8x16xf32>
    %974 = arith.subf %970, %973 : vector<2x8x16xf32>
    %975 = math.exp %974 : vector<2x8x16xf32>
    %cst_523 = arith.constant dense<0.000000e+00> : vector<2x8xf32>
    %976 = vector.multi_reduction <add>, %975, %cst_523 [2] : vector<2x8x16xf32> to vector<2x8xf32>
    %977 = vector.shape_cast %976 : vector<2x8xf32> to vector<2x8x1xf32>
    %978 = tpu.reciprocal %977 {approx = true} : vector<2x8x1xf32> -> vector<2x8x1xf32>
    %979 = vector.broadcast %978 : vector<2x8x1xf32> to vector<2x8x16xf32>
    %980 = arith.mulf %975, %979 : vector<2x8x16xf32>
    %981 = arith.truncf %980 : vector<2x8x16xf32> to vector<2x8x16xbf16>
    "tpu.trace_start"() <{level = 10 : i32, message = "bqk,bkd->bqd"}> : () -> ()
    %cst_524 = arith.constant dense<0.000000e+00> : vector<2x8x8xf32>
    %982 = tpu.matmul %981, %965, %cst_524 {dimension_numbers = #tpu.dot_dimension_numbers<[2], [1], [1], [2], [0, 0, 0, 1, 1, 2], [0], [0]>} : vector<2x8x16xbf16>, vector<2x16x8xbf16>, vector<2x8x8xf32> -> vector<2x8x8xf32>
    "tpu.trace_stop"() : () -> ()
    %983 = vector.shape_cast %982 : vector<2x8x8xf32> to vector<16x8xf32>
    %984 = arith.truncf %983 : vector<16x8xf32> to vector<16x8xbf16>
    %c63 = arith.constant 63 : index
    %c0_525 = arith.constant 0 : index
    %c0_526 = arith.constant 0 : index
    %985 = vector.load %arg4[%c63, %c0_525, %c0_526] : memref<64x32x8xbf16, #tpu.memory_space<vmem>>, vector<1x32x8xbf16>
    %986 = vector.shape_cast %985 : vector<1x32x8xbf16> to vector<32x8xbf16>
    %cst_527 = arith.constant dense<0.000000e+00> : vector<16x32xf32>
    %987 = tpu.matmul %984, %986, %cst_527 {dimension_numbers = #tpu.dot_dimension_numbers<[1], [1], [0], [0], [0, 0, 1, 0], [], []>} : vector<16x8xbf16>, vector<32x8xbf16>, vector<16x32xf32> -> vector<16x32xf32>
    %988 = arith.addf %938, %987 : vector<16x32xf32>
    %c16_528 = arith.constant 16 : index
    %c0_529 = arith.constant 0 : index
    %c0_530 = arith.constant 0 : index
    %989 = vector.load %arg9[%c16_528, %c0_529, %c0_530] : memref<20x1x32xf32, #tpu.memory_space<vmem>>, vector<1x1x32xf32>
    %990 = vector.shape_cast %989 : vector<1x1x32xf32> to vector<1x32xf32>
    %991 = vector.broadcast %990 : vector<1x32xf32> to vector<16x32xf32>
    %992 = arith.addf %988, %991 : vector<16x32xf32>
    %993 = arith.addf %756, %992 : vector<16x32xf32>
    %cst_531 = arith.constant dense<0.000000e+00> : vector<16xf32>
    %994 = vector.multi_reduction <add>, %993, %cst_531 [1] : vector<16x32xf32> to vector<16xf32>
    %995 = vector.shape_cast %994 : vector<16xf32> to vector<16x1xf32>
    %cst_532 = arith.constant 3.200000e+01 : f32
    %996 = vector.broadcast %cst_532 : f32 to vector<16x1xf32>
    %997 = arith.divf %995, %996 : vector<16x1xf32>
    %998 = arith.mulf %993, %993 : vector<16x32xf32>
    %cst_533 = arith.constant dense<0.000000e+00> : vector<16xf32>
    %999 = vector.multi_reduction <add>, %998, %cst_533 [1] : vector<16x32xf32> to vector<16xf32>
    %1000 = vector.shape_cast %999 : vector<16xf32> to vector<16x1xf32>
    %cst_534 = arith.constant 3.200000e+01 : f32
    %1001 = vector.broadcast %cst_534 : f32 to vector<16x1xf32>
    %1002 = arith.divf %1000, %1001 : vector<16x1xf32>
    %1003 = arith.mulf %997, %997 : vector<16x1xf32>
    %1004 = arith.subf %1002, %1003 : vector<16x1xf32>
    %1005 = vector.broadcast %997 : vector<16x1xf32> to vector<16x32xf32>
    %1006 = arith.subf %993, %1005 : vector<16x32xf32>
    %cst_535 = arith.constant 9.99999997E-7 : f32
    %1007 = vector.broadcast %cst_535 : f32 to vector<16x1xf32>
    %1008 = arith.addf %1004, %1007 : vector<16x1xf32>
    %1009 = math.rsqrt %1008 : vector<16x1xf32>
    %1010 = vector.broadcast %1009 : vector<16x1xf32> to vector<16x32xf32>
    %1011 = arith.mulf %1006, %1010 : vector<16x32xf32>
    %c13_536 = arith.constant 13 : index
    %c0_537 = arith.constant 0 : index
    %c0_538 = arith.constant 0 : index
    %1012 = vector.load %arg9[%c13_536, %c0_537, %c0_538] : memref<20x1x32xf32, #tpu.memory_space<vmem>>, vector<1x1x32xf32>
    %1013 = vector.shape_cast %1012 : vector<1x1x32xf32> to vector<1x32xf32>
    %1014 = vector.broadcast %1013 : vector<1x32xf32> to vector<16x32xf32>
    %1015 = arith.mulf %1011, %1014 : vector<16x32xf32>
    %c14_539 = arith.constant 14 : index
    %c0_540 = arith.constant 0 : index
    %c0_541 = arith.constant 0 : index
    %1016 = vector.load %arg9[%c14_539, %c0_540, %c0_541] : memref<20x1x32xf32, #tpu.memory_space<vmem>>, vector<1x1x32xf32>
    %1017 = vector.shape_cast %1016 : vector<1x1x32xf32> to vector<1x32xf32>
    %1018 = vector.broadcast %1017 : vector<1x32xf32> to vector<16x32xf32>
    %1019 = arith.addf %1015, %1018 : vector<16x32xf32>
    %1020 = arith.truncf %1019 : vector<16x32xf32> to vector<16x32xbf16>
    %c1_542 = arith.constant 1 : index
    %c0_543 = arith.constant 0 : index
    %c0_544 = arith.constant 0 : index
    %1021 = vector.load %arg5[%c1_542, %c0_543, %c0_544] : memref<2x32x64xbf16, #tpu.memory_space<vmem>>, vector<1x32x64xbf16>
    %1022 = vector.shape_cast %1021 : vector<1x32x64xbf16> to vector<32x64xbf16>
    %cst_545 = arith.constant dense<0.000000e+00> : vector<16x64xf32>
    %1023 = tpu.matmul %1020, %1022, %cst_545 {dimension_numbers = #tpu.dot_dimension_numbers<[1], [0], [0], [1], [0, 0, 1, 1], [], []>} : vector<16x32xbf16>, vector<32x64xbf16>, vector<16x64xf32> -> vector<16x64xf32>
    %c1_546 = arith.constant 1 : index
    %c0_547 = arith.constant 0 : index
    %c0_548 = arith.constant 0 : index
    %1024 = vector.load %arg8[%c1_546, %c0_547, %c0_548] : memref<2x1x64xf32, #tpu.memory_space<vmem>>, vector<1x1x64xf32>
    %1025 = vector.shape_cast %1024 : vector<1x1x64xf32> to vector<1x64xf32>
    %1026 = vector.broadcast %1025 : vector<1x64xf32> to vector<16x64xf32>
    %1027 = arith.addf %1023, %1026 : vector<16x64xf32>
    %cst_549 = arith.constant 0.000000e+00 : f32
    %1028 = vector.broadcast %cst_549 : f32 to vector<16x64xf32>
    %1029 = arith.maximumf %1027, %1028 : vector<16x64xf32>
    %1030 = arith.truncf %1029 : vector<16x64xf32> to vector<16x64xbf16>
    %c1_550 = arith.constant 1 : index
    %c0_551 = arith.constant 0 : index
    %c0_552 = arith.constant 0 : index
    %1031 = vector.load %arg6[%c1_550, %c0_551, %c0_552] : memref<2x64x32xbf16, #tpu.memory_space<vmem>>, vector<1x64x32xbf16>
    %1032 = vector.shape_cast %1031 : vector<1x64x32xbf16> to vector<64x32xbf16>
    %cst_553 = arith.constant dense<0.000000e+00> : vector<16x32xf32>
    %1033 = tpu.matmul %1030, %1032, %cst_553 {dimension_numbers = #tpu.dot_dimension_numbers<[1], [0], [0], [1], [0, 0, 1, 1], [], []>} : vector<16x64xbf16>, vector<64x32xbf16>, vector<16x32xf32> -> vector<16x32xf32>
    %1034 = arith.addf %993, %1033 : vector<16x32xf32>
    %c17_554 = arith.constant 17 : index
    %c0_555 = arith.constant 0 : index
    %c0_556 = arith.constant 0 : index
    %1035 = vector.load %arg9[%c17_554, %c0_555, %c0_556] : memref<20x1x32xf32, #tpu.memory_space<vmem>>, vector<1x1x32xf32>
    %1036 = vector.shape_cast %1035 : vector<1x1x32xf32> to vector<1x32xf32>
    %1037 = vector.broadcast %1036 : vector<1x32xf32> to vector<16x32xf32>
    %1038 = arith.addf %1034, %1037 : vector<16x32xf32>
    %cst_557 = arith.constant dense<0.000000e+00> : vector<16xf32>
    %1039 = vector.multi_reduction <add>, %1038, %cst_557 [1] : vector<16x32xf32> to vector<16xf32>
    %1040 = vector.shape_cast %1039 : vector<16xf32> to vector<16x1xf32>
    %cst_558 = arith.constant 3.200000e+01 : f32
    %1041 = vector.broadcast %cst_558 : f32 to vector<16x1xf32>
    %1042 = arith.divf %1040, %1041 : vector<16x1xf32>
    %1043 = arith.mulf %1038, %1038 : vector<16x32xf32>
    %cst_559 = arith.constant dense<0.000000e+00> : vector<16xf32>
    %1044 = vector.multi_reduction <add>, %1043, %cst_559 [1] : vector<16x32xf32> to vector<16xf32>
    %1045 = vector.shape_cast %1044 : vector<16xf32> to vector<16x1xf32>
    %cst_560 = arith.constant 3.200000e+01 : f32
    %1046 = vector.broadcast %cst_560 : f32 to vector<16x1xf32>
    %1047 = arith.divf %1045, %1046 : vector<16x1xf32>
    %1048 = arith.mulf %1042, %1042 : vector<16x1xf32>
    %1049 = arith.subf %1047, %1048 : vector<16x1xf32>
    %1050 = vector.broadcast %1042 : vector<16x1xf32> to vector<16x32xf32>
    %1051 = arith.subf %1038, %1050 : vector<16x32xf32>
    %cst_561 = arith.constant 9.99999997E-7 : f32
    %1052 = vector.broadcast %cst_561 : f32 to vector<16x1xf32>
    %1053 = arith.addf %1049, %1052 : vector<16x1xf32>
    %1054 = math.rsqrt %1053 : vector<16x1xf32>
    %1055 = vector.broadcast %1054 : vector<16x1xf32> to vector<16x32xf32>
    %1056 = arith.mulf %1051, %1055 : vector<16x32xf32>
    %c18_562 = arith.constant 18 : index
    %c0_563 = arith.constant 0 : index
    %c0_564 = arith.constant 0 : index
    %1057 = vector.load %arg9[%c18_562, %c0_563, %c0_564] : memref<20x1x32xf32, #tpu.memory_space<vmem>>, vector<1x1x32xf32>
    %1058 = vector.shape_cast %1057 : vector<1x1x32xf32> to vector<1x32xf32>
    %1059 = vector.broadcast %1058 : vector<1x32xf32> to vector<16x32xf32>
    %1060 = arith.mulf %1056, %1059 : vector<16x32xf32>
    %c19_565 = arith.constant 19 : index
    %c0_566 = arith.constant 0 : index
    %c0_567 = arith.constant 0 : index
    %1061 = vector.load %arg9[%c19_565, %c0_566, %c0_567] : memref<20x1x32xf32, #tpu.memory_space<vmem>>, vector<1x1x32xf32>
    %1062 = vector.shape_cast %1061 : vector<1x1x32xf32> to vector<1x32xf32>
    %1063 = vector.broadcast %1062 : vector<1x32xf32> to vector<16x32xf32>
    %1064 = arith.addf %1060, %1063 : vector<16x32xf32>
    %c0_568 = arith.constant 0 : index
    %c0_569 = arith.constant 0 : index
    %1065 = vector.load %arg10[%c0_568, %c0_569] : memref<16x32xf32, #tpu.memory_space<vmem>>, vector<16x32xf32>
    tpu.vector_store %arg10[%c0_568, %c0_569], %1064 {strides = array<i32>} : memref<16x32xf32, #tpu.memory_space<vmem>>, vector<16x32xf32>,
    return
  }
}

</mosaic_0001>

<llo_original>
// kernel: decoder_forward.1
$region0: #{decoder_forward.1}
  #allocation0 [shape = 'u32[]', space=smem, size = 0x4, offset = 0x4, fixed_abs, tag = 'smem constant byte address 0x4 - core index']
  #allocation1 [shape = 'u32[144,128]{1,0:T(1,128)}', space=vmem, size = 0x12000, scoped, tag = 'internal scratch']
  %s0 = inlined_call_operand.vmem [shape: f32[16,32], index: 0, kind: input, shape index: {}]
  %s1 = inlined_call_operand.vmem [shape: f32[32,32], index: 1, kind: input, shape index: {}]
  %s2 = inlined_call_operand.vmem [shape: f32[2,8,8], index: 2, kind: input, shape index: {}]
  %s3 = inlined_call_operand.vmem [shape: f32[2,1,16], index: 3, kind: input, shape index: {}]
  %s4 = inlined_call_operand.vmem [shape: bf16[64,32,8], index: 4, kind: input, shape index: {}]
  %s5 = inlined_call_operand.vmem [shape: bf16[2,32,64], index: 5, kind: input, shape index: {}]
  %s6 = inlined_call_operand.vmem [shape: bf16[2,64,32], index: 6, kind: input, shape index: {}]
  %s7 = inlined_call_operand.vmem [shape: f32[48,1,8], index: 7, kind: input, shape index: {}]
  %s8 = inlined_call_operand.vmem [shape: f32[2,1,64], index: 8, kind: input, shape index: {}]
  %s9 = inlined_call_operand.vmem [shape: f32[20,1,32], index: 9, kind: input, shape index: {}]
  %s10 = inlined_call_operand.hbm [shape: f32[16,32], index: 10, kind: output, shape index: {}]
  %s11 = sld [smem:[#allocation0]]
  $region50: #{decoder_forward.1} parent=0
    _
  %s13 = ssub.s32 1, %s11
  %s14 = scalar_select 0, %s13, %s11
  $region1: #{decoder_forward.1} parent=0
    #allocation2 [shape = 'u8[8192]{0}', space=vmem, size = 0x2000, scoped, tag = 'output window, operand 0, single buffered']
    #allocation3 [shape = 's32[1]{0}', space=sflag, size = 0x4, scoped, tag = 'scoped memory for decoder_forward.1']
    %15 = vsyncpa [#allocation3], 0
    // Predicated region
    $region2: #{decoder_forward.1} parent=1 // pred_check
      _
    $region3: #{decoder_forward.1} parent=1 // pred_check_branch
      %17 = sbr.rel (0) target = $region5
    $region4: #{decoder_forward.1} parent=1 // pred_region
      _
    $region5: #{decoder_forward.1} parent=1 // pred_fallthru
      _
    // Predicated region
    $region6: #{decoder_forward.1} parent=1 // pred_check
      _
    $region7: #{decoder_forward.1} parent=1 // pred_check_branch
      %19 = sbr.rel (0) target = $region9
    $region8: #{decoder_forward.1} parent=1 // pred_region
      _
    $region9: #{decoder_forward.1} parent=1 // pred_fallthru
      _
    // Predicated region
    $region10: #{decoder_forward.1} parent=1 // pred_check
      _
    $region11: #{decoder_forward.1} parent=1 // pred_check_branch
      %21 = sbr.rel (0) target = $region13
    $region12: #{decoder_forward.1} parent=1 // pred_region
      _
    $region13: #{decoder_forward.1} parent=1 // pred_fallthru
      _
    // Predicated region
    $region14: #{decoder_forward.1} parent=1 // pred_check
      _
    $region15: #{decoder_forward.1} parent=1 // pred_check_branch
      %23 = sbr.rel (0) target = $region17
    $region16: #{decoder_forward.1} parent=1 // pred_region
      _
    $region17: #{decoder_forward.1} parent=1 // pred_fallthru
      _
    // Predicated region
    $region18: #{decoder_forward.1} parent=1 // pred_check
      _
    $region19: #{decoder_forward.1} parent=1 // pred_check_branch
      %25 = sbr.rel (0) target = $region21
    $region20: #{decoder_forward.1} parent=1 // pred_region
      _
    $region21: #{decoder_forward.1} parent=1 // pred_fallthru
      _
    // Predicated region
    $region22: #{decoder_forward.1} parent=1 // pred_check
      _
    $region23: #{decoder_forward.1} parent=1 // pred_check_branch
      %27 = sbr.rel (0) target = $region25
    $region24: #{decoder_forward.1} parent=1 // pred_region
      _
    $region25: #{decoder_forward.1} parent=1 // pred_fallthru
      _
    // Predicated region
    $region26: #{decoder_forward.1} parent=1 // pred_check
      _
    $region27: #{decoder_forward.1} parent=1 // pred_check_branch
      %29 = sbr.rel (0) target = $region29
    $region28: #{decoder_forward.1} parent=1 // pred_region
      _
    $region29: #{decoder_forward.1} parent=1 // pred_fallthru
      _
    // Predicated region
    $region30: #{decoder_forward.1} parent=1 // pred_check
      _
    $region31: #{decoder_forward.1} parent=1 // pred_check_branch
      %31 = sbr.rel (0) target = $region33
    $region32: #{decoder_forward.1} parent=1 // pred_region
      _
    $region33: #{decoder_forward.1} parent=1 // pred_fallthru
      _
    // Predicated region
    $region34: #{decoder_forward.1} parent=1 // pred_check
      _
    $region35: #{decoder_forward.1} parent=1 // pred_check_branch
      %33 = sbr.rel (0) target = $region37
    $region36: #{decoder_forward.1} parent=1 // pred_region
      _
    $region37: #{decoder_forward.1} parent=1 // pred_fallthru
      _
    // Predicated region
    $region38: #{decoder_forward.1} parent=1 // pred_check
      _
    $region39: #{decoder_forward.1} parent=1 // pred_check_branch
      %35 = sbr.rel (0) target = $region41
    $region40: #{decoder_forward.1} parent=1 // pred_region
      _
    $region41: #{decoder_forward.1} parent=1 // pred_fallthru
      _
    %v37 = vld [vmem:[%s0] sm:$0xff]
    %v38 = vld [vmem:[%s0 + $0x8] sm:$0xff]
    %v39 = vld [vmem:[%s1] sm:$0xff]
    %v40 = vld [vmem:[%s1 + $0x8] sm:$0xff]
    %v41 = vld [vmem:[%s1 + $0x10] sm:$0xff]
    %v42 = vld [vmem:[%s1 + $0x18] sm:$0xff]
    %v43 = vpack.c.bf16 %v40, %v39
    %v44 = vpack.c.bf16 %v42, %v41
    %v45 = vld [vmem:[%s2] sm:$0xff]
    %v46 = vld [vmem:[%s2 + $0x8] sm:$0xff]
    %v47 = vld [vmem:[%s3] sm:$0x1]
    %v48 = vld [vmem:[%s3 + $0x1] sm:$0x1]
    %vm49 = vcmask 261120
    %v50 = vsel %vm49, %v37, 0.0
    %51 = vadd.xlane.f32.xlu0 %v50
    %v52 = vpop.xlane.xlu0 %51
    %v53 = vsel %vm49, %v38, 0.0
    %54 = vadd.xlane.f32.xlu0 %v53
    %v55 = vpop.xlane.xlu0 %54
    %v56 = vrcp.pop 32.0
    %v57 = vmul.f32 %v52, %v56
    %v58 = vmul.f32 %v55, %v56
    %v59 = vmul.f32 %v37, %v37
    %v60 = vmul.f32 %v38, %v38
    %v61 = vsel %vm49, %v59, 0.0
    %62 = vadd.xlane.f32.xlu0 %v61
    %v63 = vpop.xlane.xlu0 %62
    %v64 = vsel %vm49, %v60, 0.0
    %65 = vadd.xlane.f32.xlu0 %v64
    %v66 = vpop.xlane.xlu0 %65
    %v67 = vmul.f32 %v63, %v56
    %v68 = vmul.f32 %v66, %v56
    %v69 = vmul.f32 %v57, %v57
    %v70 = vmul.f32 %v58, %v58
    %v71 = vsub.f32 %v67, %v69
    %v72 = vsub.f32 %v68, %v70
    %v73 = vsub.f32 %v37, %v57
    %v74 = vsub.f32 %v38, %v58
    %v75 = vadd.f32 %v71, 1e-06
    %v76 = vadd.f32 %v72, 1e-06
    %v77 = vrsqrt.pop %v75
    %v78 = vrsqrt.pop %v76
    %v79 = vmul.f32 %v73, %v77
    %v80 = vmul.f32 %v74, %v78
    %v81 = vld [vmem:[%s9] sm:$0x1]
    %v83 = vlaneseq
    %v84 = vshrl.u32 %v83, 7
    %v85 = vsub.s32 0, %v84
    %v86 = vrot.slane %v81, %v85
    %v88 = vmul.f32 %v79, %v86
    %v89 = vmul.f32 %v80, %v86
    %s90 = scalar_lea.vmem %s9, 1
    %v91 = vld [vmem:[%s90] sm:$0x1]
    %v93 = vlaneseq
    %v94 = vshrl.u32 %v93, 7
    %v95 = vsub.s32 0, %v94
    %v96 = vrot.slane %v91, %v95
    %v98 = vadd.f32 %v88, %v96
    %v99 = vadd.f32 %v89, %v96
    %v100 = vpack.c.bf16 %v99, %v98
    %vm101 = vcmp.gt.f32.partialorder %v45, 0.0
    %vm102 = vcmp.gt.f32.partialorder %v46, 0.0
    %v103 = vld [vmem:[%s4] sm:$0xf]
    %v104 = vld [vmem:[%s4 + $0x4] sm:$0xf]
    %v105 = vld [vmem:[%s4 + $0x8] sm:$0xf]
    %v106 = vld [vmem:[%s4 + $0xc] sm:$0xf]
    %v107 = vld [vmem:[%s7] sm:$0x1]
    %v109 = vlaneseq
    %v110 = vshrl.u32 %v109, 7
    %v111 = vsub.s32 0, %v110
    %v112 = vrot.slane %v107, %v111
    %v118 = vunpack.c.l.b16 %v103
    %v119 = vunpack.c.l.b16 %v104
    %v120 = vunpack.c.l.b16 %v105
    %v121 = vunpack.c.l.b16 %v106
    %v122 = vpack.c.b16 %v119, %v118
    %v123 = vpack.c.b16 %v121, %v120
    %v127 = vsel %vm49, %v100, 0
    %129 = vmatprep.subr.bf16.mxu0 0
    %130 = vmatpush1.bf16.msra.mxu0 %v122
    %131 = vmatprep.subr.bf16.mxu0 0
    %132 = vmatpush1.bf16.msra.mxu0 %v123
    %133 = vmatprep.subr.bf16.mxu0 0
    %134 = vmatpush1.bf16.msra.mxu0 0
    %135 = vmatprep.subr.bf16.mxu0 0
    %136 = vmatpush1.bf16.msra.mxu0 0
    %137 = vmatprep.subr.bf16.mxu0 0
    %138 = vmatpush1.bf16.msra.mxu0 0
    %139 = vmatprep.subr.bf16.mxu0 0
    %140 = vmatpush1.bf16.msra.mxu0 0
    %141 = vmatprep.subr.bf16.mxu0 0
    %142 = vmatpush1.bf16.msra.mxu0 0
    %143 = vmatprep.subr.bf16.mxu0 0
    %144 = vmatpush1.bf16.msra.mxu0 0
    %145 = vmatprep.subr.bf16.mxu0 0
    %146 = vmatpush1.bf16.msra.mxu0 0
    %147 = vmatprep.subr.bf16.mxu0 0
    %148 = vmatpush1.bf16.msra.mxu0 0
    %149 = vmatprep.subr.bf16.mxu0 0
    %150 = vmatpush1.bf16.msra.mxu0 0
    %151 = vmatprep.subr.bf16.mxu0 0
    %152 = vmatpush1.bf16.msra.mxu0 0
    %153 = vmatprep.subr.bf16.mxu0 0
    %154 = vmatpush1.bf16.msra.mxu0 0
    %155 = vmatprep.subr.bf16.mxu0 0
    %156 = vmatpush1.bf16.msra.mxu0 0
    %157 = vmatprep.subr.bf16.mxu0 0
    %158 = vmatpush1.bf16.msra.mxu0 0
    %159 = vmatprep.subr.bf16.mxu0 0
    %160 = vmatpush1.bf16.msra.mxu0 0
    %161 = vmatprep.mubr.bf16.mxu0 0
    %162 = vmatmul.mubr.bf16.gmra.mrb[0].mxu0 %v127
    %v163 = vpop.f32.mrb[0].mxu0
    %v164 = vadd.f32 %v112, %v163
    %v165 = vpop.f32.mrb[0].mxu0
    %v166 = vpop.f32.mrb[0].mxu0
    %v167 = vadd.f32 %v112, %v166
    %v168 = vpop.f32.mrb[0].mxu0
    %169 = vdwg.mxu0
    %s170 = scalar_lea.vmem %s4, 64
    %v171 = vld [vmem:[%s170] sm:$0xf]
    %v172 = vld [vmem:[%s170 + $0x4] sm:$0xf]
    %v173 = vld [vmem:[%s170 + $0x8] sm:$0xf]
    %v174 = vld [vmem:[%s170 + $0xc] sm:$0xf]
    %s175 = scalar_lea.vmem %s7, 4
    %v176 = vld [vmem:[%s175] sm:$0x1]
    %v178 = vlaneseq
    %v179 = vshrl.u32 %v178, 7
    %v180 = vsub.s32 0, %v179
    %v181 = vrot.slane %v176, %v180
    %v187 = vunpack.c.l.b16 %v171
    %v188 = vunpack.c.l.b16 %v172
    %v189 = vunpack.c.l.b16 %v173
    %v190 = vunpack.c.l.b16 %v174
    %v191 = vpack.c.b16 %v188, %v187
    %v192 = vpack.c.b16 %v190, %v189
    %195 = vmatprep.subr.bf16.mxu0 0
    %196 = vmatpush1.bf16.msra.mxu0 %v191
    %197 = vmatprep.subr.bf16.mxu0 0
    %198 = vmatpush1.bf16.msra.mxu0 %v192
    %199 = vmatprep.subr.bf16.mxu0 0
    %200 = vmatpush1.bf16.msra.mxu0 0
    %201 = vmatprep.subr.bf16.mxu0 0
    %202 = vmatpush1.bf16.msra.mxu0 0
    %203 = vmatprep.subr.bf16.mxu0 0
    %204 = vmatpush1.bf16.msra.mxu0 0
    %205 = vmatprep.subr.bf16.mxu0 0
    %206 = vmatpush1.bf16.msra.mxu0 0
    %207 = vmatprep.subr.bf16.mxu0 0
    %208 = vmatpush1.bf16.msra.mxu0 0
    %209 = vmatprep.subr.bf16.mxu0 0
    %210 = vmatpush1.bf16.msra.mxu0 0
    %211 = vmatprep.subr.bf16.mxu0 0
    %212 = vmatpush1.bf16.msra.mxu0 0
    %213 = vmatprep.subr.bf16.mxu0 0
    %214 = vmatpush1.bf16.msra.mxu0 0
    %215 = vmatprep.subr.bf16.mxu0 0
    %216 = vmatpush1.bf16.msra.mxu0 0
    %217 = vmatprep.subr.bf16.mxu0 0
    %218 = vmatpush1.bf16.msra.mxu0 0
    %219 = vmatprep.subr.bf16.mxu0 0
    %220 = vmatpush1.bf16.msra.mxu0 0
    %221 = vmatprep.subr.bf16.mxu0 0
    %222 = vmatpush1.bf16.msra.mxu0 0
    %223 = vmatprep.subr.bf16.mxu0 0
    %224 = vmatpush1.bf16.msra.mxu0 0
    %225 = vmatprep.subr.bf16.mxu0 0
    %226 = vmatpush1.bf16.msra.mxu0 0
    %227 = vmatprep.mubr.bf16.mxu0 0
    %228 = vmatmul.mubr.bf16.gmra.mrb[0].mxu0 %v127
    %v229 = vpop.f32.mrb[0].mxu0
    %v230 = vadd.f32 %v181, %v229
    %v231 = vpop.f32.mrb[0].mxu0
    %v232 = vpop.f32.mrb[0].mxu0
    %v233 = vadd.f32 %v181, %v232
    %v234 = vpop.f32.mrb[0].mxu0
    %235 = vdwg.mxu0
    %s236 = scalar_lea.vmem %s4, 128
    %v237 = vld [vmem:[%s236] sm:$0xf]
    %v238 = vld [vmem:[%s236 + $0x4] sm:$0xf]
    %v239 = vld [vmem:[%s236 + $0x8] sm:$0xf]
    %v240 = vld [vmem:[%s236 + $0xc] sm:$0xf]
    %s241 = scalar_lea.vmem %s7, 8
    %v242 = vld [vmem:[%s241] sm:$0x1]
    %v244 = vlaneseq
    %v245 = vshrl.u32 %v244, 7
    %v246 = vsub.s32 0, %v245
    %v247 = vrot.slane %v242, %v246
    %v253 = vunpack.c.l.b16 %v237
    %v254 = vunpack.c.l.b16 %v238
    %v255 = vunpack.c.l.b16 %v239
    %v256 = vunpack.c.l.b16 %v240
    %v257 = vpack.c.b16 %v254, %v253
    %v258 = vpack.c.b16 %v256, %v255
    %261 = vmatprep.subr.bf16.mxu0 0
    %262 = vmatpush1.bf16.msra.mxu0 %v257
    %263 = vmatprep.subr.bf16.mxu0 0
    %264 = vmatpush1.bf16.msra.mxu0 %v258
    %265 = vmatprep.subr.bf16.mxu0 0
    %266 = vmatpush1.bf16.msra.mxu0 0
    %267 = vmatprep.subr.bf16.mxu0 0
    %268 = vmatpush1.bf16.msra.mxu0 0
    %269 = vmatprep.subr.bf16.mxu0 0
    %270 = vmatpush1.bf16.msra.mxu0 0
    %271 = vmatprep.subr.bf16.mxu0 0
    %272 = vmatpush1.bf16.msra.mxu0 0
    %273 = vmatprep.subr.bf16.mxu0 0
    %274 = vmatpush1.bf16.msra.mxu0 0
    %275 = vmatprep.subr.bf16.mxu0 0
    %276 = vmatpush1.bf16.msra.mxu0 0
    %277 = vmatprep.subr.bf16.mxu0 0
    %278 = vmatpush1.bf16.msra.mxu0 0
    %279 = vmatprep.subr.bf16.mxu0 0
    %280 = vmatpush1.bf16.msra.mxu0 0
    %281 = vmatprep.subr.bf16.mxu0 0
    %282 = vmatpush1.bf16.msra.mxu0 0
    %283 = vmatprep.subr.bf16.mxu0 0
    %284 = vmatpush1.bf16.msra.mxu0 0
    %285 = vmatprep.subr.bf16.mxu0 0
    %286 = vmatpush1.bf16.msra.mxu0 0
    %287 = vmatprep.subr.bf16.mxu0 0
    %288 = vmatpush1.bf16.msra.mxu0 0
    %289 = vmatprep.subr.bf16.mxu0 0
    %290 = vmatpush1.bf16.msra.mxu0 0
    %291 = vmatprep.subr.bf16.mxu0 0
    %292 = vmatpush1.bf16.msra.mxu0 0
    %293 = vmatprep.mubr.bf16.mxu0 0
    %294 = vmatmul.mubr.bf16.gmra.mrb[0].mxu0 %v127
    %v295 = vpop.f32.mrb[0].mxu0
    %v296 = vadd.f32 %v247, %v295
    %v297 = vpop.f32.mrb[0].mxu0
    %v298 = vpop.f32.mrb[0].mxu0
    %v299 = vadd.f32 %v247, %v298
    %v300 = vpop.f32.mrb[0].mxu0
    %301 = vdwg.mxu0
    %v302 = vpack.c.bf16 %v164, %v164
    %v303 = vpack.c.bf16 %v167, %v167
    %v304 = vpack.c.bf16 %v230, %v230
    %v305 = vpack.c.bf16 %v233, %v233
    %v306 = vpack.c.bf16 %v296, %v296
    %v307 = vpack.c.bf16 %v299, %v299
    %vm308 = vcmask 64512
    %v310 = vsel %vm308, %v302, 0
    %v313 = vsel %vm308, %v304, 0
    %315 = vmatprep.subr.bf16.mxu0 0
    %316 = vmatpush1.bf16.xpose.msra.mxu0 %v313
    %317 = vmatprep.subr.bf16.mxu0 0
    %318 = vmatpush1.bf16.xpose.msra.mxu0 0
    %319 = vmatprep.subr.bf16.mxu0 0
    %320 = vmatpush1.bf16.xpose.msra.mxu0 0
    %321 = vmatprep.subr.bf16.mxu0 0
    %322 = vmatpush1.bf16.xpose.msra.mxu0 0
    %323 = vmatprep.subr.bf16.mxu0 0
    %324 = vmatpush1.bf16.xpose.msra.mxu0 0
    %325 = vmatprep.subr.bf16.mxu0 0
    %326 = vmatpush1.bf16.xpose.msra.mxu0 0
    %327 = vmatprep.subr.bf16.mxu0 0
    %328 = vmatpush1.bf16.xpose.msra.mxu0 0
    %329 = vmatprep.subr.bf16.mxu0 0
    %330 = vmatpush1.bf16.xpose.msra.mxu0 0
    %331 = vmatprep.subr.bf16.mxu0 0
    %332 = vmatpush1.bf16.xpose.msra.mxu0 0
    %333 = vmatprep.subr.bf16.mxu0 0
    %334 = vmatpush1.bf16.xpose.msra.mxu0 0
    %335 = vmatprep.subr.bf16.mxu0 0
    %336 = vmatpush1.bf16.xpose.msra.mxu0 0
    %337 = vmatprep.subr.bf16.mxu0 0
    %338 = vmatpush1.bf16.xpose.msra.mxu0 0
    %339 = vmatprep.subr.bf16.mxu0 0
    %340 = vmatpush1.bf16.xpose.msra.mxu0 0
    %341 = vmatprep.subr.bf16.mxu0 0
    %342 = vmatpush1.bf16.xpose.msra.mxu0 0
    %343 = vmatprep.subr.bf16.mxu0 0
    %344 = vmatpush1.bf16.xpose.msra.mxu0 0
    %345 = vmatprep.subr.bf16.mxu0 0
    %346 = vmatpush1.bf16.xpose.msra.mxu0 0
    %347 = vmatprep.mubr.bf16.mxu0 0
    %348 = vmatmul.mubr.bf16.gmra.mrb[0].mxu0 %v310
    %v349 = vpop.f32.mrb[0].mxu0
    %v350 = vadd.f32 0.0, %v349
    %v351 = vpop.f32.mrb[0].mxu0
    %v352 = vpop.f32.mrb[0].mxu0
    %v353 = vpop.f32.mrb[0].mxu0
    %354 = vdwg.mxu0
    %v356 = vsel %vm308, %v303, 0
    %v359 = vsel %vm308, %v305, 0
    %361 = vmatprep.subr.bf16.mxu0 0
    %362 = vmatpush1.bf16.xpose.msra.mxu0 %v359
    %363 = vmatprep.subr.bf16.mxu0 0
    %364 = vmatpush1.bf16.xpose.msra.mxu0 0
    %365 = vmatprep.subr.bf16.mxu0 0
    %366 = vmatpush1.bf16.xpose.msra.mxu0 0
    %367 = vmatprep.subr.bf16.mxu0 0
    %368 = vmatpush1.bf16.xpose.msra.mxu0 0
    %369 = vmatprep.subr.bf16.mxu0 0
    %370 = vmatpush1.bf16.xpose.msra.mxu0 0
    %371 = vmatprep.subr.bf16.mxu0 0
    %372 = vmatpush1.bf16.xpose.msra.mxu0 0
    %373 = vmatprep.subr.bf16.mxu0 0
    %374 = vmatpush1.bf16.xpose.msra.mxu0 0
    %375 = vmatprep.subr.bf16.mxu0 0
    %376 = vmatpush1.bf16.xpose.msra.mxu0 0
    %377 = vmatprep.subr.bf16.mxu0 0
    %378 = vmatpush1.bf16.xpose.msra.mxu0 0
    %379 = vmatprep.subr.bf16.mxu0 0
    %380 = vmatpush1.bf16.xpose.msra.mxu0 0
    %381 = vmatprep.subr.bf16.mxu0 0
    %382 = vmatpush1.bf16.xpose.msra.mxu0 0
    %383 = vmatprep.subr.bf16.mxu0 0
    %384 = vmatpush1.bf16.xpose.msra.mxu0 0
    %385 = vmatprep.subr.bf16.mxu0 0
    %386 = vmatpush1.bf16.xpose.msra.mxu0 0
    %387 = vmatprep.subr.bf16.mxu0 0
    %388 = vmatpush1.bf16.xpose.msra.mxu0 0
    %389 = vmatprep.subr.bf16.mxu0 0
    %390 = vmatpush1.bf16.xpose.msra.mxu0 0
    %391 = vmatprep.subr.bf16.mxu0 0
    %392 = vmatpush1.bf16.xpose.msra.mxu0 0
    %393 = vmatprep.mubr.bf16.mxu0 0
    %394 = vmatmul.mubr.bf16.gmra.mrb[0].mxu0 %v356
    %v395 = vpop.f32.mrb[0].mxu0
    %v396 = vadd.f32 0.0, %v395
    %v397 = vpop.f32.mrb[0].mxu0
    %v398 = vpop.f32.mrb[0].mxu0
    %v399 = vpop.f32.mrb[0].mxu0
    %400 = vdwg.mxu0
    %v401 = vmul.f32 %v350, 0.35355338
    %v402 = vmul.f32 %v396, 0.35355338
    %v403 = vsel %vm101, %v401, -1e+09
    %v404 = vsel %vm102, %v402, -1e+09
    %v405 = vsel %vm308, %v403, -inf
    %406 = vmax.xlane.f32.xlu0 %v405
    %v407 = vpop.xlane.xlu0 %406
    %v408 = vsel %vm308, %v404, -inf
    %409 = vmax.xlane.f32.xlu0 %v408
    %v410 = vpop.xlane.xlu0 %409
    %v411 = vsub.f32 %v403, %v407
    %v412 = vsub.f32 %v404, %v410
    %v413 = vmul.f32 %v411, 1.442695
    %v414 = vpow.pop %v413
    %v415 = vmul.f32 %v412, 1.442695
    %v416 = vpow.pop %v415
    %v417 = vsel %vm308, %v414, 0.0
    %418 = vadd.xlane.f32.xlu0 %v417
    %v419 = vpop.xlane.xlu0 %418
    %v420 = vsel %vm308, %v416, 0.0
    %421 = vadd.xlane.f32.xlu0 %v420
    %v422 = vpop.xlane.xlu0 %421
    %v423 = vrcp.pop %v419
    %v424 = vrcp.pop %v422
    %v425 = vmul.f32 %v414, %v423
    %v426 = vmul.f32 %v416, %v424
    %v427 = vpack.c.bf16 %v425, %v425
    %v428 = vpack.c.bf16 %v426, %v426
    %v430 = vsel %vm308, %v427, 0
    %vm432 = vcmask 1043456
    %v434 = vsel %vm432, %v306, 0
    %436 = vmatprep.subr.bf16.mxu0 0
    %437 = vmatpush1.bf16.msra.mxu0 %v434
    %438 = vmatprep.subr.bf16.mxu0 0
    %439 = vmatpush1.bf16.msra.mxu0 0
    %440 = vmatprep.subr.bf16.mxu0 0
    %441 = vmatpush1.bf16.msra.mxu0 0
    %442 = vmatprep.subr.bf16.mxu0 0
    %443 = vmatpush1.bf16.msra.mxu0 0
    %444 = vmatprep.subr.bf16.mxu0 0
    %445 = vmatpush1.bf16.msra.mxu0 0
    %446 = vmatprep.subr.bf16.mxu0 0
    %447 = vmatpush1.bf16.msra.mxu0 0
    %448 = vmatprep.subr.bf16.mxu0 0
    %449 = vmatpush1.bf16.msra.mxu0 0
    %450 = vmatprep.subr.bf16.mxu0 0
    %451 = vmatpush1.bf16.msra.mxu0 0
    %452 = vmatprep.subr.bf16.mxu0 0
    %453 = vmatpush1.bf16.msra.mxu0 0
    %454 = vmatprep.subr.bf16.mxu0 0
    %455 = vmatpush1.bf16.msra.mxu0 0
    %456 = vmatprep.subr.bf16.mxu0 0
    %457 = vmatpush1.bf16.msra.mxu0 0
    %458 = vmatprep.subr.bf16.mxu0 0
    %459 = vmatpush1.bf16.msra.mxu0 0
    %460 = vmatprep.subr.bf16.mxu0 0
    %461 = vmatpush1.bf16.msra.mxu0 0
    %462 = vmatprep.subr.bf16.mxu0 0
    %463 = vmatpush1.bf16.msra.mxu0 0
    %464 = vmatprep.subr.bf16.mxu0 0
    %465 = vmatpush1.bf16.msra.mxu0 0
    %466 = vmatprep.subr.bf16.mxu0 0
    %467 = vmatpush1.bf16.msra.mxu0 0
    %468 = vmatprep.mubr.bf16.mxu0 0
    %469 = vmatmul.mubr.bf16.gmra.mrb[0].mxu0 %v430
    %v470 = vpop.f32.mrb[0].mxu0
    %v471 = vadd.f32 0.0, %v470
    %v472 = vpop.f32.mrb[0].mxu0
    %v473 = vpop.f32.mrb[0].mxu0
    %v474 = vpop.f32.mrb[0].mxu0
    %475 = vdwg.mxu0
    %v477 = vsel %vm308, %v428, 0
    %v480 = vsel %vm432, %v307, 0
    %482 = vmatprep.subr.bf16.mxu0 0
    %483 = vmatpush1.bf16.msra.mxu0 %v480
    %484 = vmatprep.subr.bf16.mxu0 0
    %485 = vmatpush1.bf16.msra.mxu0 0
    %486 = vmatprep.subr.bf16.mxu0 0
    %487 = vmatpush1.bf16.msra.mxu0 0
    %488 = vmatprep.subr.bf16.mxu0 0
    %489 = vmatpush1.bf16.msra.mxu0 0
    %490 = vmatprep.subr.bf16.mxu0 0
    %491 = vmatpush1.bf16.msra.mxu0 0
    %492 = vmatprep.subr.bf16.mxu0 0
    %493 = vmatpush1.bf16.msra.mxu0 0
    %494 = vmatprep.subr.bf16.mxu0 0
    %495 = vmatpush1.bf16.msra.mxu0 0
    %496 = vmatprep.subr.bf16.mxu0 0
    %497 = vmatpush1.bf16.msra.mxu0 0
    %498 = vmatprep.subr.bf16.mxu0 0
    %499 = vmatpush1.bf16.msra.mxu0 0
    %500 = vmatprep.subr.bf16.mxu0 0
    %501 = vmatpush1.bf16.msra.mxu0 0
    %502 = vmatprep.subr.bf16.mxu0 0
    %503 = vmatpush1.bf16.msra.mxu0 0
    %504 = vmatprep.subr.bf16.mxu0 0
    %505 = vmatpush1.bf16.msra.mxu0 0
    %506 = vmatprep.subr.bf16.mxu0 0
    %507 = vmatpush1.bf16.msra.mxu0 0
    %508 = vmatprep.subr.bf16.mxu0 0
    %509 = vmatpush1.bf16.msra.mxu0 0
    %510 = vmatprep.subr.bf16.mxu0 0
    %511 = vmatpush1.bf16.msra.mxu0 0
    %512 = vmatprep.subr.bf16.mxu0 0
    %513 = vmatpush1.bf16.msra.mxu0 0
    %514 = vmatprep.mubr.bf16.mxu0 0
    %515 = vmatmul.mubr.bf16.gmra.mrb[0].mxu0 %v477
    %v516 = vpop.f32.mrb[0].mxu0
    %v517 = vadd.f32 0.0, %v516
    %v518 = vpop.f32.mrb[0].mxu0
    %v519 = vpop.f32.mrb[0].mxu0
    %v520 = vpop.f32.mrb[0].mxu0
    %521 = vdwg.mxu0
    %v522 = vpack.c.bf16 %v517, %v471
    %s523 = scalar_lea.vmem %s4, 768
    %v524 = vld [vmem:[%s523] sm:$0xf]
    %v525 = vld [vmem:[%s523 + $0x4] sm:$0xf]
    %v526 = vld [vmem:[%s523 + $0x8] sm:$0xf]
    %v527 = vld [vmem:[%s523 + $0xc] sm:$0xf]
    %s528 = scalar_lea.vmem %s4, 16
    %v529 = vld [vmem:[%s528] sm:$0xf]
    %v530 = vld [vmem:[%s528 + $0x4] sm:$0xf]
    %v531 = vld [vmem:[%s528 + $0x8] sm:$0xf]
    %v532 = vld [vmem:[%s528 + $0xc] sm:$0xf]
    %s533 = scalar_lea.vmem %s7, 1
    %v534 = vld [vmem:[%s533] sm:$0x1]
    %v536 = vlaneseq
    %v537 = vshrl.u32 %v536, 7
    %v538 = vsub.s32 0, %v537
    %v539 = vrot.slane %v534, %v538
    %v545 = vunpack.c.l.b16 %v529
    %v546 = vunpack.c.l.b16 %v530
    %v547 = vunpack.c.l.b16 %v531
    %v548 = vunpack.c.l.b16 %v532
    %v549 = vpack.c.b16 %v546, %v545
    %v550 = vpack.c.b16 %v548, %v547
    %553 = vmatprep.subr.bf16.mxu0 0
    %554 = vmatpush1.bf16.msra.mxu0 %v549
    %555 = vmatprep.subr.bf16.mxu0 0
    %556 = vmatpush1.bf16.msra.mxu0 %v550
    %557 = vmatprep.subr.bf16.mxu0 0
    %558 = vmatpush1.bf16.msra.mxu0 0
    %559 = vmatprep.subr.bf16.mxu0 0
    %560 = vmatpush1.bf16.msra.mxu0 0
    %561 = vmatprep.subr.bf16.mxu0 0
    %562 = vmatpush1.bf16.msra.mxu0 0
    %563 = vmatprep.subr.bf16.mxu0 0
    %564 = vmatpush1.bf16.msra.mxu0 0
    %565 = vmatprep.subr.bf16.mxu0 0
    %566 = vmatpush1.bf16.msra.mxu0 0
    %567 = vmatprep.subr.bf16.mxu0 0
    %568 = vmatpush1.bf16.msra.mxu0 0
    %569 = vmatprep.subr.bf16.mxu0 0
    %570 = vmatpush1.bf16.msra.mxu0 0
    %571 = vmatprep.subr.bf16.mxu0 0
    %572 = vmatpush1.bf16.msra.mxu0 0
    %573 = vmatprep.subr.bf16.mxu0 0
    %574 = vmatpush1.bf16.msra.mxu0 0
    %575 = vmatprep.subr.bf16.mxu0 0
    %576 = vmatpush1.bf16.msra.mxu0 0
    %577 = vmatprep.subr.bf16.mxu0 0
    %578 = vmatpush1.bf16.msra.mxu0 0
    %579 = vmatprep.subr.bf16.mxu0 0
    %580 = vmatpush1.bf16.msra.mxu0 0
    %581 = vmatprep.subr.bf16.mxu0 0
    %582 = vmatpush1.bf16.msra.mxu0 0
    %583 = vmatprep.subr.bf16.mxu0 0
    %584 = vmatpush1.bf16.msra.mxu0 0
    %585 = vmatprep.mubr.bf16.mxu0 0
    %586 = vmatmul.mubr.bf16.gmra.mrb[0].mxu0 %v127
    %v587 = vpop.f32.mrb[0].mxu0
    %v588 = vadd.f32 %v539, %v587
    %v589 = vpop.f32.mrb[0].mxu0
    %v590 = vpop.f32.mrb[0].mxu0
    %v591 = vadd.f32 %v539, %v590
    %v592 = vpop.f32.mrb[0].mxu0
    %593 = vdwg.mxu0
    %s594 = scalar_lea.vmem %s4, 80
    %v595 = vld [vmem:[%s594] sm:$0xf]
    %v596 = vld [vmem:[%s594 + $0x4] sm:$0xf]
    %v597 = vld [vmem:[%s594 + $0x8] sm:$0xf]
    %v598 = vld [vmem:[%s594 + $0xc] sm:$0xf]
    %s599 = scalar_lea.vmem %s7, 5
    %v600 = vld [vmem:[%s599] sm:$0x1]
    %v602 = vlaneseq
    %v603 = vshrl.u32 %v602, 7
    %v604 = vsub.s32 0, %v603
    %v605 = vrot.slane %v600, %v604
    %v611 = vunpack.c.l.b16 %v595
    %v612 = vunpack.c.l.b16 %v596
    %v613 = vunpack.c.l.b16 %v597
    %v614 = vunpack.c.l.b16 %v598
    %v615 = vpack.c.b16 %v612, %v611
    %v616 = vpack.c.b16 %v614, %v613
    %619 = vmatprep.subr.bf16.mxu0 0
    %620 = vmatpush1.bf16.msra.mxu0 %v615
    %621 = vmatprep.subr.bf16.mxu0 0
    %622 = vmatpush1.bf16.msra.mxu0 %v616
    %623 = vmatprep.subr.bf16.mxu0 0
    %624 = vmatpush1.bf16.msra.mxu0 0
    %625 = vmatprep.subr.bf16.mxu0 0
    %626 = vmatpush1.bf16.msra.mxu0 0
    %627 = vmatprep.subr.bf16.mxu0 0
    %628 = vmatpush1.bf16.msra.mxu0 0
    %629 = vmatprep.subr.bf16.mxu0 0
    %630 = vmatpush1.bf16.msra.mxu0 0
    %631 = vmatprep.subr.bf16.mxu0 0
    %632 = vmatpush1.bf16.msra.mxu0 0
    %633 = vmatprep.subr.bf16.mxu0 0
    %634 = vmatpush1.bf16.msra.mxu0 0
    %635 = vmatprep.subr.bf16.mxu0 0
    %636 = vmatpush1.bf16.msra.mxu0 0
    %637 = vmatprep.subr.bf16.mxu0 0
    %638 = vmatpush1.bf16.msra.mxu0 0
    %639 = vmatprep.subr.bf16.mxu0 0
    %640 = vmatpush1.bf16.msra.mxu0 0
    %641 = vmatprep.subr.bf16.mxu0 0
    %642 = vmatpush1.bf16.msra.mxu0 0
    %643 = vmatprep.subr.bf16.mxu0 0
    %644 = vmatpush1.bf16.msra.mxu0 0
    %645 = vmatprep.subr.bf16.mxu0 0
    %646 = vmatpush1.bf16.msra.mxu0 0
    %647 = vmatprep.subr.bf16.mxu0 0
    %648 = vmatpush1.bf16.msra.mxu0 0
    %649 = vmatprep.subr.bf16.mxu0 0
    %650 = vmatpush1.bf16.msra.mxu0 0
    %651 = vmatprep.mubr.bf16.mxu0 0
    %652 = vmatmul.mubr.bf16.gmra.mrb[0].mxu0 %v127
    %v653 = vpop.f32.mrb[0].mxu0
    %v654 = vadd.f32 %v605, %v653
    %v655 = vpop.f32.mrb[0].mxu0
    %v656 = vpop.f32.mrb[0].mxu0
    %v657 = vadd.f32 %v605, %v656
    %v658 = vpop.f32.mrb[0].mxu0
    %659 = vdwg.mxu0
    %s660 = scalar_lea.vmem %s4, 144
    %v661 = vld [vmem:[%s660] sm:$0xf]
    %v662 = vld [vmem:[%s660 + $0x4] sm:$0xf]
    %v663 = vld [vmem:[%s660 + $0x8] sm:$0xf]
    %v664 = vld [vmem:[%s660 + $0xc] sm:$0xf]
    %s665 = scalar_lea.vmem %s7, 9
    %v666 = vld [vmem:[%s665] sm:$0x1]
    %v668 = vlaneseq
    %v669 = vshrl.u32 %v668, 7
    %v670 = vsub.s32 0, %v669
    %v671 = vrot.slane %v666, %v670
    %v677 = vunpack.c.l.b16 %v661
    %v678 = vunpack.c.l.b16 %v662
    %v679 = vunpack.c.l.b16 %v663
    %v680 = vunpack.c.l.b16 %v664
    %v681 = vpack.c.b16 %v678, %v677
    %v682 = vpack.c.b16 %v680, %v679
    %685 = vmatprep.subr.bf16.mxu0 0
    %686 = vmatpush1.bf16.msra.mxu0 %v681
    %687 = vmatprep.subr.bf16.mxu0 0
    %688 = vmatpush1.bf16.msra.mxu0 %v682
    %689 = vmatprep.subr.bf16.mxu0 0
    %690 = vmatpush1.bf16.msra.mxu0 0
    %691 = vmatprep.subr.bf16.mxu0 0
    %692 = vmatpush1.bf16.msra.mxu0 0
    %693 = vmatprep.subr.bf16.mxu0 0
    %694 = vmatpush1.bf16.msra.mxu0 0
    %695 = vmatprep.subr.bf16.mxu0 0
    %696 = vmatpush1.bf16.msra.mxu0 0
    %697 = vmatprep.subr.bf16.mxu0 0
    %698 = vmatpush1.bf16.msra.mxu0 0
    %699 = vmatprep.subr.bf16.mxu0 0
    %700 = vmatpush1.bf16.msra.mxu0 0
    %701 = vmatprep.subr.bf16.mxu0 0
    %702 = vmatpush1.bf16.msra.mxu0 0
    %703 = vmatprep.subr.bf16.mxu0 0
    %704 = vmatpush1.bf16.msra.mxu0 0
    %705 = vmatprep.subr.bf16.mxu0 0
    %706 = vmatpush1.bf16.msra.mxu0 0
    %707 = vmatprep.subr.bf16.mxu0 0
    %708 = vmatpush1.bf16.msra.mxu0 0
    %709 = vmatprep.subr.bf16.mxu0 0
    %710 = vmatpush1.bf16.msra.mxu0 0
    %711 = vmatprep.subr.bf16.mxu0 0
    %712 = vmatpush1.bf16.msra.mxu0 0
    %713 = vmatprep.subr.bf16.mxu0 0
    %714 = vmatpush1.bf16.msra.mxu0 0
    %715 = vmatprep.subr.bf16.mxu0 0
    %716 = vmatpush1.bf16.msra.mxu0 0
    %717 = vmatprep.mubr.bf16.mxu0 0
    %718 = vmatmul.mubr.bf16.gmra.mrb[0].mxu0 %v127
    %v719 = vpop.f32.mrb[0].mxu0
    %v720 = vadd.f32 %v671, %v719
    %v721 = vpop.f32.mrb[0].mxu0
    %v722 = vpop.f32.mrb[0].mxu0
    %v723 = vadd.f32 %v671, %v722
    %v724 = vpop.f32.mrb[0].mxu0
    %725 = vdwg.mxu0
    %v726 = vpack.c.bf16 %v588, %v588
    %v727 = vpack.c.bf16 %v591, %v591
    %v728 = vpack.c.bf16 %v654, %v654
    %v729 = vpack.c.bf16 %v657, %v657
    %v730 = vpack.c.bf16 %v720, %v720
    %v731 = vpack.c.bf16 %v723, %v723
    %v733 = vsel %vm308, %v726, 0
    %v736 = vsel %vm308, %v728, 0
    %738 = vmatprep.subr.bf16.mxu0 0
    %739 = vmatpush1.bf16.xpose.msra.mxu0 %v736
    %740 = vmatprep.subr.bf16.mxu0 0
    %741 = vmatpush1.bf16.xpose.msra.mxu0 0
    %742 = vmatprep.subr.bf16.mxu0 0
    %743 = vmatpush1.bf16.xpose.msra.mxu0 0
    %744 = vmatprep.subr.bf16.mxu0 0
    %745 = vmatpush1.bf16.xpose.msra.mxu0 0
    %746 = vmatprep.subr.bf16.mxu0 0
    %747 = vmatpush1.bf16.xpose.msra.mxu0 0
    %748 = vmatprep.subr.bf16.mxu0 0
    %749 = vmatpush1.bf16.xpose.msra.mxu0 0
    %750 = vmatprep.subr.bf16.mxu0 0
    %751 = vmatpush1.bf16.xpose.msra.mxu0 0
    %752 = vmatprep.subr.bf16.mxu0 0
    %753 = vmatpush1.bf16.xpose.msra.mxu0 0
    %754 = vmatprep.subr.bf16.mxu0 0
    %755 = vmatpush1.bf16.xpose.msra.mxu0 0
    %756 = vmatprep.subr.bf16.mxu0 0
    %757 = vmatpush1.bf16.xpose.msra.mxu0 0
    %758 = vmatprep.subr.bf16.mxu0 0
    %759 = vmatpush1.bf16.xpose.msra.mxu0 0
    %760 = vmatprep.subr.bf16.mxu0 0
    %761 = vmatpush1.bf16.xpose.msra.mxu0 0
    %762 = vmatprep.subr.bf16.mxu0 0
    %763 = vmatpush1.bf16.xpose.msra.mxu0 0
    %764 = vmatprep.subr.bf16.mxu0 0
    %765 = vmatpush1.bf16.xpose.msra.mxu0 0
    %766 = vmatprep.subr.bf16.mxu0 0
    %767 = vmatpush1.bf16.xpose.msra.mxu0 0
    %768 = vmatprep.subr.bf16.mxu0 0
    %769 = vmatpush1.bf16.xpose.msra.mxu0 0
    %770 = vmatprep.mubr.bf16.mxu0 0
    %771 = vmatmul.mubr.bf16.gmra.mrb[0].mxu0 %v733
    %v772 = vpop.f32.mrb[0].mxu0
    %v773 = vadd.f32 0.0, %v772
    %v774 = vpop.f32.mrb[0].mxu0
    %v775 = vpop.f32.mrb[0].mxu0
    %v776 = vpop.f32.mrb[0].mxu0
    %777 = vdwg.mxu0
    %v779 = vsel %vm308, %v727, 0
    %v782 = vsel %vm308, %v729, 0
    %784 = vmatprep.subr.bf16.mxu0 0
    %785 = vmatpush1.bf16.xpose.msra.mxu0 %v782
    %786 = vmatprep.subr.bf16.mxu0 0
    %787 = vmatpush1.bf16.xpose.msra.mxu0 0
    %788 = vmatprep.subr.bf16.mxu0 0
    %789 = vmatpush1.bf16.xpose.msra.mxu0 0
    %790 = vmatprep.subr.bf16.mxu0 0
    %791 = vmatpush1.bf16.xpose.msra.mxu0 0
    %792 = vmatprep.subr.bf16.mxu0 0
    %793 = vmatpush1.bf16.xpose.msra.mxu0 0
    %794 = vmatprep.subr.bf16.mxu0 0
    %795 = vmatpush1.bf16.xpose.msra.mxu0 0
    %796 = vmatprep.subr.bf16.mxu0 0
    %797 = vmatpush1.bf16.xpose.msra.mxu0 0
    %798 = vmatprep.subr.bf16.mxu0 0
    %799 = vmatpush1.bf16.xpose.msra.mxu0 0
    %800 = vmatprep.subr.bf16.mxu0 0
    %801 = vmatpush1.bf16.xpose.msra.mxu0 0
    %802 = vmatprep.subr.bf16.mxu0 0
    %803 = vmatpush1.bf16.xpose.msra.mxu0 0
    %804 = vmatprep.subr.bf16.mxu0 0
    %805 = vmatpush1.bf16.xpose.msra.mxu0 0
    %806 = vmatprep.subr.bf16.mxu0 0
    %807 = vmatpush1.bf16.xpose.msra.mxu0 0
    %808 = vmatprep.subr.bf16.mxu0 0
    %809 = vmatpush1.bf16.xpose.msra.mxu0 0
    %810 = vmatprep.subr.bf16.mxu0 0
    %811 = vmatpush1.bf16.xpose.msra.mxu0 0
    %812 = vmatprep.subr.bf16.mxu0 0
    %813 = vmatpush1.bf16.xpose.msra.mxu0 0
    %814 = vmatprep.subr.bf16.mxu0 0
    %815 = vmatpush1.bf16.xpose.msra.mxu0 0
    %816 = vmatprep.mubr.bf16.mxu0 0
    %817 = vmatmul.mubr.bf16.gmra.mrb[0].mxu0 %v779
    %v818 = vpop.f32.mrb[0].mxu0
    %v819 = vadd.f32 0.0, %v818
    %v820 = vpop.f32.mrb[0].mxu0
    %v821 = vpop.f32.mrb[0].mxu0
    %v822 = vpop.f32.mrb[0].mxu0
    %823 = vdwg.mxu0
    %v824 = vmul.f32 %v773, 0.35355338
    %v825 = vmul.f32 %v819, 0.35355338
    %v826 = vsel %vm101, %v824, -1e+09
    %v827 = vsel %vm102, %v825, -1e+09
    %v828 = vsel %vm308, %v826, -inf
    %829 = vmax.xlane.f32.xlu0 %v828
    %v830 = vpop.xlane.xlu0 %829
    %v831 = vsel %vm308, %v827, -inf
    %832 = vmax.xlane.f32.xlu0 %v831
    %v833 = vpop.xlane.xlu0 %832
    %v834 = vsub.f32 %v826, %v830
    %v835 = vsub.f32 %v827, %v833
    %v836 = vmul.f32 %v834, 1.442695
    %v837 = vpow.pop %v836
    %v838 = vmul.f32 %v835, 1.442695
    %v839 = vpow.pop %v838
    %v840 = vsel %vm308, %v837, 0.0
    %841 = vadd.xlane.f32.xlu0 %v840
    %v842 = vpop.xlane.xlu0 %841
    %v843 = vsel %vm308, %v839, 0.0
    %844 = vadd.xlane.f32.xlu0 %v843
    %v845 = vpop.xlane.xlu0 %844
    %v846 = vrcp.pop %v842
    %v847 = vrcp.pop %v845
    %v848 = vmul.f32 %v837, %v846
    %v849 = vmul.f32 %v839, %v847
    %v850 = vpack.c.bf16 %v848, %v848
    %v851 = vpack.c.bf16 %v849, %v849
    %v853 = vsel %vm308, %v850, 0
    %v856 = vsel %vm432, %v730, 0
    %858 = vmatprep.subr.bf16.mxu0 0
    %859 = vmatpush1.bf16.msra.mxu0 %v856
    %860 = vmatprep.subr.bf16.mxu0 0
    %861 = vmatpush1.bf16.msra.mxu0 0
    %862 = vmatprep.subr.bf16.mxu0 0
    %863 = vmatpush1.bf16.msra.mxu0 0
    %864 = vmatprep.subr.bf16.mxu0 0
    %865 = vmatpush1.bf16.msra.mxu0 0
    %866 = vmatprep.subr.bf16.mxu0 0
    %867 = vmatpush1.bf16.msra.mxu0 0
    %868 = vmatprep.subr.bf16.mxu0 0
    %869 = vmatpush1.bf16.msra.mxu0 0
    %870 = vmatprep.subr.bf16.mxu0 0
    %871 = vmatpush1.bf16.msra.mxu0 0
    %872 = vmatprep.subr.bf16.mxu0 0
    %873 = vmatpush1.bf16.msra.mxu0 0
    %874 = vmatprep.subr.bf16.mxu0 0
    %875 = vmatpush1.bf16.msra.mxu0 0
    %876 = vmatprep.subr.bf16.mxu0 0
    %877 = vmatpush1.bf16.msra.mxu0 0
    %878 = vmatprep.subr.bf16.mxu0 0
    %879 = vmatpush1.bf16.msra.mxu0 0
    %880 = vmatprep.subr.bf16.mxu0 0
    %881 = vmatpush1.bf16.msra.mxu0 0
    %882 = vmatprep.subr.bf16.mxu0 0
    %883 = vmatpush1.bf16.msra.mxu0 0
    %884 = vmatprep.subr.bf16.mxu0 0
    %885 = vmatpush1.bf16.msra.mxu0 0
    %886 = vmatprep.subr.bf16.mxu0 0
    %887 = vmatpush1.bf16.msra.mxu0 0
    %888 = vmatprep.subr.bf16.mxu0 0
    %889 = vmatpush1.bf16.msra.mxu0 0
    %890 = vmatprep.mubr.bf16.mxu0 0
    %891 = vmatmul.mubr.bf16.gmra.mrb[0].mxu0 %v853
    %v892 = vpop.f32.mrb[0].mxu0
    %v893 = vadd.f32 0.0, %v892
    %v894 = vpop.f32.mrb[0].mxu0
    %v895 = vpop.f32.mrb[0].mxu0
    %v896 = vpop.f32.mrb[0].mxu0
    %897 = vdwg.mxu0
    %v899 = vsel %vm308, %v851, 0
    %v902 = vsel %vm432, %v731, 0
    %904 = vmatprep.subr.bf16.mxu0 0
    %905 = vmatpush1.bf16.msra.mxu0 %v902
    %906 = vmatprep.subr.bf16.mxu0 0
    %907 = vmatpush1.bf16.msra.mxu0 0
    %908 = vmatprep.subr.bf16.mxu0 0
    %909 = vmatpush1.bf16.msra.mxu0 0
    %910 = vmatprep.subr.bf16.mxu0 0
    %911 = vmatpush1.bf16.msra.mxu0 0
    %912 = vmatprep.subr.bf16.mxu0 0
    %913 = vmatpush1.bf16.msra.mxu0 0
    %914 = vmatprep.subr.bf16.mxu0 0
    %915 = vmatpush1.bf16.msra.mxu0 0
    %916 = vmatprep.subr.bf16.mxu0 0
    %917 = vmatpush1.bf16.msra.mxu0 0
    %918 = vmatprep.subr.bf16.mxu0 0
    %919 = vmatpush1.bf16.msra.mxu0 0
    %920 = vmatprep.subr.bf16.mxu0 0
    %921 = vmatpush1.bf16.msra.mxu0 0
    %922 = vmatprep.subr.bf16.mxu0 0
    %923 = vmatpush1.bf16.msra.mxu0 0
    %924 = vmatprep.subr.bf16.mxu0 0
    %925 = vmatpush1.bf16.msra.mxu0 0
    %926 = vmatprep.subr.bf16.mxu0 0
    %927 = vmatpush1.bf16.msra.mxu0 0
    %928 = vmatprep.subr.bf16.mxu0 0
    %929 = vmatpush1.bf16.msra.mxu0 0
    %930 = vmatprep.subr.bf16.mxu0 0
    %931 = vmatpush1.bf16.msra.mxu0 0
    %932 = vmatprep.subr.bf16.mxu0 0
    %933 = vmatpush1.bf16.msra.mxu0 0
    %934 = vmatprep.subr.bf16.mxu0 0
    %935 = vmatpush1.bf16.msra.mxu0 0
    %936 = vmatprep.mubr.bf16.mxu0 0
    %937 = vmatmul.mubr.bf16.gmra.mrb[0].mxu0 %v899
    %v938 = vpop.f32.mrb[0].mxu0
    %v939 = vadd.f32 0.0, %v938
    %v940 = vpop.f32.mrb[0].mxu0
    %v941 = vpop.f32.mrb[0].mxu0
    %v942 = vpop.f32.mrb[0].mxu0
    %943 = vdwg.mxu0
    %v944 = vpack.c.bf16 %v939, %v893
    %s945 = scalar_lea.vmem %s4, 784
    %v946 = vld [vmem:[%s945] sm:$0xf]
    %v947 = vld [vmem:[%s945 + $0x4] sm:$0xf]
    %v948 = vld [vmem:[%s945 + $0x8] sm:$0xf]
    %v949 = vld [vmem:[%s945 + $0xc] sm:$0xf]
    %v954 = vunpack.c.l.b16 %v946
    %v955 = vunpack.c.l.b16 %v947
    %v956 = vunpack.c.l.b16 %v948
    %v957 = vunpack.c.l.b16 %v949
    %v958 = vpack.c.b16 %v955, %v954
    %v959 = vpack.c.b16 %v957, %v956
    %v961 = vsel %vm308, %v944, 0
    %v964 = vsel %vm308, %v958, 0
    %v967 = vsel %vm308, %v959, 0
    %969 = vmatprep.subr.bf16.mxu0 0
    %970 = vmatpush1.bf16.xpose.msra.mxu0 %v964
    %971 = vmatprep.subr.bf16.mxu0 0
    %972 = vmatpush1.bf16.xpose.msra.mxu0 %v967
    %973 = vmatprep.subr.bf16.mxu0 0
    %974 = vmatpush1.bf16.xpose.msra.mxu0 0
    %975 = vmatprep.subr.bf16.mxu0 0
    %976 = vmatpush1.bf16.xpose.msra.mxu0 0
    %977 = vmatprep.subr.bf16.mxu0 0
    %978 = vmatpush1.bf16.xpose.msra.mxu0 0
    %979 = vmatprep.subr.bf16.mxu0 0
    %980 = vmatpush1.bf16.xpose.msra.mxu0 0
    %981 = vmatprep.subr.bf16.mxu0 0
    %982 = vmatpush1.bf16.xpose.msra.mxu0 0
    %983 = vmatprep.subr.bf16.mxu0 0
    %984 = vmatpush1.bf16.xpose.msra.mxu0 0
    %985 = vmatprep.subr.bf16.mxu0 0
    %986 = vmatpush1.bf16.xpose.msra.mxu0 0
    %987 = vmatprep.subr.bf16.mxu0 0
    %988 = vmatpush1.bf16.xpose.msra.mxu0 0
    %989 = vmatprep.subr.bf16.mxu0 0
    %990 = vmatpush1.bf16.xpose.msra.mxu0 0
    %991 = vmatprep.subr.bf16.mxu0 0
    %992 = vmatpush1.bf16.xpose.msra.mxu0 0
    %993 = vmatprep.subr.bf16.mxu0 0
    %994 = vmatpush1.bf16.xpose.msra.mxu0 0
    %995 = vmatprep.subr.bf16.mxu0 0
    %996 = vmatpush1.bf16.xpose.msra.mxu0 0
    %997 = vmatprep.subr.bf16.mxu0 0
    %998 = vmatpush1.bf16.xpose.msra.mxu0 0
    %999 = vmatprep.subr.bf16.mxu0 0
    %1000 = vmatpush1.bf16.xpose.msra.mxu0 0
    %1001 = vmatprep.mubr.bf16.mxu0 0
    %1002 = vmatmul.mubr.bf16.gmra.mrb[0].mxu0 %v961
    %v1003 = vpop.f32.mrb[0].mxu0
    %v1004 = vadd.f32 0.0, %v1003
    %v1005 = vpop.f32.mrb[0].mxu0
    %v1006 = vpop.f32.mrb[0].mxu0
    %v1007 = vadd.f32 0.0, %v1006
    %v1008 = vpop.f32.mrb[0].mxu0
    %1009 = vdwg.mxu0
    %v1014 = vunpack.c.l.b16 %v524
    %v1015 = vunpack.c.l.b16 %v525
    %v1016 = vunpack.c.l.b16 %v526
    %v1017 = vunpack.c.l.b16 %v527
    %v1018 = vpack.c.b16 %v1015, %v1014
    %v1019 = vpack.c.b16 %v1017, %v1016
    %v1021 = vsel %vm308, %v522, 0
    %v1024 = vsel %vm308, %v1018, 0
    %v1027 = vsel %vm308, %v1019, 0
    %1029 = vmatprep.subr.bf16.mxu0 0
    %1030 = vmatpush1.bf16.xpose.msra.mxu0 %v1024
    %1031 = vmatprep.subr.bf16.mxu0 0
    %1032 = vmatpush1.bf16.xpose.msra.mxu0 %v1027
    %1033 = vmatprep.subr.bf16.mxu0 0
    %1034 = vmatpush1.bf16.xpose.msra.mxu0 0
    %1035 = vmatprep.subr.bf16.mxu0 0
    %1036 = vmatpush1.bf16.xpose.msra.mxu0 0
    %1037 = vmatprep.subr.bf16.mxu0 0
    %1038 = vmatpush1.bf16.xpose.msra.mxu0 0
    %1039 = vmatprep.subr.bf16.mxu0 0
    %1040 = vmatpush1.bf16.xpose.msra.mxu0 0
    %1041 = vmatprep.subr.bf16.mxu0 0
    %1042 = vmatpush1.bf16.xpose.msra.mxu0 0
    %1043 = vmatprep.subr.bf16.mxu0 0
    %1044 = vmatpush1.bf16.xpose.msra.mxu0 0
    %1045 = vmatprep.subr.bf16.mxu0 0
    %1046 = vmatpush1.bf16.xpose.msra.mxu0 0
    %1047 = vmatprep.subr.bf16.mxu0 0
    %1048 = vmatpush1.bf16.xpose.msra.mxu0 0
    %1049 = vmatprep.subr.bf16.mxu0 0
    %1050 = vmatpush1.bf16.xpose.msra.mxu0 0
    %1051 = vmatprep.subr.bf16.mxu0 0
    %1052 = vmatpush1.bf16.xpose.msra.mxu0 0
    %1053 = vmatprep.subr.bf16.mxu0 0
    %1054 = vmatpush1.bf16.xpose.msra.mxu0 0
    %1055 = vmatprep.subr.bf16.mxu0 0
    %1056 = vmatpush1.bf16.xpose.msra.mxu0 0
    %1057 = vmatprep.subr.bf16.mxu0 0
    %1058 = vmatpush1.bf16.xpose.msra.mxu0 0
    %1059 = vmatprep.subr.bf16.mxu0 0
    %1060 = vmatpush1.bf16.xpose.msra.mxu0 0
    %1061 = vmatprep.mubr.bf16.mxu0 0
    %1062 = vmatmul.mubr.bf16.gmra.mrb[0].mxu0 %v1021
    %v1063 = vpop.f32.mrb[0].mxu0
    %v1064 = vadd.f32 %v1004, %v1063
    %v1065 = vpop.f32.mrb[0].mxu0
    %v1066 = vpop.f32.mrb[0].mxu0
    %v1067 = vadd.f32 %v1007, %v1066
    %v1068 = vpop.f32.mrb[0].mxu0
    %1069 = vdwg.mxu0
    %s1070 = scalar_lea.vmem %s4, 32
    %v1071 = vld [vmem:[%s1070] sm:$0xf]
    %v1072 = vld [vmem:[%s1070 + $0x4] sm:$0xf]
    %v1073 = vld [vmem:[%s1070 + $0x8] sm:$0xf]
    %v1074 = vld [vmem:[%s1070 + $0xc] sm:$0xf]
    %s1075 = scalar_lea.vmem %s7, 2
    %v1076 = vld [vmem:[%s1075] sm:$0x1]
    %v1078 = vlaneseq
    %v1079 = vshrl.u32 %v1078, 7
    %v1080 = vsub.s32 0, %v1079
    %v1081 = vrot.slane %v1076, %v1080
    %v1087 = vunpack.c.l.b16 %v1071
    %v1088 = vunpack.c.l.b16 %v1072
    %v1089 = vunpack.c.l.b16 %v1073
    %v1090 = vunpack.c.l.b16 %v1074
    %v1091 = vpack.c.b16 %v1088, %v1087
    %v1092 = vpack.c.b16 %v1090, %v1089
    %1095 = vmatprep.subr.bf16.mxu0 0
    %1096 = vmatpush1.bf16.msra.mxu0 %v1091
    %1097 = vmatprep.subr.bf16.mxu0 0
    %1098 = vmatpush1.bf16.msra.mxu0 %v1092
    %1099 = vmatprep.subr.bf16.mxu0 0
    %1100 = vmatpush1.bf16.msra.mxu0 0
    %1101 = vmatprep.subr.bf16.mxu0 0
    %1102 = vmatpush1.bf16.msra.mxu0 0
    %1103 = vmatprep.subr.bf16.mxu0 0
    %1104 = vmatpush1.bf16.msra.mxu0 0
    %1105 = vmatprep.subr.bf16.mxu0 0
    %1106 = vmatpush1.bf16.msra.mxu0 0
    %1107 = vmatprep.subr.bf16.mxu0 0
    %1108 = vmatpush1.bf16.msra.mxu0 0
    %1109 = vmatprep.subr.bf16.mxu0 0
    %1110 = vmatpush1.bf16.msra.mxu0 0
    %1111 = vmatprep.subr.bf16.mxu0 0
    %1112 = vmatpush1.bf16.msra.mxu0 0
    %1113 = vmatprep.subr.bf16.mxu0 0
    %1114 = vmatpush1.bf16.msra.mxu0 0
    %1115 = vmatprep.subr.bf16.mxu0 0
    %1116 = vmatpush1.bf16.msra.mxu0 0
    %1117 = vmatprep.subr.bf16.mxu0 0
    %1118 = vmatpush1.bf16.msra.mxu0 0
    %1119 = vmatprep.subr.bf16.mxu0 0
    %1120 = vmatpush1.bf16.msra.mxu0 0
    %1121 = vmatprep.subr.bf16.mxu0 0
    %1122 = vmatpush1.bf16.msra.mxu0 0
    %1123 = vmatprep.subr.bf16.mxu0 0
    %1124 = vmatpush1.bf16.msra.mxu0 0
    %1125 = vmatprep.subr.bf16.mxu0 0
    %1126 = vmatpush1.bf16.msra.mxu0 0
    %1127 = vmatprep.mubr.bf16.mxu0 0
    %1128 = vmatmul.mubr.bf16.gmra.mrb[0].mxu0 %v127
    %v1129 = vpop.f32.mrb[0].mxu0
    %v1130 = vadd.f32 %v1081, %v1129
    %v1131 = vpop.f32.mrb[0].mxu0
    %v1132 = vpop.f32.mrb[0].mxu0
    %v1133 = vadd.f32 %v1081, %v1132
    %v1134 = vpop.f32.mrb[0].mxu0
    %1135 = vdwg.mxu0
    %s1136 = scalar_lea.vmem %s4, 96
    %v1137 = vld [vmem:[%s1136] sm:$0xf]
    %v1138 = vld [vmem:[%s1136 + $0x4] sm:$0xf]
    %v1139 = vld [vmem:[%s1136 + $0x8] sm:$0xf]
    %v1140 = vld [vmem:[%s1136 + $0xc] sm:$0xf]
    %s1141 = scalar_lea.vmem %s7, 6
    %v1142 = vld [vmem:[%s1141] sm:$0x1]
    %v1144 = vlaneseq
    %v1145 = vshrl.u32 %v1144, 7
    %v1146 = vsub.s32 0, %v1145
    %v1147 = vrot.slane %v1142, %v1146
    %v1153 = vunpack.c.l.b16 %v1137
    %v1154 = vunpack.c.l.b16 %v1138
    %v1155 = vunpack.c.l.b16 %v1139
    %v1156 = vunpack.c.l.b16 %v1140
    %v1157 = vpack.c.b16 %v1154, %v1153
    %v1158 = vpack.c.b16 %v1156, %v1155
    %1161 = vmatprep.subr.bf16.mxu0 0
    %1162 = vmatpush1.bf16.msra.mxu0 %v1157
    %1163 = vmatprep.subr.bf16.mxu0 0
    %1164 = vmatpush1.bf16.msra.mxu0 %v1158
    %1165 = vmatprep.subr.bf16.mxu0 0
    %1166 = vmatpush1.bf16.msra.mxu0 0
    %1167 = vmatprep.subr.bf16.mxu0 0
    %1168 = vmatpush1.bf16.msra.mxu0 0
    %1169 = vmatprep.subr.bf16.mxu0 0
    %1170 = vmatpush1.bf16.msra.mxu0 0
    %1171 = vmatprep.subr.bf16.mxu0 0
    %1172 = vmatpush1.bf16.msra.mxu0 0
    %1173 = vmatprep.subr.bf16.mxu0 0
    %1174 = vmatpush1.bf16.msra.mxu0 0
    %1175 = vmatprep.subr.bf16.mxu0 0
    %1176 = vmatpush1.bf16.msra.mxu0 0
    %1177 = vmatprep.subr.bf16.mxu0 0
    %1178 = vmatpush1.bf16.msra.mxu0 0
    %1179 = vmatprep.subr.bf16.mxu0 0
    %1180 = vmatpush1.bf16.msra.mxu0 0
    %1181 = vmatprep.subr.bf16.mxu0 0
    %1182 = vmatpush1.bf16.msra.mxu0 0
    %1183 = vmatprep.subr.bf16.mxu0 0
    %1184 = vmatpush1.bf16.msra.mxu0 0
    %1185 = vmatprep.subr.bf16.mxu0 0
    %1186 = vmatpush1.bf16.msra.mxu0 0
    %1187 = vmatprep.subr.bf16.mxu0 0
    %1188 = vmatpush1.bf16.msra.mxu0 0
    %1189 = vmatprep.subr.bf16.mxu0 0
    %1190 = vmatpush1.bf16.msra.mxu0 0
    %1191 = vmatprep.subr.bf16.mxu0 0
    %1192 = vmatpush1.bf16.msra.mxu0 0
    %1193 = vmatprep.mubr.bf16.mxu0 0
    %1194 = vmatmul.mubr.bf16.gmra.mrb[0].mxu0 %v127
    %v1195 = vpop.f32.mrb[0].mxu0
    %v1196 = vadd.f32 %v1147, %v1195
    %v1197 = vpop.f32.mrb[0].mxu0
    %v1198 = vpop.f32.mrb[0].mxu0
    %v1199 = vadd.f32 %v1147, %v1198
    %v1200 = vpop.f32.mrb[0].mxu0
    %1201 = vdwg.mxu0
    %s1202 = scalar_lea.vmem %s4, 160
    %v1203 = vld [vmem:[%s1202] sm:$0xf]
    %v1204 = vld [vmem:[%s1202 + $0x4] sm:$0xf]
    %v1205 = vld [vmem:[%s1202 + $0x8] sm:$0xf]
    %v1206 = vld [vmem:[%s1202 + $0xc] sm:$0xf]
    %s1207 = scalar_lea.vmem %s7, 10
    %v1208 = vld [vmem:[%s1207] sm:$0x1]
    %v1210 = vlaneseq
    %v1211 = vshrl.u32 %v1210, 7
    %v1212 = vsub.s32 0, %v1211
    %v1213 = vrot.slane %v1208, %v1212
    %v1219 = vunpack.c.l.b16 %v1203
    %v1220 = vunpack.c.l.b16 %v1204
    %v1221 = vunpack.c.l.b16 %v1205
    %v1222 = vunpack.c.l.b16 %v1206
    %v1223 = vpack.c.b16 %v1220, %v1219
    %v1224 = vpack.c.b16 %v1222, %v1221
    %1227 = vmatprep.subr.bf16.mxu0 0
    %1228 = vmatpush1.bf16.msra.mxu0 %v1223
    %1229 = vmatprep.subr.bf16.mxu0 0
    %1230 = vmatpush1.bf16.msra.mxu0 %v1224
    %1231 = vmatprep.subr.bf16.mxu0 0
    %1232 = vmatpush1.bf16.msra.mxu0 0
    %1233 = vmatprep.subr.bf16.mxu0 0
    %1234 = vmatpush1.bf16.msra.mxu0 0
    %1235 = vmatprep.subr.bf16.mxu0 0
    %1236 = vmatpush1.bf16.msra.mxu0 0
    %1237 = vmatprep.subr.bf16.mxu0 0
    %1238 = vmatpush1.bf16.msra.mxu0 0
    %1239 = vmatprep.subr.bf16.mxu0 0
    %1240 = vmatpush1.bf16.msra.mxu0 0
    %1241 = vmatprep.subr.bf16.mxu0 0
    %1242 = vmatpush1.bf16.msra.mxu0 0
    %1243 = vmatprep.subr.bf16.mxu0 0
    %1244 = vmatpush1.bf16.msra.mxu0 0
    %1245 = vmatprep.subr.bf16.mxu0 0
    %1246 = vmatpush1.bf16.msra.mxu0 0
    %1247 = vmatprep.subr.bf16.mxu0 0
    %1248 = vmatpush1.bf16.msra.mxu0 0
    %1249 = vmatprep.subr.bf16.mxu0 0
    %1250 = vmatpush1.bf16.msra.mxu0 0
    %1251 = vmatprep.subr.bf16.mxu0 0
    %1252 = vmatpush1.bf16.msra.mxu0 0
    %1253 = vmatprep.subr.bf16.mxu0 0
    %1254 = vmatpush1.bf16.msra.mxu0 0
    %1255 = vmatprep.subr.bf16.mxu0 0
    %1256 = vmatpush1.bf16.msra.mxu0 0
    %1257 = vmatprep.subr.bf16.mxu0 0
    %1258 = vmatpush1.bf16.msra.mxu0 0
    %1259 = vmatprep.mubr.bf16.mxu0 0
    %1260 = vmatmul.mubr.bf16.gmra.mrb[0].mxu0 %v127
    %v1261 = vpop.f32.mrb[0].mxu0
    %v1262 = vadd.f32 %v1213, %v1261
    %v1263 = vpop.f32.mrb[0].mxu0
    %v1264 = vpop.f32.mrb[0].mxu0
    %v1265 = vadd.f32 %v1213, %v1264
    %v1266 = vpop.f32.mrb[0].mxu0
    %1267 = vdwg.mxu0
    %v1268 = vpack.c.bf16 %v1130, %v1130
    %v1269 = vpack.c.bf16 %v1133, %v1133
    %v1270 = vpack.c.bf16 %v1196, %v1196
    %v1271 = vpack.c.bf16 %v1199, %v1199
    %v1272 = vpack.c.bf16 %v1262, %v1262
    %v1273 = vpack.c.bf16 %v1265, %v1265
    %v1275 = vsel %vm308, %v1268, 0
    %v1278 = vsel %vm308, %v1270, 0
    %1280 = vmatprep.subr.bf16.mxu0 0
    %1281 = vmatpush1.bf16.xpose.msra.mxu0 %v1278
    %1282 = vmatprep.subr.bf16.mxu0 0
    %1283 = vmatpush1.bf16.xpose.msra.mxu0 0
    %1284 = vmatprep.subr.bf16.mxu0 0
    %1285 = vmatpush1.bf16.xpose.msra.mxu0 0
    %1286 = vmatprep.subr.bf16.mxu0 0
    %1287 = vmatpush1.bf16.xpose.msra.mxu0 0
    %1288 = vmatprep.subr.bf16.mxu0 0
    %1289 = vmatpush1.bf16.xpose.msra.mxu0 0
    %1290 = vmatprep.subr.bf16.mxu0 0
    %1291 = vmatpush1.bf16.xpose.msra.mxu0 0
    %1292 = vmatprep.subr.bf16.mxu0 0
    %1293 = vmatpush1.bf16.xpose.msra.mxu0 0
    %1294 = vmatprep.subr.bf16.mxu0 0
    %1295 = vmatpush1.bf16.xpose.msra.mxu0 0
    %1296 = vmatprep.subr.bf16.mxu0 0
    %1297 = vmatpush1.bf16.xpose.msra.mxu0 0
    %1298 = vmatprep.subr.bf16.mxu0 0
    %1299 = vmatpush1.bf16.xpose.msra.mxu0 0
    %1300 = vmatprep.subr.bf16.mxu0 0
    %1301 = vmatpush1.bf16.xpose.msra.mxu0 0
    %1302 = vmatprep.subr.bf16.mxu0 0
    %1303 = vmatpush1.bf16.xpose.msra.mxu0 0
    %1304 = vmatprep.subr.bf16.mxu0 0
    %1305 = vmatpush1.bf16.xpose.msra.mxu0 0
    %1306 = vmatprep.subr.bf16.mxu0 0
    %1307 = vmatpush1.bf16.xpose.msra.mxu0 0
    %1308 = vmatprep.subr.bf16.mxu0 0
    %1309 = vmatpush1.bf16.xpose.msra.mxu0 0
    %1310 = vmatprep.subr.bf16.mxu0 0
    %1311 = vmatpush1.bf16.xpose.msra.mxu0 0
    %1312 = vmatprep.mubr.bf16.mxu0 0
    %1313 = vmatmul.mubr.bf16.gmra.mrb[0].mxu0 %v1275
    %v1314 = vpop.f32.mrb[0].mxu0
    %v1315 = vadd.f32 0.0, %v1314
    %v1316 = vpop.f32.mrb[0].mxu0
    %v1317 = vpop.f32.mrb[0].mxu0
    %v1318 = vpop.f32.mrb[0].mxu0
    %1319 = vdwg.mxu0
    %v1321 = vsel %vm308, %v1269, 0
    %v1324 = vsel %vm308, %v1271, 0
    %1326 = vmatprep.subr.bf16.mxu0 0
    %1327 = vmatpush1.bf16.xpose.msra.mxu0 %v1324
    %1328 = vmatprep.subr.bf16.mxu0 0
    %1329 = vmatpush1.bf16.xpose.msra.mxu0 0
    %1330 = vmatprep.subr.bf16.mxu0 0
    %1331 = vmatpush1.bf16.xpose.msra.mxu0 0
    %1332 = vmatprep.subr.bf16.mxu0 0
    %1333 = vmatpush1.bf16.xpose.msra.mxu0 0
    %1334 = vmatprep.subr.bf16.mxu0 0
    %1335 = vmatpush1.bf16.xpose.msra.mxu0 0
    %1336 = vmatprep.subr.bf16.mxu0 0
    %1337 = vmatpush1.bf16.xpose.msra.mxu0 0
    %1338 = vmatprep.subr.bf16.mxu0 0
    %1339 = vmatpush1.bf16.xpose.msra.mxu0 0
    %1340 = vmatprep.subr.bf16.mxu0 0
    %1341 = vmatpush1.bf16.xpose.msra.mxu0 0
    %1342 = vmatprep.subr.bf16.mxu0 0
    %1343 = vmatpush1.bf16.xpose.msra.mxu0 0
    %1344 = vmatprep.subr.bf16.mxu0 0
    %1345 = vmatpush1.bf16.xpose.msra.mxu0 0
    %1346 = vmatprep.subr.bf16.mxu0 0
    %1347 = vmatpush1.bf16.xpose.msra.mxu0 0
    %1348 = vmatprep.subr.bf16.mxu0 0
    %1349 = vmatpush1.bf16.xpose.msra.mxu0 0
    %1350 = vmatprep.subr.bf16.mxu0 0
    %1351 = vmatpush1.bf16.xpose.msra.mxu0 0
    %1352 = vmatprep.subr.bf16.mxu0 0
    %1353 = vmatpush1.bf16.xpose.msra.mxu0 0
    %1354 = vmatprep.subr.bf16.mxu0 0
    %1355 = vmatpush1.bf16.xpose.msra.mxu0 0
    %1356 = vmatprep.subr.bf16.mxu0 0
    %1357 = vmatpush1.bf16.xpose.msra.mxu0 0
    %1358 = vmatprep.mubr.bf16.mxu0 0
    %1359 = vmatmul.mubr.bf16.gmra.mrb[0].mxu0 %v1321
    %v1360 = vpop.f32.mrb[0].mxu0
    %v1361 = vadd.f32 0.0, %v1360
    %v1362 = vpop.f32.mrb[0].mxu0
    %v1363 = vpop.f32.mrb[0].mxu0
    %v1364 = vpop.f32.mrb[0].mxu0
    %1365 = vdwg.mxu0
    %v1366 = vmul.f32 %v1315, 0.35355338
    %v1367 = vmul.f32 %v1361, 0.35355338
    %v1368 = vsel %vm101, %v1366, -1e+09
    %v1369 = vsel %vm102, %v1367, -1e+09
    %v1370 = vsel %vm308, %v1368, -inf
    %1371 = vmax.xlane.f32.xlu0 %v1370
    %v1372 = vpop.xlane.xlu0 %1371
    %v1373 = vsel %vm308, %v1369, -inf
    %1374 = vmax.xlane.f32.xlu0 %v1373
    %v1375 = vpop.xlane.xlu0 %1374
    %v1376 = vsub.f32 %v1368, %v1372
    %v1377 = vsub.f32 %v1369, %v1375
    %v1378 = vmul.f32 %v1376, 1.442695
    %v1379 = vpow.pop %v1378
    %v1380 = vmul.f32 %v1377, 1.442695
    %v1381 = vpow.pop %v1380
    %v1382 = vsel %vm308, %v1379, 0.0
    %1383 = vadd.xlane.f32.xlu0 %v1382
    %v1384 = vpop.xlane.xlu0 %1383
    %v1385 = vsel %vm308, %v1381, 0.0
    %1386 = vadd.xlane.f32.xlu0 %v1385
    %v1387 = vpop.xlane.xlu0 %1386
    %v1388 = vrcp.pop %v1384
    %v1389 = vrcp.pop %v1387
    %v1390 = vmul.f32 %v1379, %v1388
    %v1391 = vmul.f32 %v1381, %v1389
    %v1392 = vpack.c.bf16 %v1390, %v1390
    %v1393 = vpack.c.bf16 %v1391, %v1391
    %v1395 = vsel %vm308, %v1392, 0
    %v1398 = vsel %vm432, %v1272, 0
    %1400 = vmatprep.subr.bf16.mxu0 0
    %1401 = vmatpush1.bf16.msra.mxu0 %v1398
    %1402 = vmatprep.subr.bf16.mxu0 0
    %1403 = vmatpush1.bf16.msra.mxu0 0
    %1404 = vmatprep.subr.bf16.mxu0 0
    %1405 = vmatpush1.bf16.msra.mxu0 0
    %1406 = vmatprep.subr.bf16.mxu0 0
    %1407 = vmatpush1.bf16.msra.mxu0 0
    %1408 = vmatprep.subr.bf16.mxu0 0
    %1409 = vmatpush1.bf16.msra.mxu0 0
    %1410 = vmatprep.subr.bf16.mxu0 0
    %1411 = vmatpush1.bf16.msra.mxu0 0
    %1412 = vmatprep.subr.bf16.mxu0 0
    %1413 = vmatpush1.bf16.msra.mxu0 0
    %1414 = vmatprep.subr.bf16.mxu0 0
    %1415 = vmatpush1.bf16.msra.mxu0 0
    %1416 = vmatprep.subr.bf16.mxu0 0
    %1417 = vmatpush1.bf16.msra.mxu0 0
    %1418 = vmatprep.subr.bf16.mxu0 0
    %1419 = vmatpush1.bf16.msra.mxu0 0
    %1420 = vmatprep.subr.bf16.mxu0 0
    %1421 = vmatpush1.bf16.msra.mxu0 0
    %1422 = vmatprep.subr.bf16.mxu0 0
    %1423 = vmatpush1.bf16.msra.mxu0 0
    %1424 = vmatprep.subr.bf16.mxu0 0
    %1425 = vmatpush1.bf16.msra.mxu0 0
    %1426 = vmatprep.subr.bf16.mxu0 0
    %1427 = vmatpush1.bf16.msra.mxu0 0
    %1428 = vmatprep.subr.bf16.mxu0 0
    %1429 = vmatpush1.bf16.msra.mxu0 0
    %1430 = vmatprep.subr.bf16.mxu0 0
    %1431 = vmatpush1.bf16.msra.mxu0 0
    %1432 = vmatprep.mubr.bf16.mxu0 0
    %1433 = vmatmul.mubr.bf16.gmra.mrb[0].mxu0 %v1395
    %v1434 = vpop.f32.mrb[0].mxu0
    %v1435 = vadd.f32 0.0, %v1434
    %v1436 = vpop.f32.mrb[0].mxu0
    %v1437 = vpop.f32.mrb[0].mxu0
    %v1438 = vpop.f32.mrb[0].mxu0
    %1439 = vdwg.mxu0
    %v1441 = vsel %vm308, %v1393, 0
    %v1444 = vsel %vm432, %v1273, 0
    %1446 = vmatprep.subr.bf16.mxu0 0
    %1447 = vmatpush1.bf16.msra.mxu0 %v1444
    %1448 = vmatprep.subr.bf16.mxu0 0
    %1449 = vmatpush1.bf16.msra.mxu0 0
    %1450 = vmatprep.subr.bf16.mxu0 0
    %1451 = vmatpush1.bf16.msra.mxu0 0
    %1452 = vmatprep.subr.bf16.mxu0 0
    %1453 = vmatpush1.bf16.msra.mxu0 0
    %1454 = vmatprep.subr.bf16.mxu0 0
    %1455 = vmatpush1.bf16.msra.mxu0 0
    %1456 = vmatprep.subr.bf16.mxu0 0
    %1457 = vmatpush1.bf16.msra.mxu0 0
    %1458 = vmatprep.subr.bf16.mxu0 0
    %1459 = vmatpush1.bf16.msra.mxu0 0
    %1460 = vmatprep.subr.bf16.mxu0 0
    %1461 = vmatpush1.bf16.msra.mxu0 0
    %1462 = vmatprep.subr.bf16.mxu0 0
    %1463 = vmatpush1.bf16.msra.mxu0 0
    %1464 = vmatprep.subr.bf16.mxu0 0
    %1465 = vmatpush1.bf16.msra.mxu0 0
    %1466 = vmatprep.subr.bf16.mxu0 0
    %1467 = vmatpush1.bf16.msra.mxu0 0
    %1468 = vmatprep.subr.bf16.mxu0 0
    %1469 = vmatpush1.bf16.msra.mxu0 0
    %1470 = vmatprep.subr.bf16.mxu0 0
    %1471 = vmatpush1.bf16.msra.mxu0 0
    %1472 = vmatprep.subr.bf16.mxu0 0
    %1473 = vmatpush1.bf16.msra.mxu0 0
    %1474 = vmatprep.subr.bf16.mxu0 0
    %1475 = vmatpush1.bf16.msra.mxu0 0
    %1476 = vmatprep.subr.bf16.mxu0 0
    %1477 = vmatpush1.bf16.msra.mxu0 0
    %1478 = vmatprep.mubr.bf16.mxu0 0
    %1479 = vmatmul.mubr.bf16.gmra.mrb[0].mxu0 %v1441
    %v1480 = vpop.f32.mrb[0].mxu0
    %v1481 = vadd.f32 0.0, %v1480
    %v1482 = vpop.f32.mrb[0].mxu0
    %v1483 = vpop.f32.mrb[0].mxu0
    %v1484 = vpop.f32.mrb[0].mxu0
    %1485 = vdwg.mxu0
    %v1486 = vpack.c.bf16 %v1481, %v1435
    %s1487 = scalar_lea.vmem %s4, 800
    %v1488 = vld [vmem:[%s1487] sm:$0xf]
    %v1489 = vld [vmem:[%s1487 + $0x4] sm:$0xf]
    %v1490 = vld [vmem:[%s1487 + $0x8] sm:$0xf]
    %v1491 = vld [vmem:[%s1487 + $0xc] sm:$0xf]
    %v1496 = vunpack.c.l.b16 %v1488
    %v1497 = vunpack.c.l.b16 %v1489
    %v1498 = vunpack.c.l.b16 %v1490
    %v1499 = vunpack.c.l.b16 %v1491
    %v1500 = vpack.c.b16 %v1497, %v1496
    %v1501 = vpack.c.b16 %v1499, %v1498
    %v1503 = vsel %vm308, %v1486, 0
    %v1506 = vsel %vm308, %v1500, 0
    %v1509 = vsel %vm308, %v1501, 0
    %1511 = vmatprep.subr.bf16.mxu0 0
    %1512 = vmatpush1.bf16.xpose.msra.mxu0 %v1506
    %1513 = vmatprep.subr.bf16.mxu0 0
    %1514 = vmatpush1.bf16.xpose.msra.mxu0 %v1509
    %1515 = vmatprep.subr.bf16.mxu0 0
    %1516 = vmatpush1.bf16.xpose.msra.mxu0 0
    %1517 = vmatprep.subr.bf16.mxu0 0
    %1518 = vmatpush1.bf16.xpose.msra.mxu0 0
    %1519 = vmatprep.subr.bf16.mxu0 0
    %1520 = vmatpush1.bf16.xpose.msra.mxu0 0
    %1521 = vmatprep.subr.bf16.mxu0 0
    %1522 = vmatpush1.bf16.xpose.msra.mxu0 0
    %1523 = vmatprep.subr.bf16.mxu0 0
    %1524 = vmatpush1.bf16.xpose.msra.mxu0 0
    %1525 = vmatprep.subr.bf16.mxu0 0
    %1526 = vmatpush1.bf16.xpose.msra.mxu0 0
    %1527 = vmatprep.subr.bf16.mxu0 0
    %1528 = vmatpush1.bf16.xpose.msra.mxu0 0
    %1529 = vmatprep.subr.bf16.mxu0 0
    %1530 = vmatpush1.bf16.xpose.msra.mxu0 0
    %1531 = vmatprep.subr.bf16.mxu0 0
    %1532 = vmatpush1.bf16.xpose.msra.mxu0 0
    %1533 = vmatprep.subr.bf16.mxu0 0
    %1534 = vmatpush1.bf16.xpose.msra.mxu0 0
    %1535 = vmatprep.subr.bf16.mxu0 0
    %1536 = vmatpush1.bf16.xpose.msra.mxu0 0
    %1537 = vmatprep.subr.bf16.mxu0 0
    %1538 = vmatpush1.bf16.xpose.msra.mxu0 0
    %1539 = vmatprep.subr.bf16.mxu0 0
    %1540 = vmatpush1.bf16.xpose.msra.mxu0 0
    %1541 = vmatprep.subr.bf16.mxu0 0
    %1542 = vmatpush1.bf16.xpose.msra.mxu0 0
    %1543 = vmatprep.mubr.bf16.mxu0 0
    %1544 = vmatmul.mubr.bf16.gmra.mrb[0].mxu0 %v1503
    %v1545 = vpop.f32.mrb[0].mxu0
    %v1546 = vadd.f32 0.0, %v1545
    %v1547 = vpop.f32.mrb[0].mxu0
    %v1548 = vpop.f32.mrb[0].mxu0
    %v1549 = vadd.f32 0.0, %v1548
    %v1550 = vpop.f32.mrb[0].mxu0
    %1551 = vdwg.mxu0
    %v1552 = vadd.f32 %v1064, %v1546
    %v1553 = vadd.f32 %v1067, %v1549
    %s1554 = scalar_lea.vmem %s4, 48
    %v1555 = vld [vmem:[%s1554] sm:$0xf]
    %v1556 = vld [vmem:[%s1554 + $0x4] sm:$0xf]
    %v1557 = vld [vmem:[%s1554 + $0x8] sm:$0xf]
    %v1558 = vld [vmem:[%s1554 + $0xc] sm:$0xf]
    %s1559 = scalar_lea.vmem %s7, 3
    %v1560 = vld [vmem:[%s1559] sm:$0x1]
    %v1562 = vlaneseq
    %v1563 = vshrl.u32 %v1562, 7
    %v1564 = vsub.s32 0, %v1563
    %v1565 = vrot.slane %v1560, %v1564
    %v1571 = vunpack.c.l.b16 %v1555
    %v1572 = vunpack.c.l.b16 %v1556
    %v1573 = vunpack.c.l.b16 %v1557
    %v1574 = vunpack.c.l.b16 %v1558
    %v1575 = vpack.c.b16 %v1572, %v1571
    %v1576 = vpack.c.b16 %v1574, %v1573
    %1579 = vmatprep.subr.bf16.mxu0 0
    %1580 = vmatpush1.bf16.msra.mxu0 %v1575
    %1581 = vmatprep.subr.bf16.mxu0 0
    %1582 = vmatpush1.bf16.msra.mxu0 %v1576
    %1583 = vmatprep.subr.bf16.mxu0 0
    %1584 = vmatpush1.bf16.msra.mxu0 0
    %1585 = vmatprep.subr.bf16.mxu0 0
    %1586 = vmatpush1.bf16.msra.mxu0 0
    %1587 = vmatprep.subr.bf16.mxu0 0
    %1588 = vmatpush1.bf16.msra.mxu0 0
    %1589 = vmatprep.subr.bf16.mxu0 0
    %1590 = vmatpush1.bf16.msra.mxu0 0
    %1591 = vmatprep.subr.bf16.mxu0 0
    %1592 = vmatpush1.bf16.msra.mxu0 0
    %1593 = vmatprep.subr.bf16.mxu0 0
    %1594 = vmatpush1.bf16.msra.mxu0 0
    %1595 = vmatprep.subr.bf16.mxu0 0
    %1596 = vmatpush1.bf16.msra.mxu0 0
    %1597 = vmatprep.subr.bf16.mxu0 0
    %1598 = vmatpush1.bf16.msra.mxu0 0
    %1599 = vmatprep.subr.bf16.mxu0 0
    %1600 = vmatpush1.bf16.msra.mxu0 0
    %1601 = vmatprep.subr.bf16.mxu0 0
    %1602 = vmatpush1.bf16.msra.mxu0 0
    %1603 = vmatprep.subr.bf16.mxu0 0
    %1604 = vmatpush1.bf16.msra.mxu0 0
    %1605 = vmatprep.subr.bf16.mxu0 0
    %1606 = vmatpush1.bf16.msra.mxu0 0
    %1607 = vmatprep.subr.bf16.mxu0 0
    %1608 = vmatpush1.bf16.msra.mxu0 0
    %1609 = vmatprep.subr.bf16.mxu0 0
    %1610 = vmatpush1.bf16.msra.mxu0 0
    %1611 = vmatprep.mubr.bf16.mxu0 0
    %1612 = vmatmul.mubr.bf16.gmra.mrb[0].mxu0 %v127
    %v1613 = vpop.f32.mrb[0].mxu0
    %v1614 = vadd.f32 %v1565, %v1613
    %v1615 = vpop.f32.mrb[0].mxu0
    %v1616 = vpop.f32.mrb[0].mxu0
    %v1617 = vadd.f32 %v1565, %v1616
    %v1618 = vpop.f32.mrb[0].mxu0
    %1619 = vdwg.mxu0
    %s1620 = scalar_lea.vmem %s4, 112
    %v1621 = vld [vmem:[%s1620] sm:$0xf]
    %v1622 = vld [vmem:[%s1620 + $0x4] sm:$0xf]
    %v1623 = vld [vmem:[%s1620 + $0x8] sm:$0xf]
    %v1624 = vld [vmem:[%s1620 + $0xc] sm:$0xf]
    %s1625 = scalar_lea.vmem %s7, 7
    %v1626 = vld [vmem:[%s1625] sm:$0x1]
    %v1628 = vlaneseq
    %v1629 = vshrl.u32 %v1628, 7
    %v1630 = vsub.s32 0, %v1629
    %v1631 = vrot.slane %v1626, %v1630
    %v1637 = vunpack.c.l.b16 %v1621
    %v1638 = vunpack.c.l.b16 %v1622
    %v1639 = vunpack.c.l.b16 %v1623
    %v1640 = vunpack.c.l.b16 %v1624
    %v1641 = vpack.c.b16 %v1638, %v1637
    %v1642 = vpack.c.b16 %v1640, %v1639
    %1645 = vmatprep.subr.bf16.mxu0 0
    %1646 = vmatpush1.bf16.msra.mxu0 %v1641
    %1647 = vmatprep.subr.bf16.mxu0 0
    %1648 = vmatpush1.bf16.msra.mxu0 %v1642
    %1649 = vmatprep.subr.bf16.mxu0 0
    %1650 = vmatpush1.bf16.msra.mxu0 0
    %1651 = vmatprep.subr.bf16.mxu0 0
    %1652 = vmatpush1.bf16.msra.mxu0 0
    %1653 = vmatprep.subr.bf16.mxu0 0
    %1654 = vmatpush1.bf16.msra.mxu0 0
    %1655 = vmatprep.subr.bf16.mxu0 0
    %1656 = vmatpush1.bf16.msra.mxu0 0
    %1657 = vmatprep.subr.bf16.mxu0 0
    %1658 = vmatpush1.bf16.msra.mxu0 0
    %1659 = vmatprep.subr.bf16.mxu0 0
    %1660 = vmatpush1.bf16.msra.mxu0 0
    %1661 = vmatprep.subr.bf16.mxu0 0
    %1662 = vmatpush1.bf16.msra.mxu0 0
    %1663 = vmatprep.subr.bf16.mxu0 0
    %1664 = vmatpush1.bf16.msra.mxu0 0
    %1665 = vmatprep.subr.bf16.mxu0 0
    %1666 = vmatpush1.bf16.msra.mxu0 0
    %1667 = vmatprep.subr.bf16.mxu0 0
    %1668 = vmatpush1.bf16.msra.mxu0 0
    %1669 = vmatprep.subr.bf16.mxu0 0
    %1670 = vmatpush1.bf16.msra.mxu0 0
    %1671 = vmatprep.subr.bf16.mxu0 0
    %1672 = vmatpush1.bf16.msra.mxu0 0
    %1673 = vmatprep.subr.bf16.mxu0 0
    %1674 = vmatpush1.bf16.msra.mxu0 0
    %1675 = vmatprep.subr.bf16.mxu0 0
    %1676 = vmatpush1.bf16.msra.mxu0 0
    %1677 = vmatprep.mubr.bf16.mxu0 0
    %1678 = vmatmul.mubr.bf16.gmra.mrb[0].mxu0 %v127
    %v1679 = vpop.f32.mrb[0].mxu0
    %v1680 = vadd.f32 %v1631, %v1679
    %v1681 = vpop.f32.mrb[0].mxu0
    %v1682 = vpop.f32.mrb[0].mxu0
    %v1683 = vadd.f32 %v1631, %v1682
    %v1684 = vpop.f32.mrb[0].mxu0
    %1685 = vdwg.mxu0
    %s1686 = scalar_lea.vmem %s4, 176
    %v1687 = vld [vmem:[%s1686] sm:$0xf]
    %v1688 = vld [vmem:[%s1686 + $0x4] sm:$0xf]
    %v1689 = vld [vmem:[%s1686 + $0x8] sm:$0xf]
    %v1690 = vld [vmem:[%s1686 + $0xc] sm:$0xf]
    %s1691 = scalar_lea.vmem %s7, 11
    %v1692 = vld [vmem:[%s1691] sm:$0x1]
    %v1694 = vlaneseq
    %v1695 = vshrl.u32 %v1694, 7
    %v1696 = vsub.s32 0, %v1695
    %v1697 = vrot.slane %v1692, %v1696
    %v1703 = vunpack.c.l.b16 %v1687
    %v1704 = vunpack.c.l.b16 %v1688
    %v1705 = vunpack.c.l.b16 %v1689
    %v1706 = vunpack.c.l.b16 %v1690
    %v1707 = vpack.c.b16 %v1704, %v1703
    %v1708 = vpack.c.b16 %v1706, %v1705
    %1711 = vmatprep.subr.bf16.mxu0 0
    %1712 = vmatpush1.bf16.msra.mxu0 %v1707
    %1713 = vmatprep.subr.bf16.mxu0 0
    %1714 = vmatpush1.bf16.msra.mxu0 %v1708
    %1715 = vmatprep.subr.bf16.mxu0 0
    %1716 = vmatpush1.bf16.msra.mxu0 0
    %1717 = vmatprep.subr.bf16.mxu0 0
    %1718 = vmatpush1.bf16.msra.mxu0 0
    %1719 = vmatprep.subr.bf16.mxu0 0
    %1720 = vmatpush1.bf16.msra.mxu0 0
    %1721 = vmatprep.subr.bf16.mxu0 0
    %1722 = vmatpush1.bf16.msra.mxu0 0
    %1723 = vmatprep.subr.bf16.mxu0 0
    %1724 = vmatpush1.bf16.msra.mxu0 0
    %1725 = vmatprep.subr.bf16.mxu0 0
    %1726 = vmatpush1.bf16.msra.mxu0 0
    %1727 = vmatprep.subr.bf16.mxu0 0
    %1728 = vmatpush1.bf16.msra.mxu0 0
    %1729 = vmatprep.subr.bf16.mxu0 0
    %1730 = vmatpush1.bf16.msra.mxu0 0
    %1731 = vmatprep.subr.bf16.mxu0 0
    %1732 = vmatpush1.bf16.msra.mxu0 0
    %1733 = vmatprep.subr.bf16.mxu0 0
    %1734 = vmatpush1.bf16.msra.mxu0 0
    %1735 = vmatprep.subr.bf16.mxu0 0
    %1736 = vmatpush1.bf16.msra.mxu0 0
    %1737 = vmatprep.subr.bf16.mxu0 0
    %1738 = vmatpush1.bf16.msra.mxu0 0
    %1739 = vmatprep.subr.bf16.mxu0 0
    %1740 = vmatpush1.bf16.msra.mxu0 0
    %1741 = vmatprep.subr.bf16.mxu0 0
    %1742 = vmatpush1.bf16.msra.mxu0 0
    %1743 = vmatprep.mubr.bf16.mxu0 0
    %1744 = vmatmul.mubr.bf16.gmra.mrb[0].mxu0 %v127
    %v1745 = vpop.f32.mrb[0].mxu0
    %v1746 = vadd.f32 %v1697, %v1745
    %v1747 = vpop.f32.mrb[0].mxu0
    %v1748 = vpop.f32.mrb[0].mxu0
    %v1749 = vadd.f32 %v1697, %v1748
    %v1750 = vpop.f32.mrb[0].mxu0
    %1751 = vdwg.mxu0
    %v1752 = vpack.c.bf16 %v1614, %v1614
    %v1753 = vpack.c.bf16 %v1617, %v1617
    %v1754 = vpack.c.bf16 %v1680, %v1680
    %v1755 = vpack.c.bf16 %v1683, %v1683
    %v1756 = vpack.c.bf16 %v1746, %v1746
    %v1757 = vpack.c.bf16 %v1749, %v1749
    %v1759 = vsel %vm308, %v1752, 0
    %v1762 = vsel %vm308, %v1754, 0
    %1764 = vmatprep.subr.bf16.mxu0 0
    %1765 = vmatpush1.bf16.xpose.msra.mxu0 %v1762
    %1766 = vmatprep.subr.bf16.mxu0 0
    %1767 = vmatpush1.bf16.xpose.msra.mxu0 0
    %1768 = vmatprep.subr.bf16.mxu0 0
    %1769 = vmatpush1.bf16.xpose.msra.mxu0 0
    %1770 = vmatprep.subr.bf16.mxu0 0
    %1771 = vmatpush1.bf16.xpose.msra.mxu0 0
    %1772 = vmatprep.subr.bf16.mxu0 0
    %1773 = vmatpush1.bf16.xpose.msra.mxu0 0
    %1774 = vmatprep.subr.bf16.mxu0 0
    %1775 = vmatpush1.bf16.xpose.msra.mxu0 0
    %1776 = vmatprep.subr.bf16.mxu0 0
    %1777 = vmatpush1.bf16.xpose.msra.mxu0 0
    %1778 = vmatprep.subr.bf16.mxu0 0
    %1779 = vmatpush1.bf16.xpose.msra.mxu0 0
    %1780 = vmatprep.subr.bf16.mxu0 0
    %1781 = vmatpush1.bf16.xpose.msra.mxu0 0
    %1782 = vmatprep.subr.bf16.mxu0 0
    %1783 = vmatpush1.bf16.xpose.msra.mxu0 0
    %1784 = vmatprep.subr.bf16.mxu0 0
    %1785 = vmatpush1.bf16.xpose.msra.mxu0 0
    %1786 = vmatprep.subr.bf16.mxu0 0
    %1787 = vmatpush1.bf16.xpose.msra.mxu0 0
    %1788 = vmatprep.subr.bf16.mxu0 0
    %1789 = vmatpush1.bf16.xpose.msra.mxu0 0
    %1790 = vmatprep.subr.bf16.mxu0 0
    %1791 = vmatpush1.bf16.xpose.msra.mxu0 0
    %1792 = vmatprep.subr.bf16.mxu0 0
    %1793 = vmatpush1.bf16.xpose.msra.mxu0 0
    %1794 = vmatprep.subr.bf16.mxu0 0
    %1795 = vmatpush1.bf16.xpose.msra.mxu0 0
    %1796 = vmatprep.mubr.bf16.mxu0 0
    %1797 = vmatmul.mubr.bf16.gmra.mrb[0].mxu0 %v1759
    %v1798 = vpop.f32.mrb[0].mxu0
    %v1799 = vadd.f32 0.0, %v1798
    %v1800 = vpop.f32.mrb[0].mxu0
    %v1801 = vpop.f32.mrb[0].mxu0
    %v1802 = vpop.f32.mrb[0].mxu0
    %1803 = vdwg.mxu0
    %v1805 = vsel %vm308, %v1753, 0
    %v1808 = vsel %vm308, %v1755, 0
    %1810 = vmatprep.subr.bf16.mxu0 0
    %1811 = vmatpush1.bf16.xpose.msra.mxu0 %v1808
    %1812 = vmatprep.subr.bf16.mxu0 0
    %1813 = vmatpush1.bf16.xpose.msra.mxu0 0
    %1814 = vmatprep.subr.bf16.mxu0 0
    %1815 = vmatpush1.bf16.xpose.msra.mxu0 0
    %1816 = vmatprep.subr.bf16.mxu0 0
    %1817 = vmatpush1.bf16.xpose.msra.mxu0 0
    %1818 = vmatprep.subr.bf16.mxu0 0
    %1819 = vmatpush1.bf16.xpose.msra.mxu0 0
    %1820 = vmatprep.subr.bf16.mxu0 0
    %1821 = vmatpush1.bf16.xpose.msra.mxu0 0
    %1822 = vmatprep.subr.bf16.mxu0 0
    %1823 = vmatpush1.bf16.xpose.msra.mxu0 0
    %1824 = vmatprep.subr.bf16.mxu0 0
    %1825 = vmatpush1.bf16.xpose.msra.mxu0 0
    %1826 = vmatprep.subr.bf16.mxu0 0
    %1827 = vmatpush1.bf16.xpose.msra.mxu0 0
    %1828 = vmatprep.subr.bf16.mxu0 0
    %1829 = vmatpush1.bf16.xpose.msra.mxu0 0
    %1830 = vmatprep.subr.bf16.mxu0 0
    %1831 = vmatpush1.bf16.xpose.msra.mxu0 0
    %1832 = vmatprep.subr.bf16.mxu0 0
    %1833 = vmatpush1.bf16.xpose.msra.mxu0 0
    %1834 = vmatprep.subr.bf16.mxu0 0
    %1835 = vmatpush1.bf16.xpose.msra.mxu0 0
    %1836 = vmatprep.subr.bf16.mxu0 0
    %1837 = vmatpush1.bf16.xpose.msra.mxu0 0
    %1838 = vmatprep.subr.bf16.mxu0 0
    %1839 = vmatpush1.bf16.xpose.msra.mxu0 0
    %1840 = vmatprep.subr.bf16.mxu0 0
    %1841 = vmatpush1.bf16.xpose.msra.mxu0 0
    %1842 = vmatprep.mubr.bf16.mxu0 0
    %1843 = vmatmul.mubr.bf16.gmra.mrb[0].mxu0 %v1805
    %v1844 = vpop.f32.mrb[0].mxu0
    %v1845 = vadd.f32 0.0, %v1844
    %v1846 = vpop.f32.mrb[0].mxu0
    %v1847 = vpop.f32.mrb[0].mxu0
    %v1848 = vpop.f32.mrb[0].mxu0
    %1849 = vdwg.mxu0
    %v1850 = vmul.f32 %v1799, 0.35355338
    %v1851 = vmul.f32 %v1845, 0.35355338
    %v1852 = vsel %vm101, %v1850, -1e+09
    %v1853 = vsel %vm102, %v1851, -1e+09
    %v1854 = vsel %vm308, %v1852, -inf
    %1855 = vmax.xlane.f32.xlu0 %v1854
    %v1856 = vpop.xlane.xlu0 %1855
    %v1857 = vsel %vm308, %v1853, -inf
    %1858 = vmax.xlane.f32.xlu0 %v1857
    %v1859 = vpop.xlane.xlu0 %1858
    %v1860 = vsub.f32 %v1852, %v1856
    %v1861 = vsub.f32 %v1853, %v1859
    %v1862 = vmul.f32 %v1860, 1.442695
    %v1863 = vpow.pop %v1862
    %v1864 = vmul.f32 %v1861, 1.442695
    %v1865 = vpow.pop %v1864
    %v1866 = vsel %vm308, %v1863, 0.0
    %1867 = vadd.xlane.f32.xlu0 %v1866
    %v1868 = vpop.xlane.xlu0 %1867
    %v1869 = vsel %vm308, %v1865, 0.0
    %1870 = vadd.xlane.f32.xlu0 %v1869
    %v1871 = vpop.xlane.xlu0 %1870
    %v1872 = vrcp.pop %v1868
    %v1873 = vrcp.pop %v1871
    %v1874 = vmul.f32 %v1863, %v1872
    %v1875 = vmul.f32 %v1865, %v1873
    %v1876 = vpack.c.bf16 %v1874, %v1874
    %v1877 = vpack.c.bf16 %v1875, %v1875
    %v1879 = vsel %vm308, %v1876, 0
    %v1882 = vsel %vm432, %v1756, 0
    %1884 = vmatprep.subr.bf16.mxu0 0
    %1885 = vmatpush1.bf16.msra.mxu0 %v1882
    %1886 = vmatprep.subr.bf16.mxu0 0
    %1887 = vmatpush1.bf16.msra.mxu0 0
    %1888 = vmatprep.subr.bf16.mxu0 0
    %1889 = vmatpush1.bf16.msra.mxu0 0
    %1890 = vmatprep.subr.bf16.mxu0 0
    %1891 = vmatpush1.bf16.msra.mxu0 0
    %1892 = vmatprep.subr.bf16.mxu0 0
    %1893 = vmatpush1.bf16.msra.mxu0 0
    %1894 = vmatprep.subr.bf16.mxu0 0
    %1895 = vmatpush1.bf16.msra.mxu0 0
    %1896 = vmatprep.subr.bf16.mxu0 0
    %1897 = vmatpush1.bf16.msra.mxu0 0
    %1898 = vmatprep.subr.bf16.mxu0 0
    %1899 = vmatpush1.bf16.msra.mxu0 0
    %1900 = vmatprep.subr.bf16.mxu0 0
    %1901 = vmatpush1.bf16.msra.mxu0 0
    %1902 = vmatprep.subr.bf16.mxu0 0
    %1903 = vmatpush1.bf16.msra.mxu0 0
    %1904 = vmatprep.subr.bf16.mxu0 0
    %1905 = vmatpush1.bf16.msra.mxu0 0
    %1906 = vmatprep.subr.bf16.mxu0 0
    %1907 = vmatpush1.bf16.msra.mxu0 0
    %1908 = vmatprep.subr.bf16.mxu0 0
    %1909 = vmatpush1.bf16.msra.mxu0 0
    %1910 = vmatprep.subr.bf16.mxu0 0
    %1911 = vmatpush1.bf16.msra.mxu0 0
    %1912 = vmatprep.subr.bf16.mxu0 0
    %1913 = vmatpush1.bf16.msra.mxu0 0
    %1914 = vmatprep.subr.bf16.mxu0 0
    %1915 = vmatpush1.bf16.msra.mxu0 0
    %1916 = vmatprep.mubr.bf16.mxu0 0
    %1917 = vmatmul.mubr.bf16.gmra.mrb[0].mxu0 %v1879
    %v1918 = vpop.f32.mrb[0].mxu0
    %v1919 = vadd.f32 0.0, %v1918
    %v1920 = vpop.f32.mrb[0].mxu0
    %v1921 = vpop.f32.mrb[0].mxu0
    %v1922 = vpop.f32.mrb[0].mxu0
    %1923 = vdwg.mxu0
    %v1925 = vsel %vm308, %v1877, 0
    %v1928 = vsel %vm432, %v1757, 0
    %1930 = vmatprep.subr.bf16.mxu0 0
    %1931 = vmatpush1.bf16.msra.mxu0 %v1928
    %1932 = vmatprep.subr.bf16.mxu0 0
    %1933 = vmatpush1.bf16.msra.mxu0 0
    %1934 = vmatprep.subr.bf16.mxu0 0
    %1935 = vmatpush1.bf16.msra.mxu0 0
    %1936 = vmatprep.subr.bf16.mxu0 0
    %1937 = vmatpush1.bf16.msra.mxu0 0
    %1938 = vmatprep.subr.bf16.mxu0 0
    %1939 = vmatpush1.bf16.msra.mxu0 0
    %1940 = vmatprep.subr.bf16.mxu0 0
    %1941 = vmatpush1.bf16.msra.mxu0 0
    %1942 = vmatprep.subr.bf16.mxu0 0
    %1943 = vmatpush1.bf16.msra.mxu0 0
    %1944 = vmatprep.subr.bf16.mxu0 0
    %1945 = vmatpush1.bf16.msra.mxu0 0
    %1946 = vmatprep.subr.bf16.mxu0 0
    %1947 = vmatpush1.bf16.msra.mxu0 0
    %1948 = vmatprep.subr.bf16.mxu0 0
    %1949 = vmatpush1.bf16.msra.mxu0 0
    %1950 = vmatprep.subr.bf16.mxu0 0
    %1951 = vmatpush1.bf16.msra.mxu0 0
    %1952 = vmatprep.subr.bf16.mxu0 0
    %1953 = vmatpush1.bf16.msra.mxu0 0
    %1954 = vmatprep.subr.bf16.mxu0 0
    %1955 = vmatpush1.bf16.msra.mxu0 0
    %1956 = vmatprep.subr.bf16.mxu0 0
    %1957 = vmatpush1.bf16.msra.mxu0 0
    %1958 = vmatprep.subr.bf16.mxu0 0
    %1959 = vmatpush1.bf16.msra.mxu0 0
    %1960 = vmatprep.subr.bf16.mxu0 0
    %1961 = vmatpush1.bf16.msra.mxu0 0
    %1962 = vmatprep.mubr.bf16.mxu0 0
    %1963 = vmatmul.mubr.bf16.gmra.mrb[0].mxu0 %v1925
    %v1964 = vpop.f32.mrb[0].mxu0
    %v1965 = vadd.f32 0.0, %v1964
    %v1966 = vpop.f32.mrb[0].mxu0
    %v1967 = vpop.f32.mrb[0].mxu0
    %v1968 = vpop.f32.mrb[0].mxu0
    %1969 = vdwg.mxu0
    %v1970 = vpack.c.bf16 %v1965, %v1919
    %s1971 = scalar_lea.vmem %s4, 816
    %v1972 = vld [vmem:[%s1971] sm:$0xf]
    %v1973 = vld [vmem:[%s1971 + $0x4] sm:$0xf]
    %v1974 = vld [vmem:[%s1971 + $0x8] sm:$0xf]
    %v1975 = vld [vmem:[%s1971 + $0xc] sm:$0xf]
    %v1980 = vunpack.c.l.b16 %v1972
    %v1981 = vunpack.c.l.b16 %v1973
    %v1982 = vunpack.c.l.b16 %v1974
    %v1983 = vunpack.c.l.b16 %v1975
    %v1984 = vpack.c.b16 %v1981, %v1980
    %v1985 = vpack.c.b16 %v1983, %v1982
    %v1987 = vsel %vm308, %v1970, 0
    %v1990 = vsel %vm308, %v1984, 0
    %v1993 = vsel %vm308, %v1985, 0
    %1995 = vmatprep.subr.bf16.mxu0 0
    %1996 = vmatpush1.bf16.xpose.msra.mxu0 %v1990
    %1997 = vmatprep.subr.bf16.mxu0 0
    %1998 = vmatpush1.bf16.xpose.msra.mxu0 %v1993
    %1999 = vmatprep.subr.bf16.mxu0 0
    %2000 = vmatpush1.bf16.xpose.msra.mxu0 0
    %2001 = vmatprep.subr.bf16.mxu0 0
    %2002 = vmatpush1.bf16.xpose.msra.mxu0 0
    %2003 = vmatprep.subr.bf16.mxu0 0
    %2004 = vmatpush1.bf16.xpose.msra.mxu0 0
    %2005 = vmatprep.subr.bf16.mxu0 0
    %2006 = vmatpush1.bf16.xpose.msra.mxu0 0
    %2007 = vmatprep.subr.bf16.mxu0 0
    %2008 = vmatpush1.bf16.xpose.msra.mxu0 0
    %2009 = vmatprep.subr.bf16.mxu0 0
    %2010 = vmatpush1.bf16.xpose.msra.mxu0 0
    %2011 = vmatprep.subr.bf16.mxu0 0
    %2012 = vmatpush1.bf16.xpose.msra.mxu0 0
    %2013 = vmatprep.subr.bf16.mxu0 0
    %2014 = vmatpush1.bf16.xpose.msra.mxu0 0
    %2015 = vmatprep.subr.bf16.mxu0 0
    %2016 = vmatpush1.bf16.xpose.msra.mxu0 0
    %2017 = vmatprep.subr.bf16.mxu0 0
    %2018 = vmatpush1.bf16.xpose.msra.mxu0 0
    %2019 = vmatprep.subr.bf16.mxu0 0
    %2020 = vmatpush1.bf16.xpose.msra.mxu0 0
    %2021 = vmatprep.subr.bf16.mxu0 0
    %2022 = vmatpush1.bf16.xpose.msra.mxu0 0
    %2023 = vmatprep.subr.bf16.mxu0 0
    %2024 = vmatpush1.bf16.xpose.msra.mxu0 0
    %2025 = vmatprep.subr.bf16.mxu0 0
    %2026 = vmatpush1.bf16.xpose.msra.mxu0 0
    %2027 = vmatprep.mubr.bf16.mxu0 0
    %2028 = vmatmul.mubr.bf16.gmra.mrb[0].mxu0 %v1987
    %v2029 = vpop.f32.mrb[0].mxu0
    %v2030 = vadd.f32 0.0, %v2029
    %v2031 = vpop.f32.mrb[0].mxu0
    %v2032 = vpop.f32.mrb[0].mxu0
    %v2033 = vadd.f32 0.0, %v2032
    %v2034 = vpop.f32.mrb[0].mxu0
    %2035 = vdwg.mxu0
    %v2036 = vadd.f32 %v1552, %v2030
    %v2037 = vadd.f32 %v1553, %v2033
    %s2038 = scalar_lea.vmem %s9, 6
    %v2039 = vld [vmem:[%s2038] sm:$0x1]
    %v2041 = vlaneseq
    %v2042 = vshrl.u32 %v2041, 7
    %v2043 = vsub.s32 0, %v2042
    %v2044 = vrot.slane %v2039, %v2043
    %v2046 = vadd.f32 %v2036, %v2044
    %v2047 = vadd.f32 %v2037, %v2044
    %v2048 = vadd.f32 %v37, %v2046
    %v2049 = vadd.f32 %v38, %v2047
    %v2050 = vsel %vm49, %v2048, 0.0
    %2051 = vadd.xlane.f32.xlu0 %v2050
    %v2052 = vpop.xlane.xlu0 %2051
    %v2053 = vsel %vm49, %v2049, 0.0
    %2054 = vadd.xlane.f32.xlu0 %v2053
    %v2055 = vpop.xlane.xlu0 %2054
    %v2056 = vmul.f32 %v2052, %v56
    %v2057 = vmul.f32 %v2055, %v56
    %v2058 = vmul.f32 %v2048, %v2048
    %v2059 = vmul.f32 %v2049, %v2049
    %v2060 = vsel %vm49, %v2058, 0.0
    %2061 = vadd.xlane.f32.xlu0 %v2060
    %v2062 = vpop.xlane.xlu0 %2061
    %v2063 = vsel %vm49, %v2059, 0.0
    %2064 = vadd.xlane.f32.xlu0 %v2063
    %v2065 = vpop.xlane.xlu0 %2064
    %v2066 = vmul.f32 %v2062, %v56
    %v2067 = vmul.f32 %v2065, %v56
    %v2068 = vmul.f32 %v2056, %v2056
    %v2069 = vmul.f32 %v2057, %v2057
    %v2070 = vsub.f32 %v2066, %v2068
    %v2071 = vsub.f32 %v2067, %v2069
    %v2072 = vsub.f32 %v2048, %v2056
    %v2073 = vsub.f32 %v2049, %v2057
    %v2074 = vadd.f32 %v2070, 1e-06
    %v2075 = vadd.f32 %v2071, 1e-06
    %v2076 = vrsqrt.pop %v2074
    %v2077 = vrsqrt.pop %v2075
    %v2078 = vmul.f32 %v2072, %v2076
    %v2079 = vmul.f32 %v2073, %v2077
    %s2080 = scalar_lea.vmem %s9, 2
    %v2081 = vld [vmem:[%s2080] sm:$0x1]
    %v2083 = vlaneseq
    %v2084 = vshrl.u32 %v2083, 7
    %v2085 = vsub.s32 0, %v2084
    %v2086 = vrot.slane %v2081, %v2085
    %v2088 = vmul.f32 %v2078, %v2086
    %v2089 = vmul.f32 %v2079, %v2086
    %s2090 = scalar_lea.vmem %s9, 3
    %v2091 = vld [vmem:[%s2090] sm:$0x1]
    %v2093 = vlaneseq
    %v2094 = vshrl.u32 %v2093, 7
    %v2095 = vsub.s32 0, %v2094
    %v2096 = vrot.slane %v2091, %v2095
    %v2098 = vadd.f32 %v2088, %v2096
    %v2099 = vadd.f32 %v2089, %v2096
    %v2100 = vpack.c.bf16 %v2099, %v2098
    %v2103 = vlaneseq
    %v2104 = vshrl.u32 %v2103, 7
    %v2105 = vsub.s32 0, %v2104
    %v2106 = vrot.slane %v47, %v2105
    %v2107 = vlaneseq
    %v2108 = vshrl.u32 %v2107, 7
    %v2109 = vsub.s32 0, %v2108
    %v2110 = vrot.slane %v48, %v2109
    %vm2113 = vcmp.gt.f32.partialorder %v2106, 0.0
    %vm2114 = vcmp.gt.f32.partialorder %v2110, 0.0
    %s2115 = scalar_lea.vmem %s4, 192
    %v2116 = vld [vmem:[%s2115] sm:$0xf]
    %v2117 = vld [vmem:[%s2115 + $0x4] sm:$0xf]
    %v2118 = vld [vmem:[%s2115 + $0x8] sm:$0xf]
    %v2119 = vld [vmem:[%s2115 + $0xc] sm:$0xf]
    %s2120 = scalar_lea.vmem %s7, 12
    %v2121 = vld [vmem:[%s2120] sm:$0x1]
    %v2123 = vlaneseq
    %v2124 = vshrl.u32 %v2123, 7
    %v2125 = vsub.s32 0, %v2124
    %v2126 = vrot.slane %v2121, %v2125
    %v2132 = vunpack.c.l.b16 %v2116
    %v2133 = vunpack.c.l.b16 %v2117
    %v2134 = vunpack.c.l.b16 %v2118
    %v2135 = vunpack.c.l.b16 %v2119
    %v2136 = vpack.c.b16 %v2133, %v2132
    %v2137 = vpack.c.b16 %v2135, %v2134
    %v2141 = vsel %vm49, %v2100, 0
    %2143 = vmatprep.subr.bf16.mxu0 0
    %2144 = vmatpush1.bf16.msra.mxu0 %v2136
    %2145 = vmatprep.subr.bf16.mxu0 0
    %2146 = vmatpush1.bf16.msra.mxu0 %v2137
    %2147 = vmatprep.subr.bf16.mxu0 0
    %2148 = vmatpush1.bf16.msra.mxu0 0
    %2149 = vmatprep.subr.bf16.mxu0 0
    %2150 = vmatpush1.bf16.msra.mxu0 0
    %2151 = vmatprep.subr.bf16.mxu0 0
    %2152 = vmatpush1.bf16.msra.mxu0 0
    %2153 = vmatprep.subr.bf16.mxu0 0
    %2154 = vmatpush1.bf16.msra.mxu0 0
    %2155 = vmatprep.subr.bf16.mxu0 0
    %2156 = vmatpush1.bf16.msra.mxu0 0
    %2157 = vmatprep.subr.bf16.mxu0 0
    %2158 = vmatpush1.bf16.msra.mxu0 0
    %2159 = vmatprep.subr.bf16.mxu0 0
    %2160 = vmatpush1.bf16.msra.mxu0 0
    %2161 = vmatprep.subr.bf16.mxu0 0
    %2162 = vmatpush1.bf16.msra.mxu0 0
    %2163 = vmatprep.subr.bf16.mxu0 0
    %2164 = vmatpush1.bf16.msra.mxu0 0
    %2165 = vmatprep.subr.bf16.mxu0 0
    %2166 = vmatpush1.bf16.msra.mxu0 0
    %2167 = vmatprep.subr.bf16.mxu0 0
    %2168 = vmatpush1.bf16.msra.mxu0 0
    %2169 = vmatprep.subr.bf16.mxu0 0
    %2170 = vmatpush1.bf16.msra.mxu0 0
    %2171 = vmatprep.subr.bf16.mxu0 0
    %2172 = vmatpush1.bf16.msra.mxu0 0
    %2173 = vmatprep.subr.bf16.mxu0 0
    %2174 = vmatpush1.bf16.msra.mxu0 0
    %2175 = vmatprep.mubr.bf16.mxu0 0
    %2176 = vmatmul.mubr.bf16.gmra.mrb[0].mxu0 %v2141
    %v2177 = vpop.f32.mrb[0].mxu0
    %v2178 = vadd.f32 %v2126, %v2177
    %v2179 = vpop.f32.mrb[0].mxu0
    %v2180 = vpop.f32.mrb[0].mxu0
    %v2181 = vadd.f32 %v2126, %v2180
    %v2182 = vpop.f32.mrb[0].mxu0
    %2183 = vdwg.mxu0
    %s2184 = scalar_lea.vmem %s4, 256
    %v2185 = vld [vmem:[%s2184] sm:$0xf]
    %v2186 = vld [vmem:[%s2184 + $0x4] sm:$0xf]
    %v2187 = vld [vmem:[%s2184 + $0x8] sm:$0xf]
    %v2188 = vld [vmem:[%s2184 + $0xc] sm:$0xf]
    %s2189 = scalar_lea.vmem %s7, 16
    %v2190 = vld [vmem:[%s2189] sm:$0x1]
    %v2192 = vlaneseq
    %v2193 = vshrl.u32 %v2192, 7
    %v2194 = vsub.s32 0, %v2193
    %v2195 = vrot.slane %v2190, %v2194
    %v2201 = vunpack.c.l.b16 %v2185
    %v2202 = vunpack.c.l.b16 %v2186
    %v2203 = vunpack.c.l.b16 %v2187
    %v2204 = vunpack.c.l.b16 %v2188
    %v2205 = vpack.c.b16 %v2202, %v2201
    %v2206 = vpack.c.b16 %v2204, %v2203
    %v2210 = vsel %vm49, %v43, 0
    %v2213 = vsel %vm49, %v44, 0
    %2215 = vmatprep.subr.bf16.mxu0 0
    %2216 = vmatpush1.bf16.msra.mxu0 %v2205
    %2217 = vmatprep.subr.bf16.mxu0 0
    %2218 = vmatpush1.bf16.msra.mxu0 %v2206
    %2219 = vmatprep.subr.bf16.mxu0 0
    %2220 = vmatpush1.bf16.msra.mxu0 0
    %2221 = vmatprep.subr.bf16.mxu0 0
    %2222 = vmatpush1.bf16.msra.mxu0 0
    %2223 = vmatprep.subr.bf16.mxu0 0
    %2224 = vmatpush1.bf16.msra.mxu0 0
    %2225 = vmatprep.subr.bf16.mxu0 0
    %2226 = vmatpush1.bf16.msra.mxu0 0
    %2227 = vmatprep.subr.bf16.mxu0 0
    %2228 = vmatpush1.bf16.msra.mxu0 0
    %2229 = vmatprep.subr.bf16.mxu0 0
    %2230 = vmatpush1.bf16.msra.mxu0 0
    %2231 = vmatprep.subr.bf16.mxu0 0
    %2232 = vmatpush1.bf16.msra.mxu0 0
    %2233 = vmatprep.subr.bf16.mxu0 0
    %2234 = vmatpush1.bf16.msra.mxu0 0
    %2235 = vmatprep.subr.bf16.mxu0 0
    %2236 = vmatpush1.bf16.msra.mxu0 0
    %2237 = vmatprep.subr.bf16.mxu0 0
    %2238 = vmatpush1.bf16.msra.mxu0 0
    %2239 = vmatprep.subr.bf16.mxu0 0
    %2240 = vmatpush1.bf16.msra.mxu0 0
    %2241 = vmatprep.subr.bf16.mxu0 0
    %2242 = vmatpush1.bf16.msra.mxu0 0
    %2243 = vmatprep.subr.bf16.mxu0 0
    %2244 = vmatpush1.bf16.msra.mxu0 0
    %2245 = vmatprep.subr.bf16.mxu0 0
    %2246 = vmatpush1.bf16.msra.mxu0 0
    %2247 = vmatprep.mubr.bf16.mxu0 0
    %2248 = vmatmul.mubr.bf16.gmra.mrb[0].mxu0 %v2210
    %v2249 = vpop.f32.mrb[0].mxu0
    %v2250 = vadd.f32 %v2195, %v2249
    %v2251 = vpop.f32.mrb[0].mxu0
    %v2252 = vpop.f32.mrb[0].mxu0
    %v2253 = vadd.f32 %v2195, %v2252
    %v2254 = vpop.f32.mrb[0].mxu0
    %2255 = vmatprep.mubr.bf16.mxu0 0
    %2256 = vmatmul.mubr.bf16.gmra.mrb[0].mxu0 %v2213
    %v2257 = vpop.f32.mrb[0].mxu0
    %v2258 = vadd.f32 %v2195, %v2257
    %v2259 = vpop.f32.mrb[0].mxu0
    %v2260 = vpop.f32.mrb[0].mxu0
    %v2261 = vadd.f32 %v2195, %v2260
    %v2262 = vpop.f32.mrb[0].mxu0
    %2263 = vdwg.mxu0
    %s2264 = scalar_lea.vmem %s4, 320
    %v2265 = vld [vmem:[%s2264] sm:$0xf]
    %v2266 = vld [vmem:[%s2264 + $0x4] sm:$0xf]
    %v2267 = vld [vmem:[%s2264 + $0x8] sm:$0xf]
    %v2268 = vld [vmem:[%s2264 + $0xc] sm:$0xf]
    %s2269 = scalar_lea.vmem %s7, 20
    %v2270 = vld [vmem:[%s2269] sm:$0x1]
    %v2272 = vlaneseq
    %v2273 = vshrl.u32 %v2272, 7
    %v2274 = vsub.s32 0, %v2273
    %v2275 = vrot.slane %v2270, %v2274
    %v2281 = vunpack.c.l.b16 %v2265
    %v2282 = vunpack.c.l.b16 %v2266
    %v2283 = vunpack.c.l.b16 %v2267
    %v2284 = vunpack.c.l.b16 %v2268
    %v2285 = vpack.c.b16 %v2282, %v2281
    %v2286 = vpack.c.b16 %v2284, %v2283
    %2289 = vmatprep.subr.bf16.mxu0 0
    %2290 = vmatpush1.bf16.msra.mxu0 %v2285
    %2291 = vmatprep.subr.bf16.mxu0 0
    %2292 = vmatpush1.bf16.msra.mxu0 %v2286
    %2293 = vmatprep.subr.bf16.mxu0 0
    %2294 = vmatpush1.bf16.msra.mxu0 0
    %2295 = vmatprep.subr.bf16.mxu0 0
    %2296 = vmatpush1.bf16.msra.mxu0 0
    %2297 = vmatprep.subr.bf16.mxu0 0
    %2298 = vmatpush1.bf16.msra.mxu0 0
    %2299 = vmatprep.subr.bf16.mxu0 0
    %2300 = vmatpush1.bf16.msra.mxu0 0
    %2301 = vmatprep.subr.bf16.mxu0 0
    %2302 = vmatpush1.bf16.msra.mxu0 0
    %2303 = vmatprep.subr.bf16.mxu0 0
    %2304 = vmatpush1.bf16.msra.mxu0 0
    %2305 = vmatprep.subr.bf16.mxu0 0
    %2306 = vmatpush1.bf16.msra.mxu0 0
    %2307 = vmatprep.subr.bf16.mxu0 0
    %2308 = vmatpush1.bf16.msra.mxu0 0
    %2309 = vmatprep.subr.bf16.mxu0 0
    %2310 = vmatpush1.bf16.msra.mxu0 0
    %2311 = vmatprep.subr.bf16.mxu0 0
    %2312 = vmatpush1.bf16.msra.mxu0 0
    %2313 = vmatprep.subr.bf16.mxu0 0
    %2314 = vmatpush1.bf16.msra.mxu0 0
    %2315 = vmatprep.subr.bf16.mxu0 0
    %2316 = vmatpush1.bf16.msra.mxu0 0
    %2317 = vmatprep.subr.bf16.mxu0 0
    %2318 = vmatpush1.bf16.msra.mxu0 0
    %2319 = vmatprep.subr.bf16.mxu0 0
    %2320 = vmatpush1.bf16.msra.mxu0 0
    %2321 = vmatprep.mubr.bf16.mxu0 0
    %2322 = vmatmul.mubr.bf16.gmra.mrb[0].mxu0 %v2210
    %v2323 = vpop.f32.mrb[0].mxu0
    %v2324 = vadd.f32 %v2275, %v2323
    %v2325 = vpop.f32.mrb[0].mxu0
    %v2326 = vpop.f32.mrb[0].mxu0
    %v2327 = vadd.f32 %v2275, %v2326
    %v2328 = vpop.f32.mrb[0].mxu0
    %2329 = vmatprep.mubr.bf16.mxu0 0
    %2330 = vmatmul.mubr.bf16.gmra.mrb[0].mxu0 %v2213
    %v2331 = vpop.f32.mrb[0].mxu0
    %v2332 = vadd.f32 %v2275, %v2331
    %v2333 = vpop.f32.mrb[0].mxu0
    %v2334 = vpop.f32.mrb[0].mxu0
    %v2335 = vadd.f32 %v2275, %v2334
    %v2336 = vpop.f32.mrb[0].mxu0
    %2337 = vdwg.mxu0
    %v2338 = vpack.c.bf16 %v2178, %v2178
    %v2339 = vpack.c.bf16 %v2181, %v2181
    %v2340 = vpack.c.bf16 %v2253, %v2250
    %v2341 = vpack.c.bf16 %v2261, %v2258
    %v2342 = vpack.c.bf16 %v2327, %v2324
    %v2343 = vpack.c.bf16 %v2335, %v2332
    %v2345 = vsel %vm308, %v2338, 0
    %v2348 = vsel %vm308, %v2340, 0
    %2350 = vmatprep.subr.bf16.mxu0 0
    %2351 = vmatpush1.bf16.xpose.msra.mxu0 %v2348
    %2352 = vmatprep.subr.bf16.mxu0 0
    %2353 = vmatpush1.bf16.xpose.msra.mxu0 0
    %2354 = vmatprep.subr.bf16.mxu0 0
    %2355 = vmatpush1.bf16.xpose.msra.mxu0 0
    %2356 = vmatprep.subr.bf16.mxu0 0
    %2357 = vmatpush1.bf16.xpose.msra.mxu0 0
    %2358 = vmatprep.subr.bf16.mxu0 0
    %2359 = vmatpush1.bf16.xpose.msra.mxu0 0
    %2360 = vmatprep.subr.bf16.mxu0 0
    %2361 = vmatpush1.bf16.xpose.msra.mxu0 0
    %2362 = vmatprep.subr.bf16.mxu0 0
    %2363 = vmatpush1.bf16.xpose.msra.mxu0 0
    %2364 = vmatprep.subr.bf16.mxu0 0
    %2365 = vmatpush1.bf16.xpose.msra.mxu0 0
    %2366 = vmatprep.subr.bf16.mxu0 0
    %2367 = vmatpush1.bf16.xpose.msra.mxu0 0
    %2368 = vmatprep.subr.bf16.mxu0 0
    %2369 = vmatpush1.bf16.xpose.msra.mxu0 0
    %2370 = vmatprep.subr.bf16.mxu0 0
    %2371 = vmatpush1.bf16.xpose.msra.mxu0 0
    %2372 = vmatprep.subr.bf16.mxu0 0
    %2373 = vmatpush1.bf16.xpose.msra.mxu0 0
    %2374 = vmatprep.subr.bf16.mxu0 0
    %2375 = vmatpush1.bf16.xpose.msra.mxu0 0
    %2376 = vmatprep.subr.bf16.mxu0 0
    %2377 = vmatpush1.bf16.xpose.msra.mxu0 0
    %2378 = vmatprep.subr.bf16.mxu0 0
    %2379 = vmatpush1.bf16.xpose.msra.mxu0 0
    %2380 = vmatprep.subr.bf16.mxu0 0
    %2381 = vmatpush1.bf16.xpose.msra.mxu0 0
    %2382 = vmatprep.mubr.bf16.mxu0 0
    %2383 = vmatmul.mubr.bf16.gmra.mrb[0].mxu0 %v2345
    %v2384 = vpop.f32.mrb[0].mxu0
    %v2385 = vadd.f32 0.0, %v2384
    %v2386 = vpop.f32.mrb[0].mxu0
    %v2387 = vpop.f32.mrb[0].mxu0
    %v2388 = vpop.f32.mrb[0].mxu0
    %2389 = vdwg.mxu0
    %v2391 = vsel %vm308, %v2339, 0
    %v2394 = vsel %vm308, %v2341, 0
    %2396 = vmatprep.subr.bf16.mxu0 0
    %2397 = vmatpush1.bf16.xpose.msra.mxu0 %v2394
    %2398 = vmatprep.subr.bf16.mxu0 0
    %2399 = vmatpush1.bf16.xpose.msra.mxu0 0
    %2400 = vmatprep.subr.bf16.mxu0 0
    %2401 = vmatpush1.bf16.xpose.msra.mxu0 0
    %2402 = vmatprep.subr.bf16.mxu0 0
    %2403 = vmatpush1.bf16.xpose.msra.mxu0 0
    %2404 = vmatprep.subr.bf16.mxu0 0
    %2405 = vmatpush1.bf16.xpose.msra.mxu0 0
    %2406 = vmatprep.subr.bf16.mxu0 0
    %2407 = vmatpush1.bf16.xpose.msra.mxu0 0
    %2408 = vmatprep.subr.bf16.mxu0 0
    %2409 = vmatpush1.bf16.xpose.msra.mxu0 0
    %2410 = vmatprep.subr.bf16.mxu0 0
    %2411 = vmatpush1.bf16.xpose.msra.mxu0 0
    %2412 = vmatprep.subr.bf16.mxu0 0
    %2413 = vmatpush1.bf16.xpose.msra.mxu0 0
    %2414 = vmatprep.subr.bf16.mxu0 0
    %2415 = vmatpush1.bf16.xpose.msra.mxu0 0
    %2416 = vmatprep.subr.bf16.mxu0 0
    %2417 = vmatpush1.bf16.xpose.msra.mxu0 0
    %2418 = vmatprep.subr.bf16.mxu0 0
    %2419 = vmatpush1.bf16.xpose.msra.mxu0 0
    %2420 = vmatprep.subr.bf16.mxu0 0
    %2421 = vmatpush1.bf16.xpose.msra.mxu0 0
    %2422 = vmatprep.subr.bf16.mxu0 0
    %2423 = vmatpush1.bf16.xpose.msra.mxu0 0
    %2424 = vmatprep.subr.bf16.mxu0 0
    %2425 = vmatpush1.bf16.xpose.msra.mxu0 0
    %2426 = vmatprep.subr.bf16.mxu0 0
    %2427 = vmatpush1.bf16.xpose.msra.mxu0 0
    %2428 = vmatprep.mubr.bf16.mxu0 0
    %2429 = vmatmul.mubr.bf16.gmra.mrb[0].mxu0 %v2391
    %v2430 = vpop.f32.mrb[0].mxu0
    %v2431 = vadd.f32 0.0, %v2430
    %v2432 = vpop.f32.mrb[0].mxu0
    %v2433 = vpop.f32.mrb[0].mxu0
    %v2434 = vpop.f32.mrb[0].mxu0
    %2435 = vdwg.mxu0
    %v2436 = vmul.f32 %v2385, 0.35355338
    %v2437 = vmul.f32 %v2431, 0.35355338
    %v2438 = vsel %vm2113, %v2436, -1e+09
    %v2439 = vsel %vm2114, %v2437, -1e+09
    %vm2440 = vcmask 130048
    %v2441 = vsel %vm2440, %v2438, -inf
    %2442 = vmax.xlane.f32.xlu0 %v2441
    %v2443 = vpop.xlane.xlu0 %2442
    %v2444 = vsel %vm2440, %v2439, -inf
    %2445 = vmax.xlane.f32.xlu0 %v2444
    %v2446 = vpop.xlane.xlu0 %2445
    %v2447 = vsub.f32 %v2438, %v2443
    %v2448 = vsub.f32 %v2439, %v2446
    %v2449 = vmul.f32 %v2447, 1.442695
    %v2450 = vpow.pop %v2449
    %v2451 = vmul.f32 %v2448, 1.442695
    %v2452 = vpow.pop %v2451
    %v2453 = vsel %vm2440, %v2450, 0.0
    %2454 = vadd.xlane.f32.xlu0 %v2453
    %v2455 = vpop.xlane.xlu0 %2454
    %v2456 = vsel %vm2440, %v2452, 0.0
    %2457 = vadd.xlane.f32.xlu0 %v2456
    %v2458 = vpop.xlane.xlu0 %2457
    %v2459 = vrcp.pop %v2455
    %v2460 = vrcp.pop %v2458
    %v2461 = vmul.f32 %v2450, %v2459
    %v2462 = vmul.f32 %v2452, %v2460
    %v2463 = vpack.c.bf16 %v2461, %v2461
    %v2464 = vpack.c.bf16 %v2462, %v2462
    %v2466 = vsel %vm2440, %v2463, 0
    %2468 = vmatprep.subr.bf16.mxu0 0
    %2469 = vmatpush1.bf16.msra.mxu0 %v2342
    %2470 = vmatprep.subr.bf16.mxu0 0
    %2471 = vmatpush1.bf16.msra.mxu0 0
    %2472 = vmatprep.subr.bf16.mxu0 0
    %2473 = vmatpush1.bf16.msra.mxu0 0
    %2474 = vmatprep.subr.bf16.mxu0 0
    %2475 = vmatpush1.bf16.msra.mxu0 0
    %2476 = vmatprep.subr.bf16.mxu0 0
    %2477 = vmatpush1.bf16.msra.mxu0 0
    %2478 = vmatprep.subr.bf16.mxu0 0
    %2479 = vmatpush1.bf16.msra.mxu0 0
    %2480 = vmatprep.subr.bf16.mxu0 0
    %2481 = vmatpush1.bf16.msra.mxu0 0
    %2482 = vmatprep.subr.bf16.mxu0 0
    %2483 = vmatpush1.bf16.msra.mxu0 0
    %2484 = vmatprep.subr.bf16.mxu0 0
    %2485 = vmatpush1.bf16.msra.mxu0 0
    %2486 = vmatprep.subr.bf16.mxu0 0
    %2487 = vmatpush1.bf16.msra.mxu0 0
    %2488 = vmatprep.subr.bf16.mxu0 0
    %2489 = vmatpush1.bf16.msra.mxu0 0
    %2490 = vmatprep.subr.bf16.mxu0 0
    %2491 = vmatpush1.bf16.msra.mxu0 0
    %2492 = vmatprep.subr.bf16.mxu0 0
    %2493 = vmatpush1.bf16.msra.mxu0 0
    %2494 = vmatprep.subr.bf16.mxu0 0
    %2495 = vmatpush1.bf16.msra.mxu0 0
    %2496 = vmatprep.subr.bf16.mxu0 0
    %2497 = vmatpush1.bf16.msra.mxu0 0
    %2498 = vmatprep.subr.bf16.mxu0 0
    %2499 = vmatpush1.bf16.msra.mxu0 0
    %2500 = vmatprep.mubr.bf16.mxu0 0
    %2501 = vmatmul.mubr.bf16.gmra.mrb[0].mxu0 %v2466
    %v2502 = vpop.f32.mrb[0].mxu0
    %v2503 = vadd.f32 0.0, %v2502
    %v2504 = vpop.f32.mrb[0].mxu0
    %v2505 = vpop.f32.mrb[0].mxu0
    %v2506 = vpop.f32.mrb[0].mxu0
    %2507 = vdwg.mxu0
    %v2509 = vsel %vm2440, %v2464, 0
    %2511 = vmatprep.subr.bf16.mxu0 0
    %2512 = vmatpush1.bf16.msra.mxu0 %v2343
    %2513 = vmatprep.subr.bf16.mxu0 0
    %2514 = vmatpush1.bf16.msra.mxu0 0
    %2515 = vmatprep.subr.bf16.mxu0 0
    %2516 = vmatpush1.bf16.msra.mxu0 0
    %2517 = vmatprep.subr.bf16.mxu0 0
    %2518 = vmatpush1.bf16.msra.mxu0 0
    %2519 = vmatprep.subr.bf16.mxu0 0
    %2520 = vmatpush1.bf16.msra.mxu0 0
    %2521 = vmatprep.subr.bf16.mxu0 0
    %2522 = vmatpush1.bf16.msra.mxu0 0
    %2523 = vmatprep.subr.bf16.mxu0 0
    %2524 = vmatpush1.bf16.msra.mxu0 0
    %2525 = vmatprep.subr.bf16.mxu0 0
    %2526 = vmatpush1.bf16.msra.mxu0 0
    %2527 = vmatprep.subr.bf16.mxu0 0
    %2528 = vmatpush1.bf16.msra.mxu0 0
    %2529 = vmatprep.subr.bf16.mxu0 0
    %2530 = vmatpush1.bf16.msra.mxu0 0
    %2531 = vmatprep.subr.bf16.mxu0 0
    %2532 = vmatpush1.bf16.msra.mxu0 0
    %2533 = vmatprep.subr.bf16.mxu0 0
    %2534 = vmatpush1.bf16.msra.mxu0 0
    %2535 = vmatprep.subr.bf16.mxu0 0
    %2536 = vmatpush1.bf16.msra.mxu0 0
    %2537 = vmatprep.subr.bf16.mxu0 0
    %2538 = vmatpush1.bf16.msra.mxu0 0
    %2539 = vmatprep.subr.bf16.mxu0 0
    %2540 = vmatpush1.bf16.msra.mxu0 0
    %2541 = vmatprep.subr.bf16.mxu0 0
    %2542 = vmatpush1.bf16.msra.mxu0 0
    %2543 = vmatprep.mubr.bf16.mxu0 0
    %2544 = vmatmul.mubr.bf16.gmra.mrb[0].mxu0 %v2509
    %v2545 = vpop.f32.mrb[0].mxu0
    %v2546 = vadd.f32 0.0, %v2545
    %v2547 = vpop.f32.mrb[0].mxu0
    %v2548 = vpop.f32.mrb[0].mxu0
    %v2549 = vpop.f32.mrb[0].mxu0
    %2550 = vdwg.mxu0
    %v2551 = vpack.c.bf16 %v2546, %v2503
    %s2552 = scalar_lea.vmem %s4, 832
    %v2553 = vld [vmem:[%s2552] sm:$0xf]
    %v2554 = vld [vmem:[%s2552 + $0x4] sm:$0xf]
    %v2555 = vld [vmem:[%s2552 + $0x8] sm:$0xf]
    %v2556 = vld [vmem:[%s2552 + $0xc] sm:$0xf]
    %s2557 = scalar_lea.vmem %s4, 208
    %v2558 = vld [vmem:[%s2557] sm:$0xf]
    %v2559 = vld [vmem:[%s2557 + $0x4] sm:$0xf]
    %v2560 = vld [vmem:[%s2557 + $0x8] sm:$0xf]
    %v2561 = vld [vmem:[%s2557 + $0xc] sm:$0xf]
    %s2562 = scalar_lea.vmem %s7, 13
    %v2563 = vld [vmem:[%s2562] sm:$0x1]
    %v2565 = vlaneseq
    %v2566 = vshrl.u32 %v2565, 7
    %v2567 = vsub.s32 0, %v2566
    %v2568 = vrot.slane %v2563, %v2567
    %v2574 = vunpack.c.l.b16 %v2558
    %v2575 = vunpack.c.l.b16 %v2559
    %v2576 = vunpack.c.l.b16 %v2560
    %v2577 = vunpack.c.l.b16 %v2561
    %v2578 = vpack.c.b16 %v2575, %v2574
    %v2579 = vpack.c.b16 %v2577, %v2576
    %2582 = vmatprep.subr.bf16.mxu0 0
    %2583 = vmatpush1.bf16.msra.mxu0 %v2578
    %2584 = vmatprep.subr.bf16.mxu0 0
    %2585 = vmatpush1.bf16.msra.mxu0 %v2579
    %2586 = vmatprep.subr.bf16.mxu0 0
    %2587 = vmatpush1.bf16.msra.mxu0 0
    %2588 = vmatprep.subr.bf16.mxu0 0
    %2589 = vmatpush1.bf16.msra.mxu0 0
    %2590 = vmatprep.subr.bf16.mxu0 0
    %2591 = vmatpush1.bf16.msra.mxu0 0
    %2592 = vmatprep.subr.bf16.mxu0 0
    %2593 = vmatpush1.bf16.msra.mxu0 0
    %2594 = vmatprep.subr.bf16.mxu0 0
    %2595 = vmatpush1.bf16.msra.mxu0 0
    %2596 = vmatprep.subr.bf16.mxu0 0
    %2597 = vmatpush1.bf16.msra.mxu0 0
    %2598 = vmatprep.subr.bf16.mxu0 0
    %2599 = vmatpush1.bf16.msra.mxu0 0
    %2600 = vmatprep.subr.bf16.mxu0 0
    %2601 = vmatpush1.bf16.msra.mxu0 0
    %2602 = vmatprep.subr.bf16.mxu0 0
    %2603 = vmatpush1.bf16.msra.mxu0 0
    %2604 = vmatprep.subr.bf16.mxu0 0
    %2605 = vmatpush1.bf16.msra.mxu0 0
    %2606 = vmatprep.subr.bf16.mxu0 0
    %2607 = vmatpush1.bf16.msra.mxu0 0
    %2608 = vmatprep.subr.bf16.mxu0 0
    %2609 = vmatpush1.bf16.msra.mxu0 0
    %2610 = vmatprep.subr.bf16.mxu0 0
    %2611 = vmatpush1.bf16.msra.mxu0 0
    %2612 = vmatprep.subr.bf16.mxu0 0
    %2613 = vmatpush1.bf16.msra.mxu0 0
    %2614 = vmatprep.mubr.bf16.mxu0 0
    %2615 = vmatmul.mubr.bf16.gmra.mrb[0].mxu0 %v2141
    %v2616 = vpop.f32.mrb[0].mxu0
    %v2617 = vadd.f32 %v2568, %v2616
    %v2618 = vpop.f32.mrb[0].mxu0
    %v2619 = vpop.f32.mrb[0].mxu0
    %v2620 = vadd.f32 %v2568, %v2619
    %v2621 = vpop.f32.mrb[0].mxu0
    %2622 = vdwg.mxu0
    %s2623 = scalar_lea.vmem %s4, 272
    %v2624 = vld [vmem:[%s2623] sm:$0xf]
    %v2625 = vld [vmem:[%s2623 + $0x4] sm:$0xf]
    %v2626 = vld [vmem:[%s2623 + $0x8] sm:$0xf]
    %v2627 = vld [vmem:[%s2623 + $0xc] sm:$0xf]
    %s2628 = scalar_lea.vmem %s7, 17
    %v2629 = vld [vmem:[%s2628] sm:$0x1]
    %v2631 = vlaneseq
    %v2632 = vshrl.u32 %v2631, 7
    %v2633 = vsub.s32 0, %v2632
    %v2634 = vrot.slane %v2629, %v2633
    %v2640 = vunpack.c.l.b16 %v2624
    %v2641 = vunpack.c.l.b16 %v2625
    %v2642 = vunpack.c.l.b16 %v2626
    %v2643 = vunpack.c.l.b16 %v2627
    %v2644 = vpack.c.b16 %v2641, %v2640
    %v2645 = vpack.c.b16 %v2643, %v2642
    %2648 = vmatprep.subr.bf16.mxu0 0
    %2649 = vmatpush1.bf16.msra.mxu0 %v2644
    %2650 = vmatprep.subr.bf16.mxu0 0
    %2651 = vmatpush1.bf16.msra.mxu0 %v2645
    %2652 = vmatprep.subr.bf16.mxu0 0
    %2653 = vmatpush1.bf16.msra.mxu0 0
    %2654 = vmatprep.subr.bf16.mxu0 0
    %2655 = vmatpush1.bf16.msra.mxu0 0
    %2656 = vmatprep.subr.bf16.mxu0 0
    %2657 = vmatpush1.bf16.msra.mxu0 0
    %2658 = vmatprep.subr.bf16.mxu0 0
    %2659 = vmatpush1.bf16.msra.mxu0 0
    %2660 = vmatprep.subr.bf16.mxu0 0
    %2661 = vmatpush1.bf16.msra.mxu0 0
    %2662 = vmatprep.subr.bf16.mxu0 0
    %2663 = vmatpush1.bf16.msra.mxu0 0
    %2664 = vmatprep.subr.bf16.mxu0 0
    %2665 = vmatpush1.bf16.msra.mxu0 0
    %2666 = vmatprep.subr.bf16.mxu0 0
    %2667 = vmatpush1.bf16.msra.mxu0 0
    %2668 = vmatprep.subr.bf16.mxu0 0
    %2669 = vmatpush1.bf16.msra.mxu0 0
    %2670 = vmatprep.subr.bf16.mxu0 0
    %2671 = vmatpush1.bf16.msra.mxu0 0
    %2672 = vmatprep.subr.bf16.mxu0 0
    %2673 = vmatpush1.bf16.msra.mxu0 0
    %2674 = vmatprep.subr.bf16.mxu0 0
    %2675 = vmatpush1.bf16.msra.mxu0 0
    %2676 = vmatprep.subr.bf16.mxu0 0
    %2677 = vmatpush1.bf16.msra.mxu0 0
    %2678 = vmatprep.subr.bf16.mxu0 0
    %2679 = vmatpush1.bf16.msra.mxu0 0
    %2680 = vmatprep.mubr.bf16.mxu0 0
    %2681 = vmatmul.mubr.bf16.gmra.mrb[0].mxu0 %v2210
    %v2682 = vpop.f32.mrb[0].mxu0
    %v2683 = vadd.f32 %v2634, %v2682
    %v2684 = vpop.f32.mrb[0].mxu0
    %v2685 = vpop.f32.mrb[0].mxu0
    %v2686 = vadd.f32 %v2634, %v2685
    %v2687 = vpop.f32.mrb[0].mxu0
    %2688 = vmatprep.mubr.bf16.mxu0 0
    %2689 = vmatmul.mubr.bf16.gmra.mrb[0].mxu0 %v2213
    %v2690 = vpop.f32.mrb[0].mxu0
    %v2691 = vadd.f32 %v2634, %v2690
    %v2692 = vpop.f32.mrb[0].mxu0
    %v2693 = vpop.f32.mrb[0].mxu0
    %v2694 = vadd.f32 %v2634, %v2693
    %v2695 = vpop.f32.mrb[0].mxu0
    %2696 = vdwg.mxu0
    %s2697 = scalar_lea.vmem %s4, 336
    %v2698 = vld [vmem:[%s2697] sm:$0xf]
    %v2699 = vld [vmem:[%s2697 + $0x4] sm:$0xf]
    %v2700 = vld [vmem:[%s2697 + $0x8] sm:$0xf]
    %v2701 = vld [vmem:[%s2697 + $0xc] sm:$0xf]
    %s2702 = scalar_lea.vmem %s7, 21
    %v2703 = vld [vmem:[%s2702] sm:$0x1]
    %v2705 = vlaneseq
    %v2706 = vshrl.u32 %v2705, 7
    %v2707 = vsub.s32 0, %v2706
    %v2708 = vrot.slane %v2703, %v2707
    %v2714 = vunpack.c.l.b16 %v2698
    %v2715 = vunpack.c.l.b16 %v2699
    %v2716 = vunpack.c.l.b16 %v2700
    %v2717 = vunpack.c.l.b16 %v2701
    %v2718 = vpack.c.b16 %v2715, %v2714
    %v2719 = vpack.c.b16 %v2717, %v2716
    %2722 = vmatprep.subr.bf16.mxu0 0
    %2723 = vmatpush1.bf16.msra.mxu0 %v2718
    %2724 = vmatprep.subr.bf16.mxu0 0
    %2725 = vmatpush1.bf16.msra.mxu0 %v2719
    %2726 = vmatprep.subr.bf16.mxu0 0
    %2727 = vmatpush1.bf16.msra.mxu0 0
    %2728 = vmatprep.subr.bf16.mxu0 0
    %2729 = vmatpush1.bf16.msra.mxu0 0
    %2730 = vmatprep.subr.bf16.mxu0 0
    %2731 = vmatpush1.bf16.msra.mxu0 0
    %2732 = vmatprep.subr.bf16.mxu0 0
    %2733 = vmatpush1.bf16.msra.mxu0 0
    %2734 = vmatprep.subr.bf16.mxu0 0
    %2735 = vmatpush1.bf16.msra.mxu0 0
    %2736 = vmatprep.subr.bf16.mxu0 0
    %2737 = vmatpush1.bf16.msra.mxu0 0
    %2738 = vmatprep.subr.bf16.mxu0 0
    %2739 = vmatpush1.bf16.msra.mxu0 0
    %2740 = vmatprep.subr.bf16.mxu0 0
    %2741 = vmatpush1.bf16.msra.mxu0 0
    %2742 = vmatprep.subr.bf16.mxu0 0
    %2743 = vmatpush1.bf16.msra.mxu0 0
    %2744 = vmatprep.subr.bf16.mxu0 0
    %2745 = vmatpush1.bf16.msra.mxu0 0
    %2746 = vmatprep.subr.bf16.mxu0 0
    %2747 = vmatpush1.bf16.msra.mxu0 0
    %2748 = vmatprep.subr.bf16.mxu0 0
    %2749 = vmatpush1.bf16.msra.mxu0 0
    %2750 = vmatprep.subr.bf16.mxu0 0
    %2751 = vmatpush1.bf16.msra.mxu0 0
    %2752 = vmatprep.subr.bf16.mxu0 0
    %2753 = vmatpush1.bf16.msra.mxu0 0
    %2754 = vmatprep.mubr.bf16.mxu0 0
    %2755 = vmatmul.mubr.bf16.gmra.mrb[0].mxu0 %v2210
    %v2756 = vpop.f32.mrb[0].mxu0
    %v2757 = vadd.f32 %v2708, %v2756
    %v2758 = vpop.f32.mrb[0].mxu0
    %v2759 = vpop.f32.mrb[0].mxu0
    %v2760 = vadd.f32 %v2708, %v2759
    %v2761 = vpop.f32.mrb[0].mxu0
    %2762 = vmatprep.mubr.bf16.mxu0 0
    %2763 = vmatmul.mubr.bf16.gmra.mrb[0].mxu0 %v2213
    %v2764 = vpop.f32.mrb[0].mxu0
    %v2765 = vadd.f32 %v2708, %v2764
    %v2766 = vpop.f32.mrb[0].mxu0
    %v2767 = vpop.f32.mrb[0].mxu0
    %v2768 = vadd.f32 %v2708, %v2767
    %v2769 = vpop.f32.mrb[0].mxu0
    %2770 = vdwg.mxu0
    %v2771 = vpack.c.bf16 %v2617, %v2617
    %v2772 = vpack.c.bf16 %v2620, %v2620
    %v2773 = vpack.c.bf16 %v2686, %v2683
    %v2774 = vpack.c.bf16 %v2694, %v2691
    %v2775 = vpack.c.bf16 %v2760, %v2757
    %v2776 = vpack.c.bf16 %v2768, %v2765
    %v2778 = vsel %vm308, %v2771, 0
    %v2781 = vsel %vm308, %v2773, 0
    %2783 = vmatprep.subr.bf16.mxu0 0
    %2784 = vmatpush1.bf16.xpose.msra.mxu0 %v2781
    %2785 = vmatprep.subr.bf16.mxu0 0
    %2786 = vmatpush1.bf16.xpose.msra.mxu0 0
    %2787 = vmatprep.subr.bf16.mxu0 0
    %2788 = vmatpush1.bf16.xpose.msra.mxu0 0
    %2789 = vmatprep.subr.bf16.mxu0 0
    %2790 = vmatpush1.bf16.xpose.msra.mxu0 0
    %2791 = vmatprep.subr.bf16.mxu0 0
    %2792 = vmatpush1.bf16.xpose.msra.mxu0 0
    %2793 = vmatprep.subr.bf16.mxu0 0
    %2794 = vmatpush1.bf16.xpose.msra.mxu0 0
    %2795 = vmatprep.subr.bf16.mxu0 0
    %2796 = vmatpush1.bf16.xpose.msra.mxu0 0
    %2797 = vmatprep.subr.bf16.mxu0 0
    %2798 = vmatpush1.bf16.xpose.msra.mxu0 0
    %2799 = vmatprep.subr.bf16.mxu0 0
    %2800 = vmatpush1.bf16.xpose.msra.mxu0 0
    %2801 = vmatprep.subr.bf16.mxu0 0
    %2802 = vmatpush1.bf16.xpose.msra.mxu0 0
    %2803 = vmatprep.subr.bf16.mxu0 0
    %2804 = vmatpush1.bf16.xpose.msra.mxu0 0
    %2805 = vmatprep.subr.bf16.mxu0 0
    %2806 = vmatpush1.bf16.xpose.msra.mxu0 0
    %2807 = vmatprep.subr.bf16.mxu0 0
    %2808 = vmatpush1.bf16.xpose.msra.mxu0 0
    %2809 = vmatprep.subr.bf16.mxu0 0
    %2810 = vmatpush1.bf16.xpose.msra.mxu0 0
    %2811 = vmatprep.subr.bf16.mxu0 0
    %2812 = vmatpush1.bf16.xpose.msra.mxu0 0
    %2813 = vmatprep.subr.bf16.mxu0 0
    %2814 = vmatpush1.bf16.xpose.msra.mxu0 0
    %2815 = vmatprep.mubr.bf16.mxu0 0
    %2816 = vmatmul.mubr.bf16.gmra.mrb[0].mxu0 %v2778
    %v2817 = vpop.f32.mrb[0].mxu0
    %v2818 = vadd.f32 0.0, %v2817
    %v2819 = vpop.f32.mrb[0].mxu0
    %v2820 = vpop.f32.mrb[0].mxu0
    %v2821 = vpop.f32.mrb[0].mxu0
    %2822 = vdwg.mxu0
    %v2824 = vsel %vm308, %v2772, 0
    %v2827 = vsel %vm308, %v2774, 0
    %2829 = vmatprep.subr.bf16.mxu0 0
    %2830 = vmatpush1.bf16.xpose.msra.mxu0 %v2827
    %2831 = vmatprep.subr.bf16.mxu0 0
    %2832 = vmatpush1.bf16.xpose.msra.mxu0 0
    %2833 = vmatprep.subr.bf16.mxu0 0
    %2834 = vmatpush1.bf16.xpose.msra.mxu0 0
    %2835 = vmatprep.subr.bf16.mxu0 0
    %2836 = vmatpush1.bf16.xpose.msra.mxu0 0
    %2837 = vmatprep.subr.bf16.mxu0 0
    %2838 = vmatpush1.bf16.xpose.msra.mxu0 0
    %2839 = vmatprep.subr.bf16.mxu0 0
    %2840 = vmatpush1.bf16.xpose.msra.mxu0 0
    %2841 = vmatprep.subr.bf16.mxu0 0
    %2842 = vmatpush1.bf16.xpose.msra.mxu0 0
    %2843 = vmatprep.subr.bf16.mxu0 0
    %2844 = vmatpush1.bf16.xpose.msra.mxu0 0
    %2845 = vmatprep.subr.bf16.mxu0 0
    %2846 = vmatpush1.bf16.xpose.msra.mxu0 0
    %2847 = vmatprep.subr.bf16.mxu0 0
    %2848 = vmatpush1.bf16.xpose.msra.mxu0 0
    %2849 = vmatprep.subr.bf16.mxu0 0
    %2850 = vmatpush1.bf16.xpose.msra.mxu0 0
    %2851 = vmatprep.subr.bf16.mxu0 0
    %2852 = vmatpush1.bf16.xpose.msra.mxu0 0
    %2853 = vmatprep.subr.bf16.mxu0 0
    %2854 = vmatpush1.bf16.xpose.msra.mxu0 0
    %2855 = vmatprep.subr.bf16.mxu0 0
    %2856 = vmatpush1.bf16.xpose.msra.mxu0 0
    %2857 = vmatprep.subr.bf16.mxu0 0
    %2858 = vmatpush1.bf16.xpose.msra.mxu0 0
    %2859 = vmatprep.subr.bf16.mxu0 0
    %2860 = vmatpush1.bf16.xpose.msra.mxu0 0
    %2861 = vmatprep.mubr.bf16.mxu0 0
    %2862 = vmatmul.mubr.bf16.gmra.mrb[0].mxu0 %v2824
    %v2863 = vpop.f32.mrb[0].mxu0
    %v2864 = vadd.f32 0.0, %v2863
    %v2865 = vpop.f32.mrb[0].mxu0
    %v2866 = vpop.f32.mrb[0].mxu0
    %v2867 = vpop.f32.mrb[0].mxu0
    %2868 = vdwg.mxu0
    %v2869 = vmul.f32 %v2818, 0.35355338
    %v2870 = vmul.f32 %v2864, 0.35355338
    %v2871 = vsel %vm2113, %v2869, -1e+09
    %v2872 = vsel %vm2114, %v2870, -1e+09
    %v2873 = vsel %vm2440, %v2871, -inf
    %2874 = vmax.xlane.f32.xlu0 %v2873
    %v2875 = vpop.xlane.xlu0 %2874
    %v2876 = vsel %vm2440, %v2872, -inf
    %2877 = vmax.xlane.f32.xlu0 %v2876
    %v2878 = vpop.xlane.xlu0 %2877
    %v2879 = vsub.f32 %v2871, %v2875
    %v2880 = vsub.f32 %v2872, %v2878
    %v2881 = vmul.f32 %v2879, 1.442695
    %v2882 = vpow.pop %v2881
    %v2883 = vmul.f32 %v2880, 1.442695
    %v2884 = vpow.pop %v2883
    %v2885 = vsel %vm2440, %v2882, 0.0
    %2886 = vadd.xlane.f32.xlu0 %v2885
    %v2887 = vpop.xlane.xlu0 %2886
    %v2888 = vsel %vm2440, %v2884, 0.0
    %2889 = vadd.xlane.f32.xlu0 %v2888
    %v2890 = vpop.xlane.xlu0 %2889
    %v2891 = vrcp.pop %v2887
    %v2892 = vrcp.pop %v2890
    %v2893 = vmul.f32 %v2882, %v2891
    %v2894 = vmul.f32 %v2884, %v2892
    %v2895 = vpack.c.bf16 %v2893, %v2893
    %v2896 = vpack.c.bf16 %v2894, %v2894
    %v2898 = vsel %vm2440, %v2895, 0
    %2900 = vmatprep.subr.bf16.mxu0 0
    %2901 = vmatpush1.bf16.msra.mxu0 %v2775
    %2902 = vmatprep.subr.bf16.mxu0 0
    %2903 = vmatpush1.bf16.msra.mxu0 0
    %2904 = vmatprep.subr.bf16.mxu0 0
    %2905 = vmatpush1.bf16.msra.mxu0 0
    %2906 = vmatprep.subr.bf16.mxu0 0
    %2907 = vmatpush1.bf16.msra.mxu0 0
    %2908 = vmatprep.subr.bf16.mxu0 0
    %2909 = vmatpush1.bf16.msra.mxu0 0
    %2910 = vmatprep.subr.bf16.mxu0 0
    %2911 = vmatpush1.bf16.msra.mxu0 0
    %2912 = vmatprep.subr.bf16.mxu0 0
    %2913 = vmatpush1.bf16.msra.mxu0 0
    %2914 = vmatprep.subr.bf16.mxu0 0
    %2915 = vmatpush1.bf16.msra.mxu0 0
    %2916 = vmatprep.subr.bf16.mxu0 0
    %2917 = vmatpush1.bf16.msra.mxu0 0
    %2918 = vmatprep.subr.bf16.mxu0 0
    %2919 = vmatpush1.bf16.msra.mxu0 0
    %2920 = vmatprep.subr.bf16.mxu0 0
    %2921 = vmatpush1.bf16.msra.mxu0 0
    %2922 = vmatprep.subr.bf16.mxu0 0
    %2923 = vmatpush1.bf16.msra.mxu0 0
    %2924 = vmatprep.subr.bf16.mxu0 0
    %2925 = vmatpush1.bf16.msra.mxu0 0
    %2926 = vmatprep.subr.bf16.mxu0 0
    %2927 = vmatpush1.bf16.msra.mxu0 0
    %2928 = vmatprep.subr.bf16.mxu0 0
    %2929 = vmatpush1.bf16.msra.mxu0 0
    %2930 = vmatprep.subr.bf16.mxu0 0
    %2931 = vmatpush1.bf16.msra.mxu0 0
    %2932 = vmatprep.mubr.bf16.mxu0 0
    %2933 = vmatmul.mubr.bf16.gmra.mrb[0].mxu0 %v2898
    %v2934 = vpop.f32.mrb[0].mxu0
    %v2935 = vadd.f32 0.0, %v2934
    %v2936 = vpop.f32.mrb[0].mxu0
    %v2937 = vpop.f32.mrb[0].mxu0
    %v2938 = vpop.f32.mrb[0].mxu0
    %2939 = vdwg.mxu0
    %v2941 = vsel %vm2440, %v2896, 0
    %2943 = vmatprep.subr.bf16.mxu0 0
    %2944 = vmatpush1.bf16.msra.mxu0 %v2776
    %2945 = vmatprep.subr.bf16.mxu0 0
    %2946 = vmatpush1.bf16.msra.mxu0 0
    %2947 = vmatprep.subr.bf16.mxu0 0
    %2948 = vmatpush1.bf16.msra.mxu0 0
    %2949 = vmatprep.subr.bf16.mxu0 0
    %2950 = vmatpush1.bf16.msra.mxu0 0
    %2951 = vmatprep.subr.bf16.mxu0 0
    %2952 = vmatpush1.bf16.msra.mxu0 0
    %2953 = vmatprep.subr.bf16.mxu0 0
    %2954 = vmatpush1.bf16.msra.mxu0 0
    %2955 = vmatprep.subr.bf16.mxu0 0
    %2956 = vmatpush1.bf16.msra.mxu0 0
    %2957 = vmatprep.subr.bf16.mxu0 0
    %2958 = vmatpush1.bf16.msra.mxu0 0
    %2959 = vmatprep.subr.bf16.mxu0 0
    %2960 = vmatpush1.bf16.msra.mxu0 0
    %2961 = vmatprep.subr.bf16.mxu0 0
    %2962 = vmatpush1.bf16.msra.mxu0 0
    %2963 = vmatprep.subr.bf16.mxu0 0
    %2964 = vmatpush1.bf16.msra.mxu0 0
    %2965 = vmatprep.subr.bf16.mxu0 0
    %2966 = vmatpush1.bf16.msra.mxu0 0
    %2967 = vmatprep.subr.bf16.mxu0 0
    %2968 = vmatpush1.bf16.msra.mxu0 0
    %2969 = vmatprep.subr.bf16.mxu0 0
    %2970 = vmatpush1.bf16.msra.mxu0 0
    %2971 = vmatprep.subr.bf16.mxu0 0
    %2972 = vmatpush1.bf16.msra.mxu0 0
    %2973 = vmatprep.subr.bf16.mxu0 0
    %2974 = vmatpush1.bf16.msra.mxu0 0
    %2975 = vmatprep.mubr.bf16.mxu0 0
    %2976 = vmatmul.mubr.bf16.gmra.mrb[0].mxu0 %v2941
    %v2977 = vpop.f32.mrb[0].mxu0
    %v2978 = vadd.f32 0.0, %v2977
    %v2979 = vpop.f32.mrb[0].mxu0
    %v2980 = vpop.f32.mrb[0].mxu0
    %v2981 = vpop.f32.mrb[0].mxu0
    %2982 = vdwg.mxu0
    %v2983 = vpack.c.bf16 %v2978, %v2935
    %s2984 = scalar_lea.vmem %s4, 848
    %v2985 = vld [vmem:[%s2984] sm:$0xf]
    %v2986 = vld [vmem:[%s2984 + $0x4] sm:$0xf]
    %v2987 = vld [vmem:[%s2984 + $0x8] sm:$0xf]
    %v2988 = vld [vmem:[%s2984 + $0xc] sm:$0xf]
    %v2993 = vunpack.c.l.b16 %v2985
    %v2994 = vunpack.c.l.b16 %v2986
    %v2995 = vunpack.c.l.b16 %v2987
    %v2996 = vunpack.c.l.b16 %v2988
    %v2997 = vpack.c.b16 %v2994, %v2993
    %v2998 = vpack.c.b16 %v2996, %v2995
    %v3000 = vsel %vm308, %v2983, 0
    %v3003 = vsel %vm308, %v2997, 0
    %v3006 = vsel %vm308, %v2998, 0
    %3008 = vmatprep.subr.bf16.mxu0 0
    %3009 = vmatpush1.bf16.xpose.msra.mxu0 %v3003
    %3010 = vmatprep.subr.bf16.mxu0 0
    %3011 = vmatpush1.bf16.xpose.msra.mxu0 %v3006
    %3012 = vmatprep.subr.bf16.mxu0 0
    %3013 = vmatpush1.bf16.xpose.msra.mxu0 0
    %3014 = vmatprep.subr.bf16.mxu0 0
    %3015 = vmatpush1.bf16.xpose.msra.mxu0 0
    %3016 = vmatprep.subr.bf16.mxu0 0
    %3017 = vmatpush1.bf16.xpose.msra.mxu0 0
    %3018 = vmatprep.subr.bf16.mxu0 0
    %3019 = vmatpush1.bf16.xpose.msra.mxu0 0
    %3020 = vmatprep.subr.bf16.mxu0 0
    %3021 = vmatpush1.bf16.xpose.msra.mxu0 0
    %3022 = vmatprep.subr.bf16.mxu0 0
    %3023 = vmatpush1.bf16.xpose.msra.mxu0 0
    %3024 = vmatprep.subr.bf16.mxu0 0
    %3025 = vmatpush1.bf16.xpose.msra.mxu0 0
    %3026 = vmatprep.subr.bf16.mxu0 0
    %3027 = vmatpush1.bf16.xpose.msra.mxu0 0
    %3028 = vmatprep.subr.bf16.mxu0 0
    %3029 = vmatpush1.bf16.xpose.msra.mxu0 0
    %3030 = vmatprep.subr.bf16.mxu0 0
    %3031 = vmatpush1.bf16.xpose.msra.mxu0 0
    %3032 = vmatprep.subr.bf16.mxu0 0
    %3033 = vmatpush1.bf16.xpose.msra.mxu0 0
    %3034 = vmatprep.subr.bf16.mxu0 0
    %3035 = vmatpush1.bf16.xpose.msra.mxu0 0
    %3036 = vmatprep.subr.bf16.mxu0 0
    %3037 = vmatpush1.bf16.xpose.msra.mxu0 0
    %3038 = vmatprep.subr.bf16.mxu0 0
    %3039 = vmatpush1.bf16.xpose.msra.mxu0 0
    %3040 = vmatprep.mubr.bf16.mxu0 0
    %3041 = vmatmul.mubr.bf16.gmra.mrb[0].mxu0 %v3000
    %v3042 = vpop.f32.mrb[0].mxu0
    %v3043 = vadd.f32 0.0, %v3042
    %v3044 = vpop.f32.mrb[0].mxu0
    %v3045 = vpop.f32.mrb[0].mxu0
    %v3046 = vadd.f32 0.0, %v3045
    %v3047 = vpop.f32.mrb[0].mxu0
    %3048 = vdwg.mxu0
    %v3053 = vunpack.c.l.b16 %v2553
    %v3054 = vunpack.c.l.b16 %v2554
    %v3055 = vunpack.c.l.b16 %v2555
    %v3056 = vunpack.c.l.b16 %v2556
    %v3057 = vpack.c.b16 %v3054, %v3053
    %v3058 = vpack.c.b16 %v3056, %v3055
    %v3060 = vsel %vm308, %v2551, 0
    %v3063 = vsel %vm308, %v3057, 0
    %v3066 = vsel %vm308, %v3058, 0
    %3068 = vmatprep.subr.bf16.mxu0 0
    %3069 = vmatpush1.bf16.xpose.msra.mxu0 %v3063
    %3070 = vmatprep.subr.bf16.mxu0 0
    %3071 = vmatpush1.bf16.xpose.msra.mxu0 %v3066
    %3072 = vmatprep.subr.bf16.mxu0 0
    %3073 = vmatpush1.bf16.xpose.msra.mxu0 0
    %3074 = vmatprep.subr.bf16.mxu0 0
    %3075 = vmatpush1.bf16.xpose.msra.mxu0 0
    %3076 = vmatprep.subr.bf16.mxu0 0
    %3077 = vmatpush1.bf16.xpose.msra.mxu0 0
    %3078 = vmatprep.subr.bf16.mxu0 0
    %3079 = vmatpush1.bf16.xpose.msra.mxu0 0
    %3080 = vmatprep.subr.bf16.mxu0 0
    %3081 = vmatpush1.bf16.xpose.msra.mxu0 0
    %3082 = vmatprep.subr.bf16.mxu0 0
    %3083 = vmatpush1.bf16.xpose.msra.mxu0 0
    %3084 = vmatprep.subr.bf16.mxu0 0
    %3085 = vmatpush1.bf16.xpose.msra.mxu0 0
    %3086 = vmatprep.subr.bf16.mxu0 0
    %3087 = vmatpush1.bf16.xpose.msra.mxu0 0
    %3088 = vmatprep.subr.bf16.mxu0 0
    %3089 = vmatpush1.bf16.xpose.msra.mxu0 0
    %3090 = vmatprep.subr.bf16.mxu0 0
    %3091 = vmatpush1.bf16.xpose.msra.mxu0 0
    %3092 = vmatprep.subr.bf16.mxu0 0
    %3093 = vmatpush1.bf16.xpose.msra.mxu0 0
    %3094 = vmatprep.subr.bf16.mxu0 0
    %3095 = vmatpush1.bf16.xpose.msra.mxu0 0
    %3096 = vmatprep.subr.bf16.mxu0 0
    %3097 = vmatpush1.bf16.xpose.msra.mxu0 0
    %3098 = vmatprep.subr.bf16.mxu0 0
    %3099 = vmatpush1.bf16.xpose.msra.mxu0 0
    %3100 = vmatprep.mubr.bf16.mxu0 0
    %3101 = vmatmul.mubr.bf16.gmra.mrb[0].mxu0 %v3060
    %v3102 = vpop.f32.mrb[0].mxu0
    %v3103 = vadd.f32 %v3043, %v3102
    %v3104 = vpop.f32.mrb[0].mxu0
    %v3105 = vpop.f32.mrb[0].mxu0
    %v3106 = vadd.f32 %v3046, %v3105
    %v3107 = vpop.f32.mrb[0].mxu0
    %3108 = vdwg.mxu0
    %s3109 = scalar_lea.vmem %s4, 224
    %v3110 = vld [vmem:[%s3109] sm:$0xf]
    %v3111 = vld [vmem:[%s3109 + $0x4] sm:$0xf]
    %v3112 = vld [vmem:[%s3109 + $0x8] sm:$0xf]
    %v3113 = vld [vmem:[%s3109 + $0xc] sm:$0xf]
    %s3114 = scalar_lea.vmem %s7, 14
    %v3115 = vld [vmem:[%s3114] sm:$0x1]
    %v3117 = vlaneseq
    %v3118 = vshrl.u32 %v3117, 7
    %v3119 = vsub.s32 0, %v3118
    %v3120 = vrot.slane %v3115, %v3119
    %v3126 = vunpack.c.l.b16 %v3110
    %v3127 = vunpack.c.l.b16 %v3111
    %v3128 = vunpack.c.l.b16 %v3112
    %v3129 = vunpack.c.l.b16 %v3113
    %v3130 = vpack.c.b16 %v3127, %v3126
    %v3131 = vpack.c.b16 %v3129, %v3128
    %3134 = vmatprep.subr.bf16.mxu0 0
    %3135 = vmatpush1.bf16.msra.mxu0 %v3130
    %3136 = vmatprep.subr.bf16.mxu0 0
    %3137 = vmatpush1.bf16.msra.mxu0 %v3131
    %3138 = vmatprep.subr.bf16.mxu0 0
    %3139 = vmatpush1.bf16.msra.mxu0 0
    %3140 = vmatprep.subr.bf16.mxu0 0
    %3141 = vmatpush1.bf16.msra.mxu0 0
    %3142 = vmatprep.subr.bf16.mxu0 0
    %3143 = vmatpush1.bf16.msra.mxu0 0
    %3144 = vmatprep.subr.bf16.mxu0 0
    %3145 = vmatpush1.bf16.msra.mxu0 0
    %3146 = vmatprep.subr.bf16.mxu0 0
    %3147 = vmatpush1.bf16.msra.mxu0 0
    %3148 = vmatprep.subr.bf16.mxu0 0
    %3149 = vmatpush1.bf16.msra.mxu0 0
    %3150 = vmatprep.subr.bf16.mxu0 0
    %3151 = vmatpush1.bf16.msra.mxu0 0
    %3152 = vmatprep.subr.bf16.mxu0 0
    %3153 = vmatpush1.bf16.msra.mxu0 0
    %3154 = vmatprep.subr.bf16.mxu0 0
    %3155 = vmatpush1.bf16.msra.mxu0 0
    %3156 = vmatprep.subr.bf16.mxu0 0
    %3157 = vmatpush1.bf16.msra.mxu0 0
    %3158 = vmatprep.subr.bf16.mxu0 0
    %3159 = vmatpush1.bf16.msra.mxu0 0
    %3160 = vmatprep.subr.bf16.mxu0 0
    %3161 = vmatpush1.bf16.msra.mxu0 0
    %3162 = vmatprep.subr.bf16.mxu0 0
    %3163 = vmatpush1.bf16.msra.mxu0 0
    %3164 = vmatprep.subr.bf16.mxu0 0
    %3165 = vmatpush1.bf16.msra.mxu0 0
    %3166 = vmatprep.mubr.bf16.mxu0 0
    %3167 = vmatmul.mubr.bf16.gmra.mrb[0].mxu0 %v2141
    %v3168 = vpop.f32.mrb[0].mxu0
    %v3169 = vadd.f32 %v3120, %v3168
    %v3170 = vpop.f32.mrb[0].mxu0
    %v3171 = vpop.f32.mrb[0].mxu0
    %v3172 = vadd.f32 %v3120, %v3171
    %v3173 = vpop.f32.mrb[0].mxu0
    %3174 = vdwg.mxu0
    %s3175 = scalar_lea.vmem %s4, 288
    %v3176 = vld [vmem:[%s3175] sm:$0xf]
    %v3177 = vld [vmem:[%s3175 + $0x4] sm:$0xf]
    %v3178 = vld [vmem:[%s3175 + $0x8] sm:$0xf]
    %v3179 = vld [vmem:[%s3175 + $0xc] sm:$0xf]
    %s3180 = scalar_lea.vmem %s7, 18
    %v3181 = vld [vmem:[%s3180] sm:$0x1]
    %v3183 = vlaneseq
    %v3184 = vshrl.u32 %v3183, 7
    %v3185 = vsub.s32 0, %v3184
    %v3186 = vrot.slane %v3181, %v3185
    %v3192 = vunpack.c.l.b16 %v3176
    %v3193 = vunpack.c.l.b16 %v3177
    %v3194 = vunpack.c.l.b16 %v3178
    %v3195 = vunpack.c.l.b16 %v3179
    %v3196 = vpack.c.b16 %v3193, %v3192
    %v3197 = vpack.c.b16 %v3195, %v3194
    %3200 = vmatprep.subr.bf16.mxu0 0
    %3201 = vmatpush1.bf16.msra.mxu0 %v3196
    %3202 = vmatprep.subr.bf16.mxu0 0
    %3203 = vmatpush1.bf16.msra.mxu0 %v3197
    %3204 = vmatprep.subr.bf16.mxu0 0
    %3205 = vmatpush1.bf16.msra.mxu0 0
    %3206 = vmatprep.subr.bf16.mxu0 0
    %3207 = vmatpush1.bf16.msra.mxu0 0
    %3208 = vmatprep.subr.bf16.mxu0 0
    %3209 = vmatpush1.bf16.msra.mxu0 0
    %3210 = vmatprep.subr.bf16.mxu0 0
    %3211 = vmatpush1.bf16.msra.mxu0 0
    %3212 = vmatprep.subr.bf16.mxu0 0
    %3213 = vmatpush1.bf16.msra.mxu0 0
    %3214 = vmatprep.subr.bf16.mxu0 0
    %3215 = vmatpush1.bf16.msra.mxu0 0
    %3216 = vmatprep.subr.bf16.mxu0 0
    %3217 = vmatpush1.bf16.msra.mxu0 0
    %3218 = vmatprep.subr.bf16.mxu0 0
    %3219 = vmatpush1.bf16.msra.mxu0 0
    %3220 = vmatprep.subr.bf16.mxu0 0
    %3221 = vmatpush1.bf16.msra.mxu0 0
    %3222 = vmatprep.subr.bf16.mxu0 0
    %3223 = vmatpush1.bf16.msra.mxu0 0
    %3224 = vmatprep.subr.bf16.mxu0 0
    %3225 = vmatpush1.bf16.msra.mxu0 0
    %3226 = vmatprep.subr.bf16.mxu0 0
    %3227 = vmatpush1.bf16.msra.mxu0 0
    %3228 = vmatprep.subr.bf16.mxu0 0
    %3229 = vmatpush1.bf16.msra.mxu0 0
    %3230 = vmatprep.subr.bf16.mxu0 0
    %3231 = vmatpush1.bf16.msra.mxu0 0
    %3232 = vmatprep.mubr.bf16.mxu0 0
    %3233 = vmatmul.mubr.bf16.gmra.mrb[0].mxu0 %v2210
    %v3234 = vpop.f32.mrb[0].mxu0
    %v3235 = vadd.f32 %v3186, %v3234
    %v3236 = vpop.f32.mrb[0].mxu0
    %v3237 = vpop.f32.mrb[0].mxu0
    %v3238 = vadd.f32 %v3186, %v3237
    %v3239 = vpop.f32.mrb[0].mxu0
    %3240 = vmatprep.mubr.bf16.mxu0 0
    %3241 = vmatmul.mubr.bf16.gmra.mrb[0].mxu0 %v2213
    %v3242 = vpop.f32.mrb[0].mxu0
    %v3243 = vadd.f32 %v3186, %v3242
    %v3244 = vpop.f32.mrb[0].mxu0
    %v3245 = vpop.f32.mrb[0].mxu0
    %v3246 = vadd.f32 %v3186, %v3245
    %v3247 = vpop.f32.mrb[0].mxu0
    %3248 = vdwg.mxu0
    %s3249 = scalar_lea.vmem %s4, 352
    %v3250 = vld [vmem:[%s3249] sm:$0xf]
    %v3251 = vld [vmem:[%s3249 + $0x4] sm:$0xf]
    %v3252 = vld [vmem:[%s3249 + $0x8] sm:$0xf]
    %v3253 = vld [vmem:[%s3249 + $0xc] sm:$0xf]
    %s3254 = scalar_lea.vmem %s7, 22
    %v3255 = vld [vmem:[%s3254] sm:$0x1]
    %v3257 = vlaneseq
    %v3258 = vshrl.u32 %v3257, 7
    %v3259 = vsub.s32 0, %v3258
    %v3260 = vrot.slane %v3255, %v3259
    %v3266 = vunpack.c.l.b16 %v3250
    %v3267 = vunpack.c.l.b16 %v3251
    %v3268 = vunpack.c.l.b16 %v3252
    %v3269 = vunpack.c.l.b16 %v3253
    %v3270 = vpack.c.b16 %v3267, %v3266
    %v3271 = vpack.c.b16 %v3269, %v3268
    %3274 = vmatprep.subr.bf16.mxu0 0
    %3275 = vmatpush1.bf16.msra.mxu0 %v3270
    %3276 = vmatprep.subr.bf16.mxu0 0
    %3277 = vmatpush1.bf16.msra.mxu0 %v3271
    %3278 = vmatprep.subr.bf16.mxu0 0
    %3279 = vmatpush1.bf16.msra.mxu0 0
    %3280 = vmatprep.subr.bf16.mxu0 0
    %3281 = vmatpush1.bf16.msra.mxu0 0
    %3282 = vmatprep.subr.bf16.mxu0 0
    %3283 = vmatpush1.bf16.msra.mxu0 0
    %3284 = vmatprep.subr.bf16.mxu0 0
    %3285 = vmatpush1.bf16.msra.mxu0 0
    %3286 = vmatprep.subr.bf16.mxu0 0
    %3287 = vmatpush1.bf16.msra.mxu0 0
    %3288 = vmatprep.subr.bf16.mxu0 0
    %3289 = vmatpush1.bf16.msra.mxu0 0
    %3290 = vmatprep.subr.bf16.mxu0 0
    %3291 = vmatpush1.bf16.msra.mxu0 0
    %3292 = vmatprep.subr.bf16.mxu0 0
    %3293 = vmatpush1.bf16.msra.mxu0 0
    %3294 = vmatprep.subr.bf16.mxu0 0
    %3295 = vmatpush1.bf16.msra.mxu0 0
    %3296 = vmatprep.subr.bf16.mxu0 0
    %3297 = vmatpush1.bf16.msra.mxu0 0
    %3298 = vmatprep.subr.bf16.mxu0 0
    %3299 = vmatpush1.bf16.msra.mxu0 0
    %3300 = vmatprep.subr.bf16.mxu0 0
    %3301 = vmatpush1.bf16.msra.mxu0 0
    %3302 = vmatprep.subr.bf16.mxu0 0
    %3303 = vmatpush1.bf16.msra.mxu0 0
    %3304 = vmatprep.subr.bf16.mxu0 0
    %3305 = vmatpush1.bf16.msra.mxu0 0
    %3306 = vmatprep.mubr.bf16.mxu0 0
    %3307 = vmatmul.mubr.bf16.gmra.mrb[0].mxu0 %v2210
    %v3308 = vpop.f32.mrb[0].mxu0
    %v3309 = vadd.f32 %v3260, %v3308
    %v3310 = vpop.f32.mrb[0].mxu0
    %v3311 = vpop.f32.mrb[0].mxu0
    %v3312 = vadd.f32 %v3260, %v3311
    %v3313 = vpop.f32.mrb[0].mxu0
    %3314 = vmatprep.mubr.bf16.mxu0 0
    %3315 = vmatmul.mubr.bf16.gmra.mrb[0].mxu0 %v2213
    %v3316 = vpop.f32.mrb[0].mxu0
    %v3317 = vadd.f32 %v3260, %v3316
    %v3318 = vpop.f32.mrb[0].mxu0
    %v3319 = vpop.f32.mrb[0].mxu0
    %v3320 = vadd.f32 %v3260, %v3319
    %v3321 = vpop.f32.mrb[0].mxu0
    %3322 = vdwg.mxu0
    %v3323 = vpack.c.bf16 %v3169, %v3169
    %v3324 = vpack.c.bf16 %v3172, %v3172
    %v3325 = vpack.c.bf16 %v3238, %v3235
    %v3326 = vpack.c.bf16 %v3246, %v3243
    %v3327 = vpack.c.bf16 %v3312, %v3309
    %v3328 = vpack.c.bf16 %v3320, %v3317
    %v3330 = vsel %vm308, %v3323, 0
    %v3333 = vsel %vm308, %v3325, 0
    %3335 = vmatprep.subr.bf16.mxu0 0
    %3336 = vmatpush1.bf16.xpose.msra.mxu0 %v3333
    %3337 = vmatprep.subr.bf16.mxu0 0
    %3338 = vmatpush1.bf16.xpose.msra.mxu0 0
    %3339 = vmatprep.subr.bf16.mxu0 0
    %3340 = vmatpush1.bf16.xpose.msra.mxu0 0
    %3341 = vmatprep.subr.bf16.mxu0 0
    %3342 = vmatpush1.bf16.xpose.msra.mxu0 0
    %3343 = vmatprep.subr.bf16.mxu0 0
    %3344 = vmatpush1.bf16.xpose.msra.mxu0 0
    %3345 = vmatprep.subr.bf16.mxu0 0
    %3346 = vmatpush1.bf16.xpose.msra.mxu0 0
    %3347 = vmatprep.subr.bf16.mxu0 0
    %3348 = vmatpush1.bf16.xpose.msra.mxu0 0
    %3349 = vmatprep.subr.bf16.mxu0 0
    %3350 = vmatpush1.bf16.xpose.msra.mxu0 0
    %3351 = vmatprep.subr.bf16.mxu0 0
    %3352 = vmatpush1.bf16.xpose.msra.mxu0 0
    %3353 = vmatprep.subr.bf16.mxu0 0
    %3354 = vmatpush1.bf16.xpose.msra.mxu0 0
    %3355 = vmatprep.subr.bf16.mxu0 0
    %3356 = vmatpush1.bf16.xpose.msra.mxu0 0
    %3357 = vmatprep.subr.bf16.mxu0 0
    %3358 = vmatpush1.bf16.xpose.msra.mxu0 0
    %3359 = vmatprep.subr.bf16.mxu0 0
    %3360 = vmatpush1.bf16.xpose.msra.mxu0 0
    %3361 = vmatprep.subr.bf16.mxu0 0
    %3362 = vmatpush1.bf16.xpose.msra.mxu0 0
    %3363 = vmatprep.subr.bf16.mxu0 0
    %3364 = vmatpush1.bf16.xpose.msra.mxu0 0
    %3365 = vmatprep.subr.bf16.mxu0 0
    %3366 = vmatpush1.bf16.xpose.msra.mxu0 0
    %3367 = vmatprep.mubr.bf16.mxu0 0
    %3368 = vmatmul.mubr.bf16.gmra.mrb[0].mxu0 %v3330
    %v3369 = vpop.f32.mrb[0].mxu0
    %v3370 = vadd.f32 0.0, %v3369
    %v3371 = vpop.f32.mrb[0].mxu0
    %v3372 = vpop.f32.mrb[0].mxu0
    %v3373 = vpop.f32.mrb[0].mxu0
    %3374 = vdwg.mxu0
    %v3376 = vsel %vm308, %v3324, 0
    %v3379 = vsel %vm308, %v3326, 0
    %3381 = vmatprep.subr.bf16.mxu0 0
    %3382 = vmatpush1.bf16.xpose.msra.mxu0 %v3379
    %3383 = vmatprep.subr.bf16.mxu0 0
    %3384 = vmatpush1.bf16.xpose.msra.mxu0 0
    %3385 = vmatprep.subr.bf16.mxu0 0
    %3386 = vmatpush1.bf16.xpose.msra.mxu0 0
    %3387 = vmatprep.subr.bf16.mxu0 0
    %3388 = vmatpush1.bf16.xpose.msra.mxu0 0
    %3389 = vmatprep.subr.bf16.mxu0 0
    %3390 = vmatpush1.bf16.xpose.msra.mxu0 0
    %3391 = vmatprep.subr.bf16.mxu0 0
    %3392 = vmatpush1.bf16.xpose.msra.mxu0 0
    %3393 = vmatprep.subr.bf16.mxu0 0
    %3394 = vmatpush1.bf16.xpose.msra.mxu0 0
    %3395 = vmatprep.subr.bf16.mxu0 0
    %3396 = vmatpush1.bf16.xpose.msra.mxu0 0
    %3397 = vmatprep.subr.bf16.mxu0 0
    %3398 = vmatpush1.bf16.xpose.msra.mxu0 0
    %3399 = vmatprep.subr.bf16.mxu0 0
    %3400 = vmatpush1.bf16.xpose.msra.mxu0 0
    %3401 = vmatprep.subr.bf16.mxu0 0
    %3402 = vmatpush1.bf16.xpose.msra.mxu0 0
    %3403 = vmatprep.subr.bf16.mxu0 0
    %3404 = vmatpush1.bf16.xpose.msra.mxu0 0
    %3405 = vmatprep.subr.bf16.mxu0 0
    %3406 = vmatpush1.bf16.xpose.msra.mxu0 0
    %3407 = vmatprep.subr.bf16.mxu0 0
    %3408 = vmatpush1.bf16.xpose.msra.mxu0 0
    %3409 = vmatprep.subr.bf16.mxu0 0
    %3410 = vmatpush1.bf16.xpose.msra.mxu0 0
    %3411 = vmatprep.subr.bf16.mxu0 0
    %3412 = vmatpush1.bf16.xpose.msra.mxu0 0
    %3413 = vmatprep.mubr.bf16.mxu0 0
    %3414 = vmatmul.mubr.bf16.gmra.mrb[0].mxu0 %v3376
    %v3415 = vpop.f32.mrb[0].mxu0
    %v3416 = vadd.f32 0.0, %v3415
    %v3417 = vpop.f32.mrb[0].mxu0
    %v3418 = vpop.f32.mrb[0].mxu0
    %v3419 = vpop.f32.mrb[0].mxu0
    %3420 = vdwg.mxu0
    %v3421 = vmul.f32 %v3370, 0.35355338
    %v3422 = vmul.f32 %v3416, 0.35355338
    %v3423 = vsel %vm2113, %v3421, -1e+09
    %v3424 = vsel %vm2114, %v3422, -1e+09
    %v3425 = vsel %vm2440, %v3423, -inf
    %3426 = vmax.xlane.f32.xlu0 %v3425
    %v3427 = vpop.xlane.xlu0 %3426
    %v3428 = vsel %vm2440, %v3424, -inf
    %3429 = vmax.xlane.f32.xlu0 %v3428
    %v3430 = vpop.xlane.xlu0 %3429
    %v3431 = vsub.f32 %v3423, %v3427
    %v3432 = vsub.f32 %v3424, %v3430
    %v3433 = vmul.f32 %v3431, 1.442695
    %v3434 = vpow.pop %v3433
    %v3435 = vmul.f32 %v3432, 1.442695
    %v3436 = vpow.pop %v3435
    %v3437 = vsel %vm2440, %v3434, 0.0
    %3438 = vadd.xlane.f32.xlu0 %v3437
    %v3439 = vpop.xlane.xlu0 %3438
    %v3440 = vsel %vm2440, %v3436, 0.0
    %3441 = vadd.xlane.f32.xlu0 %v3440
    %v3442 = vpop.xlane.xlu0 %3441
    %v3443 = vrcp.pop %v3439
    %v3444 = vrcp.pop %v3442
    %v3445 = vmul.f32 %v3434, %v3443
    %v3446 = vmul.f32 %v3436, %v3444
    %v3447 = vpack.c.bf16 %v3445, %v3445
    %v3448 = vpack.c.bf16 %v3446, %v3446
    %v3450 = vsel %vm2440, %v3447, 0
    %3452 = vmatprep.subr.bf16.mxu0 0
    %3453 = vmatpush1.bf16.msra.mxu0 %v3327
    %3454 = vmatprep.subr.bf16.mxu0 0
    %3455 = vmatpush1.bf16.msra.mxu0 0
    %3456 = vmatprep.subr.bf16.mxu0 0
    %3457 = vmatpush1.bf16.msra.mxu0 0
    %3458 = vmatprep.subr.bf16.mxu0 0
    %3459 = vmatpush1.bf16.msra.mxu0 0
    %3460 = vmatprep.subr.bf16.mxu0 0
    %3461 = vmatpush1.bf16.msra.mxu0 0
    %3462 = vmatprep.subr.bf16.mxu0 0
    %3463 = vmatpush1.bf16.msra.mxu0 0
    %3464 = vmatprep.subr.bf16.mxu0 0
    %3465 = vmatpush1.bf16.msra.mxu0 0
    %3466 = vmatprep.subr.bf16.mxu0 0
    %3467 = vmatpush1.bf16.msra.mxu0 0
    %3468 = vmatprep.subr.bf16.mxu0 0
    %3469 = vmatpush1.bf16.msra.mxu0 0
    %3470 = vmatprep.subr.bf16.mxu0 0
    %3471 = vmatpush1.bf16.msra.mxu0 0
    %3472 = vmatprep.subr.bf16.mxu0 0
    %3473 = vmatpush1.bf16.msra.mxu0 0
    %3474 = vmatprep.subr.bf16.mxu0 0
    %3475 = vmatpush1.bf16.msra.mxu0 0
    %3476 = vmatprep.subr.bf16.mxu0 0
    %3477 = vmatpush1.bf16.msra.mxu0 0
    %3478 = vmatprep.subr.bf16.mxu0 0
    %3479 = vmatpush1.bf16.msra.mxu0 0
    %3480 = vmatprep.subr.bf16.mxu0 0
    %3481 = vmatpush1.bf16.msra.mxu0 0
    %3482 = vmatprep.subr.bf16.mxu0 0
    %3483 = vmatpush1.bf16.msra.mxu0 0
    %3484 = vmatprep.mubr.bf16.mxu0 0
    %3485 = vmatmul.mubr.bf16.gmra.mrb[0].mxu0 %v3450
    %v3486 = vpop.f32.mrb[0].mxu0
    %v3487 = vadd.f32 0.0, %v3486
    %v3488 = vpop.f32.mrb[0].mxu0
    %v3489 = vpop.f32.mrb[0].mxu0
    %v3490 = vpop.f32.mrb[0].mxu0
    %3491 = vdwg.mxu0
    %v3493 = vsel %vm2440, %v3448, 0
    %3495 = vmatprep.subr.bf16.mxu0 0
    %3496 = vmatpush1.bf16.msra.mxu0 %v3328
    %3497 = vmatprep.subr.bf16.mxu0 0
    %3498 = vmatpush1.bf16.msra.mxu0 0
    %3499 = vmatprep.subr.bf16.mxu0 0
    %3500 = vmatpush1.bf16.msra.mxu0 0
    %3501 = vmatprep.subr.bf16.mxu0 0
    %3502 = vmatpush1.bf16.msra.mxu0 0
    %3503 = vmatprep.subr.bf16.mxu0 0
    %3504 = vmatpush1.bf16.msra.mxu0 0
    %3505 = vmatprep.subr.bf16.mxu0 0
    %3506 = vmatpush1.bf16.msra.mxu0 0
    %3507 = vmatprep.subr.bf16.mxu0 0
    %3508 = vmatpush1.bf16.msra.mxu0 0
    %3509 = vmatprep.subr.bf16.mxu0 0
    %3510 = vmatpush1.bf16.msra.mxu0 0
    %3511 = vmatprep.subr.bf16.mxu0 0
    %3512 = vmatpush1.bf16.msra.mxu0 0
    %3513 = vmatprep.subr.bf16.mxu0 0
    %3514 = vmatpush1.bf16.msra.mxu0 0
    %3515 = vmatprep.subr.bf16.mxu0 0
    %3516 = vmatpush1.bf16.msra.mxu0 0
    %3517 = vmatprep.subr.bf16.mxu0 0
    %3518 = vmatpush1.bf16.msra.mxu0 0
    %3519 = vmatprep.subr.bf16.mxu0 0
    %3520 = vmatpush1.bf16.msra.mxu0 0
    %3521 = vmatprep.subr.bf16.mxu0 0
    %3522 = vmatpush1.bf16.msra.mxu0 0
    %3523 = vmatprep.subr.bf16.mxu0 0
    %3524 = vmatpush1.bf16.msra.mxu0 0
    %3525 = vmatprep.subr.bf16.mxu0 0
    %3526 = vmatpush1.bf16.msra.mxu0 0
    %3527 = vmatprep.mubr.bf16.mxu0 0
    %3528 = vmatmul.mubr.bf16.gmra.mrb[0].mxu0 %v3493
    %v3529 = vpop.f32.mrb[0].mxu0
    %v3530 = vadd.f32 0.0, %v3529
    %v3531 = vpop.f32.mrb[0].mxu0
    %v3532 = vpop.f32.mrb[0].mxu0
    %v3533 = vpop.f32.mrb[0].mxu0
    %3534 = vdwg.mxu0
    %v3535 = vpack.c.bf16 %v3530, %v3487
    %s3536 = scalar_lea.vmem %s4, 864
    %v3537 = vld [vmem:[%s3536] sm:$0xf]
    %v3538 = vld [vmem:[%s3536 + $0x4] sm:$0xf]
    %v3539 = vld [vmem:[%s3536 + $0x8] sm:$0xf]
    %v3540 = vld [vmem:[%s3536 + $0xc] sm:$0xf]
    %v3545 = vunpack.c.l.b16 %v3537
    %v3546 = vunpack.c.l.b16 %v3538
    %v3547 = vunpack.c.l.b16 %v3539
    %v3548 = vunpack.c.l.b16 %v3540
    %v3549 = vpack.c.b16 %v3546, %v3545
    %v3550 = vpack.c.b16 %v3548, %v3547
    %v3552 = vsel %vm308, %v3535, 0
    %v3555 = vsel %vm308, %v3549, 0
    %v3558 = vsel %vm308, %v3550, 0
    %3560 = vmatprep.subr.bf16.mxu0 0
    %3561 = vmatpush1.bf16.xpose.msra.mxu0 %v3555
    %3562 = vmatprep.subr.bf16.mxu0 0
    %3563 = vmatpush1.bf16.xpose.msra.mxu0 %v3558
    %3564 = vmatprep.subr.bf16.mxu0 0
    %3565 = vmatpush1.bf16.xpose.msra.mxu0 0
    %3566 = vmatprep.subr.bf16.mxu0 0
    %3567 = vmatpush1.bf16.xpose.msra.mxu0 0
    %3568 = vmatprep.subr.bf16.mxu0 0
    %3569 = vmatpush1.bf16.xpose.msra.mxu0 0
    %3570 = vmatprep.subr.bf16.mxu0 0
    %3571 = vmatpush1.bf16.xpose.msra.mxu0 0
    %3572 = vmatprep.subr.bf16.mxu0 0
    %3573 = vmatpush1.bf16.xpose.msra.mxu0 0
    %3574 = vmatprep.subr.bf16.mxu0 0
    %3575 = vmatpush1.bf16.xpose.msra.mxu0 0
    %3576 = vmatprep.subr.bf16.mxu0 0
    %3577 = vmatpush1.bf16.xpose.msra.mxu0 0
    %3578 = vmatprep.subr.bf16.mxu0 0
    %3579 = vmatpush1.bf16.xpose.msra.mxu0 0
    %3580 = vmatprep.subr.bf16.mxu0 0
    %3581 = vmatpush1.bf16.xpose.msra.mxu0 0
    %3582 = vmatprep.subr.bf16.mxu0 0
    %3583 = vmatpush1.bf16.xpose.msra.mxu0 0
    %3584 = vmatprep.subr.bf16.mxu0 0
    %3585 = vmatpush1.bf16.xpose.msra.mxu0 0
    %3586 = vmatprep.subr.bf16.mxu0 0
    %3587 = vmatpush1.bf16.xpose.msra.mxu0 0
    %3588 = vmatprep.subr.bf16.mxu0 0
    %3589 = vmatpush1.bf16.xpose.msra.mxu0 0
    %3590 = vmatprep.subr.bf16.mxu0 0
    %3591 = vmatpush1.bf16.xpose.msra.mxu0 0
    %3592 = vmatprep.mubr.bf16.mxu0 0
    %3593 = vmatmul.mubr.bf16.gmra.mrb[0].mxu0 %v3552
    %v3594 = vpop.f32.mrb[0].mxu0
    %v3595 = vadd.f32 0.0, %v3594
    %v3596 = vpop.f32.mrb[0].mxu0
    %v3597 = vpop.f32.mrb[0].mxu0
    %v3598 = vadd.f32 0.0, %v3597
    %v3599 = vpop.f32.mrb[0].mxu0
    %3600 = vdwg.mxu0
    %v3601 = vadd.f32 %v3103, %v3595
    %v3602 = vadd.f32 %v3106, %v3598
    %s3603 = scalar_lea.vmem %s4, 240
    %v3604 = vld [vmem:[%s3603] sm:$0xf]
    %v3605 = vld [vmem:[%s3603 + $0x4] sm:$0xf]
    %v3606 = vld [vmem:[%s3603 + $0x8] sm:$0xf]
    %v3607 = vld [vmem:[%s3603 + $0xc] sm:$0xf]
    %s3608 = scalar_lea.vmem %s7, 15
    %v3609 = vld [vmem:[%s3608] sm:$0x1]
    %v3611 = vlaneseq
    %v3612 = vshrl.u32 %v3611, 7
    %v3613 = vsub.s32 0, %v3612
    %v3614 = vrot.slane %v3609, %v3613
    %v3620 = vunpack.c.l.b16 %v3604
    %v3621 = vunpack.c.l.b16 %v3605
    %v3622 = vunpack.c.l.b16 %v3606
    %v3623 = vunpack.c.l.b16 %v3607
    %v3624 = vpack.c.b16 %v3621, %v3620
    %v3625 = vpack.c.b16 %v3623, %v3622
    %3628 = vmatprep.subr.bf16.mxu0 0
    %3629 = vmatpush1.bf16.msra.mxu0 %v3624
    %3630 = vmatprep.subr.bf16.mxu0 0
    %3631 = vmatpush1.bf16.msra.mxu0 %v3625
    %3632 = vmatprep.subr.bf16.mxu0 0
    %3633 = vmatpush1.bf16.msra.mxu0 0
    %3634 = vmatprep.subr.bf16.mxu0 0
    %3635 = vmatpush1.bf16.msra.mxu0 0
    %3636 = vmatprep.subr.bf16.mxu0 0
    %3637 = vmatpush1.bf16.msra.mxu0 0
    %3638 = vmatprep.subr.bf16.mxu0 0
    %3639 = vmatpush1.bf16.msra.mxu0 0
    %3640 = vmatprep.subr.bf16.mxu0 0
    %3641 = vmatpush1.bf16.msra.mxu0 0
    %3642 = vmatprep.subr.bf16.mxu0 0
    %3643 = vmatpush1.bf16.msra.mxu0 0
    %3644 = vmatprep.subr.bf16.mxu0 0
    %3645 = vmatpush1.bf16.msra.mxu0 0
    %3646 = vmatprep.subr.bf16.mxu0 0
    %3647 = vmatpush1.bf16.msra.mxu0 0
    %3648 = vmatprep.subr.bf16.mxu0 0
    %3649 = vmatpush1.bf16.msra.mxu0 0
    %3650 = vmatprep.subr.bf16.mxu0 0
    %3651 = vmatpush1.bf16.msra.mxu0 0
    %3652 = vmatprep.subr.bf16.mxu0 0
    %3653 = vmatpush1.bf16.msra.mxu0 0
    %3654 = vmatprep.subr.bf16.mxu0 0
    %3655 = vmatpush1.bf16.msra.mxu0 0
    %3656 = vmatprep.subr.bf16.mxu0 0
    %3657 = vmatpush1.bf16.msra.mxu0 0
    %3658 = vmatprep.subr.bf16.mxu0 0
    %3659 = vmatpush1.bf16.msra.mxu0 0
    %3660 = vmatprep.mubr.bf16.mxu0 0
    %3661 = vmatmul.mubr.bf16.gmra.mrb[0].mxu0 %v2141
    %v3662 = vpop.f32.mrb[0].mxu0
    %v3663 = vadd.f32 %v3614, %v3662
    %v3664 = vpop.f32.mrb[0].mxu0
    %v3665 = vpop.f32.mrb[0].mxu0
    %v3666 = vadd.f32 %v3614, %v3665
    %v3667 = vpop.f32.mrb[0].mxu0
    %3668 = vdwg.mxu0
    %s3669 = scalar_lea.vmem %s4, 304
    %v3670 = vld [vmem:[%s3669] sm:$0xf]
    %v3671 = vld [vmem:[%s3669 + $0x4] sm:$0xf]
    %v3672 = vld [vmem:[%s3669 + $0x8] sm:$0xf]
    %v3673 = vld [vmem:[%s3669 + $0xc] sm:$0xf]
    %s3674 = scalar_lea.vmem %s7, 19
    %v3675 = vld [vmem:[%s3674] sm:$0x1]
    %v3677 = vlaneseq
    %v3678 = vshrl.u32 %v3677, 7
    %v3679 = vsub.s32 0, %v3678
    %v3680 = vrot.slane %v3675, %v3679
    %v3686 = vunpack.c.l.b16 %v3670
    %v3687 = vunpack.c.l.b16 %v3671
    %v3688 = vunpack.c.l.b16 %v3672
    %v3689 = vunpack.c.l.b16 %v3673
    %v3690 = vpack.c.b16 %v3687, %v3686
    %v3691 = vpack.c.b16 %v3689, %v3688
    %3694 = vmatprep.subr.bf16.mxu0 0
    %3695 = vmatpush1.bf16.msra.mxu0 %v3690
    %3696 = vmatprep.subr.bf16.mxu0 0
    %3697 = vmatpush1.bf16.msra.mxu0 %v3691
    %3698 = vmatprep.subr.bf16.mxu0 0
    %3699 = vmatpush1.bf16.msra.mxu0 0
    %3700 = vmatprep.subr.bf16.mxu0 0
    %3701 = vmatpush1.bf16.msra.mxu0 0
    %3702 = vmatprep.subr.bf16.mxu0 0
    %3703 = vmatpush1.bf16.msra.mxu0 0
    %3704 = vmatprep.subr.bf16.mxu0 0
    %3705 = vmatpush1.bf16.msra.mxu0 0
    %3706 = vmatprep.subr.bf16.mxu0 0
    %3707 = vmatpush1.bf16.msra.mxu0 0
    %3708 = vmatprep.subr.bf16.mxu0 0
    %3709 = vmatpush1.bf16.msra.mxu0 0
    %3710 = vmatprep.subr.bf16.mxu0 0
    %3711 = vmatpush1.bf16.msra.mxu0 0
    %3712 = vmatprep.subr.bf16.mxu0 0
    %3713 = vmatpush1.bf16.msra.mxu0 0
    %3714 = vmatprep.subr.bf16.mxu0 0
    %3715 = vmatpush1.bf16.msra.mxu0 0
    %3716 = vmatprep.subr.bf16.mxu0 0
    %3717 = vmatpush1.bf16.msra.mxu0 0
    %3718 = vmatprep.subr.bf16.mxu0 0
    %3719 = vmatpush1.bf16.msra.mxu0 0
    %3720 = vmatprep.subr.bf16.mxu0 0
    %3721 = vmatpush1.bf16.msra.mxu0 0
    %3722 = vmatprep.subr.bf16.mxu0 0
    %3723 = vmatpush1.bf16.msra.mxu0 0
    %3724 = vmatprep.subr.bf16.mxu0 0
    %3725 = vmatpush1.bf16.msra.mxu0 0
    %3726 = vmatprep.mubr.bf16.mxu0 0
    %3727 = vmatmul.mubr.bf16.gmra.mrb[0].mxu0 %v2210
    %v3728 = vpop.f32.mrb[0].mxu0
    %v3729 = vadd.f32 %v3680, %v3728
    %v3730 = vpop.f32.mrb[0].mxu0
    %v3731 = vpop.f32.mrb[0].mxu0
    %v3732 = vadd.f32 %v3680, %v3731
    %v3733 = vpop.f32.mrb[0].mxu0
    %3734 = vmatprep.mubr.bf16.mxu0 0
    %3735 = vmatmul.mubr.bf16.gmra.mrb[0].mxu0 %v2213
    %v3736 = vpop.f32.mrb[0].mxu0
    %v3737 = vadd.f32 %v3680, %v3736
    %v3738 = vpop.f32.mrb[0].mxu0
    %v3739 = vpop.f32.mrb[0].mxu0
    %v3740 = vadd.f32 %v3680, %v3739
    %v3741 = vpop.f32.mrb[0].mxu0
    %3742 = vdwg.mxu0
    %s3743 = scalar_lea.vmem %s4, 368
    %v3744 = vld [vmem:[%s3743] sm:$0xf]
    %v3745 = vld [vmem:[%s3743 + $0x4] sm:$0xf]
    %v3746 = vld [vmem:[%s3743 + $0x8] sm:$0xf]
    %v3747 = vld [vmem:[%s3743 + $0xc] sm:$0xf]
    %s3748 = scalar_lea.vmem %s7, 23
    %v3749 = vld [vmem:[%s3748] sm:$0x1]
    %v3751 = vlaneseq
    %v3752 = vshrl.u32 %v3751, 7
    %v3753 = vsub.s32 0, %v3752
    %v3754 = vrot.slane %v3749, %v3753
    %v3760 = vunpack.c.l.b16 %v3744
    %v3761 = vunpack.c.l.b16 %v3745
    %v3762 = vunpack.c.l.b16 %v3746
    %v3763 = vunpack.c.l.b16 %v3747
    %v3764 = vpack.c.b16 %v3761, %v3760
    %v3765 = vpack.c.b16 %v3763, %v3762
    %3768 = vmatprep.subr.bf16.mxu0 0
    %3769 = vmatpush1.bf16.msra.mxu0 %v3764
    %3770 = vmatprep.subr.bf16.mxu0 0
    %3771 = vmatpush1.bf16.msra.mxu0 %v3765
    %3772 = vmatprep.subr.bf16.mxu0 0
    %3773 = vmatpush1.bf16.msra.mxu0 0
    %3774 = vmatprep.subr.bf16.mxu0 0
    %3775 = vmatpush1.bf16.msra.mxu0 0
    %3776 = vmatprep.subr.bf16.mxu0 0
    %3777 = vmatpush1.bf16.msra.mxu0 0
    %3778 = vmatprep.subr.bf16.mxu0 0
    %3779 = vmatpush1.bf16.msra.mxu0 0
    %3780 = vmatprep.subr.bf16.mxu0 0
    %3781 = vmatpush1.bf16.msra.mxu0 0
    %3782 = vmatprep.subr.bf16.mxu0 0
    %3783 = vmatpush1.bf16.msra.mxu0 0
    %3784 = vmatprep.subr.bf16.mxu0 0
    %3785 = vmatpush1.bf16.msra.mxu0 0
    %3786 = vmatprep.subr.bf16.mxu0 0
    %3787 = vmatpush1.bf16.msra.mxu0 0
    %3788 = vmatprep.subr.bf16.mxu0 0
    %3789 = vmatpush1.bf16.msra.mxu0 0
    %3790 = vmatprep.subr.bf16.mxu0 0
    %3791 = vmatpush1.bf16.msra.mxu0 0
    %3792 = vmatprep.subr.bf16.mxu0 0
    %3793 = vmatpush1.bf16.msra.mxu0 0
    %3794 = vmatprep.subr.bf16.mxu0 0
    %3795 = vmatpush1.bf16.msra.mxu0 0
    %3796 = vmatprep.subr.bf16.mxu0 0
    %3797 = vmatpush1.bf16.msra.mxu0 0
    %3798 = vmatprep.subr.bf16.mxu0 0
    %3799 = vmatpush1.bf16.msra.mxu0 0
    %3800 = vmatprep.mubr.bf16.mxu0 0
    %3801 = vmatmul.mubr.bf16.gmra.mrb[0].mxu0 %v2210
    %v3802 = vpop.f32.mrb[0].mxu0
    %v3803 = vadd.f32 %v3754, %v3802
    %v3804 = vpop.f32.mrb[0].mxu0
    %v3805 = vpop.f32.mrb[0].mxu0
    %v3806 = vadd.f32 %v3754, %v3805
    %v3807 = vpop.f32.mrb[0].mxu0
    %3808 = vmatprep.mubr.bf16.mxu0 0
    %3809 = vmatmul.mubr.bf16.gmra.mrb[0].mxu0 %v2213
    %v3810 = vpop.f32.mrb[0].mxu0
    %v3811 = vadd.f32 %v3754, %v3810
    %v3812 = vpop.f32.mrb[0].mxu0
    %v3813 = vpop.f32.mrb[0].mxu0
    %v3814 = vadd.f32 %v3754, %v3813
    %v3815 = vpop.f32.mrb[0].mxu0
    %3816 = vdwg.mxu0
    %v3817 = vpack.c.bf16 %v3663, %v3663
    %v3818 = vpack.c.bf16 %v3666, %v3666
    %v3819 = vpack.c.bf16 %v3732, %v3729
    %v3820 = vpack.c.bf16 %v3740, %v3737
    %v3821 = vpack.c.bf16 %v3806, %v3803
    %v3822 = vpack.c.bf16 %v3814, %v3811
    %v3824 = vsel %vm308, %v3817, 0
    %v3827 = vsel %vm308, %v3819, 0
    %3829 = vmatprep.subr.bf16.mxu0 0
    %3830 = vmatpush1.bf16.xpose.msra.mxu0 %v3827
    %3831 = vmatprep.subr.bf16.mxu0 0
    %3832 = vmatpush1.bf16.xpose.msra.mxu0 0
    %3833 = vmatprep.subr.bf16.mxu0 0
    %3834 = vmatpush1.bf16.xpose.msra.mxu0 0
    %3835 = vmatprep.subr.bf16.mxu0 0
    %3836 = vmatpush1.bf16.xpose.msra.mxu0 0
    %3837 = vmatprep.subr.bf16.mxu0 0
    %3838 = vmatpush1.bf16.xpose.msra.mxu0 0
    %3839 = vmatprep.subr.bf16.mxu0 0
    %3840 = vmatpush1.bf16.xpose.msra.mxu0 0
    %3841 = vmatprep.subr.bf16.mxu0 0
    %3842 = vmatpush1.bf16.xpose.msra.mxu0 0
    %3843 = vmatprep.subr.bf16.mxu0 0
    %3844 = vmatpush1.bf16.xpose.msra.mxu0 0
    %3845 = vmatprep.subr.bf16.mxu0 0
    %3846 = vmatpush1.bf16.xpose.msra.mxu0 0
    %3847 = vmatprep.subr.bf16.mxu0 0
    %3848 = vmatpush1.bf16.xpose.msra.mxu0 0
    %3849 = vmatprep.subr.bf16.mxu0 0
    %3850 = vmatpush1.bf16.xpose.msra.mxu0 0
    %3851 = vmatprep.subr.bf16.mxu0 0
    %3852 = vmatpush1.bf16.xpose.msra.mxu0 0
    %3853 = vmatprep.subr.bf16.mxu0 0
    %3854 = vmatpush1.bf16.xpose.msra.mxu0 0
    %3855 = vmatprep.subr.bf16.mxu0 0
    %3856 = vmatpush1.bf16.xpose.msra.mxu0 0
    %3857 = vmatprep.subr.bf16.mxu0 0
    %3858 = vmatpush1.bf16.xpose.msra.mxu0 0
    %3859 = vmatprep.subr.bf16.mxu0 0
    %3860 = vmatpush1.bf16.xpose.msra.mxu0 0
    %3861 = vmatprep.mubr.bf16.mxu0 0
    %3862 = vmatmul.mubr.bf16.gmra.mrb[0].mxu0 %v3824
    %v3863 = vpop.f32.mrb[0].mxu0
    %v3864 = vadd.f32 0.0, %v3863
    %v3865 = vpop.f32.mrb[0].mxu0
    %v3866 = vpop.f32.mrb[0].mxu0
    %v3867 = vpop.f32.mrb[0].mxu0
    %3868 = vdwg.mxu0
    %v3870 = vsel %vm308, %v3818, 0
    %v3873 = vsel %vm308, %v3820, 0
    %3875 = vmatprep.subr.bf16.mxu0 0
    %3876 = vmatpush1.bf16.xpose.msra.mxu0 %v3873
    %3877 = vmatprep.subr.bf16.mxu0 0
    %3878 = vmatpush1.bf16.xpose.msra.mxu0 0
    %3879 = vmatprep.subr.bf16.mxu0 0
    %3880 = vmatpush1.bf16.xpose.msra.mxu0 0
    %3881 = vmatprep.subr.bf16.mxu0 0
    %3882 = vmatpush1.bf16.xpose.msra.mxu0 0
    %3883 = vmatprep.subr.bf16.mxu0 0
    %3884 = vmatpush1.bf16.xpose.msra.mxu0 0
    %3885 = vmatprep.subr.bf16.mxu0 0
    %3886 = vmatpush1.bf16.xpose.msra.mxu0 0
    %3887 = vmatprep.subr.bf16.mxu0 0
    %3888 = vmatpush1.bf16.xpose.msra.mxu0 0
    %3889 = vmatprep.subr.bf16.mxu0 0
    %3890 = vmatpush1.bf16.xpose.msra.mxu0 0
    %3891 = vmatprep.subr.bf16.mxu0 0
    %3892 = vmatpush1.bf16.xpose.msra.mxu0 0
    %3893 = vmatprep.subr.bf16.mxu0 0
    %3894 = vmatpush1.bf16.xpose.msra.mxu0 0
    %3895 = vmatprep.subr.bf16.mxu0 0
    %3896 = vmatpush1.bf16.xpose.msra.mxu0 0
    %3897 = vmatprep.subr.bf16.mxu0 0
    %3898 = vmatpush1.bf16.xpose.msra.mxu0 0
    %3899 = vmatprep.subr.bf16.mxu0 0
    %3900 = vmatpush1.bf16.xpose.msra.mxu0 0
    %3901 = vmatprep.subr.bf16.mxu0 0
    %3902 = vmatpush1.bf16.xpose.msra.mxu0 0
    %3903 = vmatprep.subr.bf16.mxu0 0
    %3904 = vmatpush1.bf16.xpose.msra.mxu0 0
    %3905 = vmatprep.subr.bf16.mxu0 0
    %3906 = vmatpush1.bf16.xpose.msra.mxu0 0
    %3907 = vmatprep.mubr.bf16.mxu0 0
    %3908 = vmatmul.mubr.bf16.gmra.mrb[0].mxu0 %v3870
    %v3909 = vpop.f32.mrb[0].mxu0
    %v3910 = vadd.f32 0.0, %v3909
    %v3911 = vpop.f32.mrb[0].mxu0
    %v3912 = vpop.f32.mrb[0].mxu0
    %v3913 = vpop.f32.mrb[0].mxu0
    %3914 = vdwg.mxu0
    %v3915 = vmul.f32 %v3864, 0.35355338
    %v3916 = vmul.f32 %v3910, 0.35355338
    %v3917 = vsel %vm2113, %v3915, -1e+09
    %v3918 = vsel %vm2114, %v3916, -1e+09
    %v3919 = vsel %vm2440, %v3917, -inf
    %3920 = vmax.xlane.f32.xlu0 %v3919
    %v3921 = vpop.xlane.xlu0 %3920
    %v3922 = vsel %vm2440, %v3918, -inf
    %3923 = vmax.xlane.f32.xlu0 %v3922
    %v3924 = vpop.xlane.xlu0 %3923
    %v3925 = vsub.f32 %v3917, %v3921
    %v3926 = vsub.f32 %v3918, %v3924
    %v3927 = vmul.f32 %v3925, 1.442695
    %v3928 = vpow.pop %v3927
    %v3929 = vmul.f32 %v3926, 1.442695
    %v3930 = vpow.pop %v3929
    %v3931 = vsel %vm2440, %v3928, 0.0
    %3932 = vadd.xlane.f32.xlu0 %v3931
    %v3933 = vpop.xlane.xlu0 %3932
    %v3934 = vsel %vm2440, %v3930, 0.0
    %3935 = vadd.xlane.f32.xlu0 %v3934
    %v3936 = vpop.xlane.xlu0 %3935
    %v3937 = vrcp.pop %v3933
    %v3938 = vrcp.pop %v3936
    %v3939 = vmul.f32 %v3928, %v3937
    %v3940 = vmul.f32 %v3930, %v3938
    %v3941 = vpack.c.bf16 %v3939, %v3939
    %v3942 = vpack.c.bf16 %v3940, %v3940
    %v3944 = vsel %vm2440, %v3941, 0
    %3946 = vmatprep.subr.bf16.mxu0 0
    %3947 = vmatpush1.bf16.msra.mxu0 %v3821
    %3948 = vmatprep.subr.bf16.mxu0 0
    %3949 = vmatpush1.bf16.msra.mxu0 0
    %3950 = vmatprep.subr.bf16.mxu0 0
    %3951 = vmatpush1.bf16.msra.mxu0 0
    %3952 = vmatprep.subr.bf16.mxu0 0
    %3953 = vmatpush1.bf16.msra.mxu0 0
    %3954 = vmatprep.subr.bf16.mxu0 0
    %3955 = vmatpush1.bf16.msra.mxu0 0
    %3956 = vmatprep.subr.bf16.mxu0 0
    %3957 = vmatpush1.bf16.msra.mxu0 0
    %3958 = vmatprep.subr.bf16.mxu0 0
    %3959 = vmatpush1.bf16.msra.mxu0 0
    %3960 = vmatprep.subr.bf16.mxu0 0
    %3961 = vmatpush1.bf16.msra.mxu0 0
    %3962 = vmatprep.subr.bf16.mxu0 0
    %3963 = vmatpush1.bf16.msra.mxu0 0
    %3964 = vmatprep.subr.bf16.mxu0 0
    %3965 = vmatpush1.bf16.msra.mxu0 0
    %3966 = vmatprep.subr.bf16.mxu0 0
    %3967 = vmatpush1.bf16.msra.mxu0 0
    %3968 = vmatprep.subr.bf16.mxu0 0
    %3969 = vmatpush1.bf16.msra.mxu0 0
    %3970 = vmatprep.subr.bf16.mxu0 0
    %3971 = vmatpush1.bf16.msra.mxu0 0
    %3972 = vmatprep.subr.bf16.mxu0 0
    %3973 = vmatpush1.bf16.msra.mxu0 0
    %3974 = vmatprep.subr.bf16.mxu0 0
    %3975 = vmatpush1.bf16.msra.mxu0 0
    %3976 = vmatprep.subr.bf16.mxu0 0
    %3977 = vmatpush1.bf16.msra.mxu0 0
    %3978 = vmatprep.mubr.bf16.mxu0 0
    %3979 = vmatmul.mubr.bf16.gmra.mrb[0].mxu0 %v3944
    %v3980 = vpop.f32.mrb[0].mxu0
    %v3981 = vadd.f32 0.0, %v3980
    %v3982 = vpop.f32.mrb[0].mxu0
    %v3983 = vpop.f32.mrb[0].mxu0
    %v3984 = vpop.f32.mrb[0].mxu0
    %3985 = vdwg.mxu0
    %v3987 = vsel %vm2440, %v3942, 0
    %3989 = vmatprep.subr.bf16.mxu0 0
    %3990 = vmatpush1.bf16.msra.mxu0 %v3822
    %3991 = vmatprep.subr.bf16.mxu0 0
    %3992 = vmatpush1.bf16.msra.mxu0 0
    %3993 = vmatprep.subr.bf16.mxu0 0
    %3994 = vmatpush1.bf16.msra.mxu0 0
    %3995 = vmatprep.subr.bf16.mxu0 0
    %3996 = vmatpush1.bf16.msra.mxu0 0
    %3997 = vmatprep.subr.bf16.mxu0 0
    %3998 = vmatpush1.bf16.msra.mxu0 0
    %3999 = vmatprep.subr.bf16.mxu0 0
    %4000 = vmatpush1.bf16.msra.mxu0 0
    %4001 = vmatprep.subr.bf16.mxu0 0
    %4002 = vmatpush1.bf16.msra.mxu0 0
    %4003 = vmatprep.subr.bf16.mxu0 0
    %4004 = vmatpush1.bf16.msra.mxu0 0
    %4005 = vmatprep.subr.bf16.mxu0 0
    %4006 = vmatpush1.bf16.msra.mxu0 0
    %4007 = vmatprep.subr.bf16.mxu0 0
    %4008 = vmatpush1.bf16.msra.mxu0 0
    %4009 = vmatprep.subr.bf16.mxu0 0
    %4010 = vmatpush1.bf16.msra.mxu0 0
    %4011 = vmatprep.subr.bf16.mxu0 0
    %4012 = vmatpush1.bf16.msra.mxu0 0
    %4013 = vmatprep.subr.bf16.mxu0 0
    %4014 = vmatpush1.bf16.msra.mxu0 0
    %4015 = vmatprep.subr.bf16.mxu0 0
    %4016 = vmatpush1.bf16.msra.mxu0 0
    %4017 = vmatprep.subr.bf16.mxu0 0
    %4018 = vmatpush1.bf16.msra.mxu0 0
    %4019 = vmatprep.subr.bf16.mxu0 0
    %4020 = vmatpush1.bf16.msra.mxu0 0
    %4021 = vmatprep.mubr.bf16.mxu0 0
    %4022 = vmatmul.mubr.bf16.gmra.mrb[0].mxu0 %v3987
    %v4023 = vpop.f32.mrb[0].mxu0
    %v4024 = vadd.f32 0.0, %v4023
    %v4025 = vpop.f32.mrb[0].mxu0
    %v4026 = vpop.f32.mrb[0].mxu0
    %v4027 = vpop.f32.mrb[0].mxu0
    %4028 = vdwg.mxu0
    %v4029 = vpack.c.bf16 %v4024, %v3981
    %s4030 = scalar_lea.vmem %s4, 880
    %v4031 = vld [vmem:[%s4030] sm:$0xf]
    %v4032 = vld [vmem:[%s4030 + $0x4] sm:$0xf]
    %v4033 = vld [vmem:[%s4030 + $0x8] sm:$0xf]
    %v4034 = vld [vmem:[%s4030 + $0xc] sm:$0xf]
    %v4039 = vunpack.c.l.b16 %v4031
    %v4040 = vunpack.c.l.b16 %v4032
    %v4041 = vunpack.c.l.b16 %v4033
    %v4042 = vunpack.c.l.b16 %v4034
    %v4043 = vpack.c.b16 %v4040, %v4039
    %v4044 = vpack.c.b16 %v4042, %v4041
    %v4046 = vsel %vm308, %v4029, 0
    %v4049 = vsel %vm308, %v4043, 0
    %v4052 = vsel %vm308, %v4044, 0
    %4054 = vmatprep.subr.bf16.mxu0 0
    %4055 = vmatpush1.bf16.xpose.msra.mxu0 %v4049
    %4056 = vmatprep.subr.bf16.mxu0 0
    %4057 = vmatpush1.bf16.xpose.msra.mxu0 %v4052
    %4058 = vmatprep.subr.bf16.mxu0 0
    %4059 = vmatpush1.bf16.xpose.msra.mxu0 0
    %4060 = vmatprep.subr.bf16.mxu0 0
    %4061 = vmatpush1.bf16.xpose.msra.mxu0 0
    %4062 = vmatprep.subr.bf16.mxu0 0
    %4063 = vmatpush1.bf16.xpose.msra.mxu0 0
    %4064 = vmatprep.subr.bf16.mxu0 0
    %4065 = vmatpush1.bf16.xpose.msra.mxu0 0
    %4066 = vmatprep.subr.bf16.mxu0 0
    %4067 = vmatpush1.bf16.xpose.msra.mxu0 0
    %4068 = vmatprep.subr.bf16.mxu0 0
    %4069 = vmatpush1.bf16.xpose.msra.mxu0 0
    %4070 = vmatprep.subr.bf16.mxu0 0
    %4071 = vmatpush1.bf16.xpose.msra.mxu0 0
    %4072 = vmatprep.subr.bf16.mxu0 0
    %4073 = vmatpush1.bf16.xpose.msra.mxu0 0
    %4074 = vmatprep.subr.bf16.mxu0 0
    %4075 = vmatpush1.bf16.xpose.msra.mxu0 0
    %4076 = vmatprep.subr.bf16.mxu0 0
    %4077 = vmatpush1.bf16.xpose.msra.mxu0 0
    %4078 = vmatprep.subr.bf16.mxu0 0
    %4079 = vmatpush1.bf16.xpose.msra.mxu0 0
    %4080 = vmatprep.subr.bf16.mxu0 0
    %4081 = vmatpush1.bf16.xpose.msra.mxu0 0
    %4082 = vmatprep.subr.bf16.mxu0 0
    %4083 = vmatpush1.bf16.xpose.msra.mxu0 0
    %4084 = vmatprep.subr.bf16.mxu0 0
    %4085 = vmatpush1.bf16.xpose.msra.mxu0 0
    %4086 = vmatprep.mubr.bf16.mxu0 0
    %4087 = vmatmul.mubr.bf16.gmra.mrb[0].mxu0 %v4046
    %v4088 = vpop.f32.mrb[0].mxu0
    %v4089 = vadd.f32 0.0, %v4088
    %v4090 = vpop.f32.mrb[0].mxu0
    %v4091 = vpop.f32.mrb[0].mxu0
    %v4092 = vadd.f32 0.0, %v4091
    %v4093 = vpop.f32.mrb[0].mxu0
    %4094 = vdwg.mxu0
    %v4095 = vadd.f32 %v3601, %v4089
    %v4096 = vadd.f32 %v3602, %v4092
    %s4097 = scalar_lea.vmem %s9, 7
    %v4098 = vld [vmem:[%s4097] sm:$0x1]
    %v4100 = vlaneseq
    %v4101 = vshrl.u32 %v4100, 7
    %v4102 = vsub.s32 0, %v4101
    %v4103 = vrot.slane %v4098, %v4102
    %v4105 = vadd.f32 %v4095, %v4103
    %v4106 = vadd.f32 %v4096, %v4103
    %v4107 = vadd.f32 %v2048, %v4105
    %v4108 = vadd.f32 %v2049, %v4106
    %v4109 = vsel %vm49, %v4107, 0.0
    %4110 = vadd.xlane.f32.xlu0 %v4109
    %v4111 = vpop.xlane.xlu0 %4110
    %v4112 = vsel %vm49, %v4108, 0.0
    %4113 = vadd.xlane.f32.xlu0 %v4112
    %v4114 = vpop.xlane.xlu0 %4113
    %v4115 = vmul.f32 %v4111, %v56
    %v4116 = vmul.f32 %v4114, %v56
    %v4117 = vmul.f32 %v4107, %v4107
    %v4118 = vmul.f32 %v4108, %v4108
    %v4119 = vsel %vm49, %v4117, 0.0
    %4120 = vadd.xlane.f32.xlu0 %v4119
    %v4121 = vpop.xlane.xlu0 %4120
    %v4122 = vsel %vm49, %v4118, 0.0
    %4123 = vadd.xlane.f32.xlu0 %v4122
    %v4124 = vpop.xlane.xlu0 %4123
    %v4125 = vmul.f32 %v4121, %v56
    %v4126 = vmul.f32 %v4124, %v56
    %v4127 = vmul.f32 %v4115, %v4115
    %v4128 = vmul.f32 %v4116, %v4116
    %v4129 = vsub.f32 %v4125, %v4127
    %v4130 = vsub.f32 %v4126, %v4128
    %v4131 = vsub.f32 %v4107, %v4115
    %v4132 = vsub.f32 %v4108, %v4116
    %v4133 = vadd.f32 %v4129, 1e-06
    %v4134 = vadd.f32 %v4130, 1e-06
    %v4135 = vrsqrt.pop %v4133
    %v4136 = vrsqrt.pop %v4134
    %v4137 = vmul.f32 %v4131, %v4135
    %v4138 = vmul.f32 %v4132, %v4136
    %s4139 = scalar_lea.vmem %s9, 4
    %v4140 = vld [vmem:[%s4139] sm:$0x1]
    %v4142 = vlaneseq
    %v4143 = vshrl.u32 %v4142, 7
    %v4144 = vsub.s32 0, %v4143
    %v4145 = vrot.slane %v4140, %v4144
    %v4147 = vmul.f32 %v4137, %v4145
    %v4148 = vmul.f32 %v4138, %v4145
    %s4149 = scalar_lea.vmem %s9, 5
    %v4150 = vld [vmem:[%s4149] sm:$0x1]
    %v4152 = vlaneseq
    %v4153 = vshrl.u32 %v4152, 7
    %v4154 = vsub.s32 0, %v4153
    %v4155 = vrot.slane %v4150, %v4154
    %v4157 = vadd.f32 %v4147, %v4155
    %v4158 = vadd.f32 %v4148, %v4155
    %v4159 = vpack.c.bf16 %v4158, %v4157
    %v4160 = vld [vmem:[%s5] sm:$0xf]
    %v4161 = vld [vmem:[%s5 + $0x4] sm:$0xf]
    %v4162 = vld [vmem:[%s5 + $0x8] sm:$0xf]
    %v4163 = vld [vmem:[%s5 + $0xc] sm:$0xf]
    %v4164 = vld [vmem:[%s8] sm:$0x1]
    %v4166 = vlaneseq
    %v4167 = vshrl.u32 %v4166, 7
    %v4168 = vsub.s32 0, %v4167
    %v4169 = vrot.slane %v4164, %v4168
    %v4175 = vunpack.c.l.b16 %v4160
    %v4176 = vunpack.c.l.b16 %v4161
    %v4177 = vunpack.c.l.b16 %v4162
    %v4178 = vunpack.c.l.b16 %v4163
    %v4179 = vpack.c.b16 %v4176, %v4175
    %v4180 = vpack.c.b16 %v4178, %v4177
    %v4184 = vsel %vm49, %v4159, 0
    %4186 = vmatprep.subr.bf16.mxu0 0
    %4187 = vmatpush1.bf16.msra.mxu0 %v4179
    %4188 = vmatprep.subr.bf16.mxu0 0
    %4189 = vmatpush1.bf16.msra.mxu0 %v4180
    %4190 = vmatprep.subr.bf16.mxu0 0
    %4191 = vmatpush1.bf16.msra.mxu0 0
    %4192 = vmatprep.subr.bf16.mxu0 0
    %4193 = vmatpush1.bf16.msra.mxu0 0
    %4194 = vmatprep.subr.bf16.mxu0 0
    %4195 = vmatpush1.bf16.msra.mxu0 0
    %4196 = vmatprep.subr.bf16.mxu0 0
    %4197 = vmatpush1.bf16.msra.mxu0 0
    %4198 = vmatprep.subr.bf16.mxu0 0
    %4199 = vmatpush1.bf16.msra.mxu0 0
    %4200 = vmatprep.subr.bf16.mxu0 0
    %4201 = vmatpush1.bf16.msra.mxu0 0
    %4202 = vmatprep.subr.bf16.mxu0 0
    %4203 = vmatpush1.bf16.msra.mxu0 0
    %4204 = vmatprep.subr.bf16.mxu0 0
    %4205 = vmatpush1.bf16.msra.mxu0 0
    %4206 = vmatprep.subr.bf16.mxu0 0
    %4207 = vmatpush1.bf16.msra.mxu0 0
    %4208 = vmatprep.subr.bf16.mxu0 0
    %4209 = vmatpush1.bf16.msra.mxu0 0
    %4210 = vmatprep.subr.bf16.mxu0 0
    %4211 = vmatpush1.bf16.msra.mxu0 0
    %4212 = vmatprep.subr.bf16.mxu0 0
    %4213 = vmatpush1.bf16.msra.mxu0 0
    %4214 = vmatprep.subr.bf16.mxu0 0
    %4215 = vmatpush1.bf16.msra.mxu0 0
    %4216 = vmatprep.subr.bf16.mxu0 0
    %4217 = vmatpush1.bf16.msra.mxu0 0
    %4218 = vmatprep.mubr.bf16.mxu0 0
    %4219 = vmatmul.mubr.bf16.gmra.mrb[0].mxu0 %v4184
    %v4220 = vpop.f32.mrb[0].mxu0
    %v4221 = vadd.f32 %v4169, %v4220
    %v4222 = vpop.f32.mrb[0].mxu0
    %v4223 = vpop.f32.mrb[0].mxu0
    %v4224 = vadd.f32 %v4169, %v4223
    %v4225 = vpop.f32.mrb[0].mxu0
    %4226 = vdwg.mxu0
    %v4227 = vmax.f32 %v4221, 0.0
    %v4228 = vmax.f32 %v4224, 0.0
    %v4229 = vpack.c.bf16 %v4228, %v4227
    %v4230 = vld [vmem:[%s6] sm:$0xf]
    %v4231 = vld [vmem:[%s6 + $0x4] sm:$0xf]
    %v4232 = vld [vmem:[%s6 + $0x8] sm:$0xf]
    %v4233 = vld [vmem:[%s6 + $0xc] sm:$0xf]
    %v4234 = vld [vmem:[%s6 + $0x10] sm:$0xf]
    %v4235 = vld [vmem:[%s6 + $0x14] sm:$0xf]
    %v4236 = vld [vmem:[%s6 + $0x18] sm:$0xf]
    %v4237 = vld [vmem:[%s6 + $0x1c] sm:$0xf]
    %v4246 = vunpack.c.l.b16 %v4230
    %v4247 = vunpack.c.l.b16 %v4231
    %v4248 = vunpack.c.l.b16 %v4232
    %v4249 = vunpack.c.l.b16 %v4233
    %v4250 = vunpack.c.l.b16 %v4234
    %v4251 = vunpack.c.l.b16 %v4235
    %v4252 = vunpack.c.l.b16 %v4236
    %v4253 = vunpack.c.l.b16 %v4237
    %v4254 = vpack.c.b16 %v4247, %v4246
    %v4255 = vpack.c.b16 %v4249, %v4248
    %v4256 = vpack.c.b16 %v4251, %v4250
    %v4257 = vpack.c.b16 %v4253, %v4252
    %vm4262 = vcmask 523264
    %v4264 = vsel %vm4262, %v4229, 0
    %4266 = vmatprep.subr.bf16.mxu0 0
    %4267 = vmatpush1.bf16.msra.mxu0 %v4254
    %4268 = vmatprep.subr.bf16.mxu0 0
    %4269 = vmatpush1.bf16.msra.mxu0 %v4255
    %4270 = vmatprep.subr.bf16.mxu0 0
    %4271 = vmatpush1.bf16.msra.mxu0 %v4256
    %4272 = vmatprep.subr.bf16.mxu0 0
    %4273 = vmatpush1.bf16.msra.mxu0 %v4257
    %4274 = vmatprep.subr.bf16.mxu0 0
    %4275 = vmatpush1.bf16.msra.mxu0 0
    %4276 = vmatprep.subr.bf16.mxu0 0
    %4277 = vmatpush1.bf16.msra.mxu0 0
    %4278 = vmatprep.subr.bf16.mxu0 0
    %4279 = vmatpush1.bf16.msra.mxu0 0
    %4280 = vmatprep.subr.bf16.mxu0 0
    %4281 = vmatpush1.bf16.msra.mxu0 0
    %4282 = vmatprep.subr.bf16.mxu0 0
    %4283 = vmatpush1.bf16.msra.mxu0 0
    %4284 = vmatprep.subr.bf16.mxu0 0
    %4285 = vmatpush1.bf16.msra.mxu0 0
    %4286 = vmatprep.subr.bf16.mxu0 0
    %4287 = vmatpush1.bf16.msra.mxu0 0
    %4288 = vmatprep.subr.bf16.mxu0 0
    %4289 = vmatpush1.bf16.msra.mxu0 0
    %4290 = vmatprep.subr.bf16.mxu0 0
    %4291 = vmatpush1.bf16.msra.mxu0 0
    %4292 = vmatprep.subr.bf16.mxu0 0
    %4293 = vmatpush1.bf16.msra.mxu0 0
    %4294 = vmatprep.subr.bf16.mxu0 0
    %4295 = vmatpush1.bf16.msra.mxu0 0
    %4296 = vmatprep.subr.bf16.mxu0 0
    %4297 = vmatpush1.bf16.msra.mxu0 0
    %4298 = vmatprep.mubr.bf16.mxu0 0
    %4299 = vmatmul.mubr.bf16.gmra.mrb[0].mxu0 %v4264
    %v4300 = vpop.f32.mrb[0].mxu0
    %v4301 = vadd.f32 0.0, %v4300
    %v4302 = vpop.f32.mrb[0].mxu0
    %v4303 = vpop.f32.mrb[0].mxu0
    %v4304 = vadd.f32 0.0, %v4303
    %v4305 = vpop.f32.mrb[0].mxu0
    %4306 = vdwg.mxu0
    %v4307 = vadd.f32 %v4107, %v4301
    %v4308 = vadd.f32 %v4108, %v4304
    %s4309 = scalar_lea.vmem %s9, 8
    %v4310 = vld [vmem:[%s4309] sm:$0x1]
    %v4312 = vlaneseq
    %v4313 = vshrl.u32 %v4312, 7
    %v4314 = vsub.s32 0, %v4313
    %v4315 = vrot.slane %v4310, %v4314
    %v4317 = vadd.f32 %v4307, %v4315
    %v4318 = vadd.f32 %v4308, %v4315
    %v4319 = vsel %vm49, %v4317, 0.0
    %4320 = vadd.xlane.f32.xlu0 %v4319
    %v4321 = vpop.xlane.xlu0 %4320
    %v4322 = vsel %vm49, %v4318, 0.0
    %4323 = vadd.xlane.f32.xlu0 %v4322
    %v4324 = vpop.xlane.xlu0 %4323
    %v4325 = vmul.f32 %v4321, %v56
    %v4326 = vmul.f32 %v4324, %v56
    %v4327 = vmul.f32 %v4317, %v4317
    %v4328 = vmul.f32 %v4318, %v4318
    %v4329 = vsel %vm49, %v4327, 0.0
    %4330 = vadd.xlane.f32.xlu0 %v4329
    %v4331 = vpop.xlane.xlu0 %4330
    %v4332 = vsel %vm49, %v4328, 0.0
    %4333 = vadd.xlane.f32.xlu0 %v4332
    %v4334 = vpop.xlane.xlu0 %4333
    %v4335 = vmul.f32 %v4331, %v56
    %v4336 = vmul.f32 %v4334, %v56
    %v4337 = vmul.f32 %v4325, %v4325
    %v4338 = vmul.f32 %v4326, %v4326
    %v4339 = vsub.f32 %v4335, %v4337
    %v4340 = vsub.f32 %v4336, %v4338
    %v4341 = vsub.f32 %v4317, %v4325
    %v4342 = vsub.f32 %v4318, %v4326
    %v4343 = vadd.f32 %v4339, 1e-06
    %v4344 = vadd.f32 %v4340, 1e-06
    %v4345 = vrsqrt.pop %v4343
    %v4346 = vrsqrt.pop %v4344
    %v4347 = vmul.f32 %v4341, %v4345
    %v4348 = vmul.f32 %v4342, %v4346
    %s4349 = scalar_lea.vmem %s9, 9
    %v4350 = vld [vmem:[%s4349] sm:$0x1]
    %v4352 = vlaneseq
    %v4353 = vshrl.u32 %v4352, 7
    %v4354 = vsub.s32 0, %v4353
    %v4355 = vrot.slane %v4350, %v4354
    %v4357 = vmul.f32 %v4347, %v4355
    %v4358 = vmul.f32 %v4348, %v4355
    %s4359 = scalar_lea.vmem %s9, 10
    %v4360 = vld [vmem:[%s4359] sm:$0x1]
    %v4362 = vlaneseq
    %v4363 = vshrl.u32 %v4362, 7
    %v4364 = vsub.s32 0, %v4363
    %v4365 = vrot.slane %v4360, %v4364
    %v4367 = vadd.f32 %v4357, %v4365
    %v4368 = vadd.f32 %v4358, %v4365
    %v4369 = vpack.c.bf16 %v4368, %v4367
    %s4370 = scalar_lea.vmem %s4, 384
    %v4371 = vld [vmem:[%s4370] sm:$0xf]
    %v4372 = vld [vmem:[%s4370 + $0x4] sm:$0xf]
    %v4373 = vld [vmem:[%s4370 + $0x8] sm:$0xf]
    %v4374 = vld [vmem:[%s4370 + $0xc] sm:$0xf]
    %s4375 = scalar_lea.vmem %s7, 24
    %v4376 = vld [vmem:[%s4375] sm:$0x1]
    %v4378 = vlaneseq
    %v4379 = vshrl.u32 %v4378, 7
    %v4380 = vsub.s32 0, %v4379
    %v4381 = vrot.slane %v4376, %v4380
    %v4387 = vunpack.c.l.b16 %v4371
    %v4388 = vunpack.c.l.b16 %v4372
    %v4389 = vunpack.c.l.b16 %v4373
    %v4390 = vunpack.c.l.b16 %v4374
    %v4391 = vpack.c.b16 %v4388, %v4387
    %v4392 = vpack.c.b16 %v4390, %v4389
    %v4396 = vsel %vm49, %v4369, 0
    %4398 = vmatprep.subr.bf16.mxu0 0
    %4399 = vmatpush1.bf16.msra.mxu0 %v4391
    %4400 = vmatprep.subr.bf16.mxu0 0
    %4401 = vmatpush1.bf16.msra.mxu0 %v4392
    %4402 = vmatprep.subr.bf16.mxu0 0
    %4403 = vmatpush1.bf16.msra.mxu0 0
    %4404 = vmatprep.subr.bf16.mxu0 0
    %4405 = vmatpush1.bf16.msra.mxu0 0
    %4406 = vmatprep.subr.bf16.mxu0 0
    %4407 = vmatpush1.bf16.msra.mxu0 0
    %4408 = vmatprep.subr.bf16.mxu0 0
    %4409 = vmatpush1.bf16.msra.mxu0 0
    %4410 = vmatprep.subr.bf16.mxu0 0
    %4411 = vmatpush1.bf16.msra.mxu0 0
    %4412 = vmatprep.subr.bf16.mxu0 0
    %4413 = vmatpush1.bf16.msra.mxu0 0
    %4414 = vmatprep.subr.bf16.mxu0 0
    %4415 = vmatpush1.bf16.msra.mxu0 0
    %4416 = vmatprep.subr.bf16.mxu0 0
    %4417 = vmatpush1.bf16.msra.mxu0 0
    %4418 = vmatprep.subr.bf16.mxu0 0
    %4419 = vmatpush1.bf16.msra.mxu0 0
    %4420 = vmatprep.subr.bf16.mxu0 0
    %4421 = vmatpush1.bf16.msra.mxu0 0
    %4422 = vmatprep.subr.bf16.mxu0 0
    %4423 = vmatpush1.bf16.msra.mxu0 0
    %4424 = vmatprep.subr.bf16.mxu0 0
    %4425 = vmatpush1.bf16.msra.mxu0 0
    %4426 = vmatprep.subr.bf16.mxu0 0
    %4427 = vmatpush1.bf16.msra.mxu0 0
    %4428 = vmatprep.subr.bf16.mxu0 0
    %4429 = vmatpush1.bf16.msra.mxu0 0
    %4430 = vmatprep.mubr.bf16.mxu0 0
    %4431 = vmatmul.mubr.bf16.gmra.mrb[0].mxu0 %v4396
    %v4432 = vpop.f32.mrb[0].mxu0
    %v4433 = vadd.f32 %v4381, %v4432
    %v4434 = vpop.f32.mrb[0].mxu0
    %v4435 = vpop.f32.mrb[0].mxu0
    %v4436 = vadd.f32 %v4381, %v4435
    %v4437 = vpop.f32.mrb[0].mxu0
    %4438 = vdwg.mxu0
    %s4439 = scalar_lea.vmem %s4, 448
    %v4440 = vld [vmem:[%s4439] sm:$0xf]
    %v4441 = vld [vmem:[%s4439 + $0x4] sm:$0xf]
    %v4442 = vld [vmem:[%s4439 + $0x8] sm:$0xf]
    %v4443 = vld [vmem:[%s4439 + $0xc] sm:$0xf]
    %s4444 = scalar_lea.vmem %s7, 28
    %v4445 = vld [vmem:[%s4444] sm:$0x1]
    %v4447 = vlaneseq
    %v4448 = vshrl.u32 %v4447, 7
    %v4449 = vsub.s32 0, %v4448
    %v4450 = vrot.slane %v4445, %v4449
    %v4456 = vunpack.c.l.b16 %v4440
    %v4457 = vunpack.c.l.b16 %v4441
    %v4458 = vunpack.c.l.b16 %v4442
    %v4459 = vunpack.c.l.b16 %v4443
    %v4460 = vpack.c.b16 %v4457, %v4456
    %v4461 = vpack.c.b16 %v4459, %v4458
    %4464 = vmatprep.subr.bf16.mxu0 0
    %4465 = vmatpush1.bf16.msra.mxu0 %v4460
    %4466 = vmatprep.subr.bf16.mxu0 0
    %4467 = vmatpush1.bf16.msra.mxu0 %v4461
    %4468 = vmatprep.subr.bf16.mxu0 0
    %4469 = vmatpush1.bf16.msra.mxu0 0
    %4470 = vmatprep.subr.bf16.mxu0 0
    %4471 = vmatpush1.bf16.msra.mxu0 0
    %4472 = vmatprep.subr.bf16.mxu0 0
    %4473 = vmatpush1.bf16.msra.mxu0 0
    %4474 = vmatprep.subr.bf16.mxu0 0
    %4475 = vmatpush1.bf16.msra.mxu0 0
    %4476 = vmatprep.subr.bf16.mxu0 0
    %4477 = vmatpush1.bf16.msra.mxu0 0
    %4478 = vmatprep.subr.bf16.mxu0 0
    %4479 = vmatpush1.bf16.msra.mxu0 0
    %4480 = vmatprep.subr.bf16.mxu0 0
    %4481 = vmatpush1.bf16.msra.mxu0 0
    %4482 = vmatprep.subr.bf16.mxu0 0
    %4483 = vmatpush1.bf16.msra.mxu0 0
    %4484 = vmatprep.subr.bf16.mxu0 0
    %4485 = vmatpush1.bf16.msra.mxu0 0
    %4486 = vmatprep.subr.bf16.mxu0 0
    %4487 = vmatpush1.bf16.msra.mxu0 0
    %4488 = vmatprep.subr.bf16.mxu0 0
    %4489 = vmatpush1.bf16.msra.mxu0 0
    %4490 = vmatprep.subr.bf16.mxu0 0
    %4491 = vmatpush1.bf16.msra.mxu0 0
    %4492 = vmatprep.subr.bf16.mxu0 0
    %4493 = vmatpush1.bf16.msra.mxu0 0
    %4494 = vmatprep.subr.bf16.mxu0 0
    %4495 = vmatpush1.bf16.msra.mxu0 0
    %4496 = vmatprep.mubr.bf16.mxu0 0
    %4497 = vmatmul.mubr.bf16.gmra.mrb[0].mxu0 %v4396
    %v4498 = vpop.f32.mrb[0].mxu0
    %v4499 = vadd.f32 %v4450, %v4498
    %v4500 = vpop.f32.mrb[0].mxu0
    %v4501 = vpop.f32.mrb[0].mxu0
    %v4502 = vadd.f32 %v4450, %v4501
    %v4503 = vpop.f32.mrb[0].mxu0
    %4504 = vdwg.mxu0
    %s4505 = scalar_lea.vmem %s4, 512
    %v4506 = vld [vmem:[%s4505] sm:$0xf]
    %v4507 = vld [vmem:[%s4505 + $0x4] sm:$0xf]
    %v4508 = vld [vmem:[%s4505 + $0x8] sm:$0xf]
    %v4509 = vld [vmem:[%s4505 + $0xc] sm:$0xf]
    %s4510 = scalar_lea.vmem %s7, 32
    %v4511 = vld [vmem:[%s4510] sm:$0x1]
    %v4513 = vlaneseq
    %v4514 = vshrl.u32 %v4513, 7
    %v4515 = vsub.s32 0, %v4514
    %v4516 = vrot.slane %v4511, %v4515
    %v4522 = vunpack.c.l.b16 %v4506
    %v4523 = vunpack.c.l.b16 %v4507
    %v4524 = vunpack.c.l.b16 %v4508
    %v4525 = vunpack.c.l.b16 %v4509
    %v4526 = vpack.c.b16 %v4523, %v4522
    %v4527 = vpack.c.b16 %v4525, %v4524
    %4530 = vmatprep.subr.bf16.mxu0 0
    %4531 = vmatpush1.bf16.msra.mxu0 %v4526
    %4532 = vmatprep.subr.bf16.mxu0 0
    %4533 = vmatpush1.bf16.msra.mxu0 %v4527
    %4534 = vmatprep.subr.bf16.mxu0 0
    %4535 = vmatpush1.bf16.msra.mxu0 0
    %4536 = vmatprep.subr.bf16.mxu0 0
    %4537 = vmatpush1.bf16.msra.mxu0 0
    %4538 = vmatprep.subr.bf16.mxu0 0
    %4539 = vmatpush1.bf16.msra.mxu0 0
    %4540 = vmatprep.subr.bf16.mxu0 0
    %4541 = vmatpush1.bf16.msra.mxu0 0
    %4542 = vmatprep.subr.bf16.mxu0 0
    %4543 = vmatpush1.bf16.msra.mxu0 0
    %4544 = vmatprep.subr.bf16.mxu0 0
    %4545 = vmatpush1.bf16.msra.mxu0 0
    %4546 = vmatprep.subr.bf16.mxu0 0
    %4547 = vmatpush1.bf16.msra.mxu0 0
    %4548 = vmatprep.subr.bf16.mxu0 0
    %4549 = vmatpush1.bf16.msra.mxu0 0
    %4550 = vmatprep.subr.bf16.mxu0 0
    %4551 = vmatpush1.bf16.msra.mxu0 0
    %4552 = vmatprep.subr.bf16.mxu0 0
    %4553 = vmatpush1.bf16.msra.mxu0 0
    %4554 = vmatprep.subr.bf16.mxu0 0
    %4555 = vmatpush1.bf16.msra.mxu0 0
    %4556 = vmatprep.subr.bf16.mxu0 0
    %4557 = vmatpush1.bf16.msra.mxu0 0
    %4558 = vmatprep.subr.bf16.mxu0 0
    %4559 = vmatpush1.bf16.msra.mxu0 0
    %4560 = vmatprep.subr.bf16.mxu0 0
    %4561 = vmatpush1.bf16.msra.mxu0 0
    %4562 = vmatprep.mubr.bf16.mxu0 0
    %4563 = vmatmul.mubr.bf16.gmra.mrb[0].mxu0 %v4396
    %v4564 = vpop.f32.mrb[0].mxu0
    %v4565 = vadd.f32 %v4516, %v4564
    %v4566 = vpop.f32.mrb[0].mxu0
    %v4567 = vpop.f32.mrb[0].mxu0
    %v4568 = vadd.f32 %v4516, %v4567
    %v4569 = vpop.f32.mrb[0].mxu0
    %4570 = vdwg.mxu0
    %v4571 = vpack.c.bf16 %v4433, %v4433
    %v4572 = vpack.c.bf16 %v4436, %v4436
    %v4573 = vpack.c.bf16 %v4499, %v4499
    %v4574 = vpack.c.bf16 %v4502, %v4502
    %v4575 = vpack.c.bf16 %v4565, %v4565
    %v4576 = vpack.c.bf16 %v4568, %v4568
    %v4578 = vsel %vm308, %v4571, 0
    %v4581 = vsel %vm308, %v4573, 0
    %4583 = vmatprep.subr.bf16.mxu0 0
    %4584 = vmatpush1.bf16.xpose.msra.mxu0 %v4581
    %4585 = vmatprep.subr.bf16.mxu0 0
    %4586 = vmatpush1.bf16.xpose.msra.mxu0 0
    %4587 = vmatprep.subr.bf16.mxu0 0
    %4588 = vmatpush1.bf16.xpose.msra.mxu0 0
    %4589 = vmatprep.subr.bf16.mxu0 0
    %4590 = vmatpush1.bf16.xpose.msra.mxu0 0
    %4591 = vmatprep.subr.bf16.mxu0 0
    %4592 = vmatpush1.bf16.xpose.msra.mxu0 0
    %4593 = vmatprep.subr.bf16.mxu0 0
    %4594 = vmatpush1.bf16.xpose.msra.mxu0 0
    %4595 = vmatprep.subr.bf16.mxu0 0
    %4596 = vmatpush1.bf16.xpose.msra.mxu0 0
    %4597 = vmatprep.subr.bf16.mxu0 0
    %4598 = vmatpush1.bf16.xpose.msra.mxu0 0
    %4599 = vmatprep.subr.bf16.mxu0 0
    %4600 = vmatpush1.bf16.xpose.msra.mxu0 0
    %4601 = vmatprep.subr.bf16.mxu0 0
    %4602 = vmatpush1.bf16.xpose.msra.mxu0 0
    %4603 = vmatprep.subr.bf16.mxu0 0
    %4604 = vmatpush1.bf16.xpose.msra.mxu0 0
    %4605 = vmatprep.subr.bf16.mxu0 0
    %4606 = vmatpush1.bf16.xpose.msra.mxu0 0
    %4607 = vmatprep.subr.bf16.mxu0 0
    %4608 = vmatpush1.bf16.xpose.msra.mxu0 0
    %4609 = vmatprep.subr.bf16.mxu0 0
    %4610 = vmatpush1.bf16.xpose.msra.mxu0 0
    %4611 = vmatprep.subr.bf16.mxu0 0
    %4612 = vmatpush1.bf16.xpose.msra.mxu0 0
    %4613 = vmatprep.subr.bf16.mxu0 0
    %4614 = vmatpush1.bf16.xpose.msra.mxu0 0
    %4615 = vmatprep.mubr.bf16.mxu0 0
    %4616 = vmatmul.mubr.bf16.gmra.mrb[0].mxu0 %v4578
    %v4617 = vpop.f32.mrb[0].mxu0
    %v4618 = vadd.f32 0.0, %v4617
    %v4619 = vpop.f32.mrb[0].mxu0
    %v4620 = vpop.f32.mrb[0].mxu0
    %v4621 = vpop.f32.mrb[0].mxu0
    %4622 = vdwg.mxu0
    %v4624 = vsel %vm308, %v4572, 0
    %v4627 = vsel %vm308, %v4574, 0
    %4629 = vmatprep.subr.bf16.mxu0 0
    %4630 = vmatpush1.bf16.xpose.msra.mxu0 %v4627
    %4631 = vmatprep.subr.bf16.mxu0 0
    %4632 = vmatpush1.bf16.xpose.msra.mxu0 0
    %4633 = vmatprep.subr.bf16.mxu0 0
    %4634 = vmatpush1.bf16.xpose.msra.mxu0 0
    %4635 = vmatprep.subr.bf16.mxu0 0
    %4636 = vmatpush1.bf16.xpose.msra.mxu0 0
    %4637 = vmatprep.subr.bf16.mxu0 0
    %4638 = vmatpush1.bf16.xpose.msra.mxu0 0
    %4639 = vmatprep.subr.bf16.mxu0 0
    %4640 = vmatpush1.bf16.xpose.msra.mxu0 0
    %4641 = vmatprep.subr.bf16.mxu0 0
    %4642 = vmatpush1.bf16.xpose.msra.mxu0 0
    %4643 = vmatprep.subr.bf16.mxu0 0
    %4644 = vmatpush1.bf16.xpose.msra.mxu0 0
    %4645 = vmatprep.subr.bf16.mxu0 0
    %4646 = vmatpush1.bf16.xpose.msra.mxu0 0
    %4647 = vmatprep.subr.bf16.mxu0 0
    %4648 = vmatpush1.bf16.xpose.msra.mxu0 0
    %4649 = vmatprep.subr.bf16.mxu0 0
    %4650 = vmatpush1.bf16.xpose.msra.mxu0 0
    %4651 = vmatprep.subr.bf16.mxu0 0
    %4652 = vmatpush1.bf16.xpose.msra.mxu0 0
    %4653 = vmatprep.subr.bf16.mxu0 0
    %4654 = vmatpush1.bf16.xpose.msra.mxu0 0
    %4655 = vmatprep.subr.bf16.mxu0 0
    %4656 = vmatpush1.bf16.xpose.msra.mxu0 0
    %4657 = vmatprep.subr.bf16.mxu0 0
    %4658 = vmatpush1.bf16.xpose.msra.mxu0 0
    %4659 = vmatprep.subr.bf16.mxu0 0
    %4660 = vmatpush1.bf16.xpose.msra.mxu0 0
    %4661 = vmatprep.mubr.bf16.mxu0 0
    %4662 = vmatmul.mubr.bf16.gmra.mrb[0].mxu0 %v4624
    %v4663 = vpop.f32.mrb[0].mxu0
    %v4664 = vadd.f32 0.0, %v4663
    %v4665 = vpop.f32.mrb[0].mxu0
    %v4666 = vpop.f32.mrb[0].mxu0
    %v4667 = vpop.f32.mrb[0].mxu0
    %4668 = vdwg.mxu0
    %v4669 = vmul.f32 %v4618, 0.35355338
    %v4670 = vmul.f32 %v4664, 0.35355338
    %v4671 = vsel %vm101, %v4669, -1e+09
    %v4672 = vsel %vm102, %v4670, -1e+09
    %v4673 = vsel %vm308, %v4671, -inf
    %4674 = vmax.xlane.f32.xlu0 %v4673
    %v4675 = vpop.xlane.xlu0 %4674
    %v4676 = vsel %vm308, %v4672, -inf
    %4677 = vmax.xlane.f32.xlu0 %v4676
    %v4678 = vpop.xlane.xlu0 %4677
    %v4679 = vsub.f32 %v4671, %v4675
    %v4680 = vsub.f32 %v4672, %v4678
    %v4681 = vmul.f32 %v4679, 1.442695
    %v4682 = vpow.pop %v4681
    %v4683 = vmul.f32 %v4680, 1.442695
    %v4684 = vpow.pop %v4683
    %v4685 = vsel %vm308, %v4682, 0.0
    %4686 = vadd.xlane.f32.xlu0 %v4685
    %v4687 = vpop.xlane.xlu0 %4686
    %v4688 = vsel %vm308, %v4684, 0.0
    %4689 = vadd.xlane.f32.xlu0 %v4688
    %v4690 = vpop.xlane.xlu0 %4689
    %v4691 = vrcp.pop %v4687
    %v4692 = vrcp.pop %v4690
    %v4693 = vmul.f32 %v4682, %v4691
    %v4694 = vmul.f32 %v4684, %v4692
    %v4695 = vpack.c.bf16 %v4693, %v4693
    %v4696 = vpack.c.bf16 %v4694, %v4694
    %v4698 = vsel %vm308, %v4695, 0
    %v4701 = vsel %vm432, %v4575, 0
    %4703 = vmatprep.subr.bf16.mxu0 0
    %4704 = vmatpush1.bf16.msra.mxu0 %v4701
    %4705 = vmatprep.subr.bf16.mxu0 0
    %4706 = vmatpush1.bf16.msra.mxu0 0
    %4707 = vmatprep.subr.bf16.mxu0 0
    %4708 = vmatpush1.bf16.msra.mxu0 0
    %4709 = vmatprep.subr.bf16.mxu0 0
    %4710 = vmatpush1.bf16.msra.mxu0 0
    %4711 = vmatprep.subr.bf16.mxu0 0
    %4712 = vmatpush1.bf16.msra.mxu0 0
    %4713 = vmatprep.subr.bf16.mxu0 0
    %4714 = vmatpush1.bf16.msra.mxu0 0
    %4715 = vmatprep.subr.bf16.mxu0 0
    %4716 = vmatpush1.bf16.msra.mxu0 0
    %4717 = vmatprep.subr.bf16.mxu0 0
    %4718 = vmatpush1.bf16.msra.mxu0 0
    %4719 = vmatprep.subr.bf16.mxu0 0
    %4720 = vmatpush1.bf16.msra.mxu0 0
    %4721 = vmatprep.subr.bf16.mxu0 0
    %4722 = vmatpush1.bf16.msra.mxu0 0
    %4723 = vmatprep.subr.bf16.mxu0 0
    %4724 = vmatpush1.bf16.msra.mxu0 0
    %4725 = vmatprep.subr.bf16.mxu0 0
    %4726 = vmatpush1.bf16.msra.mxu0 0
    %4727 = vmatprep.subr.bf16.mxu0 0
    %4728 = vmatpush1.bf16.msra.mxu0 0
    %4729 = vmatprep.subr.bf16.mxu0 0
    %4730 = vmatpush1.bf16.msra.mxu0 0
    %4731 = vmatprep.subr.bf16.mxu0 0
    %4732 = vmatpush1.bf16.msra.mxu0 0
    %4733 = vmatprep.subr.bf16.mxu0 0
    %4734 = vmatpush1.bf16.msra.mxu0 0
    %4735 = vmatprep.mubr.bf16.mxu0 0
    %4736 = vmatmul.mubr.bf16.gmra.mrb[0].mxu0 %v4698
    %v4737 = vpop.f32.mrb[0].mxu0
    %v4738 = vadd.f32 0.0, %v4737
    %v4739 = vpop.f32.mrb[0].mxu0
    %v4740 = vpop.f32.mrb[0].mxu0
    %v4741 = vpop.f32.mrb[0].mxu0
    %4742 = vdwg.mxu0
    %v4744 = vsel %vm308, %v4696, 0
    %v4747 = vsel %vm432, %v4576, 0
    %4749 = vmatprep.subr.bf16.mxu0 0
    %4750 = vmatpush1.bf16.msra.mxu0 %v4747
    %4751 = vmatprep.subr.bf16.mxu0 0
    %4752 = vmatpush1.bf16.msra.mxu0 0
    %4753 = vmatprep.subr.bf16.mxu0 0
    %4754 = vmatpush1.bf16.msra.mxu0 0
    %4755 = vmatprep.subr.bf16.mxu0 0
    %4756 = vmatpush1.bf16.msra.mxu0 0
    %4757 = vmatprep.subr.bf16.mxu0 0
    %4758 = vmatpush1.bf16.msra.mxu0 0
    %4759 = vmatprep.subr.bf16.mxu0 0
    %4760 = vmatpush1.bf16.msra.mxu0 0
    %4761 = vmatprep.subr.bf16.mxu0 0
    %4762 = vmatpush1.bf16.msra.mxu0 0
    %4763 = vmatprep.subr.bf16.mxu0 0
    %4764 = vmatpush1.bf16.msra.mxu0 0
    %4765 = vmatprep.subr.bf16.mxu0 0
    %4766 = vmatpush1.bf16.msra.mxu0 0
    %4767 = vmatprep.subr.bf16.mxu0 0
    %4768 = vmatpush1.bf16.msra.mxu0 0
    %4769 = vmatprep.subr.bf16.mxu0 0
    %4770 = vmatpush1.bf16.msra.mxu0 0
    %4771 = vmatprep.subr.bf16.mxu0 0
    %4772 = vmatpush1.bf16.msra.mxu0 0
    %4773 = vmatprep.subr.bf16.mxu0 0
    %4774 = vmatpush1.bf16.msra.mxu0 0
    %4775 = vmatprep.subr.bf16.mxu0 0
    %4776 = vmatpush1.bf16.msra.mxu0 0
    %4777 = vmatprep.subr.bf16.mxu0 0
    %4778 = vmatpush1.bf16.msra.mxu0 0
    %4779 = vmatprep.subr.bf16.mxu0 0
    %4780 = vmatpush1.bf16.msra.mxu0 0
    %4781 = vmatprep.mubr.bf16.mxu0 0
    %4782 = vmatmul.mubr.bf16.gmra.mrb[0].mxu0 %v4744
    %v4783 = vpop.f32.mrb[0].mxu0
    %v4784 = vadd.f32 0.0, %v4783
    %v4785 = vpop.f32.mrb[0].mxu0
    %v4786 = vpop.f32.mrb[0].mxu0
    %v4787 = vpop.f32.mrb[0].mxu0
    %4788 = vdwg.mxu0
    %v4789 = vpack.c.bf16 %v4784, %v4738
    %s4790 = scalar_lea.vmem %s4, 896
    %v4791 = vld [vmem:[%s4790] sm:$0xf]
    %v4792 = vld [vmem:[%s4790 + $0x4] sm:$0xf]
    %v4793 = vld [vmem:[%s4790 + $0x8] sm:$0xf]
    %v4794 = vld [vmem:[%s4790 + $0xc] sm:$0xf]
    %s4795 = scalar_lea.vmem %s4, 400
    %v4796 = vld [vmem:[%s4795] sm:$0xf]
    %v4797 = vld [vmem:[%s4795 + $0x4] sm:$0xf]
    %v4798 = vld [vmem:[%s4795 + $0x8] sm:$0xf]
    %v4799 = vld [vmem:[%s4795 + $0xc] sm:$0xf]
    %s4800 = scalar_lea.vmem %s7, 25
    %v4801 = vld [vmem:[%s4800] sm:$0x1]
    %v4803 = vlaneseq
    %v4804 = vshrl.u32 %v4803, 7
    %v4805 = vsub.s32 0, %v4804
    %v4806 = vrot.slane %v4801, %v4805
    %v4812 = vunpack.c.l.b16 %v4796
    %v4813 = vunpack.c.l.b16 %v4797
    %v4814 = vunpack.c.l.b16 %v4798
    %v4815 = vunpack.c.l.b16 %v4799
    %v4816 = vpack.c.b16 %v4813, %v4812
    %v4817 = vpack.c.b16 %v4815, %v4814
    %4820 = vmatprep.subr.bf16.mxu0 0
    %4821 = vmatpush1.bf16.msra.mxu0 %v4816
    %4822 = vmatprep.subr.bf16.mxu0 0
    %4823 = vmatpush1.bf16.msra.mxu0 %v4817
    %4824 = vmatprep.subr.bf16.mxu0 0
    %4825 = vmatpush1.bf16.msra.mxu0 0
    %4826 = vmatprep.subr.bf16.mxu0 0
    %4827 = vmatpush1.bf16.msra.mxu0 0
    %4828 = vmatprep.subr.bf16.mxu0 0
    %4829 = vmatpush1.bf16.msra.mxu0 0
    %4830 = vmatprep.subr.bf16.mxu0 0
    %4831 = vmatpush1.bf16.msra.mxu0 0
    %4832 = vmatprep.subr.bf16.mxu0 0
    %4833 = vmatpush1.bf16.msra.mxu0 0
    %4834 = vmatprep.subr.bf16.mxu0 0
    %4835 = vmatpush1.bf16.msra.mxu0 0
    %4836 = vmatprep.subr.bf16.mxu0 0
    %4837 = vmatpush1.bf16.msra.mxu0 0
    %4838 = vmatprep.subr.bf16.mxu0 0
    %4839 = vmatpush1.bf16.msra.mxu0 0
    %4840 = vmatprep.subr.bf16.mxu0 0
    %4841 = vmatpush1.bf16.msra.mxu0 0
    %4842 = vmatprep.subr.bf16.mxu0 0
    %4843 = vmatpush1.bf16.msra.mxu0 0
    %4844 = vmatprep.subr.bf16.mxu0 0
    %4845 = vmatpush1.bf16.msra.mxu0 0
    %4846 = vmatprep.subr.bf16.mxu0 0
    %4847 = vmatpush1.bf16.msra.mxu0 0
    %4848 = vmatprep.subr.bf16.mxu0 0
    %4849 = vmatpush1.bf16.msra.mxu0 0
    %4850 = vmatprep.subr.bf16.mxu0 0
    %4851 = vmatpush1.bf16.msra.mxu0 0
    %4852 = vmatprep.mubr.bf16.mxu0 0
    %4853 = vmatmul.mubr.bf16.gmra.mrb[0].mxu0 %v4396
    %v4854 = vpop.f32.mrb[0].mxu0
    %v4855 = vadd.f32 %v4806, %v4854
    %v4856 = vpop.f32.mrb[0].mxu0
    %v4857 = vpop.f32.mrb[0].mxu0
    %v4858 = vadd.f32 %v4806, %v4857
    %v4859 = vpop.f32.mrb[0].mxu0
    %4860 = vdwg.mxu0
    %s4861 = scalar_lea.vmem %s4, 464
    %v4862 = vld [vmem:[%s4861] sm:$0xf]
    %v4863 = vld [vmem:[%s4861 + $0x4] sm:$0xf]
    %v4864 = vld [vmem:[%s4861 + $0x8] sm:$0xf]
    %v4865 = vld [vmem:[%s4861 + $0xc] sm:$0xf]
    %s4866 = scalar_lea.vmem %s7, 29
    %v4867 = vld [vmem:[%s4866] sm:$0x1]
    %v4869 = vlaneseq
    %v4870 = vshrl.u32 %v4869, 7
    %v4871 = vsub.s32 0, %v4870
    %v4872 = vrot.slane %v4867, %v4871
    %v4878 = vunpack.c.l.b16 %v4862
    %v4879 = vunpack.c.l.b16 %v4863
    %v4880 = vunpack.c.l.b16 %v4864
    %v4881 = vunpack.c.l.b16 %v4865
    %v4882 = vpack.c.b16 %v4879, %v4878
    %v4883 = vpack.c.b16 %v4881, %v4880
    %4886 = vmatprep.subr.bf16.mxu0 0
    %4887 = vmatpush1.bf16.msra.mxu0 %v4882
    %4888 = vmatprep.subr.bf16.mxu0 0
    %4889 = vmatpush1.bf16.msra.mxu0 %v4883
    %4890 = vmatprep.subr.bf16.mxu0 0
    %4891 = vmatpush1.bf16.msra.mxu0 0
    %4892 = vmatprep.subr.bf16.mxu0 0
    %4893 = vmatpush1.bf16.msra.mxu0 0
    %4894 = vmatprep.subr.bf16.mxu0 0
    %4895 = vmatpush1.bf16.msra.mxu0 0
    %4896 = vmatprep.subr.bf16.mxu0 0
    %4897 = vmatpush1.bf16.msra.mxu0 0
    %4898 = vmatprep.subr.bf16.mxu0 0
    %4899 = vmatpush1.bf16.msra.mxu0 0
    %4900 = vmatprep.subr.bf16.mxu0 0
    %4901 = vmatpush1.bf16.msra.mxu0 0
    %4902 = vmatprep.subr.bf16.mxu0 0
    %4903 = vmatpush1.bf16.msra.mxu0 0
    %4904 = vmatprep.subr.bf16.mxu0 0
    %4905 = vmatpush1.bf16.msra.mxu0 0
    %4906 = vmatprep.subr.bf16.mxu0 0
    %4907 = vmatpush1.bf16.msra.mxu0 0
    %4908 = vmatprep.subr.bf16.mxu0 0
    %4909 = vmatpush1.bf16.msra.mxu0 0
    %4910 = vmatprep.subr.bf16.mxu0 0
    %4911 = vmatpush1.bf16.msra.mxu0 0
    %4912 = vmatprep.subr.bf16.mxu0 0
    %4913 = vmatpush1.bf16.msra.mxu0 0
    %4914 = vmatprep.subr.bf16.mxu0 0
    %4915 = vmatpush1.bf16.msra.mxu0 0
    %4916 = vmatprep.subr.bf16.mxu0 0
    %4917 = vmatpush1.bf16.msra.mxu0 0
    %4918 = vmatprep.mubr.bf16.mxu0 0
    %4919 = vmatmul.mubr.bf16.gmra.mrb[0].mxu0 %v4396
    %v4920 = vpop.f32.mrb[0].mxu0
    %v4921 = vadd.f32 %v4872, %v4920
    %v4922 = vpop.f32.mrb[0].mxu0
    %v4923 = vpop.f32.mrb[0].mxu0
    %v4924 = vadd.f32 %v4872, %v4923
    %v4925 = vpop.f32.mrb[0].mxu0
    %4926 = vdwg.mxu0
    %s4927 = scalar_lea.vmem %s4, 528
    %v4928 = vld [vmem:[%s4927] sm:$0xf]
    %v4929 = vld [vmem:[%s4927 + $0x4] sm:$0xf]
    %v4930 = vld [vmem:[%s4927 + $0x8] sm:$0xf]
    %v4931 = vld [vmem:[%s4927 + $0xc] sm:$0xf]
    %s4932 = scalar_lea.vmem %s7, 33
    %v4933 = vld [vmem:[%s4932] sm:$0x1]
    %v4935 = vlaneseq
    %v4936 = vshrl.u32 %v4935, 7
    %v4937 = vsub.s32 0, %v4936
    %v4938 = vrot.slane %v4933, %v4937
    %v4944 = vunpack.c.l.b16 %v4928
    %v4945 = vunpack.c.l.b16 %v4929
    %v4946 = vunpack.c.l.b16 %v4930
    %v4947 = vunpack.c.l.b16 %v4931
    %v4948 = vpack.c.b16 %v4945, %v4944
    %v4949 = vpack.c.b16 %v4947, %v4946
    %4952 = vmatprep.subr.bf16.mxu0 0
    %4953 = vmatpush1.bf16.msra.mxu0 %v4948
    %4954 = vmatprep.subr.bf16.mxu0 0
    %4955 = vmatpush1.bf16.msra.mxu0 %v4949
    %4956 = vmatprep.subr.bf16.mxu0 0
    %4957 = vmatpush1.bf16.msra.mxu0 0
    %4958 = vmatprep.subr.bf16.mxu0 0
    %4959 = vmatpush1.bf16.msra.mxu0 0
    %4960 = vmatprep.subr.bf16.mxu0 0
    %4961 = vmatpush1.bf16.msra.mxu0 0
    %4962 = vmatprep.subr.bf16.mxu0 0
    %4963 = vmatpush1.bf16.msra.mxu0 0
    %4964 = vmatprep.subr.bf16.mxu0 0
    %4965 = vmatpush1.bf16.msra.mxu0 0
    %4966 = vmatprep.subr.bf16.mxu0 0
    %4967 = vmatpush1.bf16.msra.mxu0 0
    %4968 = vmatprep.subr.bf16.mxu0 0
    %4969 = vmatpush1.bf16.msra.mxu0 0
    %4970 = vmatprep.subr.bf16.mxu0 0
    %4971 = vmatpush1.bf16.msra.mxu0 0
    %4972 = vmatprep.subr.bf16.mxu0 0
    %4973 = vmatpush1.bf16.msra.mxu0 0
    %4974 = vmatprep.subr.bf16.mxu0 0
    %4975 = vmatpush1.bf16.msra.mxu0 0
    %4976 = vmatprep.subr.bf16.mxu0 0
    %4977 = vmatpush1.bf16.msra.mxu0 0
    %4978 = vmatprep.subr.bf16.mxu0 0
    %4979 = vmatpush1.bf16.msra.mxu0 0
    %4980 = vmatprep.subr.bf16.mxu0 0
    %4981 = vmatpush1.bf16.msra.mxu0 0
    %4982 = vmatprep.subr.bf16.mxu0 0
    %4983 = vmatpush1.bf16.msra.mxu0 0
    %4984 = vmatprep.mubr.bf16.mxu0 0
    %4985 = vmatmul.mubr.bf16.gmra.mrb[0].mxu0 %v4396
    %v4986 = vpop.f32.mrb[0].mxu0
    %v4987 = vadd.f32 %v4938, %v4986
    %v4988 = vpop.f32.mrb[0].mxu0
    %v4989 = vpop.f32.mrb[0].mxu0
    %v4990 = vadd.f32 %v4938, %v4989
    %v4991 = vpop.f32.mrb[0].mxu0
    %4992 = vdwg.mxu0
    %v4993 = vpack.c.bf16 %v4855, %v4855
    %v4994 = vpack.c.bf16 %v4858, %v4858
    %v4995 = vpack.c.bf16 %v4921, %v4921
    %v4996 = vpack.c.bf16 %v4924, %v4924
    %v4997 = vpack.c.bf16 %v4987, %v4987
    %v4998 = vpack.c.bf16 %v4990, %v4990
    %v5000 = vsel %vm308, %v4993, 0
    %v5003 = vsel %vm308, %v4995, 0
    %5005 = vmatprep.subr.bf16.mxu0 0
    %5006 = vmatpush1.bf16.xpose.msra.mxu0 %v5003
    %5007 = vmatprep.subr.bf16.mxu0 0
    %5008 = vmatpush1.bf16.xpose.msra.mxu0 0
    %5009 = vmatprep.subr.bf16.mxu0 0
    %5010 = vmatpush1.bf16.xpose.msra.mxu0 0
    %5011 = vmatprep.subr.bf16.mxu0 0
    %5012 = vmatpush1.bf16.xpose.msra.mxu0 0
    %5013 = vmatprep.subr.bf16.mxu0 0
    %5014 = vmatpush1.bf16.xpose.msra.mxu0 0
    %5015 = vmatprep.subr.bf16.mxu0 0
    %5016 = vmatpush1.bf16.xpose.msra.mxu0 0
    %5017 = vmatprep.subr.bf16.mxu0 0
    %5018 = vmatpush1.bf16.xpose.msra.mxu0 0
    %5019 = vmatprep.subr.bf16.mxu0 0
    %5020 = vmatpush1.bf16.xpose.msra.mxu0 0
    %5021 = vmatprep.subr.bf16.mxu0 0
    %5022 = vmatpush1.bf16.xpose.msra.mxu0 0
    %5023 = vmatprep.subr.bf16.mxu0 0
    %5024 = vmatpush1.bf16.xpose.msra.mxu0 0
    %5025 = vmatprep.subr.bf16.mxu0 0
    %5026 = vmatpush1.bf16.xpose.msra.mxu0 0
    %5027 = vmatprep.subr.bf16.mxu0 0
    %5028 = vmatpush1.bf16.xpose.msra.mxu0 0
    %5029 = vmatprep.subr.bf16.mxu0 0
    %5030 = vmatpush1.bf16.xpose.msra.mxu0 0
    %5031 = vmatprep.subr.bf16.mxu0 0
    %5032 = vmatpush1.bf16.xpose.msra.mxu0 0
    %5033 = vmatprep.subr.bf16.mxu0 0
    %5034 = vmatpush1.bf16.xpose.msra.mxu0 0
    %5035 = vmatprep.subr.bf16.mxu0 0
    %5036 = vmatpush1.bf16.xpose.msra.mxu0 0
    %5037 = vmatprep.mubr.bf16.mxu0 0
    %5038 = vmatmul.mubr.bf16.gmra.mrb[0].mxu0 %v5000
    %v5039 = vpop.f32.mrb[0].mxu0
    %v5040 = vadd.f32 0.0, %v5039
    %v5041 = vpop.f32.mrb[0].mxu0
    %v5042 = vpop.f32.mrb[0].mxu0
    %v5043 = vpop.f32.mrb[0].mxu0
    %5044 = vdwg.mxu0
    %v5046 = vsel %vm308, %v4994, 0
    %v5049 = vsel %vm308, %v4996, 0
    %5051 = vmatprep.subr.bf16.mxu0 0
    %5052 = vmatpush1.bf16.xpose.msra.mxu0 %v5049
    %5053 = vmatprep.subr.bf16.mxu0 0
    %5054 = vmatpush1.bf16.xpose.msra.mxu0 0
    %5055 = vmatprep.subr.bf16.mxu0 0
    %5056 = vmatpush1.bf16.xpose.msra.mxu0 0
    %5057 = vmatprep.subr.bf16.mxu0 0
    %5058 = vmatpush1.bf16.xpose.msra.mxu0 0
    %5059 = vmatprep.subr.bf16.mxu0 0
    %5060 = vmatpush1.bf16.xpose.msra.mxu0 0
    %5061 = vmatprep.subr.bf16.mxu0 0
    %5062 = vmatpush1.bf16.xpose.msra.mxu0 0
    %5063 = vmatprep.subr.bf16.mxu0 0
    %5064 = vmatpush1.bf16.xpose.msra.mxu0 0
    %5065 = vmatprep.subr.bf16.mxu0 0
    %5066 = vmatpush1.bf16.xpose.msra.mxu0 0
    %5067 = vmatprep.subr.bf16.mxu0 0
    %5068 = vmatpush1.bf16.xpose.msra.mxu0 0
    %5069 = vmatprep.subr.bf16.mxu0 0
    %5070 = vmatpush1.bf16.xpose.msra.mxu0 0
    %5071 = vmatprep.subr.bf16.mxu0 0
    %5072 = vmatpush1.bf16.xpose.msra.mxu0 0
    %5073 = vmatprep.subr.bf16.mxu0 0
    %5074 = vmatpush1.bf16.xpose.msra.mxu0 0
    %5075 = vmatprep.subr.bf16.mxu0 0
    %5076 = vmatpush1.bf16.xpose.msra.mxu0 0
    %5077 = vmatprep.subr.bf16.mxu0 0
    %5078 = vmatpush1.bf16.xpose.msra.mxu0 0
    %5079 = vmatprep.subr.bf16.mxu0 0
    %5080 = vmatpush1.bf16.xpose.msra.mxu0 0
    %5081 = vmatprep.subr.bf16.mxu0 0
    %5082 = vmatpush1.bf16.xpose.msra.mxu0 0
    %5083 = vmatprep.mubr.bf16.mxu0 0
    %5084 = vmatmul.mubr.bf16.gmra.mrb[0].mxu0 %v5046
    %v5085 = vpop.f32.mrb[0].mxu0
    %v5086 = vadd.f32 0.0, %v5085
    %v5087 = vpop.f32.mrb[0].mxu0
    %v5088 = vpop.f32.mrb[0].mxu0
    %v5089 = vpop.f32.mrb[0].mxu0
    %5090 = vdwg.mxu0
    %v5091 = vmul.f32 %v5040, 0.35355338
    %v5092 = vmul.f32 %v5086, 0.35355338
    %v5093 = vsel %vm101, %v5091, -1e+09
    %v5094 = vsel %vm102, %v5092, -1e+09
    %v5095 = vsel %vm308, %v5093, -inf
    %5096 = vmax.xlane.f32.xlu0 %v5095
    %v5097 = vpop.xlane.xlu0 %5096
    %v5098 = vsel %vm308, %v5094, -inf
    %5099 = vmax.xlane.f32.xlu0 %v5098
    %v5100 = vpop.xlane.xlu0 %5099
    %v5101 = vsub.f32 %v5093, %v5097
    %v5102 = vsub.f32 %v5094, %v5100
    %v5103 = vmul.f32 %v5101, 1.442695
    %v5104 = vpow.pop %v5103
    %v5105 = vmul.f32 %v5102, 1.442695
    %v5106 = vpow.pop %v5105
    %v5107 = vsel %vm308, %v5104, 0.0
    %5108 = vadd.xlane.f32.xlu0 %v5107
    %v5109 = vpop.xlane.xlu0 %5108
    %v5110 = vsel %vm308, %v5106, 0.0
    %5111 = vadd.xlane.f32.xlu0 %v5110
    %v5112 = vpop.xlane.xlu0 %5111
    %v5113 = vrcp.pop %v5109
    %v5114 = vrcp.pop %v5112
    %v5115 = vmul.f32 %v5104, %v5113
    %v5116 = vmul.f32 %v5106, %v5114
    %v5117 = vpack.c.bf16 %v5115, %v5115
    %v5118 = vpack.c.bf16 %v5116, %v5116
    %v5120 = vsel %vm308, %v5117, 0
    %v5123 = vsel %vm432, %v4997, 0
    %5125 = vmatprep.subr.bf16.mxu0 0
    %5126 = vmatpush1.bf16.msra.mxu0 %v5123
    %5127 = vmatprep.subr.bf16.mxu0 0
    %5128 = vmatpush1.bf16.msra.mxu0 0
    %5129 = vmatprep.subr.bf16.mxu0 0
    %5130 = vmatpush1.bf16.msra.mxu0 0
    %5131 = vmatprep.subr.bf16.mxu0 0
    %5132 = vmatpush1.bf16.msra.mxu0 0
    %5133 = vmatprep.subr.bf16.mxu0 0
    %5134 = vmatpush1.bf16.msra.mxu0 0
    %5135 = vmatprep.subr.bf16.mxu0 0
    %5136 = vmatpush1.bf16.msra.mxu0 0
    %5137 = vmatprep.subr.bf16.mxu0 0
    %5138 = vmatpush1.bf16.msra.mxu0 0
    %5139 = vmatprep.subr.bf16.mxu0 0
    %5140 = vmatpush1.bf16.msra.mxu0 0
    %5141 = vmatprep.subr.bf16.mxu0 0
    %5142 = vmatpush1.bf16.msra.mxu0 0
    %5143 = vmatprep.subr.bf16.mxu0 0
    %5144 = vmatpush1.bf16.msra.mxu0 0
    %5145 = vmatprep.subr.bf16.mxu0 0
    %5146 = vmatpush1.bf16.msra.mxu0 0
    %5147 = vmatprep.subr.bf16.mxu0 0
    %5148 = vmatpush1.bf16.msra.mxu0 0
    %5149 = vmatprep.subr.bf16.mxu0 0
    %5150 = vmatpush1.bf16.msra.mxu0 0
    %5151 = vmatprep.subr.bf16.mxu0 0
    %5152 = vmatpush1.bf16.msra.mxu0 0
    %5153 = vmatprep.subr.bf16.mxu0 0
    %5154 = vmatpush1.bf16.msra.mxu0 0
    %5155 = vmatprep.subr.bf16.mxu0 0
    %5156 = vmatpush1.bf16.msra.mxu0 0
    %5157 = vmatprep.mubr.bf16.mxu0 0
    %5158 = vmatmul.mubr.bf16.gmra.mrb[0].mxu0 %v5120
    %v5159 = vpop.f32.mrb[0].mxu0
    %v5160 = vadd.f32 0.0, %v5159
    %v5161 = vpop.f32.mrb[0].mxu0
    %v5162 = vpop.f32.mrb[0].mxu0
    %v5163 = vpop.f32.mrb[0].mxu0
    %5164 = vdwg.mxu0
    %v5166 = vsel %vm308, %v5118, 0
    %v5169 = vsel %vm432, %v4998, 0
    %5171 = vmatprep.subr.bf16.mxu0 0
    %5172 = vmatpush1.bf16.msra.mxu0 %v5169
    %5173 = vmatprep.subr.bf16.mxu0 0
    %5174 = vmatpush1.bf16.msra.mxu0 0
    %5175 = vmatprep.subr.bf16.mxu0 0
    %5176 = vmatpush1.bf16.msra.mxu0 0
    %5177 = vmatprep.subr.bf16.mxu0 0
    %5178 = vmatpush1.bf16.msra.mxu0 0
    %5179 = vmatprep.subr.bf16.mxu0 0
    %5180 = vmatpush1.bf16.msra.mxu0 0
    %5181 = vmatprep.subr.bf16.mxu0 0
    %5182 = vmatpush1.bf16.msra.mxu0 0
    %5183 = vmatprep.subr.bf16.mxu0 0
    %5184 = vmatpush1.bf16.msra.mxu0 0
    %5185 = vmatprep.subr.bf16.mxu0 0
    %5186 = vmatpush1.bf16.msra.mxu0 0
    %5187 = vmatprep.subr.bf16.mxu0 0
    %5188 = vmatpush1.bf16.msra.mxu0 0
    %5189 = vmatprep.subr.bf16.mxu0 0
    %5190 = vmatpush1.bf16.msra.mxu0 0
    %5191 = vmatprep.subr.bf16.mxu0 0
    %5192 = vmatpush1.bf16.msra.mxu0 0
    %5193 = vmatprep.subr.bf16.mxu0 0
    %5194 = vmatpush1.bf16.msra.mxu0 0
    %5195 = vmatprep.subr.bf16.mxu0 0
    %5196 = vmatpush1.bf16.msra.mxu0 0
    %5197 = vmatprep.subr.bf16.mxu0 0
    %5198 = vmatpush1.bf16.msra.mxu0 0
    %5199 = vmatprep.subr.bf16.mxu0 0
    %5200 = vmatpush1.bf16.msra.mxu0 0
    %5201 = vmatprep.subr.bf16.mxu0 0
    %5202 = vmatpush1.bf16.msra.mxu0 0
    %5203 = vmatprep.mubr.bf16.mxu0 0
    %5204 = vmatmul.mubr.bf16.gmra.mrb[0].mxu0 %v5166
    %v5205 = vpop.f32.mrb[0].mxu0
    %v5206 = vadd.f32 0.0, %v5205
    %v5207 = vpop.f32.mrb[0].mxu0
    %v5208 = vpop.f32.mrb[0].mxu0
    %v5209 = vpop.f32.mrb[0].mxu0
    %5210 = vdwg.mxu0
    %v5211 = vpack.c.bf16 %v5206, %v5160
    %s5212 = scalar_lea.vmem %s4, 912
    %v5213 = vld [vmem:[%s5212] sm:$0xf]
    %v5214 = vld [vmem:[%s5212 + $0x4] sm:$0xf]
    %v5215 = vld [vmem:[%s5212 + $0x8] sm:$0xf]
    %v5216 = vld [vmem:[%s5212 + $0xc] sm:$0xf]
    %v5221 = vunpack.c.l.b16 %v5213
    %v5222 = vunpack.c.l.b16 %v5214
    %v5223 = vunpack.c.l.b16 %v5215
    %v5224 = vunpack.c.l.b16 %v5216
    %v5225 = vpack.c.b16 %v5222, %v5221
    %v5226 = vpack.c.b16 %v5224, %v5223
    %v5228 = vsel %vm308, %v5211, 0
    %v5231 = vsel %vm308, %v5225, 0
    %v5234 = vsel %vm308, %v5226, 0
    %5236 = vmatprep.subr.bf16.mxu0 0
    %5237 = vmatpush1.bf16.xpose.msra.mxu0 %v5231
    %5238 = vmatprep.subr.bf16.mxu0 0
    %5239 = vmatpush1.bf16.xpose.msra.mxu0 %v5234
    %5240 = vmatprep.subr.bf16.mxu0 0
    %5241 = vmatpush1.bf16.xpose.msra.mxu0 0
    %5242 = vmatprep.subr.bf16.mxu0 0
    %5243 = vmatpush1.bf16.xpose.msra.mxu0 0
    %5244 = vmatprep.subr.bf16.mxu0 0
    %5245 = vmatpush1.bf16.xpose.msra.mxu0 0
    %5246 = vmatprep.subr.bf16.mxu0 0
    %5247 = vmatpush1.bf16.xpose.msra.mxu0 0
    %5248 = vmatprep.subr.bf16.mxu0 0
    %5249 = vmatpush1.bf16.xpose.msra.mxu0 0
    %5250 = vmatprep.subr.bf16.mxu0 0
    %5251 = vmatpush1.bf16.xpose.msra.mxu0 0
    %5252 = vmatprep.subr.bf16.mxu0 0
    %5253 = vmatpush1.bf16.xpose.msra.mxu0 0
    %5254 = vmatprep.subr.bf16.mxu0 0
    %5255 = vmatpush1.bf16.xpose.msra.mxu0 0
    %5256 = vmatprep.subr.bf16.mxu0 0
    %5257 = vmatpush1.bf16.xpose.msra.mxu0 0
    %5258 = vmatprep.subr.bf16.mxu0 0
    %5259 = vmatpush1.bf16.xpose.msra.mxu0 0
    %5260 = vmatprep.subr.bf16.mxu0 0
    %5261 = vmatpush1.bf16.xpose.msra.mxu0 0
    %5262 = vmatprep.subr.bf16.mxu0 0
    %5263 = vmatpush1.bf16.xpose.msra.mxu0 0
    %5264 = vmatprep.subr.bf16.mxu0 0
    %5265 = vmatpush1.bf16.xpose.msra.mxu0 0
    %5266 = vmatprep.subr.bf16.mxu0 0
    %5267 = vmatpush1.bf16.xpose.msra.mxu0 0
    %5268 = vmatprep.mubr.bf16.mxu0 0
    %5269 = vmatmul.mubr.bf16.gmra.mrb[0].mxu0 %v5228
    %v5270 = vpop.f32.mrb[0].mxu0
    %v5271 = vadd.f32 0.0, %v5270
    %v5272 = vpop.f32.mrb[0].mxu0
    %v5273 = vpop.f32.mrb[0].mxu0
    %v5274 = vadd.f32 0.0, %v5273
    %v5275 = vpop.f32.mrb[0].mxu0
    %5276 = vdwg.mxu0
    %v5281 = vunpack.c.l.b16 %v4791
    %v5282 = vunpack.c.l.b16 %v4792
    %v5283 = vunpack.c.l.b16 %v4793
    %v5284 = vunpack.c.l.b16 %v4794
    %v5285 = vpack.c.b16 %v5282, %v5281
    %v5286 = vpack.c.b16 %v5284, %v5283
    %v5288 = vsel %vm308, %v4789, 0
    %v5291 = vsel %vm308, %v5285, 0
    %v5294 = vsel %vm308, %v5286, 0
    %5296 = vmatprep.subr.bf16.mxu0 0
    %5297 = vmatpush1.bf16.xpose.msra.mxu0 %v5291
    %5298 = vmatprep.subr.bf16.mxu0 0
    %5299 = vmatpush1.bf16.xpose.msra.mxu0 %v5294
    %5300 = vmatprep.subr.bf16.mxu0 0
    %5301 = vmatpush1.bf16.xpose.msra.mxu0 0
    %5302 = vmatprep.subr.bf16.mxu0 0
    %5303 = vmatpush1.bf16.xpose.msra.mxu0 0
    %5304 = vmatprep.subr.bf16.mxu0 0
    %5305 = vmatpush1.bf16.xpose.msra.mxu0 0
    %5306 = vmatprep.subr.bf16.mxu0 0
    %5307 = vmatpush1.bf16.xpose.msra.mxu0 0
    %5308 = vmatprep.subr.bf16.mxu0 0
    %5309 = vmatpush1.bf16.xpose.msra.mxu0 0
    %5310 = vmatprep.subr.bf16.mxu0 0
    %5311 = vmatpush1.bf16.xpose.msra.mxu0 0
    %5312 = vmatprep.subr.bf16.mxu0 0
    %5313 = vmatpush1.bf16.xpose.msra.mxu0 0
    %5314 = vmatprep.subr.bf16.mxu0 0
    %5315 = vmatpush1.bf16.xpose.msra.mxu0 0
    %5316 = vmatprep.subr.bf16.mxu0 0
    %5317 = vmatpush1.bf16.xpose.msra.mxu0 0
    %5318 = vmatprep.subr.bf16.mxu0 0
    %5319 = vmatpush1.bf16.xpose.msra.mxu0 0
    %5320 = vmatprep.subr.bf16.mxu0 0
    %5321 = vmatpush1.bf16.xpose.msra.mxu0 0
    %5322 = vmatprep.subr.bf16.mxu0 0
    %5323 = vmatpush1.bf16.xpose.msra.mxu0 0
    %5324 = vmatprep.subr.bf16.mxu0 0
    %5325 = vmatpush1.bf16.xpose.msra.mxu0 0
    %5326 = vmatprep.subr.bf16.mxu0 0
    %5327 = vmatpush1.bf16.xpose.msra.mxu0 0
    %5328 = vmatprep.mubr.bf16.mxu0 0
    %5329 = vmatmul.mubr.bf16.gmra.mrb[0].mxu0 %v5288
    %v5330 = vpop.f32.mrb[0].mxu0
    %v5331 = vadd.f32 %v5271, %v5330
    %v5332 = vpop.f32.mrb[0].mxu0
    %v5333 = vpop.f32.mrb[0].mxu0
    %v5334 = vadd.f32 %v5274, %v5333
    %v5335 = vpop.f32.mrb[0].mxu0
    %5336 = vdwg.mxu0
    %s5337 = scalar_lea.vmem %s4, 416
    %v5338 = vld [vmem:[%s5337] sm:$0xf]
    %v5339 = vld [vmem:[%s5337 + $0x4] sm:$0xf]
    %v5340 = vld [vmem:[%s5337 + $0x8] sm:$0xf]
    %v5341 = vld [vmem:[%s5337 + $0xc] sm:$0xf]
    %s5342 = scalar_lea.vmem %s7, 26
    %v5343 = vld [vmem:[%s5342] sm:$0x1]
    %v5345 = vlaneseq
    %v5346 = vshrl.u32 %v5345, 7
    %v5347 = vsub.s32 0, %v5346
    %v5348 = vrot.slane %v5343, %v5347
    %v5354 = vunpack.c.l.b16 %v5338
    %v5355 = vunpack.c.l.b16 %v5339
    %v5356 = vunpack.c.l.b16 %v5340
    %v5357 = vunpack.c.l.b16 %v5341
    %v5358 = vpack.c.b16 %v5355, %v5354
    %v5359 = vpack.c.b16 %v5357, %v5356
    %5362 = vmatprep.subr.bf16.mxu0 0
    %5363 = vmatpush1.bf16.msra.mxu0 %v5358
    %5364 = vmatprep.subr.bf16.mxu0 0
    %5365 = vmatpush1.bf16.msra.mxu0 %v5359
    %5366 = vmatprep.subr.bf16.mxu0 0
    %5367 = vmatpush1.bf16.msra.mxu0 0
    %5368 = vmatprep.subr.bf16.mxu0 0
    %5369 = vmatpush1.bf16.msra.mxu0 0
    %5370 = vmatprep.subr.bf16.mxu0 0
    %5371 = vmatpush1.bf16.msra.mxu0 0
    %5372 = vmatprep.subr.bf16.mxu0 0
    %5373 = vmatpush1.bf16.msra.mxu0 0
    %5374 = vmatprep.subr.bf16.mxu0 0
    %5375 = vmatpush1.bf16.msra.mxu0 0
    %5376 = vmatprep.subr.bf16.mxu0 0
    %5377 = vmatpush1.bf16.msra.mxu0 0
    %5378 = vmatprep.subr.bf16.mxu0 0
    %5379 = vmatpush1.bf16.msra.mxu0 0
    %5380 = vmatprep.subr.bf16.mxu0 0
    %5381 = vmatpush1.bf16.msra.mxu0 0
    %5382 = vmatprep.subr.bf16.mxu0 0
    %5383 = vmatpush1.bf16.msra.mxu0 0
    %5384 = vmatprep.subr.bf16.mxu0 0
    %5385 = vmatpush1.bf16.msra.mxu0 0
    %5386 = vmatprep.subr.bf16.mxu0 0
    %5387 = vmatpush1.bf16.msra.mxu0 0
    %5388 = vmatprep.subr.bf16.mxu0 0
    %5389 = vmatpush1.bf16.msra.mxu0 0
    %5390 = vmatprep.subr.bf16.mxu0 0
    %5391 = vmatpush1.bf16.msra.mxu0 0
    %5392 = vmatprep.subr.bf16.mxu0 0
    %5393 = vmatpush1.bf16.msra.mxu0 0
    %5394 = vmatprep.mubr.bf16.mxu0 0
    %5395 = vmatmul.mubr.bf16.gmra.mrb[0].mxu0 %v4396
    %v5396 = vpop.f32.mrb[0].mxu0
    %v5397 = vadd.f32 %v5348, %v5396
    %v5398 = vpop.f32.mrb[0].mxu0
    %v5399 = vpop.f32.mrb[0].mxu0
    %v5400 = vadd.f32 %v5348, %v5399
    %v5401 = vpop.f32.mrb[0].mxu0
    %5402 = vdwg.mxu0
    %s5403 = scalar_lea.vmem %s4, 480
    %v5404 = vld [vmem:[%s5403] sm:$0xf]
    %v5405 = vld [vmem:[%s5403 + $0x4] sm:$0xf]
    %v5406 = vld [vmem:[%s5403 + $0x8] sm:$0xf]
    %v5407 = vld [vmem:[%s5403 + $0xc] sm:$0xf]
    %s5408 = scalar_lea.vmem %s7, 30
    %v5409 = vld [vmem:[%s5408] sm:$0x1]
    %v5411 = vlaneseq
    %v5412 = vshrl.u32 %v5411, 7
    %v5413 = vsub.s32 0, %v5412
    %v5414 = vrot.slane %v5409, %v5413
    %v5420 = vunpack.c.l.b16 %v5404
    %v5421 = vunpack.c.l.b16 %v5405
    %v5422 = vunpack.c.l.b16 %v5406
    %v5423 = vunpack.c.l.b16 %v5407
    %v5424 = vpack.c.b16 %v5421, %v5420
    %v5425 = vpack.c.b16 %v5423, %v5422
    %5428 = vmatprep.subr.bf16.mxu0 0
    %5429 = vmatpush1.bf16.msra.mxu0 %v5424
    %5430 = vmatprep.subr.bf16.mxu0 0
    %5431 = vmatpush1.bf16.msra.mxu0 %v5425
    %5432 = vmatprep.subr.bf16.mxu0 0
    %5433 = vmatpush1.bf16.msra.mxu0 0
    %5434 = vmatprep.subr.bf16.mxu0 0
    %5435 = vmatpush1.bf16.msra.mxu0 0
    %5436 = vmatprep.subr.bf16.mxu0 0
    %5437 = vmatpush1.bf16.msra.mxu0 0
    %5438 = vmatprep.subr.bf16.mxu0 0
    %5439 = vmatpush1.bf16.msra.mxu0 0
    %5440 = vmatprep.subr.bf16.mxu0 0
    %5441 = vmatpush1.bf16.msra.mxu0 0
    %5442 = vmatprep.subr.bf16.mxu0 0
    %5443 = vmatpush1.bf16.msra.mxu0 0
    %5444 = vmatprep.subr.bf16.mxu0 0
    %5445 = vmatpush1.bf16.msra.mxu0 0
    %5446 = vmatprep.subr.bf16.mxu0 0
    %5447 = vmatpush1.bf16.msra.mxu0 0
    %5448 = vmatprep.subr.bf16.mxu0 0
    %5449 = vmatpush1.bf16.msra.mxu0 0
    %5450 = vmatprep.subr.bf16.mxu0 0
    %5451 = vmatpush1.bf16.msra.mxu0 0
    %5452 = vmatprep.subr.bf16.mxu0 0
    %5453 = vmatpush1.bf16.msra.mxu0 0
    %5454 = vmatprep.subr.bf16.mxu0 0
    %5455 = vmatpush1.bf16.msra.mxu0 0
    %5456 = vmatprep.subr.bf16.mxu0 0
    %5457 = vmatpush1.bf16.msra.mxu0 0
    %5458 = vmatprep.subr.bf16.mxu0 0
    %5459 = vmatpush1.bf16.msra.mxu0 0
    %5460 = vmatprep.mubr.bf16.mxu0 0
    %5461 = vmatmul.mubr.bf16.gmra.mrb[0].mxu0 %v4396
    %v5462 = vpop.f32.mrb[0].mxu0
    %v5463 = vadd.f32 %v5414, %v5462
    %v5464 = vpop.f32.mrb[0].mxu0
    %v5465 = vpop.f32.mrb[0].mxu0
    %v5466 = vadd.f32 %v5414, %v5465
    %v5467 = vpop.f32.mrb[0].mxu0
    %5468 = vdwg.mxu0
    %s5469 = scalar_lea.vmem %s4, 544
    %v5470 = vld [vmem:[%s5469] sm:$0xf]
    %v5471 = vld [vmem:[%s5469 + $0x4] sm:$0xf]
    %v5472 = vld [vmem:[%s5469 + $0x8] sm:$0xf]
    %v5473 = vld [vmem:[%s5469 + $0xc] sm:$0xf]
    %s5474 = scalar_lea.vmem %s7, 34
    %v5475 = vld [vmem:[%s5474] sm:$0x1]
    %v5477 = vlaneseq
    %v5478 = vshrl.u32 %v5477, 7
    %v5479 = vsub.s32 0, %v5478
    %v5480 = vrot.slane %v5475, %v5479
    %v5486 = vunpack.c.l.b16 %v5470
    %v5487 = vunpack.c.l.b16 %v5471
    %v5488 = vunpack.c.l.b16 %v5472
    %v5489 = vunpack.c.l.b16 %v5473
    %v5490 = vpack.c.b16 %v5487, %v5486
    %v5491 = vpack.c.b16 %v5489, %v5488
    %5494 = vmatprep.subr.bf16.mxu0 0
    %5495 = vmatpush1.bf16.msra.mxu0 %v5490
    %5496 = vmatprep.subr.bf16.mxu0 0
    %5497 = vmatpush1.bf16.msra.mxu0 %v5491
    %5498 = vmatprep.subr.bf16.mxu0 0
    %5499 = vmatpush1.bf16.msra.mxu0 0
    %5500 = vmatprep.subr.bf16.mxu0 0
    %5501 = vmatpush1.bf16.msra.mxu0 0
    %5502 = vmatprep.subr.bf16.mxu0 0
    %5503 = vmatpush1.bf16.msra.mxu0 0
    %5504 = vmatprep.subr.bf16.mxu0 0
    %5505 = vmatpush1.bf16.msra.mxu0 0
    %5506 = vmatprep.subr.bf16.mxu0 0
    %5507 = vmatpush1.bf16.msra.mxu0 0
    %5508 = vmatprep.subr.bf16.mxu0 0
    %5509 = vmatpush1.bf16.msra.mxu0 0
    %5510 = vmatprep.subr.bf16.mxu0 0
    %5511 = vmatpush1.bf16.msra.mxu0 0
    %5512 = vmatprep.subr.bf16.mxu0 0
    %5513 = vmatpush1.bf16.msra.mxu0 0
    %5514 = vmatprep.subr.bf16.mxu0 0
    %5515 = vmatpush1.bf16.msra.mxu0 0
    %5516 = vmatprep.subr.bf16.mxu0 0
    %5517 = vmatpush1.bf16.msra.mxu0 0
    %5518 = vmatprep.subr.bf16.mxu0 0
    %5519 = vmatpush1.bf16.msra.mxu0 0
    %5520 = vmatprep.subr.bf16.mxu0 0
    %5521 = vmatpush1.bf16.msra.mxu0 0
    %5522 = vmatprep.subr.bf16.mxu0 0
    %5523 = vmatpush1.bf16.msra.mxu0 0
    %5524 = vmatprep.subr.bf16.mxu0 0
    %5525 = vmatpush1.bf16.msra.mxu0 0
    %5526 = vmatprep.mubr.bf16.mxu0 0
    %5527 = vmatmul.mubr.bf16.gmra.mrb[0].mxu0 %v4396
    %v5528 = vpop.f32.mrb[0].mxu0
    %v5529 = vadd.f32 %v5480, %v5528
    %v5530 = vpop.f32.mrb[0].mxu0
    %v5531 = vpop.f32.mrb[0].mxu0
    %v5532 = vadd.f32 %v5480, %v5531
    %v5533 = vpop.f32.mrb[0].mxu0
    %5534 = vdwg.mxu0
    %v5535 = vpack.c.bf16 %v5397, %v5397
    %v5536 = vpack.c.bf16 %v5400, %v5400
    %v5537 = vpack.c.bf16 %v5463, %v5463
    %v5538 = vpack.c.bf16 %v5466, %v5466
    %v5539 = vpack.c.bf16 %v5529, %v5529
    %v5540 = vpack.c.bf16 %v5532, %v5532
    %v5542 = vsel %vm308, %v5535, 0
    %v5545 = vsel %vm308, %v5537, 0
    %5547 = vmatprep.subr.bf16.mxu0 0
    %5548 = vmatpush1.bf16.xpose.msra.mxu0 %v5545
    %5549 = vmatprep.subr.bf16.mxu0 0
    %5550 = vmatpush1.bf16.xpose.msra.mxu0 0
    %5551 = vmatprep.subr.bf16.mxu0 0
    %5552 = vmatpush1.bf16.xpose.msra.mxu0 0
    %5553 = vmatprep.subr.bf16.mxu0 0
    %5554 = vmatpush1.bf16.xpose.msra.mxu0 0
    %5555 = vmatprep.subr.bf16.mxu0 0
    %5556 = vmatpush1.bf16.xpose.msra.mxu0 0
    %5557 = vmatprep.subr.bf16.mxu0 0
    %5558 = vmatpush1.bf16.xpose.msra.mxu0 0
    %5559 = vmatprep.subr.bf16.mxu0 0
    %5560 = vmatpush1.bf16.xpose.msra.mxu0 0
    %5561 = vmatprep.subr.bf16.mxu0 0
    %5562 = vmatpush1.bf16.xpose.msra.mxu0 0
    %5563 = vmatprep.subr.bf16.mxu0 0
    %5564 = vmatpush1.bf16.xpose.msra.mxu0 0
    %5565 = vmatprep.subr.bf16.mxu0 0
    %5566 = vmatpush1.bf16.xpose.msra.mxu0 0
    %5567 = vmatprep.subr.bf16.mxu0 0
    %5568 = vmatpush1.bf16.xpose.msra.mxu0 0
    %5569 = vmatprep.subr.bf16.mxu0 0
    %5570 = vmatpush1.bf16.xpose.msra.mxu0 0
    %5571 = vmatprep.subr.bf16.mxu0 0
    %5572 = vmatpush1.bf16.xpose.msra.mxu0 0
    %5573 = vmatprep.subr.bf16.mxu0 0
    %5574 = vmatpush1.bf16.xpose.msra.mxu0 0
    %5575 = vmatprep.subr.bf16.mxu0 0
    %5576 = vmatpush1.bf16.xpose.msra.mxu0 0
    %5577 = vmatprep.subr.bf16.mxu0 0
    %5578 = vmatpush1.bf16.xpose.msra.mxu0 0
    %5579 = vmatprep.mubr.bf16.mxu0 0
    %5580 = vmatmul.mubr.bf16.gmra.mrb[0].mxu0 %v5542
    %v5581 = vpop.f32.mrb[0].mxu0
    %v5582 = vadd.f32 0.0, %v5581
    %v5583 = vpop.f32.mrb[0].mxu0
    %v5584 = vpop.f32.mrb[0].mxu0
    %v5585 = vpop.f32.mrb[0].mxu0
    %5586 = vdwg.mxu0
    %v5588 = vsel %vm308, %v5536, 0
    %v5591 = vsel %vm308, %v5538, 0
    %5593 = vmatprep.subr.bf16.mxu0 0
    %5594 = vmatpush1.bf16.xpose.msra.mxu0 %v5591
    %5595 = vmatprep.subr.bf16.mxu0 0
    %5596 = vmatpush1.bf16.xpose.msra.mxu0 0
    %5597 = vmatprep.subr.bf16.mxu0 0
    %5598 = vmatpush1.bf16.xpose.msra.mxu0 0
    %5599 = vmatprep.subr.bf16.mxu0 0
    %5600 = vmatpush1.bf16.xpose.msra.mxu0 0
    %5601 = vmatprep.subr.bf16.mxu0 0
    %5602 = vmatpush1.bf16.xpose.msra.mxu0 0
    %5603 = vmatprep.subr.bf16.mxu0 0
    %5604 = vmatpush1.bf16.xpose.msra.mxu0 0
    %5605 = vmatprep.subr.bf16.mxu0 0
    %5606 = vmatpush1.bf16.xpose.msra.mxu0 0
    %5607 = vmatprep.subr.bf16.mxu0 0
    %5608 = vmatpush1.bf16.xpose.msra.mxu0 0
    %5609 = vmatprep.subr.bf16.mxu0 0
    %5610 = vmatpush1.bf16.xpose.msra.mxu0 0
    %5611 = vmatprep.subr.bf16.mxu0 0
    %5612 = vmatpush1.bf16.xpose.msra.mxu0 0
    %5613 = vmatprep.subr.bf16.mxu0 0
    %5614 = vmatpush1.bf16.xpose.msra.mxu0 0
    %5615 = vmatprep.subr.bf16.mxu0 0
    %5616 = vmatpush1.bf16.xpose.msra.mxu0 0
    %5617 = vmatprep.subr.bf16.mxu0 0
    %5618 = vmatpush1.bf16.xpose.msra.mxu0 0
    %5619 = vmatprep.subr.bf16.mxu0 0
    %5620 = vmatpush1.bf16.xpose.msra.mxu0 0
    %5621 = vmatprep.subr.bf16.mxu0 0
    %5622 = vmatpush1.bf16.xpose.msra.mxu0 0
    %5623 = vmatprep.subr.bf16.mxu0 0
    %5624 = vmatpush1.bf16.xpose.msra.mxu0 0
    %5625 = vmatprep.mubr.bf16.mxu0 0
    %5626 = vmatmul.mubr.bf16.gmra.mrb[0].mxu0 %v5588
    %v5627 = vpop.f32.mrb[0].mxu0
    %v5628 = vadd.f32 0.0, %v5627
    %v5629 = vpop.f32.mrb[0].mxu0
    %v5630 = vpop.f32.mrb[0].mxu0
    %v5631 = vpop.f32.mrb[0].mxu0
    %5632 = vdwg.mxu0
    %v5633 = vmul.f32 %v5582, 0.35355338
    %v5634 = vmul.f32 %v5628, 0.35355338
    %v5635 = vsel %vm101, %v5633, -1e+09
    %v5636 = vsel %vm102, %v5634, -1e+09
    %v5637 = vsel %vm308, %v5635, -inf
    %5638 = vmax.xlane.f32.xlu0 %v5637
    %v5639 = vpop.xlane.xlu0 %5638
    %v5640 = vsel %vm308, %v5636, -inf
    %5641 = vmax.xlane.f32.xlu0 %v5640
    %v5642 = vpop.xlane.xlu0 %5641
    %v5643 = vsub.f32 %v5635, %v5639
    %v5644 = vsub.f32 %v5636, %v5642
    %v5645 = vmul.f32 %v5643, 1.442695
    %v5646 = vpow.pop %v5645
    %v5647 = vmul.f32 %v5644, 1.442695
    %v5648 = vpow.pop %v5647
    %v5649 = vsel %vm308, %v5646, 0.0
    %5650 = vadd.xlane.f32.xlu0 %v5649
    %v5651 = vpop.xlane.xlu0 %5650
    %v5652 = vsel %vm308, %v5648, 0.0
    %5653 = vadd.xlane.f32.xlu0 %v5652
    %v5654 = vpop.xlane.xlu0 %5653
    %v5655 = vrcp.pop %v5651
    %v5656 = vrcp.pop %v5654
    %v5657 = vmul.f32 %v5646, %v5655
    %v5658 = vmul.f32 %v5648, %v5656
    %v5659 = vpack.c.bf16 %v5657, %v5657
    %v5660 = vpack.c.bf16 %v5658, %v5658
    %v5662 = vsel %vm308, %v5659, 0
    %v5665 = vsel %vm432, %v5539, 0
    %5667 = vmatprep.subr.bf16.mxu0 0
    %5668 = vmatpush1.bf16.msra.mxu0 %v5665
    %5669 = vmatprep.subr.bf16.mxu0 0
    %5670 = vmatpush1.bf16.msra.mxu0 0
    %5671 = vmatprep.subr.bf16.mxu0 0
    %5672 = vmatpush1.bf16.msra.mxu0 0
    %5673 = vmatprep.subr.bf16.mxu0 0
    %5674 = vmatpush1.bf16.msra.mxu0 0
    %5675 = vmatprep.subr.bf16.mxu0 0
    %5676 = vmatpush1.bf16.msra.mxu0 0
    %5677 = vmatprep.subr.bf16.mxu0 0
    %5678 = vmatpush1.bf16.msra.mxu0 0
    %5679 = vmatprep.subr.bf16.mxu0 0
    %5680 = vmatpush1.bf16.msra.mxu0 0
    %5681 = vmatprep.subr.bf16.mxu0 0
    %5682 = vmatpush1.bf16.msra.mxu0 0
    %5683 = vmatprep.subr.bf16.mxu0 0
    %5684 = vmatpush1.bf16.msra.mxu0 0
    %5685 = vmatprep.subr.bf16.mxu0 0
    %5686 = vmatpush1.bf16.msra.mxu0 0
    %5687 = vmatprep.subr.bf16.mxu0 0
    %5688 = vmatpush1.bf16.msra.mxu0 0
    %5689 = vmatprep.subr.bf16.mxu0 0
    %5690 = vmatpush1.bf16.msra.mxu0 0
    %5691 = vmatprep.subr.bf16.mxu0 0
    %5692 = vmatpush1.bf16.msra.mxu0 0
    %5693 = vmatprep.subr.bf16.mxu0 0
    %5694 = vmatpush1.bf16.msra.mxu0 0
    %5695 = vmatprep.subr.bf16.mxu0 0
    %5696 = vmatpush1.bf16.msra.mxu0 0
    %5697 = vmatprep.subr.bf16.mxu0 0
    %5698 = vmatpush1.bf16.msra.mxu0 0
    %5699 = vmatprep.mubr.bf16.mxu0 0
    %5700 = vmatmul.mubr.bf16.gmra.mrb[0].mxu0 %v5662
    %v5701 = vpop.f32.mrb[0].mxu0
    %v5702 = vadd.f32 0.0, %v5701
    %v5703 = vpop.f32.mrb[0].mxu0
    %v5704 = vpop.f32.mrb[0].mxu0
    %v5705 = vpop.f32.mrb[0].mxu0
    %5706 = vdwg.mxu0
    %v5708 = vsel %vm308, %v5660, 0
    %v5711 = vsel %vm432, %v5540, 0
    %5713 = vmatprep.subr.bf16.mxu0 0
    %5714 = vmatpush1.bf16.msra.mxu0 %v5711
    %5715 = vmatprep.subr.bf16.mxu0 0
    %5716 = vmatpush1.bf16.msra.mxu0 0
    %5717 = vmatprep.subr.bf16.mxu0 0
    %5718 = vmatpush1.bf16.msra.mxu0 0
    %5719 = vmatprep.subr.bf16.mxu0 0
    %5720 = vmatpush1.bf16.msra.mxu0 0
    %5721 = vmatprep.subr.bf16.mxu0 0
    %5722 = vmatpush1.bf16.msra.mxu0 0
    %5723 = vmatprep.subr.bf16.mxu0 0
    %5724 = vmatpush1.bf16.msra.mxu0 0
    %5725 = vmatprep.subr.bf16.mxu0 0
    %5726 = vmatpush1.bf16.msra.mxu0 0
    %5727 = vmatprep.subr.bf16.mxu0 0
    %5728 = vmatpush1.bf16.msra.mxu0 0
    %5729 = vmatprep.subr.bf16.mxu0 0
    %5730 = vmatpush1.bf16.msra.mxu0 0
    %5731 = vmatprep.subr.bf16.mxu0 0
    %5732 = vmatpush1.bf16.msra.mxu0 0
    %5733 = vmatprep.subr.bf16.mxu0 0
    %5734 = vmatpush1.bf16.msra.mxu0 0
    %5735 = vmatprep.subr.bf16.mxu0 0
    %5736 = vmatpush1.bf16.msra.mxu0 0
    %5737 = vmatprep.subr.bf16.mxu0 0
    %5738 = vmatpush1.bf16.msra.mxu0 0
    %5739 = vmatprep.subr.bf16.mxu0 0
    %5740 = vmatpush1.bf16.msra.mxu0 0
    %5741 = vmatprep.subr.bf16.mxu0 0
    %5742 = vmatpush1.bf16.msra.mxu0 0
    %5743 = vmatprep.subr.bf16.mxu0 0
    %5744 = vmatpush1.bf16.msra.mxu0 0
    %5745 = vmatprep.mubr.bf16.mxu0 0
    %5746 = vmatmul.mubr.bf16.gmra.mrb[0].mxu0 %v5708
    %v5747 = vpop.f32.mrb[0].mxu0
    %v5748 = vadd.f32 0.0, %v5747
    %v5749 = vpop.f32.mrb[0].mxu0
    %v5750 = vpop.f32.mrb[0].mxu0
    %v5751 = vpop.f32.mrb[0].mxu0
    %5752 = vdwg.mxu0
    %v5753 = vpack.c.bf16 %v5748, %v5702
    %s5754 = scalar_lea.vmem %s4, 928
    %v5755 = vld [vmem:[%s5754] sm:$0xf]
    %v5756 = vld [vmem:[%s5754 + $0x4] sm:$0xf]
    %v5757 = vld [vmem:[%s5754 + $0x8] sm:$0xf]
    %v5758 = vld [vmem:[%s5754 + $0xc] sm:$0xf]
    %v5763 = vunpack.c.l.b16 %v5755
    %v5764 = vunpack.c.l.b16 %v5756
    %v5765 = vunpack.c.l.b16 %v5757
    %v5766 = vunpack.c.l.b16 %v5758
    %v5767 = vpack.c.b16 %v5764, %v5763
    %v5768 = vpack.c.b16 %v5766, %v5765
    %v5770 = vsel %vm308, %v5753, 0
    %v5773 = vsel %vm308, %v5767, 0
    %v5776 = vsel %vm308, %v5768, 0
    %5778 = vmatprep.subr.bf16.mxu0 0
    %5779 = vmatpush1.bf16.xpose.msra.mxu0 %v5773
    %5780 = vmatprep.subr.bf16.mxu0 0
    %5781 = vmatpush1.bf16.xpose.msra.mxu0 %v5776
    %5782 = vmatprep.subr.bf16.mxu0 0
    %5783 = vmatpush1.bf16.xpose.msra.mxu0 0
    %5784 = vmatprep.subr.bf16.mxu0 0
    %5785 = vmatpush1.bf16.xpose.msra.mxu0 0
    %5786 = vmatprep.subr.bf16.mxu0 0
    %5787 = vmatpush1.bf16.xpose.msra.mxu0 0
    %5788 = vmatprep.subr.bf16.mxu0 0
    %5789 = vmatpush1.bf16.xpose.msra.mxu0 0
    %5790 = vmatprep.subr.bf16.mxu0 0
    %5791 = vmatpush1.bf16.xpose.msra.mxu0 0
    %5792 = vmatprep.subr.bf16.mxu0 0
    %5793 = vmatpush1.bf16.xpose.msra.mxu0 0
    %5794 = vmatprep.subr.bf16.mxu0 0
    %5795 = vmatpush1.bf16.xpose.msra.mxu0 0
    %5796 = vmatprep.subr.bf16.mxu0 0
    %5797 = vmatpush1.bf16.xpose.msra.mxu0 0
    %5798 = vmatprep.subr.bf16.mxu0 0
    %5799 = vmatpush1.bf16.xpose.msra.mxu0 0
    %5800 = vmatprep.subr.bf16.mxu0 0
    %5801 = vmatpush1.bf16.xpose.msra.mxu0 0
    %5802 = vmatprep.subr.bf16.mxu0 0
    %5803 = vmatpush1.bf16.xpose.msra.mxu0 0
    %5804 = vmatprep.subr.bf16.mxu0 0
    %5805 = vmatpush1.bf16.xpose.msra.mxu0 0
    %5806 = vmatprep.subr.bf16.mxu0 0
    %5807 = vmatpush1.bf16.xpose.msra.mxu0 0
    %5808 = vmatprep.subr.bf16.mxu0 0
    %5809 = vmatpush1.bf16.xpose.msra.mxu0 0
    %5810 = vmatprep.mubr.bf16.mxu0 0
    %5811 = vmatmul.mubr.bf16.gmra.mrb[0].mxu0 %v5770
    %v5812 = vpop.f32.mrb[0].mxu0
    %v5813 = vadd.f32 0.0, %v5812
    %v5814 = vpop.f32.mrb[0].mxu0
    %v5815 = vpop.f32.mrb[0].mxu0
    %v5816 = vadd.f32 0.0, %v5815
    %v5817 = vpop.f32.mrb[0].mxu0
    %5818 = vdwg.mxu0
    %v5819 = vadd.f32 %v5331, %v5813
    %v5820 = vadd.f32 %v5334, %v5816
    %s5821 = scalar_lea.vmem %s4, 432
    %v5822 = vld [vmem:[%s5821] sm:$0xf]
    %v5823 = vld [vmem:[%s5821 + $0x4] sm:$0xf]
    %v5824 = vld [vmem:[%s5821 + $0x8] sm:$0xf]
    %v5825 = vld [vmem:[%s5821 + $0xc] sm:$0xf]
    %s5826 = scalar_lea.vmem %s7, 27
    %v5827 = vld [vmem:[%s5826] sm:$0x1]
    %v5829 = vlaneseq
    %v5830 = vshrl.u32 %v5829, 7
    %v5831 = vsub.s32 0, %v5830
    %v5832 = vrot.slane %v5827, %v5831
    %v5838 = vunpack.c.l.b16 %v5822
    %v5839 = vunpack.c.l.b16 %v5823
    %v5840 = vunpack.c.l.b16 %v5824
    %v5841 = vunpack.c.l.b16 %v5825
    %v5842 = vpack.c.b16 %v5839, %v5838
    %v5843 = vpack.c.b16 %v5841, %v5840
    %5846 = vmatprep.subr.bf16.mxu0 0
    %5847 = vmatpush1.bf16.msra.mxu0 %v5842
    %5848 = vmatprep.subr.bf16.mxu0 0
    %5849 = vmatpush1.bf16.msra.mxu0 %v5843
    %5850 = vmatprep.subr.bf16.mxu0 0
    %5851 = vmatpush1.bf16.msra.mxu0 0
    %5852 = vmatprep.subr.bf16.mxu0 0
    %5853 = vmatpush1.bf16.msra.mxu0 0
    %5854 = vmatprep.subr.bf16.mxu0 0
    %5855 = vmatpush1.bf16.msra.mxu0 0
    %5856 = vmatprep.subr.bf16.mxu0 0
    %5857 = vmatpush1.bf16.msra.mxu0 0
    %5858 = vmatprep.subr.bf16.mxu0 0
    %5859 = vmatpush1.bf16.msra.mxu0 0
    %5860 = vmatprep.subr.bf16.mxu0 0
    %5861 = vmatpush1.bf16.msra.mxu0 0
    %5862 = vmatprep.subr.bf16.mxu0 0
    %5863 = vmatpush1.bf16.msra.mxu0 0
    %5864 = vmatprep.subr.bf16.mxu0 0
    %5865 = vmatpush1.bf16.msra.mxu0 0
    %5866 = vmatprep.subr.bf16.mxu0 0
    %5867 = vmatpush1.bf16.msra.mxu0 0
    %5868 = vmatprep.subr.bf16.mxu0 0
    %5869 = vmatpush1.bf16.msra.mxu0 0
    %5870 = vmatprep.subr.bf16.mxu0 0
    %5871 = vmatpush1.bf16.msra.mxu0 0
    %5872 = vmatprep.subr.bf16.mxu0 0
    %5873 = vmatpush1.bf16.msra.mxu0 0
    %5874 = vmatprep.subr.bf16.mxu0 0
    %5875 = vmatpush1.bf16.msra.mxu0 0
    %5876 = vmatprep.subr.bf16.mxu0 0
    %5877 = vmatpush1.bf16.msra.mxu0 0
    %5878 = vmatprep.mubr.bf16.mxu0 0
    %5879 = vmatmul.mubr.bf16.gmra.mrb[0].mxu0 %v4396
    %v5880 = vpop.f32.mrb[0].mxu0
    %v5881 = vadd.f32 %v5832, %v5880
    %v5882 = vpop.f32.mrb[0].mxu0
    %v5883 = vpop.f32.mrb[0].mxu0
    %v5884 = vadd.f32 %v5832, %v5883
    %v5885 = vpop.f32.mrb[0].mxu0
    %5886 = vdwg.mxu0
    %s5887 = scalar_lea.vmem %s4, 496
    %v5888 = vld [vmem:[%s5887] sm:$0xf]
    %v5889 = vld [vmem:[%s5887 + $0x4] sm:$0xf]
    %v5890 = vld [vmem:[%s5887 + $0x8] sm:$0xf]
    %v5891 = vld [vmem:[%s5887 + $0xc] sm:$0xf]
    %s5892 = scalar_lea.vmem %s7, 31
    %v5893 = vld [vmem:[%s5892] sm:$0x1]
    %v5895 = vlaneseq
    %v5896 = vshrl.u32 %v5895, 7
    %v5897 = vsub.s32 0, %v5896
    %v5898 = vrot.slane %v5893, %v5897
    %v5904 = vunpack.c.l.b16 %v5888
    %v5905 = vunpack.c.l.b16 %v5889
    %v5906 = vunpack.c.l.b16 %v5890
    %v5907 = vunpack.c.l.b16 %v5891
    %v5908 = vpack.c.b16 %v5905, %v5904
    %v5909 = vpack.c.b16 %v5907, %v5906
    %5912 = vmatprep.subr.bf16.mxu0 0
    %5913 = vmatpush1.bf16.msra.mxu0 %v5908
    %5914 = vmatprep.subr.bf16.mxu0 0
    %5915 = vmatpush1.bf16.msra.mxu0 %v5909
    %5916 = vmatprep.subr.bf16.mxu0 0
    %5917 = vmatpush1.bf16.msra.mxu0 0
    %5918 = vmatprep.subr.bf16.mxu0 0
    %5919 = vmatpush1.bf16.msra.mxu0 0
    %5920 = vmatprep.subr.bf16.mxu0 0
    %5921 = vmatpush1.bf16.msra.mxu0 0
    %5922 = vmatprep.subr.bf16.mxu0 0
    %5923 = vmatpush1.bf16.msra.mxu0 0
    %5924 = vmatprep.subr.bf16.mxu0 0
    %5925 = vmatpush1.bf16.msra.mxu0 0
    %5926 = vmatprep.subr.bf16.mxu0 0
    %5927 = vmatpush1.bf16.msra.mxu0 0
    %5928 = vmatprep.subr.bf16.mxu0 0
    %5929 = vmatpush1.bf16.msra.mxu0 0
    %5930 = vmatprep.subr.bf16.mxu0 0
    %5931 = vmatpush1.bf16.msra.mxu0 0
    %5932 = vmatprep.subr.bf16.mxu0 0
    %5933 = vmatpush1.bf16.msra.mxu0 0
    %5934 = vmatprep.subr.bf16.mxu0 0
    %5935 = vmatpush1.bf16.msra.mxu0 0
    %5936 = vmatprep.subr.bf16.mxu0 0
    %5937 = vmatpush1.bf16.msra.mxu0 0
    %5938 = vmatprep.subr.bf16.mxu0 0
    %5939 = vmatpush1.bf16.msra.mxu0 0
    %5940 = vmatprep.subr.bf16.mxu0 0
    %5941 = vmatpush1.bf16.msra.mxu0 0
    %5942 = vmatprep.subr.bf16.mxu0 0
    %5943 = vmatpush1.bf16.msra.mxu0 0
    %5944 = vmatprep.mubr.bf16.mxu0 0
    %5945 = vmatmul.mubr.bf16.gmra.mrb[0].mxu0 %v4396
    %v5946 = vpop.f32.mrb[0].mxu0
    %v5947 = vadd.f32 %v5898, %v5946
    %v5948 = vpop.f32.mrb[0].mxu0
    %v5949 = vpop.f32.mrb[0].mxu0
    %v5950 = vadd.f32 %v5898, %v5949
    %v5951 = vpop.f32.mrb[0].mxu0
    %5952 = vdwg.mxu0
    %s5953 = scalar_lea.vmem %s4, 560
    %v5954 = vld [vmem:[%s5953] sm:$0xf]
    %v5955 = vld [vmem:[%s5953 + $0x4] sm:$0xf]
    %v5956 = vld [vmem:[%s5953 + $0x8] sm:$0xf]
    %v5957 = vld [vmem:[%s5953 + $0xc] sm:$0xf]
    %s5958 = scalar_lea.vmem %s7, 35
    %v5959 = vld [vmem:[%s5958] sm:$0x1]
    %v5961 = vlaneseq
    %v5962 = vshrl.u32 %v5961, 7
    %v5963 = vsub.s32 0, %v5962
    %v5964 = vrot.slane %v5959, %v5963
    %v5970 = vunpack.c.l.b16 %v5954
    %v5971 = vunpack.c.l.b16 %v5955
    %v5972 = vunpack.c.l.b16 %v5956
    %v5973 = vunpack.c.l.b16 %v5957
    %v5974 = vpack.c.b16 %v5971, %v5970
    %v5975 = vpack.c.b16 %v5973, %v5972
    %5978 = vmatprep.subr.bf16.mxu0 0
    %5979 = vmatpush1.bf16.msra.mxu0 %v5974
    %5980 = vmatprep.subr.bf16.mxu0 0
    %5981 = vmatpush1.bf16.msra.mxu0 %v5975
    %5982 = vmatprep.subr.bf16.mxu0 0
    %5983 = vmatpush1.bf16.msra.mxu0 0
    %5984 = vmatprep.subr.bf16.mxu0 0
    %5985 = vmatpush1.bf16.msra.mxu0 0
    %5986 = vmatprep.subr.bf16.mxu0 0
    %5987 = vmatpush1.bf16.msra.mxu0 0
    %5988 = vmatprep.subr.bf16.mxu0 0
    %5989 = vmatpush1.bf16.msra.mxu0 0
    %5990 = vmatprep.subr.bf16.mxu0 0
    %5991 = vmatpush1.bf16.msra.mxu0 0
    %5992 = vmatprep.subr.bf16.mxu0 0
    %5993 = vmatpush1.bf16.msra.mxu0 0
    %5994 = vmatprep.subr.bf16.mxu0 0
    %5995 = vmatpush1.bf16.msra.mxu0 0
    %5996 = vmatprep.subr.bf16.mxu0 0
    %5997 = vmatpush1.bf16.msra.mxu0 0
    %5998 = vmatprep.subr.bf16.mxu0 0
    %5999 = vmatpush1.bf16.msra.mxu0 0
    %6000 = vmatprep.subr.bf16.mxu0 0
    %6001 = vmatpush1.bf16.msra.mxu0 0
    %6002 = vmatprep.subr.bf16.mxu0 0
    %6003 = vmatpush1.bf16.msra.mxu0 0
    %6004 = vmatprep.subr.bf16.mxu0 0
    %6005 = vmatpush1.bf16.msra.mxu0 0
    %6006 = vmatprep.subr.bf16.mxu0 0
    %6007 = vmatpush1.bf16.msra.mxu0 0
    %6008 = vmatprep.subr.bf16.mxu0 0
    %6009 = vmatpush1.bf16.msra.mxu0 0
    %6010 = vmatprep.mubr.bf16.mxu0 0
    %6011 = vmatmul.mubr.bf16.gmra.mrb[0].mxu0 %v4396
    %v6012 = vpop.f32.mrb[0].mxu0
    %v6013 = vadd.f32 %v5964, %v6012
    %v6014 = vpop.f32.mrb[0].mxu0
    %v6015 = vpop.f32.mrb[0].mxu0
    %v6016 = vadd.f32 %v5964, %v6015
    %v6017 = vpop.f32.mrb[0].mxu0
    %6018 = vdwg.mxu0
    %v6019 = vpack.c.bf16 %v5881, %v5881
    %v6020 = vpack.c.bf16 %v5884, %v5884
    %v6021 = vpack.c.bf16 %v5947, %v5947
    %v6022 = vpack.c.bf16 %v5950, %v5950
    %v6023 = vpack.c.bf16 %v6013, %v6013
    %v6024 = vpack.c.bf16 %v6016, %v6016
    %v6026 = vsel %vm308, %v6019, 0
    %v6029 = vsel %vm308, %v6021, 0
    %6031 = vmatprep.subr.bf16.mxu0 0
    %6032 = vmatpush1.bf16.xpose.msra.mxu0 %v6029
    %6033 = vmatprep.subr.bf16.mxu0 0
    %6034 = vmatpush1.bf16.xpose.msra.mxu0 0
    %6035 = vmatprep.subr.bf16.mxu0 0
    %6036 = vmatpush1.bf16.xpose.msra.mxu0 0
    %6037 = vmatprep.subr.bf16.mxu0 0
    %6038 = vmatpush1.bf16.xpose.msra.mxu0 0
    %6039 = vmatprep.subr.bf16.mxu0 0
    %6040 = vmatpush1.bf16.xpose.msra.mxu0 0
    %6041 = vmatprep.subr.bf16.mxu0 0
    %6042 = vmatpush1.bf16.xpose.msra.mxu0 0
    %6043 = vmatprep.subr.bf16.mxu0 0
    %6044 = vmatpush1.bf16.xpose.msra.mxu0 0
    %6045 = vmatprep.subr.bf16.mxu0 0
    %6046 = vmatpush1.bf16.xpose.msra.mxu0 0
    %6047 = vmatprep.subr.bf16.mxu0 0
    %6048 = vmatpush1.bf16.xpose.msra.mxu0 0
    %6049 = vmatprep.subr.bf16.mxu0 0
    %6050 = vmatpush1.bf16.xpose.msra.mxu0 0
    %6051 = vmatprep.subr.bf16.mxu0 0
    %6052 = vmatpush1.bf16.xpose.msra.mxu0 0
    %6053 = vmatprep.subr.bf16.mxu0 0
    %6054 = vmatpush1.bf16.xpose.msra.mxu0 0
    %6055 = vmatprep.subr.bf16.mxu0 0
    %6056 = vmatpush1.bf16.xpose.msra.mxu0 0
    %6057 = vmatprep.subr.bf16.mxu0 0
    %6058 = vmatpush1.bf16.xpose.msra.mxu0 0
    %6059 = vmatprep.subr.bf16.mxu0 0
    %6060 = vmatpush1.bf16.xpose.msra.mxu0 0
    %6061 = vmatprep.subr.bf16.mxu0 0
    %6062 = vmatpush1.bf16.xpose.msra.mxu0 0
    %6063 = vmatprep.mubr.bf16.mxu0 0
    %6064 = vmatmul.mubr.bf16.gmra.mrb[0].mxu0 %v6026
    %v6065 = vpop.f32.mrb[0].mxu0
    %v6066 = vadd.f32 0.0, %v6065
    %v6067 = vpop.f32.mrb[0].mxu0
    %v6068 = vpop.f32.mrb[0].mxu0
    %v6069 = vpop.f32.mrb[0].mxu0
    %6070 = vdwg.mxu0
    %v6072 = vsel %vm308, %v6020, 0
    %v6075 = vsel %vm308, %v6022, 0
    %6077 = vmatprep.subr.bf16.mxu0 0
    %6078 = vmatpush1.bf16.xpose.msra.mxu0 %v6075
    %6079 = vmatprep.subr.bf16.mxu0 0
    %6080 = vmatpush1.bf16.xpose.msra.mxu0 0
    %6081 = vmatprep.subr.bf16.mxu0 0
    %6082 = vmatpush1.bf16.xpose.msra.mxu0 0
    %6083 = vmatprep.subr.bf16.mxu0 0
    %6084 = vmatpush1.bf16.xpose.msra.mxu0 0
    %6085 = vmatprep.subr.bf16.mxu0 0
    %6086 = vmatpush1.bf16.xpose.msra.mxu0 0
    %6087 = vmatprep.subr.bf16.mxu0 0
    %6088 = vmatpush1.bf16.xpose.msra.mxu0 0
    %6089 = vmatprep.subr.bf16.mxu0 0
    %6090 = vmatpush1.bf16.xpose.msra.mxu0 0
    %6091 = vmatprep.subr.bf16.mxu0 0
    %6092 = vmatpush1.bf16.xpose.msra.mxu0 0
    %6093 = vmatprep.subr.bf16.mxu0 0
    %6094 = vmatpush1.bf16.xpose.msra.mxu0 0
    %6095 = vmatprep.subr.bf16.mxu0 0
    %6096 = vmatpush1.bf16.xpose.msra.mxu0 0
    %6097 = vmatprep.subr.bf16.mxu0 0
    %6098 = vmatpush1.bf16.xpose.msra.mxu0 0
    %6099 = vmatprep.subr.bf16.mxu0 0
    %6100 = vmatpush1.bf16.xpose.msra.mxu0 0
    %6101 = vmatprep.subr.bf16.mxu0 0
    %6102 = vmatpush1.bf16.xpose.msra.mxu0 0
    %6103 = vmatprep.subr.bf16.mxu0 0
    %6104 = vmatpush1.bf16.xpose.msra.mxu0 0
    %6105 = vmatprep.subr.bf16.mxu0 0
    %6106 = vmatpush1.bf16.xpose.msra.mxu0 0
    %6107 = vmatprep.subr.bf16.mxu0 0
    %6108 = vmatpush1.bf16.xpose.msra.mxu0 0
    %6109 = vmatprep.mubr.bf16.mxu0 0
    %6110 = vmatmul.mubr.bf16.gmra.mrb[0].mxu0 %v6072
    %v6111 = vpop.f32.mrb[0].mxu0
    %v6112 = vadd.f32 0.0, %v6111
    %v6113 = vpop.f32.mrb[0].mxu0
    %v6114 = vpop.f32.mrb[0].mxu0
    %v6115 = vpop.f32.mrb[0].mxu0
    %6116 = vdwg.mxu0
    %v6117 = vmul.f32 %v6066, 0.35355338
    %v6118 = vmul.f32 %v6112, 0.35355338
    %v6119 = vsel %vm101, %v6117, -1e+09
    %v6120 = vsel %vm102, %v6118, -1e+09
    %v6121 = vsel %vm308, %v6119, -inf
    %6122 = vmax.xlane.f32.xlu0 %v6121
    %v6123 = vpop.xlane.xlu0 %6122
    %v6124 = vsel %vm308, %v6120, -inf
    %6125 = vmax.xlane.f32.xlu0 %v6124
    %v6126 = vpop.xlane.xlu0 %6125
    %v6127 = vsub.f32 %v6119, %v6123
    %v6128 = vsub.f32 %v6120, %v6126
    %v6129 = vmul.f32 %v6127, 1.442695
    %v6130 = vpow.pop %v6129
    %v6131 = vmul.f32 %v6128, 1.442695
    %v6132 = vpow.pop %v6131
    %v6133 = vsel %vm308, %v6130, 0.0
    %6134 = vadd.xlane.f32.xlu0 %v6133
    %v6135 = vpop.xlane.xlu0 %6134
    %v6136 = vsel %vm308, %v6132, 0.0
    %6137 = vadd.xlane.f32.xlu0 %v6136
    %v6138 = vpop.xlane.xlu0 %6137
    %v6139 = vrcp.pop %v6135
    %v6140 = vrcp.pop %v6138
    %v6141 = vmul.f32 %v6130, %v6139
    %v6142 = vmul.f32 %v6132, %v6140
    %v6143 = vpack.c.bf16 %v6141, %v6141
    %v6144 = vpack.c.bf16 %v6142, %v6142
    %v6146 = vsel %vm308, %v6143, 0
    %v6149 = vsel %vm432, %v6023, 0
    %6151 = vmatprep.subr.bf16.mxu0 0
    %6152 = vmatpush1.bf16.msra.mxu0 %v6149
    %6153 = vmatprep.subr.bf16.mxu0 0
    %6154 = vmatpush1.bf16.msra.mxu0 0
    %6155 = vmatprep.subr.bf16.mxu0 0
    %6156 = vmatpush1.bf16.msra.mxu0 0
    %6157 = vmatprep.subr.bf16.mxu0 0
    %6158 = vmatpush1.bf16.msra.mxu0 0
    %6159 = vmatprep.subr.bf16.mxu0 0
    %6160 = vmatpush1.bf16.msra.mxu0 0
    %6161 = vmatprep.subr.bf16.mxu0 0
    %6162 = vmatpush1.bf16.msra.mxu0 0
    %6163 = vmatprep.subr.bf16.mxu0 0
    %6164 = vmatpush1.bf16.msra.mxu0 0
    %6165 = vmatprep.subr.bf16.mxu0 0
    %6166 = vmatpush1.bf16.msra.mxu0 0
    %6167 = vmatprep.subr.bf16.mxu0 0
    %6168 = vmatpush1.bf16.msra.mxu0 0
    %6169 = vmatprep.subr.bf16.mxu0 0
    %6170 = vmatpush1.bf16.msra.mxu0 0
    %6171 = vmatprep.subr.bf16.mxu0 0
    %6172 = vmatpush1.bf16.msra.mxu0 0
    %6173 = vmatprep.subr.bf16.mxu0 0
    %6174 = vmatpush1.bf16.msra.mxu0 0
    %6175 = vmatprep.subr.bf16.mxu0 0
    %6176 = vmatpush1.bf16.msra.mxu0 0
    %6177 = vmatprep.subr.bf16.mxu0 0
    %6178 = vmatpush1.bf16.msra.mxu0 0
    %6179 = vmatprep.subr.bf16.mxu0 0
    %6180 = vmatpush1.bf16.msra.mxu0 0
    %6181 = vmatprep.subr.bf16.mxu0 0
    %6182 = vmatpush1.bf16.msra.mxu0 0
    %6183 = vmatprep.mubr.bf16.mxu0 0
    %6184 = vmatmul.mubr.bf16.gmra.mrb[0].mxu0 %v6146
    %v6185 = vpop.f32.mrb[0].mxu0
    %v6186 = vadd.f32 0.0, %v6185
    %v6187 = vpop.f32.mrb[0].mxu0
    %v6188 = vpop.f32.mrb[0].mxu0
    %v6189 = vpop.f32.mrb[0].mxu0
    %6190 = vdwg.mxu0
    %v6192 = vsel %vm308, %v6144, 0
    %v6195 = vsel %vm432, %v6024, 0
    %6197 = vmatprep.subr.bf16.mxu0 0
    %6198 = vmatpush1.bf16.msra.mxu0 %v6195
    %6199 = vmatprep.subr.bf16.mxu0 0
    %6200 = vmatpush1.bf16.msra.mxu0 0
    %6201 = vmatprep.subr.bf16.mxu0 0
    %6202 = vmatpush1.bf16.msra.mxu0 0
    %6203 = vmatprep.subr.bf16.mxu0 0
    %6204 = vmatpush1.bf16.msra.mxu0 0
    %6205 = vmatprep.subr.bf16.mxu0 0
    %6206 = vmatpush1.bf16.msra.mxu0 0
    %6207 = vmatprep.subr.bf16.mxu0 0
    %6208 = vmatpush1.bf16.msra.mxu0 0
    %6209 = vmatprep.subr.bf16.mxu0 0
    %6210 = vmatpush1.bf16.msra.mxu0 0
    %6211 = vmatprep.subr.bf16.mxu0 0
    %6212 = vmatpush1.bf16.msra.mxu0 0
    %6213 = vmatprep.subr.bf16.mxu0 0
    %6214 = vmatpush1.bf16.msra.mxu0 0
    %6215 = vmatprep.subr.bf16.mxu0 0
    %6216 = vmatpush1.bf16.msra.mxu0 0
    %6217 = vmatprep.subr.bf16.mxu0 0
    %6218 = vmatpush1.bf16.msra.mxu0 0
    %6219 = vmatprep.subr.bf16.mxu0 0
    %6220 = vmatpush1.bf16.msra.mxu0 0
    %6221 = vmatprep.subr.bf16.mxu0 0
    %6222 = vmatpush1.bf16.msra.mxu0 0
    %6223 = vmatprep.subr.bf16.mxu0 0
    %6224 = vmatpush1.bf16.msra.mxu0 0
    %6225 = vmatprep.subr.bf16.mxu0 0
    %6226 = vmatpush1.bf16.msra.mxu0 0
    %6227 = vmatprep.subr.bf16.mxu0 0
    %6228 = vmatpush1.bf16.msra.mxu0 0
    %6229 = vmatprep.mubr.bf16.mxu0 0
    %6230 = vmatmul.mubr.bf16.gmra.mrb[0].mxu0 %v6192
    %v6231 = vpop.f32.mrb[0].mxu0
    %v6232 = vadd.f32 0.0, %v6231
    %v6233 = vpop.f32.mrb[0].mxu0
    %v6234 = vpop.f32.mrb[0].mxu0
    %v6235 = vpop.f32.mrb[0].mxu0
    %6236 = vdwg.mxu0
    %v6237 = vpack.c.bf16 %v6232, %v6186
    %s6238 = scalar_lea.vmem %s4, 944
    %v6239 = vld [vmem:[%s6238] sm:$0xf]
    %v6240 = vld [vmem:[%s6238 + $0x4] sm:$0xf]
    %v6241 = vld [vmem:[%s6238 + $0x8] sm:$0xf]
    %v6242 = vld [vmem:[%s6238 + $0xc] sm:$0xf]
    %v6247 = vunpack.c.l.b16 %v6239
    %v6248 = vunpack.c.l.b16 %v6240
    %v6249 = vunpack.c.l.b16 %v6241
    %v6250 = vunpack.c.l.b16 %v6242
    %v6251 = vpack.c.b16 %v6248, %v6247
    %v6252 = vpack.c.b16 %v6250, %v6249
    %v6254 = vsel %vm308, %v6237, 0
    %v6257 = vsel %vm308, %v6251, 0
    %v6260 = vsel %vm308, %v6252, 0
    %6262 = vmatprep.subr.bf16.mxu0 0
    %6263 = vmatpush1.bf16.xpose.msra.mxu0 %v6257
    %6264 = vmatprep.subr.bf16.mxu0 0
    %6265 = vmatpush1.bf16.xpose.msra.mxu0 %v6260
    %6266 = vmatprep.subr.bf16.mxu0 0
    %6267 = vmatpush1.bf16.xpose.msra.mxu0 0
    %6268 = vmatprep.subr.bf16.mxu0 0
    %6269 = vmatpush1.bf16.xpose.msra.mxu0 0
    %6270 = vmatprep.subr.bf16.mxu0 0
    %6271 = vmatpush1.bf16.xpose.msra.mxu0 0
    %6272 = vmatprep.subr.bf16.mxu0 0
    %6273 = vmatpush1.bf16.xpose.msra.mxu0 0
    %6274 = vmatprep.subr.bf16.mxu0 0
    %6275 = vmatpush1.bf16.xpose.msra.mxu0 0
    %6276 = vmatprep.subr.bf16.mxu0 0
    %6277 = vmatpush1.bf16.xpose.msra.mxu0 0
    %6278 = vmatprep.subr.bf16.mxu0 0
    %6279 = vmatpush1.bf16.xpose.msra.mxu0 0
    %6280 = vmatprep.subr.bf16.mxu0 0
    %6281 = vmatpush1.bf16.xpose.msra.mxu0 0
    %6282 = vmatprep.subr.bf16.mxu0 0
    %6283 = vmatpush1.bf16.xpose.msra.mxu0 0
    %6284 = vmatprep.subr.bf16.mxu0 0
    %6285 = vmatpush1.bf16.xpose.msra.mxu0 0
    %6286 = vmatprep.subr.bf16.mxu0 0
    %6287 = vmatpush1.bf16.xpose.msra.mxu0 0
    %6288 = vmatprep.subr.bf16.mxu0 0
    %6289 = vmatpush1.bf16.xpose.msra.mxu0 0
    %6290 = vmatprep.subr.bf16.mxu0 0
    %6291 = vmatpush1.bf16.xpose.msra.mxu0 0
    %6292 = vmatprep.subr.bf16.mxu0 0
    %6293 = vmatpush1.bf16.xpose.msra.mxu0 0
    %6294 = vmatprep.mubr.bf16.mxu0 0
    %6295 = vmatmul.mubr.bf16.gmra.mrb[0].mxu0 %v6254
    %v6296 = vpop.f32.mrb[0].mxu0
    %v6297 = vadd.f32 0.0, %v6296
    %v6298 = vpop.f32.mrb[0].mxu0
    %v6299 = vpop.f32.mrb[0].mxu0
    %v6300 = vadd.f32 0.0, %v6299
    %v6301 = vpop.f32.mrb[0].mxu0
    %6302 = vdwg.mxu0
    %v6303 = vadd.f32 %v5819, %v6297
    %v6304 = vadd.f32 %v5820, %v6300
    %s6305 = scalar_lea.vmem %s9, 15
    %v6306 = vld [vmem:[%s6305] sm:$0x1]
    %v6308 = vlaneseq
    %v6309 = vshrl.u32 %v6308, 7
    %v6310 = vsub.s32 0, %v6309
    %v6311 = vrot.slane %v6306, %v6310
    %v6313 = vadd.f32 %v6303, %v6311
    %v6314 = vadd.f32 %v6304, %v6311
    %v6315 = vadd.f32 %v4317, %v6313
    %v6316 = vadd.f32 %v4318, %v6314
    %v6317 = vsel %vm49, %v6315, 0.0
    %6318 = vadd.xlane.f32.xlu0 %v6317
    %v6319 = vpop.xlane.xlu0 %6318
    %v6320 = vsel %vm49, %v6316, 0.0
    %6321 = vadd.xlane.f32.xlu0 %v6320
    %v6322 = vpop.xlane.xlu0 %6321
    %v6323 = vmul.f32 %v6319, %v56
    %v6324 = vmul.f32 %v6322, %v56
    %v6325 = vmul.f32 %v6315, %v6315
    %v6326 = vmul.f32 %v6316, %v6316
    %v6327 = vsel %vm49, %v6325, 0.0
    %6328 = vadd.xlane.f32.xlu0 %v6327
    %v6329 = vpop.xlane.xlu0 %6328
    %v6330 = vsel %vm49, %v6326, 0.0
    %6331 = vadd.xlane.f32.xlu0 %v6330
    %v6332 = vpop.xlane.xlu0 %6331
    %v6333 = vmul.f32 %v6329, %v56
    %v6334 = vmul.f32 %v6332, %v56
    %v6335 = vmul.f32 %v6323, %v6323
    %v6336 = vmul.f32 %v6324, %v6324
    %v6337 = vsub.f32 %v6333, %v6335
    %v6338 = vsub.f32 %v6334, %v6336
    %v6339 = vsub.f32 %v6315, %v6323
    %v6340 = vsub.f32 %v6316, %v6324
    %v6341 = vadd.f32 %v6337, 1e-06
    %v6342 = vadd.f32 %v6338, 1e-06
    %v6343 = vrsqrt.pop %v6341
    %v6344 = vrsqrt.pop %v6342
    %v6345 = vmul.f32 %v6339, %v6343
    %v6346 = vmul.f32 %v6340, %v6344
    %s6347 = scalar_lea.vmem %s9, 11
    %v6348 = vld [vmem:[%s6347] sm:$0x1]
    %v6350 = vlaneseq
    %v6351 = vshrl.u32 %v6350, 7
    %v6352 = vsub.s32 0, %v6351
    %v6353 = vrot.slane %v6348, %v6352
    %v6355 = vmul.f32 %v6345, %v6353
    %v6356 = vmul.f32 %v6346, %v6353
    %s6357 = scalar_lea.vmem %s9, 12
    %v6358 = vld [vmem:[%s6357] sm:$0x1]
    %v6360 = vlaneseq
    %v6361 = vshrl.u32 %v6360, 7
    %v6362 = vsub.s32 0, %v6361
    %v6363 = vrot.slane %v6358, %v6362
    %v6365 = vadd.f32 %v6355, %v6363
    %v6366 = vadd.f32 %v6356, %v6363
    %v6367 = vpack.c.bf16 %v6366, %v6365
    %s6368 = scalar_lea.vmem %s4, 576
    %v6369 = vld [vmem:[%s6368] sm:$0xf]
    %v6370 = vld [vmem:[%s6368 + $0x4] sm:$0xf]
    %v6371 = vld [vmem:[%s6368 + $0x8] sm:$0xf]
    %v6372 = vld [vmem:[%s6368 + $0xc] sm:$0xf]
    %s6373 = scalar_lea.vmem %s7, 36
    %v6374 = vld [vmem:[%s6373] sm:$0x1]
    %v6376 = vlaneseq
    %v6377 = vshrl.u32 %v6376, 7
    %v6378 = vsub.s32 0, %v6377
    %v6379 = vrot.slane %v6374, %v6378
    %v6385 = vunpack.c.l.b16 %v6369
    %v6386 = vunpack.c.l.b16 %v6370
    %v6387 = vunpack.c.l.b16 %v6371
    %v6388 = vunpack.c.l.b16 %v6372
    %v6389 = vpack.c.b16 %v6386, %v6385
    %v6390 = vpack.c.b16 %v6388, %v6387
    %v6394 = vsel %vm49, %v6367, 0
    %6396 = vmatprep.subr.bf16.mxu0 0
    %6397 = vmatpush1.bf16.msra.mxu0 %v6389
    %6398 = vmatprep.subr.bf16.mxu0 0
    %6399 = vmatpush1.bf16.msra.mxu0 %v6390
    %6400 = vmatprep.subr.bf16.mxu0 0
    %6401 = vmatpush1.bf16.msra.mxu0 0
    %6402 = vmatprep.subr.bf16.mxu0 0
    %6403 = vmatpush1.bf16.msra.mxu0 0
    %6404 = vmatprep.subr.bf16.mxu0 0
    %6405 = vmatpush1.bf16.msra.mxu0 0
    %6406 = vmatprep.subr.bf16.mxu0 0
    %6407 = vmatpush1.bf16.msra.mxu0 0
    %6408 = vmatprep.subr.bf16.mxu0 0
    %6409 = vmatpush1.bf16.msra.mxu0 0
    %6410 = vmatprep.subr.bf16.mxu0 0
    %6411 = vmatpush1.bf16.msra.mxu0 0
    %6412 = vmatprep.subr.bf16.mxu0 0
    %6413 = vmatpush1.bf16.msra.mxu0 0
    %6414 = vmatprep.subr.bf16.mxu0 0
    %6415 = vmatpush1.bf16.msra.mxu0 0
    %6416 = vmatprep.subr.bf16.mxu0 0
    %6417 = vmatpush1.bf16.msra.mxu0 0
    %6418 = vmatprep.subr.bf16.mxu0 0
    %6419 = vmatpush1.bf16.msra.mxu0 0
    %6420 = vmatprep.subr.bf16.mxu0 0
    %6421 = vmatpush1.bf16.msra.mxu0 0
    %6422 = vmatprep.subr.bf16.mxu0 0
    %6423 = vmatpush1.bf16.msra.mxu0 0
    %6424 = vmatprep.subr.bf16.mxu0 0
    %6425 = vmatpush1.bf16.msra.mxu0 0
    %6426 = vmatprep.subr.bf16.mxu0 0
    %6427 = vmatpush1.bf16.msra.mxu0 0
    %6428 = vmatprep.mubr.bf16.mxu0 0
    %6429 = vmatmul.mubr.bf16.gmra.mrb[0].mxu0 %v6394
    %v6430 = vpop.f32.mrb[0].mxu0
    %v6431 = vadd.f32 %v6379, %v6430
    %v6432 = vpop.f32.mrb[0].mxu0
    %v6433 = vpop.f32.mrb[0].mxu0
    %v6434 = vadd.f32 %v6379, %v6433
    %v6435 = vpop.f32.mrb[0].mxu0
    %6436 = vdwg.mxu0
    %s6437 = scalar_lea.vmem %s4, 640
    %v6438 = vld [vmem:[%s6437] sm:$0xf]
    %v6439 = vld [vmem:[%s6437 + $0x4] sm:$0xf]
    %v6440 = vld [vmem:[%s6437 + $0x8] sm:$0xf]
    %v6441 = vld [vmem:[%s6437 + $0xc] sm:$0xf]
    %s6442 = scalar_lea.vmem %s7, 40
    %v6443 = vld [vmem:[%s6442] sm:$0x1]
    %v6445 = vlaneseq
    %v6446 = vshrl.u32 %v6445, 7
    %v6447 = vsub.s32 0, %v6446
    %v6448 = vrot.slane %v6443, %v6447
    %v6454 = vunpack.c.l.b16 %v6438
    %v6455 = vunpack.c.l.b16 %v6439
    %v6456 = vunpack.c.l.b16 %v6440
    %v6457 = vunpack.c.l.b16 %v6441
    %v6458 = vpack.c.b16 %v6455, %v6454
    %v6459 = vpack.c.b16 %v6457, %v6456
    %6462 = vmatprep.subr.bf16.mxu0 0
    %6463 = vmatpush1.bf16.msra.mxu0 %v6458
    %6464 = vmatprep.subr.bf16.mxu0 0
    %6465 = vmatpush1.bf16.msra.mxu0 %v6459
    %6466 = vmatprep.subr.bf16.mxu0 0
    %6467 = vmatpush1.bf16.msra.mxu0 0
    %6468 = vmatprep.subr.bf16.mxu0 0
    %6469 = vmatpush1.bf16.msra.mxu0 0
    %6470 = vmatprep.subr.bf16.mxu0 0
    %6471 = vmatpush1.bf16.msra.mxu0 0
    %6472 = vmatprep.subr.bf16.mxu0 0
    %6473 = vmatpush1.bf16.msra.mxu0 0
    %6474 = vmatprep.subr.bf16.mxu0 0
    %6475 = vmatpush1.bf16.msra.mxu0 0
    %6476 = vmatprep.subr.bf16.mxu0 0
    %6477 = vmatpush1.bf16.msra.mxu0 0
    %6478 = vmatprep.subr.bf16.mxu0 0
    %6479 = vmatpush1.bf16.msra.mxu0 0
    %6480 = vmatprep.subr.bf16.mxu0 0
    %6481 = vmatpush1.bf16.msra.mxu0 0
    %6482 = vmatprep.subr.bf16.mxu0 0
    %6483 = vmatpush1.bf16.msra.mxu0 0
    %6484 = vmatprep.subr.bf16.mxu0 0
    %6485 = vmatpush1.bf16.msra.mxu0 0
    %6486 = vmatprep.subr.bf16.mxu0 0
    %6487 = vmatpush1.bf16.msra.mxu0 0
    %6488 = vmatprep.subr.bf16.mxu0 0
    %6489 = vmatpush1.bf16.msra.mxu0 0
    %6490 = vmatprep.subr.bf16.mxu0 0
    %6491 = vmatpush1.bf16.msra.mxu0 0
    %6492 = vmatprep.subr.bf16.mxu0 0
    %6493 = vmatpush1.bf16.msra.mxu0 0
    %6494 = vmatprep.mubr.bf16.mxu0 0
    %6495 = vmatmul.mubr.bf16.gmra.mrb[0].mxu0 %v2210
    %v6496 = vpop.f32.mrb[0].mxu0
    %v6497 = vadd.f32 %v6448, %v6496
    %v6498 = vpop.f32.mrb[0].mxu0
    %v6499 = vpop.f32.mrb[0].mxu0
    %v6500 = vadd.f32 %v6448, %v6499
    %v6501 = vpop.f32.mrb[0].mxu0
    %6502 = vmatprep.mubr.bf16.mxu0 0
    %6503 = vmatmul.mubr.bf16.gmra.mrb[0].mxu0 %v2213
    %v6504 = vpop.f32.mrb[0].mxu0
    %v6505 = vadd.f32 %v6448, %v6504
    %v6506 = vpop.f32.mrb[0].mxu0
    %v6507 = vpop.f32.mrb[0].mxu0
    %v6508 = vadd.f32 %v6448, %v6507
    %v6509 = vpop.f32.mrb[0].mxu0
    %6510 = vdwg.mxu0
    %s6511 = scalar_lea.vmem %s4, 704
    %v6512 = vld [vmem:[%s6511] sm:$0xf]
    %v6513 = vld [vmem:[%s6511 + $0x4] sm:$0xf]
    %v6514 = vld [vmem:[%s6511 + $0x8] sm:$0xf]
    %v6515 = vld [vmem:[%s6511 + $0xc] sm:$0xf]
    %s6516 = scalar_lea.vmem %s7, 44
    %v6517 = vld [vmem:[%s6516] sm:$0x1]
    %v6519 = vlaneseq
    %v6520 = vshrl.u32 %v6519, 7
    %v6521 = vsub.s32 0, %v6520
    %v6522 = vrot.slane %v6517, %v6521
    %v6528 = vunpack.c.l.b16 %v6512
    %v6529 = vunpack.c.l.b16 %v6513
    %v6530 = vunpack.c.l.b16 %v6514
    %v6531 = vunpack.c.l.b16 %v6515
    %v6532 = vpack.c.b16 %v6529, %v6528
    %v6533 = vpack.c.b16 %v6531, %v6530
    %6536 = vmatprep.subr.bf16.mxu0 0
    %6537 = vmatpush1.bf16.msra.mxu0 %v6532
    %6538 = vmatprep.subr.bf16.mxu0 0
    %6539 = vmatpush1.bf16.msra.mxu0 %v6533
    %6540 = vmatprep.subr.bf16.mxu0 0
    %6541 = vmatpush1.bf16.msra.mxu0 0
    %6542 = vmatprep.subr.bf16.mxu0 0
    %6543 = vmatpush1.bf16.msra.mxu0 0
    %6544 = vmatprep.subr.bf16.mxu0 0
    %6545 = vmatpush1.bf16.msra.mxu0 0
    %6546 = vmatprep.subr.bf16.mxu0 0
    %6547 = vmatpush1.bf16.msra.mxu0 0
    %6548 = vmatprep.subr.bf16.mxu0 0
    %6549 = vmatpush1.bf16.msra.mxu0 0
    %6550 = vmatprep.subr.bf16.mxu0 0
    %6551 = vmatpush1.bf16.msra.mxu0 0
    %6552 = vmatprep.subr.bf16.mxu0 0
    %6553 = vmatpush1.bf16.msra.mxu0 0
    %6554 = vmatprep.subr.bf16.mxu0 0
    %6555 = vmatpush1.bf16.msra.mxu0 0
    %6556 = vmatprep.subr.bf16.mxu0 0
    %6557 = vmatpush1.bf16.msra.mxu0 0
    %6558 = vmatprep.subr.bf16.mxu0 0
    %6559 = vmatpush1.bf16.msra.mxu0 0
    %6560 = vmatprep.subr.bf16.mxu0 0
    %6561 = vmatpush1.bf16.msra.mxu0 0
    %6562 = vmatprep.subr.bf16.mxu0 0
    %6563 = vmatpush1.bf16.msra.mxu0 0
    %6564 = vmatprep.subr.bf16.mxu0 0
    %6565 = vmatpush1.bf16.msra.mxu0 0
    %6566 = vmatprep.subr.bf16.mxu0 0
    %6567 = vmatpush1.bf16.msra.mxu0 0
    %6568 = vmatprep.mubr.bf16.mxu0 0
    %6569 = vmatmul.mubr.bf16.gmra.mrb[0].mxu0 %v2210
    %v6570 = vpop.f32.mrb[0].mxu0
    %v6571 = vadd.f32 %v6522, %v6570
    %v6572 = vpop.f32.mrb[0].mxu0
    %v6573 = vpop.f32.mrb[0].mxu0
    %v6574 = vadd.f32 %v6522, %v6573
    %v6575 = vpop.f32.mrb[0].mxu0
    %6576 = vmatprep.mubr.bf16.mxu0 0
    %6577 = vmatmul.mubr.bf16.gmra.mrb[0].mxu0 %v2213
    %v6578 = vpop.f32.mrb[0].mxu0
    %v6579 = vadd.f32 %v6522, %v6578
    %v6580 = vpop.f32.mrb[0].mxu0
    %v6581 = vpop.f32.mrb[0].mxu0
    %v6582 = vadd.f32 %v6522, %v6581
    %v6583 = vpop.f32.mrb[0].mxu0
    %6584 = vdwg.mxu0
    %v6585 = vpack.c.bf16 %v6431, %v6431
    %v6586 = vpack.c.bf16 %v6434, %v6434
    %v6587 = vpack.c.bf16 %v6500, %v6497
    %v6588 = vpack.c.bf16 %v6508, %v6505
    %v6589 = vpack.c.bf16 %v6574, %v6571
    %v6590 = vpack.c.bf16 %v6582, %v6579
    %v6592 = vsel %vm308, %v6585, 0
    %v6595 = vsel %vm308, %v6587, 0
    %6597 = vmatprep.subr.bf16.mxu0 0
    %6598 = vmatpush1.bf16.xpose.msra.mxu0 %v6595
    %6599 = vmatprep.subr.bf16.mxu0 0
    %6600 = vmatpush1.bf16.xpose.msra.mxu0 0
    %6601 = vmatprep.subr.bf16.mxu0 0
    %6602 = vmatpush1.bf16.xpose.msra.mxu0 0
    %6603 = vmatprep.subr.bf16.mxu0 0
    %6604 = vmatpush1.bf16.xpose.msra.mxu0 0
    %6605 = vmatprep.subr.bf16.mxu0 0
    %6606 = vmatpush1.bf16.xpose.msra.mxu0 0
    %6607 = vmatprep.subr.bf16.mxu0 0
    %6608 = vmatpush1.bf16.xpose.msra.mxu0 0
    %6609 = vmatprep.subr.bf16.mxu0 0
    %6610 = vmatpush1.bf16.xpose.msra.mxu0 0
    %6611 = vmatprep.subr.bf16.mxu0 0
    %6612 = vmatpush1.bf16.xpose.msra.mxu0 0
    %6613 = vmatprep.subr.bf16.mxu0 0
    %6614 = vmatpush1.bf16.xpose.msra.mxu0 0
    %6615 = vmatprep.subr.bf16.mxu0 0
    %6616 = vmatpush1.bf16.xpose.msra.mxu0 0
    %6617 = vmatprep.subr.bf16.mxu0 0
    %6618 = vmatpush1.bf16.xpose.msra.mxu0 0
    %6619 = vmatprep.subr.bf16.mxu0 0
    %6620 = vmatpush1.bf16.xpose.msra.mxu0 0
    %6621 = vmatprep.subr.bf16.mxu0 0
    %6622 = vmatpush1.bf16.xpose.msra.mxu0 0
    %6623 = vmatprep.subr.bf16.mxu0 0
    %6624 = vmatpush1.bf16.xpose.msra.mxu0 0
    %6625 = vmatprep.subr.bf16.mxu0 0
    %6626 = vmatpush1.bf16.xpose.msra.mxu0 0
    %6627 = vmatprep.subr.bf16.mxu0 0
    %6628 = vmatpush1.bf16.xpose.msra.mxu0 0
    %6629 = vmatprep.mubr.bf16.mxu0 0
    %6630 = vmatmul.mubr.bf16.gmra.mrb[0].mxu0 %v6592
    %v6631 = vpop.f32.mrb[0].mxu0
    %v6632 = vadd.f32 0.0, %v6631
    %v6633 = vpop.f32.mrb[0].mxu0
    %v6634 = vpop.f32.mrb[0].mxu0
    %v6635 = vpop.f32.mrb[0].mxu0
    %6636 = vdwg.mxu0
    %v6638 = vsel %vm308, %v6586, 0
    %v6641 = vsel %vm308, %v6588, 0
    %6643 = vmatprep.subr.bf16.mxu0 0
    %6644 = vmatpush1.bf16.xpose.msra.mxu0 %v6641
    %6645 = vmatprep.subr.bf16.mxu0 0
    %6646 = vmatpush1.bf16.xpose.msra.mxu0 0
    %6647 = vmatprep.subr.bf16.mxu0 0
    %6648 = vmatpush1.bf16.xpose.msra.mxu0 0
    %6649 = vmatprep.subr.bf16.mxu0 0
    %6650 = vmatpush1.bf16.xpose.msra.mxu0 0
    %6651 = vmatprep.subr.bf16.mxu0 0
    %6652 = vmatpush1.bf16.xpose.msra.mxu0 0
    %6653 = vmatprep.subr.bf16.mxu0 0
    %6654 = vmatpush1.bf16.xpose.msra.mxu0 0
    %6655 = vmatprep.subr.bf16.mxu0 0
    %6656 = vmatpush1.bf16.xpose.msra.mxu0 0
    %6657 = vmatprep.subr.bf16.mxu0 0
    %6658 = vmatpush1.bf16.xpose.msra.mxu0 0
    %6659 = vmatprep.subr.bf16.mxu0 0
    %6660 = vmatpush1.bf16.xpose.msra.mxu0 0
    %6661 = vmatprep.subr.bf16.mxu0 0
    %6662 = vmatpush1.bf16.xpose.msra.mxu0 0
    %6663 = vmatprep.subr.bf16.mxu0 0
    %6664 = vmatpush1.bf16.xpose.msra.mxu0 0
    %6665 = vmatprep.subr.bf16.mxu0 0
    %6666 = vmatpush1.bf16.xpose.msra.mxu0 0
    %6667 = vmatprep.subr.bf16.mxu0 0
    %6668 = vmatpush1.bf16.xpose.msra.mxu0 0
    %6669 = vmatprep.subr.bf16.mxu0 0
    %6670 = vmatpush1.bf16.xpose.msra.mxu0 0
    %6671 = vmatprep.subr.bf16.mxu0 0
    %6672 = vmatpush1.bf16.xpose.msra.mxu0 0
    %6673 = vmatprep.subr.bf16.mxu0 0
    %6674 = vmatpush1.bf16.xpose.msra.mxu0 0
    %6675 = vmatprep.mubr.bf16.mxu0 0
    %6676 = vmatmul.mubr.bf16.gmra.mrb[0].mxu0 %v6638
    %v6677 = vpop.f32.mrb[0].mxu0
    %v6678 = vadd.f32 0.0, %v6677
    %v6679 = vpop.f32.mrb[0].mxu0
    %v6680 = vpop.f32.mrb[0].mxu0
    %v6681 = vpop.f32.mrb[0].mxu0
    %6682 = vdwg.mxu0
    %v6683 = vmul.f32 %v6632, 0.35355338
    %v6684 = vmul.f32 %v6678, 0.35355338
    %v6685 = vsel %vm2113, %v6683, -1e+09
    %v6686 = vsel %vm2114, %v6684, -1e+09
    %v6687 = vsel %vm2440, %v6685, -inf
    %6688 = vmax.xlane.f32.xlu0 %v6687
    %v6689 = vpop.xlane.xlu0 %6688
    %v6690 = vsel %vm2440, %v6686, -inf
    %6691 = vmax.xlane.f32.xlu0 %v6690
    %v6692 = vpop.xlane.xlu0 %6691
    %v6693 = vsub.f32 %v6685, %v6689
    %v6694 = vsub.f32 %v6686, %v6692
    %v6695 = vmul.f32 %v6693, 1.442695
    %v6696 = vpow.pop %v6695
    %v6697 = vmul.f32 %v6694, 1.442695
    %v6698 = vpow.pop %v6697
    %v6699 = vsel %vm2440, %v6696, 0.0
    %6700 = vadd.xlane.f32.xlu0 %v6699
    %v6701 = vpop.xlane.xlu0 %6700
    %v6702 = vsel %vm2440, %v6698, 0.0
    %6703 = vadd.xlane.f32.xlu0 %v6702
    %v6704 = vpop.xlane.xlu0 %6703
    %v6705 = vrcp.pop %v6701
    %v6706 = vrcp.pop %v6704
    %v6707 = vmul.f32 %v6696, %v6705
    %v6708 = vmul.f32 %v6698, %v6706
    %v6709 = vpack.c.bf16 %v6707, %v6707
    %v6710 = vpack.c.bf16 %v6708, %v6708
    %v6712 = vsel %vm2440, %v6709, 0
    %6714 = vmatprep.subr.bf16.mxu0 0
    %6715 = vmatpush1.bf16.msra.mxu0 %v6589
    %6716 = vmatprep.subr.bf16.mxu0 0
    %6717 = vmatpush1.bf16.msra.mxu0 0
    %6718 = vmatprep.subr.bf16.mxu0 0
    %6719 = vmatpush1.bf16.msra.mxu0 0
    %6720 = vmatprep.subr.bf16.mxu0 0
    %6721 = vmatpush1.bf16.msra.mxu0 0
    %6722 = vmatprep.subr.bf16.mxu0 0
    %6723 = vmatpush1.bf16.msra.mxu0 0
    %6724 = vmatprep.subr.bf16.mxu0 0
    %6725 = vmatpush1.bf16.msra.mxu0 0
    %6726 = vmatprep.subr.bf16.mxu0 0
    %6727 = vmatpush1.bf16.msra.mxu0 0
    %6728 = vmatprep.subr.bf16.mxu0 0
    %6729 = vmatpush1.bf16.msra.mxu0 0
    %6730 = vmatprep.subr.bf16.mxu0 0
    %6731 = vmatpush1.bf16.msra.mxu0 0
    %6732 = vmatprep.subr.bf16.mxu0 0
    %6733 = vmatpush1.bf16.msra.mxu0 0
    %6734 = vmatprep.subr.bf16.mxu0 0
    %6735 = vmatpush1.bf16.msra.mxu0 0
    %6736 = vmatprep.subr.bf16.mxu0 0
    %6737 = vmatpush1.bf16.msra.mxu0 0
    %6738 = vmatprep.subr.bf16.mxu0 0
    %6739 = vmatpush1.bf16.msra.mxu0 0
    %6740 = vmatprep.subr.bf16.mxu0 0
    %6741 = vmatpush1.bf16.msra.mxu0 0
    %6742 = vmatprep.subr.bf16.mxu0 0
    %6743 = vmatpush1.bf16.msra.mxu0 0
    %6744 = vmatprep.subr.bf16.mxu0 0
    %6745 = vmatpush1.bf16.msra.mxu0 0
    %6746 = vmatprep.mubr.bf16.mxu0 0
    %6747 = vmatmul.mubr.bf16.gmra.mrb[0].mxu0 %v6712
    %v6748 = vpop.f32.mrb[0].mxu0
    %v6749 = vadd.f32 0.0, %v6748
    %v6750 = vpop.f32.mrb[0].mxu0
    %v6751 = vpop.f32.mrb[0].mxu0
    %v6752 = vpop.f32.mrb[0].mxu0
    %6753 = vdwg.mxu0
    %v6755 = vsel %vm2440, %v6710, 0
    %6757 = vmatprep.subr.bf16.mxu0 0
    %6758 = vmatpush1.bf16.msra.mxu0 %v6590
    %6759 = vmatprep.subr.bf16.mxu0 0
    %6760 = vmatpush1.bf16.msra.mxu0 0
    %6761 = vmatprep.subr.bf16.mxu0 0
    %6762 = vmatpush1.bf16.msra.mxu0 0
    %6763 = vmatprep.subr.bf16.mxu0 0
    %6764 = vmatpush1.bf16.msra.mxu0 0
    %6765 = vmatprep.subr.bf16.mxu0 0
    %6766 = vmatpush1.bf16.msra.mxu0 0
    %6767 = vmatprep.subr.bf16.mxu0 0
    %6768 = vmatpush1.bf16.msra.mxu0 0
    %6769 = vmatprep.subr.bf16.mxu0 0
    %6770 = vmatpush1.bf16.msra.mxu0 0
    %6771 = vmatprep.subr.bf16.mxu0 0
    %6772 = vmatpush1.bf16.msra.mxu0 0
    %6773 = vmatprep.subr.bf16.mxu0 0
    %6774 = vmatpush1.bf16.msra.mxu0 0
    %6775 = vmatprep.subr.bf16.mxu0 0
    %6776 = vmatpush1.bf16.msra.mxu0 0
    %6777 = vmatprep.subr.bf16.mxu0 0
    %6778 = vmatpush1.bf16.msra.mxu0 0
    %6779 = vmatprep.subr.bf16.mxu0 0
    %6780 = vmatpush1.bf16.msra.mxu0 0
    %6781 = vmatprep.subr.bf16.mxu0 0
    %6782 = vmatpush1.bf16.msra.mxu0 0
    %6783 = vmatprep.subr.bf16.mxu0 0
    %6784 = vmatpush1.bf16.msra.mxu0 0
    %6785 = vmatprep.subr.bf16.mxu0 0
    %6786 = vmatpush1.bf16.msra.mxu0 0
    %6787 = vmatprep.subr.bf16.mxu0 0
    %6788 = vmatpush1.bf16.msra.mxu0 0
    %6789 = vmatprep.mubr.bf16.mxu0 0
    %6790 = vmatmul.mubr.bf16.gmra.mrb[0].mxu0 %v6755
    %v6791 = vpop.f32.mrb[0].mxu0
    %v6792 = vadd.f32 0.0, %v6791
    %v6793 = vpop.f32.mrb[0].mxu0
    %v6794 = vpop.f32.mrb[0].mxu0
    %v6795 = vpop.f32.mrb[0].mxu0
    %6796 = vdwg.mxu0
    %v6797 = vpack.c.bf16 %v6792, %v6749
    %s6798 = scalar_lea.vmem %s4, 960
    %v6799 = vld [vmem:[%s6798] sm:$0xf]
    %v6800 = vld [vmem:[%s6798 + $0x4] sm:$0xf]
    %v6801 = vld [vmem:[%s6798 + $0x8] sm:$0xf]
    %v6802 = vld [vmem:[%s6798 + $0xc] sm:$0xf]
    %s6803 = scalar_lea.vmem %s4, 592
    %v6804 = vld [vmem:[%s6803] sm:$0xf]
    %v6805 = vld [vmem:[%s6803 + $0x4] sm:$0xf]
    %v6806 = vld [vmem:[%s6803 + $0x8] sm:$0xf]
    %v6807 = vld [vmem:[%s6803 + $0xc] sm:$0xf]
    %s6808 = scalar_lea.vmem %s7, 37
    %v6809 = vld [vmem:[%s6808] sm:$0x1]
    %v6811 = vlaneseq
    %v6812 = vshrl.u32 %v6811, 7
    %v6813 = vsub.s32 0, %v6812
    %v6814 = vrot.slane %v6809, %v6813
    %v6820 = vunpack.c.l.b16 %v6804
    %v6821 = vunpack.c.l.b16 %v6805
    %v6822 = vunpack.c.l.b16 %v6806
    %v6823 = vunpack.c.l.b16 %v6807
    %v6824 = vpack.c.b16 %v6821, %v6820
    %v6825 = vpack.c.b16 %v6823, %v6822
    %6828 = vmatprep.subr.bf16.mxu0 0
    %6829 = vmatpush1.bf16.msra.mxu0 %v6824
    %6830 = vmatprep.subr.bf16.mxu0 0
    %6831 = vmatpush1.bf16.msra.mxu0 %v6825
    %6832 = vmatprep.subr.bf16.mxu0 0
    %6833 = vmatpush1.bf16.msra.mxu0 0
    %6834 = vmatprep.subr.bf16.mxu0 0
    %6835 = vmatpush1.bf16.msra.mxu0 0
    %6836 = vmatprep.subr.bf16.mxu0 0
    %6837 = vmatpush1.bf16.msra.mxu0 0
    %6838 = vmatprep.subr.bf16.mxu0 0
    %6839 = vmatpush1.bf16.msra.mxu0 0
    %6840 = vmatprep.subr.bf16.mxu0 0
    %6841 = vmatpush1.bf16.msra.mxu0 0
    %6842 = vmatprep.subr.bf16.mxu0 0
    %6843 = vmatpush1.bf16.msra.mxu0 0
    %6844 = vmatprep.subr.bf16.mxu0 0
    %6845 = vmatpush1.bf16.msra.mxu0 0
    %6846 = vmatprep.subr.bf16.mxu0 0
    %6847 = vmatpush1.bf16.msra.mxu0 0
    %6848 = vmatprep.subr.bf16.mxu0 0
    %6849 = vmatpush1.bf16.msra.mxu0 0
    %6850 = vmatprep.subr.bf16.mxu0 0
    %6851 = vmatpush1.bf16.msra.mxu0 0
    %6852 = vmatprep.subr.bf16.mxu0 0
    %6853 = vmatpush1.bf16.msra.mxu0 0
    %6854 = vmatprep.subr.bf16.mxu0 0
    %6855 = vmatpush1.bf16.msra.mxu0 0
    %6856 = vmatprep.subr.bf16.mxu0 0
    %6857 = vmatpush1.bf16.msra.mxu0 0
    %6858 = vmatprep.subr.bf16.mxu0 0
    %6859 = vmatpush1.bf16.msra.mxu0 0
    %6860 = vmatprep.mubr.bf16.mxu0 0
    %6861 = vmatmul.mubr.bf16.gmra.mrb[0].mxu0 %v6394
    %v6862 = vpop.f32.mrb[0].mxu0
    %v6863 = vadd.f32 %v6814, %v6862
    %v6864 = vpop.f32.mrb[0].mxu0
    %v6865 = vpop.f32.mrb[0].mxu0
    %v6866 = vadd.f32 %v6814, %v6865
    %v6867 = vpop.f32.mrb[0].mxu0
    %6868 = vdwg.mxu0
    %s6869 = scalar_lea.vmem %s4, 656
    %v6870 = vld [vmem:[%s6869] sm:$0xf]
    %v6871 = vld [vmem:[%s6869 + $0x4] sm:$0xf]
    %v6872 = vld [vmem:[%s6869 + $0x8] sm:$0xf]
    %v6873 = vld [vmem:[%s6869 + $0xc] sm:$0xf]
    %s6874 = scalar_lea.vmem %s7, 41
    %v6875 = vld [vmem:[%s6874] sm:$0x1]
    %v6877 = vlaneseq
    %v6878 = vshrl.u32 %v6877, 7
    %v6879 = vsub.s32 0, %v6878
    %v6880 = vrot.slane %v6875, %v6879
    %v6886 = vunpack.c.l.b16 %v6870
    %v6887 = vunpack.c.l.b16 %v6871
    %v6888 = vunpack.c.l.b16 %v6872
    %v6889 = vunpack.c.l.b16 %v6873
    %v6890 = vpack.c.b16 %v6887, %v6886
    %v6891 = vpack.c.b16 %v6889, %v6888
    %6894 = vmatprep.subr.bf16.mxu0 0
    %6895 = vmatpush1.bf16.msra.mxu0 %v6890
    %6896 = vmatprep.subr.bf16.mxu0 0
    %6897 = vmatpush1.bf16.msra.mxu0 %v6891
    %6898 = vmatprep.subr.bf16.mxu0 0
    %6899 = vmatpush1.bf16.msra.mxu0 0
    %6900 = vmatprep.subr.bf16.mxu0 0
    %6901 = vmatpush1.bf16.msra.mxu0 0
    %6902 = vmatprep.subr.bf16.mxu0 0
    %6903 = vmatpush1.bf16.msra.mxu0 0
    %6904 = vmatprep.subr.bf16.mxu0 0
    %6905 = vmatpush1.bf16.msra.mxu0 0
    %6906 = vmatprep.subr.bf16.mxu0 0
    %6907 = vmatpush1.bf16.msra.mxu0 0
    %6908 = vmatprep.subr.bf16.mxu0 0
    %6909 = vmatpush1.bf16.msra.mxu0 0
    %6910 = vmatprep.subr.bf16.mxu0 0
    %6911 = vmatpush1.bf16.msra.mxu0 0
    %6912 = vmatprep.subr.bf16.mxu0 0
    %6913 = vmatpush1.bf16.msra.mxu0 0
    %6914 = vmatprep.subr.bf16.mxu0 0
    %6915 = vmatpush1.bf16.msra.mxu0 0
    %6916 = vmatprep.subr.bf16.mxu0 0
    %6917 = vmatpush1.bf16.msra.mxu0 0
    %6918 = vmatprep.subr.bf16.mxu0 0
    %6919 = vmatpush1.bf16.msra.mxu0 0
    %6920 = vmatprep.subr.bf16.mxu0 0
    %6921 = vmatpush1.bf16.msra.mxu0 0
    %6922 = vmatprep.subr.bf16.mxu0 0
    %6923 = vmatpush1.bf16.msra.mxu0 0
    %6924 = vmatprep.subr.bf16.mxu0 0
    %6925 = vmatpush1.bf16.msra.mxu0 0
    %6926 = vmatprep.mubr.bf16.mxu0 0
    %6927 = vmatmul.mubr.bf16.gmra.mrb[0].mxu0 %v2210
    %v6928 = vpop.f32.mrb[0].mxu0
    %v6929 = vadd.f32 %v6880, %v6928
    %v6930 = vpop.f32.mrb[0].mxu0
    %v6931 = vpop.f32.mrb[0].mxu0
    %v6932 = vadd.f32 %v6880, %v6931
    %v6933 = vpop.f32.mrb[0].mxu0
    %6934 = vmatprep.mubr.bf16.mxu0 0
    %6935 = vmatmul.mubr.bf16.gmra.mrb[0].mxu0 %v2213
    %v6936 = vpop.f32.mrb[0].mxu0
    %v6937 = vadd.f32 %v6880, %v6936
    %v6938 = vpop.f32.mrb[0].mxu0
    %v6939 = vpop.f32.mrb[0].mxu0
    %v6940 = vadd.f32 %v6880, %v6939
    %v6941 = vpop.f32.mrb[0].mxu0
    %6942 = vdwg.mxu0
    %s6943 = scalar_lea.vmem %s4, 720
    %v6944 = vld [vmem:[%s6943] sm:$0xf]
    %v6945 = vld [vmem:[%s6943 + $0x4] sm:$0xf]
    %v6946 = vld [vmem:[%s6943 + $0x8] sm:$0xf]
    %v6947 = vld [vmem:[%s6943 + $0xc] sm:$0xf]
    %s6948 = scalar_lea.vmem %s7, 45
    %v6949 = vld [vmem:[%s6948] sm:$0x1]
    %v6951 = vlaneseq
    %v6952 = vshrl.u32 %v6951, 7
    %v6953 = vsub.s32 0, %v6952
    %v6954 = vrot.slane %v6949, %v6953
    %v6960 = vunpack.c.l.b16 %v6944
    %v6961 = vunpack.c.l.b16 %v6945
    %v6962 = vunpack.c.l.b16 %v6946
    %v6963 = vunpack.c.l.b16 %v6947
    %v6964 = vpack.c.b16 %v6961, %v6960
    %v6965 = vpack.c.b16 %v6963, %v6962
    %6968 = vmatprep.subr.bf16.mxu0 0
    %6969 = vmatpush1.bf16.msra.mxu0 %v6964
    %6970 = vmatprep.subr.bf16.mxu0 0
    %6971 = vmatpush1.bf16.msra.mxu0 %v6965
    %6972 = vmatprep.subr.bf16.mxu0 0
    %6973 = vmatpush1.bf16.msra.mxu0 0
    %6974 = vmatprep.subr.bf16.mxu0 0
    %6975 = vmatpush1.bf16.msra.mxu0 0
    %6976 = vmatprep.subr.bf16.mxu0 0
    %6977 = vmatpush1.bf16.msra.mxu0 0
    %6978 = vmatprep.subr.bf16.mxu0 0
    %6979 = vmatpush1.bf16.msra.mxu0 0
    %6980 = vmatprep.subr.bf16.mxu0 0
    %6981 = vmatpush1.bf16.msra.mxu0 0
    %6982 = vmatprep.subr.bf16.mxu0 0
    %6983 = vmatpush1.bf16.msra.mxu0 0
    %6984 = vmatprep.subr.bf16.mxu0 0
    %6985 = vmatpush1.bf16.msra.mxu0 0
    %6986 = vmatprep.subr.bf16.mxu0 0
    %6987 = vmatpush1.bf16.msra.mxu0 0
    %6988 = vmatprep.subr.bf16.mxu0 0
    %6989 = vmatpush1.bf16.msra.mxu0 0
    %6990 = vmatprep.subr.bf16.mxu0 0
    %6991 = vmatpush1.bf16.msra.mxu0 0
    %6992 = vmatprep.subr.bf16.mxu0 0
    %6993 = vmatpush1.bf16.msra.mxu0 0
    %6994 = vmatprep.subr.bf16.mxu0 0
    %6995 = vmatpush1.bf16.msra.mxu0 0
    %6996 = vmatprep.subr.bf16.mxu0 0
    %6997 = vmatpush1.bf16.msra.mxu0 0
    %6998 = vmatprep.subr.bf16.mxu0 0
    %6999 = vmatpush1.bf16.msra.mxu0 0
    %7000 = vmatprep.mubr.bf16.mxu0 0
    %7001 = vmatmul.mubr.bf16.gmra.mrb[0].mxu0 %v2210
    %v7002 = vpop.f32.mrb[0].mxu0
    %v7003 = vadd.f32 %v6954, %v7002
    %v7004 = vpop.f32.mrb[0].mxu0
    %v7005 = vpop.f32.mrb[0].mxu0
    %v7006 = vadd.f32 %v6954, %v7005
    %v7007 = vpop.f32.mrb[0].mxu0
    %7008 = vmatprep.mubr.bf16.mxu0 0
    %7009 = vmatmul.mubr.bf16.gmra.mrb[0].mxu0 %v2213
    %v7010 = vpop.f32.mrb[0].mxu0
    %v7011 = vadd.f32 %v6954, %v7010
    %v7012 = vpop.f32.mrb[0].mxu0
    %v7013 = vpop.f32.mrb[0].mxu0
    %v7014 = vadd.f32 %v6954, %v7013
    %v7015 = vpop.f32.mrb[0].mxu0
    %7016 = vdwg.mxu0
    %v7017 = vpack.c.bf16 %v6863, %v6863
    %v7018 = vpack.c.bf16 %v6866, %v6866
    %v7019 = vpack.c.bf16 %v6932, %v6929
    %v7020 = vpack.c.bf16 %v6940, %v6937
    %v7021 = vpack.c.bf16 %v7006, %v7003
    %v7022 = vpack.c.bf16 %v7014, %v7011
    %v7024 = vsel %vm308, %v7017, 0
    %v7027 = vsel %vm308, %v7019, 0
    %7029 = vmatprep.subr.bf16.mxu0 0
    %7030 = vmatpush1.bf16.xpose.msra.mxu0 %v7027
    %7031 = vmatprep.subr.bf16.mxu0 0
    %7032 = vmatpush1.bf16.xpose.msra.mxu0 0
    %7033 = vmatprep.subr.bf16.mxu0 0
    %7034 = vmatpush1.bf16.xpose.msra.mxu0 0
    %7035 = vmatprep.subr.bf16.mxu0 0
    %7036 = vmatpush1.bf16.xpose.msra.mxu0 0
    %7037 = vmatprep.subr.bf16.mxu0 0
    %7038 = vmatpush1.bf16.xpose.msra.mxu0 0
    %7039 = vmatprep.subr.bf16.mxu0 0
    %7040 = vmatpush1.bf16.xpose.msra.mxu0 0
    %7041 = vmatprep.subr.bf16.mxu0 0
    %7042 = vmatpush1.bf16.xpose.msra.mxu0 0
    %7043 = vmatprep.subr.bf16.mxu0 0
    %7044 = vmatpush1.bf16.xpose.msra.mxu0 0
    %7045 = vmatprep.subr.bf16.mxu0 0
    %7046 = vmatpush1.bf16.xpose.msra.mxu0 0
    %7047 = vmatprep.subr.bf16.mxu0 0
    %7048 = vmatpush1.bf16.xpose.msra.mxu0 0
    %7049 = vmatprep.subr.bf16.mxu0 0
    %7050 = vmatpush1.bf16.xpose.msra.mxu0 0
    %7051 = vmatprep.subr.bf16.mxu0 0
    %7052 = vmatpush1.bf16.xpose.msra.mxu0 0
    %7053 = vmatprep.subr.bf16.mxu0 0
    %7054 = vmatpush1.bf16.xpose.msra.mxu0 0
    %7055 = vmatprep.subr.bf16.mxu0 0
    %7056 = vmatpush1.bf16.xpose.msra.mxu0 0
    %7057 = vmatprep.subr.bf16.mxu0 0
    %7058 = vmatpush1.bf16.xpose.msra.mxu0 0
    %7059 = vmatprep.subr.bf16.mxu0 0
    %7060 = vmatpush1.bf16.xpose.msra.mxu0 0
    %7061 = vmatprep.mubr.bf16.mxu0 0
    %7062 = vmatmul.mubr.bf16.gmra.mrb[0].mxu0 %v7024
    %v7063 = vpop.f32.mrb[0].mxu0
    %v7064 = vadd.f32 0.0, %v7063
    %v7065 = vpop.f32.mrb[0].mxu0
    %v7066 = vpop.f32.mrb[0].mxu0
    %v7067 = vpop.f32.mrb[0].mxu0
    %7068 = vdwg.mxu0
    %v7070 = vsel %vm308, %v7018, 0
    %v7073 = vsel %vm308, %v7020, 0
    %7075 = vmatprep.subr.bf16.mxu0 0
    %7076 = vmatpush1.bf16.xpose.msra.mxu0 %v7073
    %7077 = vmatprep.subr.bf16.mxu0 0
    %7078 = vmatpush1.bf16.xpose.msra.mxu0 0
    %7079 = vmatprep.subr.bf16.mxu0 0
    %7080 = vmatpush1.bf16.xpose.msra.mxu0 0
    %7081 = vmatprep.subr.bf16.mxu0 0
    %7082 = vmatpush1.bf16.xpose.msra.mxu0 0
    %7083 = vmatprep.subr.bf16.mxu0 0
    %7084 = vmatpush1.bf16.xpose.msra.mxu0 0
    %7085 = vmatprep.subr.bf16.mxu0 0
    %7086 = vmatpush1.bf16.xpose.msra.mxu0 0
    %7087 = vmatprep.subr.bf16.mxu0 0
    %7088 = vmatpush1.bf16.xpose.msra.mxu0 0
    %7089 = vmatprep.subr.bf16.mxu0 0
    %7090 = vmatpush1.bf16.xpose.msra.mxu0 0
    %7091 = vmatprep.subr.bf16.mxu0 0
    %7092 = vmatpush1.bf16.xpose.msra.mxu0 0
    %7093 = vmatprep.subr.bf16.mxu0 0
    %7094 = vmatpush1.bf16.xpose.msra.mxu0 0
    %7095 = vmatprep.subr.bf16.mxu0 0
    %7096 = vmatpush1.bf16.xpose.msra.mxu0 0
    %7097 = vmatprep.subr.bf16.mxu0 0
    %7098 = vmatpush1.bf16.xpose.msra.mxu0 0
    %7099 = vmatprep.subr.bf16.mxu0 0
    %7100 = vmatpush1.bf16.xpose.msra.mxu0 0
    %7101 = vmatprep.subr.bf16.mxu0 0
    %7102 = vmatpush1.bf16.xpose.msra.mxu0 0
    %7103 = vmatprep.subr.bf16.mxu0 0
    %7104 = vmatpush1.bf16.xpose.msra.mxu0 0
    %7105 = vmatprep.subr.bf16.mxu0 0
    %7106 = vmatpush1.bf16.xpose.msra.mxu0 0
    %7107 = vmatprep.mubr.bf16.mxu0 0
    %7108 = vmatmul.mubr.bf16.gmra.mrb[0].mxu0 %v7070
    %v7109 = vpop.f32.mrb[0].mxu0
    %v7110 = vadd.f32 0.0, %v7109
    %v7111 = vpop.f32.mrb[0].mxu0
    %v7112 = vpop.f32.mrb[0].mxu0
    %v7113 = vpop.f32.mrb[0].mxu0
    %7114 = vdwg.mxu0
    %v7115 = vmul.f32 %v7064, 0.35355338
    %v7116 = vmul.f32 %v7110, 0.35355338
    %v7117 = vsel %vm2113, %v7115, -1e+09
    %v7118 = vsel %vm2114, %v7116, -1e+09
    %v7119 = vsel %vm2440, %v7117, -inf
    %7120 = vmax.xlane.f32.xlu0 %v7119
    %v7121 = vpop.xlane.xlu0 %7120
    %v7122 = vsel %vm2440, %v7118, -inf
    %7123 = vmax.xlane.f32.xlu0 %v7122
    %v7124 = vpop.xlane.xlu0 %7123
    %v7125 = vsub.f32 %v7117, %v7121
    %v7126 = vsub.f32 %v7118, %v7124
    %v7127 = vmul.f32 %v7125, 1.442695
    %v7128 = vpow.pop %v7127
    %v7129 = vmul.f32 %v7126, 1.442695
    %v7130 = vpow.pop %v7129
    %v7131 = vsel %vm2440, %v7128, 0.0
    %7132 = vadd.xlane.f32.xlu0 %v7131
    %v7133 = vpop.xlane.xlu0 %7132
    %v7134 = vsel %vm2440, %v7130, 0.0
    %7135 = vadd.xlane.f32.xlu0 %v7134
    %v7136 = vpop.xlane.xlu0 %7135
    %v7137 = vrcp.pop %v7133
    %v7138 = vrcp.pop %v7136
    %v7139 = vmul.f32 %v7128, %v7137
    %v7140 = vmul.f32 %v7130, %v7138
    %v7141 = vpack.c.bf16 %v7139, %v7139
    %v7142 = vpack.c.bf16 %v7140, %v7140
    %v7144 = vsel %vm2440, %v7141, 0
    %7146 = vmatprep.subr.bf16.mxu0 0
    %7147 = vmatpush1.bf16.msra.mxu0 %v7021
    %7148 = vmatprep.subr.bf16.mxu0 0
    %7149 = vmatpush1.bf16.msra.mxu0 0
    %7150 = vmatprep.subr.bf16.mxu0 0
    %7151 = vmatpush1.bf16.msra.mxu0 0
    %7152 = vmatprep.subr.bf16.mxu0 0
    %7153 = vmatpush1.bf16.msra.mxu0 0
    %7154 = vmatprep.subr.bf16.mxu0 0
    %7155 = vmatpush1.bf16.msra.mxu0 0
    %7156 = vmatprep.subr.bf16.mxu0 0
    %7157 = vmatpush1.bf16.msra.mxu0 0
    %7158 = vmatprep.subr.bf16.mxu0 0
    %7159 = vmatpush1.bf16.msra.mxu0 0
    %7160 = vmatprep.subr.bf16.mxu0 0
    %7161 = vmatpush1.bf16.msra.mxu0 0
    %7162 = vmatprep.subr.bf16.mxu0 0
    %7163 = vmatpush1.bf16.msra.mxu0 0
    %7164 = vmatprep.subr.bf16.mxu0 0
    %7165 = vmatpush1.bf16.msra.mxu0 0
    %7166 = vmatprep.subr.bf16.mxu0 0
    %7167 = vmatpush1.bf16.msra.mxu0 0
    %7168 = vmatprep.subr.bf16.mxu0 0
    %7169 = vmatpush1.bf16.msra.mxu0 0
    %7170 = vmatprep.subr.bf16.mxu0 0
    %7171 = vmatpush1.bf16.msra.mxu0 0
    %7172 = vmatprep.subr.bf16.mxu0 0
    %7173 = vmatpush1.bf16.msra.mxu0 0
    %7174 = vmatprep.subr.bf16.mxu0 0
    %7175 = vmatpush1.bf16.msra.mxu0 0
    %7176 = vmatprep.subr.bf16.mxu0 0
    %7177 = vmatpush1.bf16.msra.mxu0 0
    %7178 = vmatprep.mubr.bf16.mxu0 0
    %7179 = vmatmul.mubr.bf16.gmra.mrb[0].mxu0 %v7144
    %v7180 = vpop.f32.mrb[0].mxu0
    %v7181 = vadd.f32 0.0, %v7180
    %v7182 = vpop.f32.mrb[0].mxu0
    %v7183 = vpop.f32.mrb[0].mxu0
    %v7184 = vpop.f32.mrb[0].mxu0
    %7185 = vdwg.mxu0
    %v7187 = vsel %vm2440, %v7142, 0
    %7189 = vmatprep.subr.bf16.mxu0 0
    %7190 = vmatpush1.bf16.msra.mxu0 %v7022
    %7191 = vmatprep.subr.bf16.mxu0 0
    %7192 = vmatpush1.bf16.msra.mxu0 0
    %7193 = vmatprep.subr.bf16.mxu0 0
    %7194 = vmatpush1.bf16.msra.mxu0 0
    %7195 = vmatprep.subr.bf16.mxu0 0
    %7196 = vmatpush1.bf16.msra.mxu0 0
    %7197 = vmatprep.subr.bf16.mxu0 0
    %7198 = vmatpush1.bf16.msra.mxu0 0
    %7199 = vmatprep.subr.bf16.mxu0 0
    %7200 = vmatpush1.bf16.msra.mxu0 0
    %7201 = vmatprep.subr.bf16.mxu0 0
    %7202 = vmatpush1.bf16.msra.mxu0 0
    %7203 = vmatprep.subr.bf16.mxu0 0
    %7204 = vmatpush1.bf16.msra.mxu0 0
    %7205 = vmatprep.subr.bf16.mxu0 0
    %7206 = vmatpush1.bf16.msra.mxu0 0
    %7207 = vmatprep.subr.bf16.mxu0 0
    %7208 = vmatpush1.bf16.msra.mxu0 0
    %7209 = vmatprep.subr.bf16.mxu0 0
    %7210 = vmatpush1.bf16.msra.mxu0 0
    %7211 = vmatprep.subr.bf16.mxu0 0
    %7212 = vmatpush1.bf16.msra.mxu0 0
    %7213 = vmatprep.subr.bf16.mxu0 0
    %7214 = vmatpush1.bf16.msra.mxu0 0
    %7215 = vmatprep.subr.bf16.mxu0 0
    %7216 = vmatpush1.bf16.msra.mxu0 0
    %7217 = vmatprep.subr.bf16.mxu0 0
    %7218 = vmatpush1.bf16.msra.mxu0 0
    %7219 = vmatprep.subr.bf16.mxu0 0
    %7220 = vmatpush1.bf16.msra.mxu0 0
    %7221 = vmatprep.mubr.bf16.mxu0 0
    %7222 = vmatmul.mubr.bf16.gmra.mrb[0].mxu0 %v7187
    %v7223 = vpop.f32.mrb[0].mxu0
    %v7224 = vadd.f32 0.0, %v7223
    %v7225 = vpop.f32.mrb[0].mxu0
    %v7226 = vpop.f32.mrb[0].mxu0
    %v7227 = vpop.f32.mrb[0].mxu0
    %7228 = vdwg.mxu0
    %v7229 = vpack.c.bf16 %v7224, %v7181
    %s7230 = scalar_lea.vmem %s4, 976
    %v7231 = vld [vmem:[%s7230] sm:$0xf]
    %v7232 = vld [vmem:[%s7230 + $0x4] sm:$0xf]
    %v7233 = vld [vmem:[%s7230 + $0x8] sm:$0xf]
    %v7234 = vld [vmem:[%s7230 + $0xc] sm:$0xf]
    %v7239 = vunpack.c.l.b16 %v7231
    %v7240 = vunpack.c.l.b16 %v7232
    %v7241 = vunpack.c.l.b16 %v7233
    %v7242 = vunpack.c.l.b16 %v7234
    %v7243 = vpack.c.b16 %v7240, %v7239
    %v7244 = vpack.c.b16 %v7242, %v7241
    %v7246 = vsel %vm308, %v7229, 0
    %v7249 = vsel %vm308, %v7243, 0
    %v7252 = vsel %vm308, %v7244, 0
    %7254 = vmatprep.subr.bf16.mxu0 0
    %7255 = vmatpush1.bf16.xpose.msra.mxu0 %v7249
    %7256 = vmatprep.subr.bf16.mxu0 0
    %7257 = vmatpush1.bf16.xpose.msra.mxu0 %v7252
    %7258 = vmatprep.subr.bf16.mxu0 0
    %7259 = vmatpush1.bf16.xpose.msra.mxu0 0
    %7260 = vmatprep.subr.bf16.mxu0 0
    %7261 = vmatpush1.bf16.xpose.msra.mxu0 0
    %7262 = vmatprep.subr.bf16.mxu0 0
    %7263 = vmatpush1.bf16.xpose.msra.mxu0 0
    %7264 = vmatprep.subr.bf16.mxu0 0
    %7265 = vmatpush1.bf16.xpose.msra.mxu0 0
    %7266 = vmatprep.subr.bf16.mxu0 0
    %7267 = vmatpush1.bf16.xpose.msra.mxu0 0
    %7268 = vmatprep.subr.bf16.mxu0 0
    %7269 = vmatpush1.bf16.xpose.msra.mxu0 0
    %7270 = vmatprep.subr.bf16.mxu0 0
    %7271 = vmatpush1.bf16.xpose.msra.mxu0 0
    %7272 = vmatprep.subr.bf16.mxu0 0
    %7273 = vmatpush1.bf16.xpose.msra.mxu0 0
    %7274 = vmatprep.subr.bf16.mxu0 0
    %7275 = vmatpush1.bf16.xpose.msra.mxu0 0
    %7276 = vmatprep.subr.bf16.mxu0 0
    %7277 = vmatpush1.bf16.xpose.msra.mxu0 0
    %7278 = vmatprep.subr.bf16.mxu0 0
    %7279 = vmatpush1.bf16.xpose.msra.mxu0 0
    %7280 = vmatprep.subr.bf16.mxu0 0
    %7281 = vmatpush1.bf16.xpose.msra.mxu0 0
    %7282 = vmatprep.subr.bf16.mxu0 0
    %7283 = vmatpush1.bf16.xpose.msra.mxu0 0
    %7284 = vmatprep.subr.bf16.mxu0 0
    %7285 = vmatpush1.bf16.xpose.msra.mxu0 0
    %7286 = vmatprep.mubr.bf16.mxu0 0
    %7287 = vmatmul.mubr.bf16.gmra.mrb[0].mxu0 %v7246
    %v7288 = vpop.f32.mrb[0].mxu0
    %v7289 = vadd.f32 0.0, %v7288
    %v7290 = vpop.f32.mrb[0].mxu0
    %v7291 = vpop.f32.mrb[0].mxu0
    %v7292 = vadd.f32 0.0, %v7291
    %v7293 = vpop.f32.mrb[0].mxu0
    %7294 = vdwg.mxu0
    %v7299 = vunpack.c.l.b16 %v6799
    %v7300 = vunpack.c.l.b16 %v6800
    %v7301 = vunpack.c.l.b16 %v6801
    %v7302 = vunpack.c.l.b16 %v6802
    %v7303 = vpack.c.b16 %v7300, %v7299
    %v7304 = vpack.c.b16 %v7302, %v7301
    %v7306 = vsel %vm308, %v6797, 0
    %v7309 = vsel %vm308, %v7303, 0
    %v7312 = vsel %vm308, %v7304, 0
    %7314 = vmatprep.subr.bf16.mxu0 0
    %7315 = vmatpush1.bf16.xpose.msra.mxu0 %v7309
    %7316 = vmatprep.subr.bf16.mxu0 0
    %7317 = vmatpush1.bf16.xpose.msra.mxu0 %v7312
    %7318 = vmatprep.subr.bf16.mxu0 0
    %7319 = vmatpush1.bf16.xpose.msra.mxu0 0
    %7320 = vmatprep.subr.bf16.mxu0 0
    %7321 = vmatpush1.bf16.xpose.msra.mxu0 0
    %7322 = vmatprep.subr.bf16.mxu0 0
    %7323 = vmatpush1.bf16.xpose.msra.mxu0 0
    %7324 = vmatprep.subr.bf16.mxu0 0
    %7325 = vmatpush1.bf16.xpose.msra.mxu0 0
    %7326 = vmatprep.subr.bf16.mxu0 0
    %7327 = vmatpush1.bf16.xpose.msra.mxu0 0
    %7328 = vmatprep.subr.bf16.mxu0 0
    %7329 = vmatpush1.bf16.xpose.msra.mxu0 0
    %7330 = vmatprep.subr.bf16.mxu0 0
    %7331 = vmatpush1.bf16.xpose.msra.mxu0 0
    %7332 = vmatprep.subr.bf16.mxu0 0
    %7333 = vmatpush1.bf16.xpose.msra.mxu0 0
    %7334 = vmatprep.subr.bf16.mxu0 0
    %7335 = vmatpush1.bf16.xpose.msra.mxu0 0
    %7336 = vmatprep.subr.bf16.mxu0 0
    %7337 = vmatpush1.bf16.xpose.msra.mxu0 0
    %7338 = vmatprep.subr.bf16.mxu0 0
    %7339 = vmatpush1.bf16.xpose.msra.mxu0 0
    %7340 = vmatprep.subr.bf16.mxu0 0
    %7341 = vmatpush1.bf16.xpose.msra.mxu0 0
    %7342 = vmatprep.subr.bf16.mxu0 0
    %7343 = vmatpush1.bf16.xpose.msra.mxu0 0
    %7344 = vmatprep.subr.bf16.mxu0 0
    %7345 = vmatpush1.bf16.xpose.msra.mxu0 0
    %7346 = vmatprep.mubr.bf16.mxu0 0
    %7347 = vmatmul.mubr.bf16.gmra.mrb[0].mxu0 %v7306
    %v7348 = vpop.f32.mrb[0].mxu0
    %v7349 = vadd.f32 %v7289, %v7348
    %v7350 = vpop.f32.mrb[0].mxu0
    %v7351 = vpop.f32.mrb[0].mxu0
    %v7352 = vadd.f32 %v7292, %v7351
    %v7353 = vpop.f32.mrb[0].mxu0
    %7354 = vdwg.mxu0
    %s7355 = scalar_lea.vmem %s4, 608
    %v7356 = vld [vmem:[%s7355] sm:$0xf]
    %v7357 = vld [vmem:[%s7355 + $0x4] sm:$0xf]
    %v7358 = vld [vmem:[%s7355 + $0x8] sm:$0xf]
    %v7359 = vld [vmem:[%s7355 + $0xc] sm:$0xf]
    %s7360 = scalar_lea.vmem %s7, 38
    %v7361 = vld [vmem:[%s7360] sm:$0x1]
    %v7363 = vlaneseq
    %v7364 = vshrl.u32 %v7363, 7
    %v7365 = vsub.s32 0, %v7364
    %v7366 = vrot.slane %v7361, %v7365
    %v7372 = vunpack.c.l.b16 %v7356
    %v7373 = vunpack.c.l.b16 %v7357
    %v7374 = vunpack.c.l.b16 %v7358
    %v7375 = vunpack.c.l.b16 %v7359
    %v7376 = vpack.c.b16 %v7373, %v7372
    %v7377 = vpack.c.b16 %v7375, %v7374
    %7380 = vmatprep.subr.bf16.mxu0 0
    %7381 = vmatpush1.bf16.msra.mxu0 %v7376
    %7382 = vmatprep.subr.bf16.mxu0 0
    %7383 = vmatpush1.bf16.msra.mxu0 %v7377
    %7384 = vmatprep.subr.bf16.mxu0 0
    %7385 = vmatpush1.bf16.msra.mxu0 0
    %7386 = vmatprep.subr.bf16.mxu0 0
    %7387 = vmatpush1.bf16.msra.mxu0 0
    %7388 = vmatprep.subr.bf16.mxu0 0
    %7389 = vmatpush1.bf16.msra.mxu0 0
    %7390 = vmatprep.subr.bf16.mxu0 0
    %7391 = vmatpush1.bf16.msra.mxu0 0
    %7392 = vmatprep.subr.bf16.mxu0 0
    %7393 = vmatpush1.bf16.msra.mxu0 0
    %7394 = vmatprep.subr.bf16.mxu0 0
    %7395 = vmatpush1.bf16.msra.mxu0 0
    %7396 = vmatprep.subr.bf16.mxu0 0
    %7397 = vmatpush1.bf16.msra.mxu0 0
    %7398 = vmatprep.subr.bf16.mxu0 0
    %7399 = vmatpush1.bf16.msra.mxu0 0
    %7400 = vmatprep.subr.bf16.mxu0 0
    %7401 = vmatpush1.bf16.msra.mxu0 0
    %7402 = vmatprep.subr.bf16.mxu0 0
    %7403 = vmatpush1.bf16.msra.mxu0 0
    %7404 = vmatprep.subr.bf16.mxu0 0
    %7405 = vmatpush1.bf16.msra.mxu0 0
    %7406 = vmatprep.subr.bf16.mxu0 0
    %7407 = vmatpush1.bf16.msra.mxu0 0
    %7408 = vmatprep.subr.bf16.mxu0 0
    %7409 = vmatpush1.bf16.msra.mxu0 0
    %7410 = vmatprep.subr.bf16.mxu0 0
    %7411 = vmatpush1.bf16.msra.mxu0 0
    %7412 = vmatprep.mubr.bf16.mxu0 0
    %7413 = vmatmul.mubr.bf16.gmra.mrb[0].mxu0 %v6394
    %v7414 = vpop.f32.mrb[0].mxu0
    %v7415 = vadd.f32 %v7366, %v7414
    %v7416 = vpop.f32.mrb[0].mxu0
    %v7417 = vpop.f32.mrb[0].mxu0
    %v7418 = vadd.f32 %v7366, %v7417
    %v7419 = vpop.f32.mrb[0].mxu0
    %7420 = vdwg.mxu0
    %s7421 = scalar_lea.vmem %s4, 672
    %v7422 = vld [vmem:[%s7421] sm:$0xf]
    %v7423 = vld [vmem:[%s7421 + $0x4] sm:$0xf]
    %v7424 = vld [vmem:[%s7421 + $0x8] sm:$0xf]
    %v7425 = vld [vmem:[%s7421 + $0xc] sm:$0xf]
    %s7426 = scalar_lea.vmem %s7, 42
    %v7427 = vld [vmem:[%s7426] sm:$0x1]
    %v7429 = vlaneseq
    %v7430 = vshrl.u32 %v7429, 7
    %v7431 = vsub.s32 0, %v7430
    %v7432 = vrot.slane %v7427, %v7431
    %v7438 = vunpack.c.l.b16 %v7422
    %v7439 = vunpack.c.l.b16 %v7423
    %v7440 = vunpack.c.l.b16 %v7424
    %v7441 = vunpack.c.l.b16 %v7425
    %v7442 = vpack.c.b16 %v7439, %v7438
    %v7443 = vpack.c.b16 %v7441, %v7440
    %7446 = vmatprep.subr.bf16.mxu0 0
    %7447 = vmatpush1.bf16.msra.mxu0 %v7442
    %7448 = vmatprep.subr.bf16.mxu0 0
    %7449 = vmatpush1.bf16.msra.mxu0 %v7443
    %7450 = vmatprep.subr.bf16.mxu0 0
    %7451 = vmatpush1.bf16.msra.mxu0 0
    %7452 = vmatprep.subr.bf16.mxu0 0
    %7453 = vmatpush1.bf16.msra.mxu0 0
    %7454 = vmatprep.subr.bf16.mxu0 0
    %7455 = vmatpush1.bf16.msra.mxu0 0
    %7456 = vmatprep.subr.bf16.mxu0 0
    %7457 = vmatpush1.bf16.msra.mxu0 0
    %7458 = vmatprep.subr.bf16.mxu0 0
    %7459 = vmatpush1.bf16.msra.mxu0 0
    %7460 = vmatprep.subr.bf16.mxu0 0
    %7461 = vmatpush1.bf16.msra.mxu0 0
    %7462 = vmatprep.subr.bf16.mxu0 0
    %7463 = vmatpush1.bf16.msra.mxu0 0
    %7464 = vmatprep.subr.bf16.mxu0 0
    %7465 = vmatpush1.bf16.msra.mxu0 0
    %7466 = vmatprep.subr.bf16.mxu0 0
    %7467 = vmatpush1.bf16.msra.mxu0 0
    %7468 = vmatprep.subr.bf16.mxu0 0
    %7469 = vmatpush1.bf16.msra.mxu0 0
    %7470 = vmatprep.subr.bf16.mxu0 0
    %7471 = vmatpush1.bf16.msra.mxu0 0
    %7472 = vmatprep.subr.bf16.mxu0 0
    %7473 = vmatpush1.bf16.msra.mxu0 0
    %7474 = vmatprep.subr.bf16.mxu0 0
    %7475 = vmatpush1.bf16.msra.mxu0 0
    %7476 = vmatprep.subr.bf16.mxu0 0
    %7477 = vmatpush1.bf16.msra.mxu0 0
    %7478 = vmatprep.mubr.bf16.mxu0 0
    %7479 = vmatmul.mubr.bf16.gmra.mrb[0].mxu0 %v2210
    %v7480 = vpop.f32.mrb[0].mxu0
    %v7481 = vadd.f32 %v7432, %v7480
    %v7482 = vpop.f32.mrb[0].mxu0
    %v7483 = vpop.f32.mrb[0].mxu0
    %v7484 = vadd.f32 %v7432, %v7483
    %v7485 = vpop.f32.mrb[0].mxu0
    %7486 = vmatprep.mubr.bf16.mxu0 0
    %7487 = vmatmul.mubr.bf16.gmra.mrb[0].mxu0 %v2213
    %v7488 = vpop.f32.mrb[0].mxu0
    %v7489 = vadd.f32 %v7432, %v7488
    %v7490 = vpop.f32.mrb[0].mxu0
    %v7491 = vpop.f32.mrb[0].mxu0
    %v7492 = vadd.f32 %v7432, %v7491
    %v7493 = vpop.f32.mrb[0].mxu0
    %7494 = vdwg.mxu0
    %s7495 = scalar_lea.vmem %s4, 736
    %v7496 = vld [vmem:[%s7495] sm:$0xf]
    %v7497 = vld [vmem:[%s7495 + $0x4] sm:$0xf]
    %v7498 = vld [vmem:[%s7495 + $0x8] sm:$0xf]
    %v7499 = vld [vmem:[%s7495 + $0xc] sm:$0xf]
    %s7500 = scalar_lea.vmem %s7, 46
    %v7501 = vld [vmem:[%s7500] sm:$0x1]
    %v7503 = vlaneseq
    %v7504 = vshrl.u32 %v7503, 7
    %v7505 = vsub.s32 0, %v7504
    %v7506 = vrot.slane %v7501, %v7505
    %v7512 = vunpack.c.l.b16 %v7496
    %v7513 = vunpack.c.l.b16 %v7497
    %v7514 = vunpack.c.l.b16 %v7498
    %v7515 = vunpack.c.l.b16 %v7499
    %v7516 = vpack.c.b16 %v7513, %v7512
    %v7517 = vpack.c.b16 %v7515, %v7514
    %7520 = vmatprep.subr.bf16.mxu0 0
    %7521 = vmatpush1.bf16.msra.mxu0 %v7516
    %7522 = vmatprep.subr.bf16.mxu0 0
    %7523 = vmatpush1.bf16.msra.mxu0 %v7517
    %7524 = vmatprep.subr.bf16.mxu0 0
    %7525 = vmatpush1.bf16.msra.mxu0 0
    %7526 = vmatprep.subr.bf16.mxu0 0
    %7527 = vmatpush1.bf16.msra.mxu0 0
    %7528 = vmatprep.subr.bf16.mxu0 0
    %7529 = vmatpush1.bf16.msra.mxu0 0
    %7530 = vmatprep.subr.bf16.mxu0 0
    %7531 = vmatpush1.bf16.msra.mxu0 0
    %7532 = vmatprep.subr.bf16.mxu0 0
    %7533 = vmatpush1.bf16.msra.mxu0 0
    %7534 = vmatprep.subr.bf16.mxu0 0
    %7535 = vmatpush1.bf16.msra.mxu0 0
    %7536 = vmatprep.subr.bf16.mxu0 0
    %7537 = vmatpush1.bf16.msra.mxu0 0
    %7538 = vmatprep.subr.bf16.mxu0 0
    %7539 = vmatpush1.bf16.msra.mxu0 0
    %7540 = vmatprep.subr.bf16.mxu0 0
    %7541 = vmatpush1.bf16.msra.mxu0 0
    %7542 = vmatprep.subr.bf16.mxu0 0
    %7543 = vmatpush1.bf16.msra.mxu0 0
    %7544 = vmatprep.subr.bf16.mxu0 0
    %7545 = vmatpush1.bf16.msra.mxu0 0
    %7546 = vmatprep.subr.bf16.mxu0 0
    %7547 = vmatpush1.bf16.msra.mxu0 0
    %7548 = vmatprep.subr.bf16.mxu0 0
    %7549 = vmatpush1.bf16.msra.mxu0 0
    %7550 = vmatprep.subr.bf16.mxu0 0
    %7551 = vmatpush1.bf16.msra.mxu0 0
    %7552 = vmatprep.mubr.bf16.mxu0 0
    %7553 = vmatmul.mubr.bf16.gmra.mrb[0].mxu0 %v2210
    %v7554 = vpop.f32.mrb[0].mxu0
    %v7555 = vadd.f32 %v7506, %v7554
    %v7556 = vpop.f32.mrb[0].mxu0
    %v7557 = vpop.f32.mrb[0].mxu0
    %v7558 = vadd.f32 %v7506, %v7557
    %v7559 = vpop.f32.mrb[0].mxu0
    %7560 = vmatprep.mubr.bf16.mxu0 0
    %7561 = vmatmul.mubr.bf16.gmra.mrb[0].mxu0 %v2213
    %v7562 = vpop.f32.mrb[0].mxu0
    %v7563 = vadd.f32 %v7506, %v7562
    %v7564 = vpop.f32.mrb[0].mxu0
    %v7565 = vpop.f32.mrb[0].mxu0
    %v7566 = vadd.f32 %v7506, %v7565
    %v7567 = vpop.f32.mrb[0].mxu0
    %7568 = vdwg.mxu0
    %v7569 = vpack.c.bf16 %v7415, %v7415
    %v7570 = vpack.c.bf16 %v7418, %v7418
    %v7571 = vpack.c.bf16 %v7484, %v7481
    %v7572 = vpack.c.bf16 %v7492, %v7489
    %v7573 = vpack.c.bf16 %v7558, %v7555
    %v7574 = vpack.c.bf16 %v7566, %v7563
    %v7576 = vsel %vm308, %v7569, 0
    %v7579 = vsel %vm308, %v7571, 0
    %7581 = vmatprep.subr.bf16.mxu0 0
    %7582 = vmatpush1.bf16.xpose.msra.mxu0 %v7579
    %7583 = vmatprep.subr.bf16.mxu0 0
    %7584 = vmatpush1.bf16.xpose.msra.mxu0 0
    %7585 = vmatprep.subr.bf16.mxu0 0
    %7586 = vmatpush1.bf16.xpose.msra.mxu0 0
    %7587 = vmatprep.subr.bf16.mxu0 0
    %7588 = vmatpush1.bf16.xpose.msra.mxu0 0
    %7589 = vmatprep.subr.bf16.mxu0 0
    %7590 = vmatpush1.bf16.xpose.msra.mxu0 0
    %7591 = vmatprep.subr.bf16.mxu0 0
    %7592 = vmatpush1.bf16.xpose.msra.mxu0 0
    %7593 = vmatprep.subr.bf16.mxu0 0
    %7594 = vmatpush1.bf16.xpose.msra.mxu0 0
    %7595 = vmatprep.subr.bf16.mxu0 0
    %7596 = vmatpush1.bf16.xpose.msra.mxu0 0
    %7597 = vmatprep.subr.bf16.mxu0 0
    %7598 = vmatpush1.bf16.xpose.msra.mxu0 0
    %7599 = vmatprep.subr.bf16.mxu0 0
    %7600 = vmatpush1.bf16.xpose.msra.mxu0 0
    %7601 = vmatprep.subr.bf16.mxu0 0
    %7602 = vmatpush1.bf16.xpose.msra.mxu0 0
    %7603 = vmatprep.subr.bf16.mxu0 0
    %7604 = vmatpush1.bf16.xpose.msra.mxu0 0
    %7605 = vmatprep.subr.bf16.mxu0 0
    %7606 = vmatpush1.bf16.xpose.msra.mxu0 0
    %7607 = vmatprep.subr.bf16.mxu0 0
    %7608 = vmatpush1.bf16.xpose.msra.mxu0 0
    %7609 = vmatprep.subr.bf16.mxu0 0
    %7610 = vmatpush1.bf16.xpose.msra.mxu0 0
    %7611 = vmatprep.subr.bf16.mxu0 0
    %7612 = vmatpush1.bf16.xpose.msra.mxu0 0
    %7613 = vmatprep.mubr.bf16.mxu0 0
    %7614 = vmatmul.mubr.bf16.gmra.mrb[0].mxu0 %v7576
    %v7615 = vpop.f32.mrb[0].mxu0
    %v7616 = vadd.f32 0.0, %v7615
    %v7617 = vpop.f32.mrb[0].mxu0
    %v7618 = vpop.f32.mrb[0].mxu0
    %v7619 = vpop.f32.mrb[0].mxu0
    %7620 = vdwg.mxu0
    %v7622 = vsel %vm308, %v7570, 0
    %v7625 = vsel %vm308, %v7572, 0
    %7627 = vmatprep.subr.bf16.mxu0 0
    %7628 = vmatpush1.bf16.xpose.msra.mxu0 %v7625
    %7629 = vmatprep.subr.bf16.mxu0 0
    %7630 = vmatpush1.bf16.xpose.msra.mxu0 0
    %7631 = vmatprep.subr.bf16.mxu0 0
    %7632 = vmatpush1.bf16.xpose.msra.mxu0 0
    %7633 = vmatprep.subr.bf16.mxu0 0
    %7634 = vmatpush1.bf16.xpose.msra.mxu0 0
    %7635 = vmatprep.subr.bf16.mxu0 0
    %7636 = vmatpush1.bf16.xpose.msra.mxu0 0
    %7637 = vmatprep.subr.bf16.mxu0 0
    %7638 = vmatpush1.bf16.xpose.msra.mxu0 0
    %7639 = vmatprep.subr.bf16.mxu0 0
    %7640 = vmatpush1.bf16.xpose.msra.mxu0 0
    %7641 = vmatprep.subr.bf16.mxu0 0
    %7642 = vmatpush1.bf16.xpose.msra.mxu0 0
    %7643 = vmatprep.subr.bf16.mxu0 0
    %7644 = vmatpush1.bf16.xpose.msra.mxu0 0
    %7645 = vmatprep.subr.bf16.mxu0 0
    %7646 = vmatpush1.bf16.xpose.msra.mxu0 0
    %7647 = vmatprep.subr.bf16.mxu0 0
    %7648 = vmatpush1.bf16.xpose.msra.mxu0 0
    %7649 = vmatprep.subr.bf16.mxu0 0
    %7650 = vmatpush1.bf16.xpose.msra.mxu0 0
    %7651 = vmatprep.subr.bf16.mxu0 0
    %7652 = vmatpush1.bf16.xpose.msra.mxu0 0
    %7653 = vmatprep.subr.bf16.mxu0 0
    %7654 = vmatpush1.bf16.xpose.msra.mxu0 0
    %7655 = vmatprep.subr.bf16.mxu0 0
    %7656 = vmatpush1.bf16.xpose.msra.mxu0 0
    %7657 = vmatprep.subr.bf16.mxu0 0
    %7658 = vmatpush1.bf16.xpose.msra.mxu0 0
    %7659 = vmatprep.mubr.bf16.mxu0 0
    %7660 = vmatmul.mubr.bf16.gmra.mrb[0].mxu0 %v7622
    %v7661 = vpop.f32.mrb[0].mxu0
    %v7662 = vadd.f32 0.0, %v7661
    %v7663 = vpop.f32.mrb[0].mxu0
    %v7664 = vpop.f32.mrb[0].mxu0
    %v7665 = vpop.f32.mrb[0].mxu0
    %7666 = vdwg.mxu0
    %v7667 = vmul.f32 %v7616, 0.35355338
    %v7668 = vmul.f32 %v7662, 0.35355338
    %v7669 = vsel %vm2113, %v7667, -1e+09
    %v7670 = vsel %vm2114, %v7668, -1e+09
    %v7671 = vsel %vm2440, %v7669, -inf
    %7672 = vmax.xlane.f32.xlu0 %v7671
    %v7673 = vpop.xlane.xlu0 %7672
    %v7674 = vsel %vm2440, %v7670, -inf
    %7675 = vmax.xlane.f32.xlu0 %v7674
    %v7676 = vpop.xlane.xlu0 %7675
    %v7677 = vsub.f32 %v7669, %v7673
    %v7678 = vsub.f32 %v7670, %v7676
    %v7679 = vmul.f32 %v7677, 1.442695
    %v7680 = vpow.pop %v7679
    %v7681 = vmul.f32 %v7678, 1.442695
    %v7682 = vpow.pop %v7681
    %v7683 = vsel %vm2440, %v7680, 0.0
    %7684 = vadd.xlane.f32.xlu0 %v7683
    %v7685 = vpop.xlane.xlu0 %7684
    %v7686 = vsel %vm2440, %v7682, 0.0
    %7687 = vadd.xlane.f32.xlu0 %v7686
    %v7688 = vpop.xlane.xlu0 %7687
    %v7689 = vrcp.pop %v7685
    %v7690 = vrcp.pop %v7688
    %v7691 = vmul.f32 %v7680, %v7689
    %v7692 = vmul.f32 %v7682, %v7690
    %v7693 = vpack.c.bf16 %v7691, %v7691
    %v7694 = vpack.c.bf16 %v7692, %v7692
    %v7696 = vsel %vm2440, %v7693, 0
    %7698 = vmatprep.subr.bf16.mxu0 0
    %7699 = vmatpush1.bf16.msra.mxu0 %v7573
    %7700 = vmatprep.subr.bf16.mxu0 0
    %7701 = vmatpush1.bf16.msra.mxu0 0
    %7702 = vmatprep.subr.bf16.mxu0 0
    %7703 = vmatpush1.bf16.msra.mxu0 0
    %7704 = vmatprep.subr.bf16.mxu0 0
    %7705 = vmatpush1.bf16.msra.mxu0 0
    %7706 = vmatprep.subr.bf16.mxu0 0
    %7707 = vmatpush1.bf16.msra.mxu0 0
    %7708 = vmatprep.subr.bf16.mxu0 0
    %7709 = vmatpush1.bf16.msra.mxu0 0
    %7710 = vmatprep.subr.bf16.mxu0 0
    %7711 = vmatpush1.bf16.msra.mxu0 0
    %7712 = vmatprep.subr.bf16.mxu0 0
    %7713 = vmatpush1.bf16.msra.mxu0 0
    %7714 = vmatprep.subr.bf16.mxu0 0
    %7715 = vmatpush1.bf16.msra.mxu0 0
    %7716 = vmatprep.subr.bf16.mxu0 0
    %7717 = vmatpush1.bf16.msra.mxu0 0
    %7718 = vmatprep.subr.bf16.mxu0 0
    %7719 = vmatpush1.bf16.msra.mxu0 0
    %7720 = vmatprep.subr.bf16.mxu0 0
    %7721 = vmatpush1.bf16.msra.mxu0 0
    %7722 = vmatprep.subr.bf16.mxu0 0
    %7723 = vmatpush1.bf16.msra.mxu0 0
    %7724 = vmatprep.subr.bf16.mxu0 0
    %7725 = vmatpush1.bf16.msra.mxu0 0
    %7726 = vmatprep.subr.bf16.mxu0 0
    %7727 = vmatpush1.bf16.msra.mxu0 0
    %7728 = vmatprep.subr.bf16.mxu0 0
    %7729 = vmatpush1.bf16.msra.mxu0 0
    %7730 = vmatprep.mubr.bf16.mxu0 0
    %7731 = vmatmul.mubr.bf16.gmra.mrb[0].mxu0 %v7696
    %v7732 = vpop.f32.mrb[0].mxu0
    %v7733 = vadd.f32 0.0, %v7732
    %v7734 = vpop.f32.mrb[0].mxu0
    %v7735 = vpop.f32.mrb[0].mxu0
    %v7736 = vpop.f32.mrb[0].mxu0
    %7737 = vdwg.mxu0
    %v7739 = vsel %vm2440, %v7694, 0
    %7741 = vmatprep.subr.bf16.mxu0 0
    %7742 = vmatpush1.bf16.msra.mxu0 %v7574
    %7743 = vmatprep.subr.bf16.mxu0 0
    %7744 = vmatpush1.bf16.msra.mxu0 0
    %7745 = vmatprep.subr.bf16.mxu0 0
    %7746 = vmatpush1.bf16.msra.mxu0 0
    %7747 = vmatprep.subr.bf16.mxu0 0
    %7748 = vmatpush1.bf16.msra.mxu0 0
    %7749 = vmatprep.subr.bf16.mxu0 0
    %7750 = vmatpush1.bf16.msra.mxu0 0
    %7751 = vmatprep.subr.bf16.mxu0 0
    %7752 = vmatpush1.bf16.msra.mxu0 0
    %7753 = vmatprep.subr.bf16.mxu0 0
    %7754 = vmatpush1.bf16.msra.mxu0 0
    %7755 = vmatprep.subr.bf16.mxu0 0
    %7756 = vmatpush1.bf16.msra.mxu0 0
    %7757 = vmatprep.subr.bf16.mxu0 0
    %7758 = vmatpush1.bf16.msra.mxu0 0
    %7759 = vmatprep.subr.bf16.mxu0 0
    %7760 = vmatpush1.bf16.msra.mxu0 0
    %7761 = vmatprep.subr.bf16.mxu0 0
    %7762 = vmatpush1.bf16.msra.mxu0 0
    %7763 = vmatprep.subr.bf16.mxu0 0
    %7764 = vmatpush1.bf16.msra.mxu0 0
    %7765 = vmatprep.subr.bf16.mxu0 0
    %7766 = vmatpush1.bf16.msra.mxu0 0
    %7767 = vmatprep.subr.bf16.mxu0 0
    %7768 = vmatpush1.bf16.msra.mxu0 0
    %7769 = vmatprep.subr.bf16.mxu0 0
    %7770 = vmatpush1.bf16.msra.mxu0 0
    %7771 = vmatprep.subr.bf16.mxu0 0
    %7772 = vmatpush1.bf16.msra.mxu0 0
    %7773 = vmatprep.mubr.bf16.mxu0 0
    %7774 = vmatmul.mubr.bf16.gmra.mrb[0].mxu0 %v7739
    %v7775 = vpop.f32.mrb[0].mxu0
    %v7776 = vadd.f32 0.0, %v7775
    %v7777 = vpop.f32.mrb[0].mxu0
    %v7778 = vpop.f32.mrb[0].mxu0
    %v7779 = vpop.f32.mrb[0].mxu0
    %7780 = vdwg.mxu0
    %v7781 = vpack.c.bf16 %v7776, %v7733
    %s7782 = scalar_lea.vmem %s4, 992
    %v7783 = vld [vmem:[%s7782] sm:$0xf]
    %v7784 = vld [vmem:[%s7782 + $0x4] sm:$0xf]
    %v7785 = vld [vmem:[%s7782 + $0x8] sm:$0xf]
    %v7786 = vld [vmem:[%s7782 + $0xc] sm:$0xf]
    %v7791 = vunpack.c.l.b16 %v7783
    %v7792 = vunpack.c.l.b16 %v7784
    %v7793 = vunpack.c.l.b16 %v7785
    %v7794 = vunpack.c.l.b16 %v7786
    %v7795 = vpack.c.b16 %v7792, %v7791
    %v7796 = vpack.c.b16 %v7794, %v7793
    %v7798 = vsel %vm308, %v7781, 0
    %v7801 = vsel %vm308, %v7795, 0
    %v7804 = vsel %vm308, %v7796, 0
    %7806 = vmatprep.subr.bf16.mxu0 0
    %7807 = vmatpush1.bf16.xpose.msra.mxu0 %v7801
    %7808 = vmatprep.subr.bf16.mxu0 0
    %7809 = vmatpush1.bf16.xpose.msra.mxu0 %v7804
    %7810 = vmatprep.subr.bf16.mxu0 0
    %7811 = vmatpush1.bf16.xpose.msra.mxu0 0
    %7812 = vmatprep.subr.bf16.mxu0 0
    %7813 = vmatpush1.bf16.xpose.msra.mxu0 0
    %7814 = vmatprep.subr.bf16.mxu0 0
    %7815 = vmatpush1.bf16.xpose.msra.mxu0 0
    %7816 = vmatprep.subr.bf16.mxu0 0
    %7817 = vmatpush1.bf16.xpose.msra.mxu0 0
    %7818 = vmatprep.subr.bf16.mxu0 0
    %7819 = vmatpush1.bf16.xpose.msra.mxu0 0
    %7820 = vmatprep.subr.bf16.mxu0 0
    %7821 = vmatpush1.bf16.xpose.msra.mxu0 0
    %7822 = vmatprep.subr.bf16.mxu0 0
    %7823 = vmatpush1.bf16.xpose.msra.mxu0 0
    %7824 = vmatprep.subr.bf16.mxu0 0
    %7825 = vmatpush1.bf16.xpose.msra.mxu0 0
    %7826 = vmatprep.subr.bf16.mxu0 0
    %7827 = vmatpush1.bf16.xpose.msra.mxu0 0
    %7828 = vmatprep.subr.bf16.mxu0 0
    %7829 = vmatpush1.bf16.xpose.msra.mxu0 0
    %7830 = vmatprep.subr.bf16.mxu0 0
    %7831 = vmatpush1.bf16.xpose.msra.mxu0 0
    %7832 = vmatprep.subr.bf16.mxu0 0
    %7833 = vmatpush1.bf16.xpose.msra.mxu0 0
    %7834 = vmatprep.subr.bf16.mxu0 0
    %7835 = vmatpush1.bf16.xpose.msra.mxu0 0
    %7836 = vmatprep.subr.bf16.mxu0 0
    %7837 = vmatpush1.bf16.xpose.msra.mxu0 0
    %7838 = vmatprep.mubr.bf16.mxu0 0
    %7839 = vmatmul.mubr.bf16.gmra.mrb[0].mxu0 %v7798
    %v7840 = vpop.f32.mrb[0].mxu0
    %v7841 = vadd.f32 0.0, %v7840
    %v7842 = vpop.f32.mrb[0].mxu0
    %v7843 = vpop.f32.mrb[0].mxu0
    %v7844 = vadd.f32 0.0, %v7843
    %v7845 = vpop.f32.mrb[0].mxu0
    %7846 = vdwg.mxu0
    %v7847 = vadd.f32 %v7349, %v7841
    %v7848 = vadd.f32 %v7352, %v7844
    %s7849 = scalar_lea.vmem %s4, 624
    %v7850 = vld [vmem:[%s7849] sm:$0xf]
    %v7851 = vld [vmem:[%s7849 + $0x4] sm:$0xf]
    %v7852 = vld [vmem:[%s7849 + $0x8] sm:$0xf]
    %v7853 = vld [vmem:[%s7849 + $0xc] sm:$0xf]
    %s7854 = scalar_lea.vmem %s7, 39
    %v7855 = vld [vmem:[%s7854] sm:$0x1]
    %v7857 = vlaneseq
    %v7858 = vshrl.u32 %v7857, 7
    %v7859 = vsub.s32 0, %v7858
    %v7860 = vrot.slane %v7855, %v7859
    %v7866 = vunpack.c.l.b16 %v7850
    %v7867 = vunpack.c.l.b16 %v7851
    %v7868 = vunpack.c.l.b16 %v7852
    %v7869 = vunpack.c.l.b16 %v7853
    %v7870 = vpack.c.b16 %v7867, %v7866
    %v7871 = vpack.c.b16 %v7869, %v7868
    %7874 = vmatprep.subr.bf16.mxu0 0
    %7875 = vmatpush1.bf16.msra.mxu0 %v7870
    %7876 = vmatprep.subr.bf16.mxu0 0
    %7877 = vmatpush1.bf16.msra.mxu0 %v7871
    %7878 = vmatprep.subr.bf16.mxu0 0
    %7879 = vmatpush1.bf16.msra.mxu0 0
    %7880 = vmatprep.subr.bf16.mxu0 0
    %7881 = vmatpush1.bf16.msra.mxu0 0
    %7882 = vmatprep.subr.bf16.mxu0 0
    %7883 = vmatpush1.bf16.msra.mxu0 0
    %7884 = vmatprep.subr.bf16.mxu0 0
    %7885 = vmatpush1.bf16.msra.mxu0 0
    %7886 = vmatprep.subr.bf16.mxu0 0
    %7887 = vmatpush1.bf16.msra.mxu0 0
    %7888 = vmatprep.subr.bf16.mxu0 0
    %7889 = vmatpush1.bf16.msra.mxu0 0
    %7890 = vmatprep.subr.bf16.mxu0 0
    %7891 = vmatpush1.bf16.msra.mxu0 0
    %7892 = vmatprep.subr.bf16.mxu0 0
    %7893 = vmatpush1.bf16.msra.mxu0 0
    %7894 = vmatprep.subr.bf16.mxu0 0
    %7895 = vmatpush1.bf16.msra.mxu0 0
    %7896 = vmatprep.subr.bf16.mxu0 0
    %7897 = vmatpush1.bf16.msra.mxu0 0
    %7898 = vmatprep.subr.bf16.mxu0 0
    %7899 = vmatpush1.bf16.msra.mxu0 0
    %7900 = vmatprep.subr.bf16.mxu0 0
    %7901 = vmatpush1.bf16.msra.mxu0 0
    %7902 = vmatprep.subr.bf16.mxu0 0
    %7903 = vmatpush1.bf16.msra.mxu0 0
    %7904 = vmatprep.subr.bf16.mxu0 0
    %7905 = vmatpush1.bf16.msra.mxu0 0
    %7906 = vmatprep.mubr.bf16.mxu0 0
    %7907 = vmatmul.mubr.bf16.gmra.mrb[0].mxu0 %v6394
    %v7908 = vpop.f32.mrb[0].mxu0
    %v7909 = vadd.f32 %v7860, %v7908
    %v7910 = vpop.f32.mrb[0].mxu0
    %v7911 = vpop.f32.mrb[0].mxu0
    %v7912 = vadd.f32 %v7860, %v7911
    %v7913 = vpop.f32.mrb[0].mxu0
    %7914 = vdwg.mxu0
    %s7915 = scalar_lea.vmem %s4, 688
    %v7916 = vld [vmem:[%s7915] sm:$0xf]
    %v7917 = vld [vmem:[%s7915 + $0x4] sm:$0xf]
    %v7918 = vld [vmem:[%s7915 + $0x8] sm:$0xf]
    %v7919 = vld [vmem:[%s7915 + $0xc] sm:$0xf]
    %s7920 = scalar_lea.vmem %s7, 43
    %v7921 = vld [vmem:[%s7920] sm:$0x1]
    %v7923 = vlaneseq
    %v7924 = vshrl.u32 %v7923, 7
    %v7925 = vsub.s32 0, %v7924
    %v7926 = vrot.slane %v7921, %v7925
    %v7932 = vunpack.c.l.b16 %v7916
    %v7933 = vunpack.c.l.b16 %v7917
    %v7934 = vunpack.c.l.b16 %v7918
    %v7935 = vunpack.c.l.b16 %v7919
    %v7936 = vpack.c.b16 %v7933, %v7932
    %v7937 = vpack.c.b16 %v7935, %v7934
    %7940 = vmatprep.subr.bf16.mxu0 0
    %7941 = vmatpush1.bf16.msra.mxu0 %v7936
    %7942 = vmatprep.subr.bf16.mxu0 0
    %7943 = vmatpush1.bf16.msra.mxu0 %v7937
    %7944 = vmatprep.subr.bf16.mxu0 0
    %7945 = vmatpush1.bf16.msra.mxu0 0
    %7946 = vmatprep.subr.bf16.mxu0 0
    %7947 = vmatpush1.bf16.msra.mxu0 0
    %7948 = vmatprep.subr.bf16.mxu0 0
    %7949 = vmatpush1.bf16.msra.mxu0 0
    %7950 = vmatprep.subr.bf16.mxu0 0
    %7951 = vmatpush1.bf16.msra.mxu0 0
    %7952 = vmatprep.subr.bf16.mxu0 0
    %7953 = vmatpush1.bf16.msra.mxu0 0
    %7954 = vmatprep.subr.bf16.mxu0 0
    %7955 = vmatpush1.bf16.msra.mxu0 0
    %7956 = vmatprep.subr.bf16.mxu0 0
    %7957 = vmatpush1.bf16.msra.mxu0 0
    %7958 = vmatprep.subr.bf16.mxu0 0
    %7959 = vmatpush1.bf16.msra.mxu0 0
    %7960 = vmatprep.subr.bf16.mxu0 0
    %7961 = vmatpush1.bf16.msra.mxu0 0
    %7962 = vmatprep.subr.bf16.mxu0 0
    %7963 = vmatpush1.bf16.msra.mxu0 0
    %7964 = vmatprep.subr.bf16.mxu0 0
    %7965 = vmatpush1.bf16.msra.mxu0 0
    %7966 = vmatprep.subr.bf16.mxu0 0
    %7967 = vmatpush1.bf16.msra.mxu0 0
    %7968 = vmatprep.subr.bf16.mxu0 0
    %7969 = vmatpush1.bf16.msra.mxu0 0
    %7970 = vmatprep.subr.bf16.mxu0 0
    %7971 = vmatpush1.bf16.msra.mxu0 0
    %7972 = vmatprep.mubr.bf16.mxu0 0
    %7973 = vmatmul.mubr.bf16.gmra.mrb[0].mxu0 %v2210
    %v7974 = vpop.f32.mrb[0].mxu0
    %v7975 = vadd.f32 %v7926, %v7974
    %v7976 = vpop.f32.mrb[0].mxu0
    %v7977 = vpop.f32.mrb[0].mxu0
    %v7978 = vadd.f32 %v7926, %v7977
    %v7979 = vpop.f32.mrb[0].mxu0
    %7980 = vmatprep.mubr.bf16.mxu0 0
    %7981 = vmatmul.mubr.bf16.gmra.mrb[0].mxu0 %v2213
    %v7982 = vpop.f32.mrb[0].mxu0
    %v7983 = vadd.f32 %v7926, %v7982
    %v7984 = vpop.f32.mrb[0].mxu0
    %v7985 = vpop.f32.mrb[0].mxu0
    %v7986 = vadd.f32 %v7926, %v7985
    %v7987 = vpop.f32.mrb[0].mxu0
    %7988 = vdwg.mxu0
    %s7989 = scalar_lea.vmem %s4, 752
    %v7990 = vld [vmem:[%s7989] sm:$0xf]
    %v7991 = vld [vmem:[%s7989 + $0x4] sm:$0xf]
    %v7992 = vld [vmem:[%s7989 + $0x8] sm:$0xf]
    %v7993 = vld [vmem:[%s7989 + $0xc] sm:$0xf]
    %s7994 = scalar_lea.vmem %s7, 47
    %v7995 = vld [vmem:[%s7994] sm:$0x1]
    %v7997 = vlaneseq
    %v7998 = vshrl.u32 %v7997, 7
    %v7999 = vsub.s32 0, %v7998
    %v8000 = vrot.slane %v7995, %v7999
    %v8006 = vunpack.c.l.b16 %v7990
    %v8007 = vunpack.c.l.b16 %v7991
    %v8008 = vunpack.c.l.b16 %v7992
    %v8009 = vunpack.c.l.b16 %v7993
    %v8010 = vpack.c.b16 %v8007, %v8006
    %v8011 = vpack.c.b16 %v8009, %v8008
    %8014 = vmatprep.subr.bf16.mxu0 0
    %8015 = vmatpush1.bf16.msra.mxu0 %v8010
    %8016 = vmatprep.subr.bf16.mxu0 0
    %8017 = vmatpush1.bf16.msra.mxu0 %v8011
    %8018 = vmatprep.subr.bf16.mxu0 0
    %8019 = vmatpush1.bf16.msra.mxu0 0
    %8020 = vmatprep.subr.bf16.mxu0 0
    %8021 = vmatpush1.bf16.msra.mxu0 0
    %8022 = vmatprep.subr.bf16.mxu0 0
    %8023 = vmatpush1.bf16.msra.mxu0 0
    %8024 = vmatprep.subr.bf16.mxu0 0
    %8025 = vmatpush1.bf16.msra.mxu0 0
    %8026 = vmatprep.subr.bf16.mxu0 0
    %8027 = vmatpush1.bf16.msra.mxu0 0
    %8028 = vmatprep.subr.bf16.mxu0 0
    %8029 = vmatpush1.bf16.msra.mxu0 0
    %8030 = vmatprep.subr.bf16.mxu0 0
    %8031 = vmatpush1.bf16.msra.mxu0 0
    %8032 = vmatprep.subr.bf16.mxu0 0
    %8033 = vmatpush1.bf16.msra.mxu0 0
    %8034 = vmatprep.subr.bf16.mxu0 0
    %8035 = vmatpush1.bf16.msra.mxu0 0
    %8036 = vmatprep.subr.bf16.mxu0 0
    %8037 = vmatpush1.bf16.msra.mxu0 0
    %8038 = vmatprep.subr.bf16.mxu0 0
    %8039 = vmatpush1.bf16.msra.mxu0 0
    %8040 = vmatprep.subr.bf16.mxu0 0
    %8041 = vmatpush1.bf16.msra.mxu0 0
    %8042 = vmatprep.subr.bf16.mxu0 0
    %8043 = vmatpush1.bf16.msra.mxu0 0
    %8044 = vmatprep.subr.bf16.mxu0 0
    %8045 = vmatpush1.bf16.msra.mxu0 0
    %8046 = vmatprep.mubr.bf16.mxu0 0
    %8047 = vmatmul.mubr.bf16.gmra.mrb[0].mxu0 %v2210
    %v8048 = vpop.f32.mrb[0].mxu0
    %v8049 = vadd.f32 %v8000, %v8048
    %v8050 = vpop.f32.mrb[0].mxu0
    %v8051 = vpop.f32.mrb[0].mxu0
    %v8052 = vadd.f32 %v8000, %v8051
    %v8053 = vpop.f32.mrb[0].mxu0
    %8054 = vmatprep.mubr.bf16.mxu0 0
    %8055 = vmatmul.mubr.bf16.gmra.mrb[0].mxu0 %v2213
    %v8056 = vpop.f32.mrb[0].mxu0
    %v8057 = vadd.f32 %v8000, %v8056
    %v8058 = vpop.f32.mrb[0].mxu0
    %v8059 = vpop.f32.mrb[0].mxu0
    %v8060 = vadd.f32 %v8000, %v8059
    %v8061 = vpop.f32.mrb[0].mxu0
    %8062 = vdwg.mxu0
    %v8063 = vpack.c.bf16 %v7909, %v7909
    %v8064 = vpack.c.bf16 %v7912, %v7912
    %v8065 = vpack.c.bf16 %v7978, %v7975
    %v8066 = vpack.c.bf16 %v7986, %v7983
    %v8067 = vpack.c.bf16 %v8052, %v8049
    %v8068 = vpack.c.bf16 %v8060, %v8057
    %v8070 = vsel %vm308, %v8063, 0
    %v8073 = vsel %vm308, %v8065, 0
    %8075 = vmatprep.subr.bf16.mxu0 0
    %8076 = vmatpush1.bf16.xpose.msra.mxu0 %v8073
    %8077 = vmatprep.subr.bf16.mxu0 0
    %8078 = vmatpush1.bf16.xpose.msra.mxu0 0
    %8079 = vmatprep.subr.bf16.mxu0 0
    %8080 = vmatpush1.bf16.xpose.msra.mxu0 0
    %8081 = vmatprep.subr.bf16.mxu0 0
    %8082 = vmatpush1.bf16.xpose.msra.mxu0 0
    %8083 = vmatprep.subr.bf16.mxu0 0
    %8084 = vmatpush1.bf16.xpose.msra.mxu0 0
    %8085 = vmatprep.subr.bf16.mxu0 0
    %8086 = vmatpush1.bf16.xpose.msra.mxu0 0
    %8087 = vmatprep.subr.bf16.mxu0 0
    %8088 = vmatpush1.bf16.xpose.msra.mxu0 0
    %8089 = vmatprep.subr.bf16.mxu0 0
    %8090 = vmatpush1.bf16.xpose.msra.mxu0 0
    %8091 = vmatprep.subr.bf16.mxu0 0
    %8092 = vmatpush1.bf16.xpose.msra.mxu0 0
    %8093 = vmatprep.subr.bf16.mxu0 0
    %8094 = vmatpush1.bf16.xpose.msra.mxu0 0
    %8095 = vmatprep.subr.bf16.mxu0 0
    %8096 = vmatpush1.bf16.xpose.msra.mxu0 0
    %8097 = vmatprep.subr.bf16.mxu0 0
    %8098 = vmatpush1.bf16.xpose.msra.mxu0 0
    %8099 = vmatprep.subr.bf16.mxu0 0
    %8100 = vmatpush1.bf16.xpose.msra.mxu0 0
    %8101 = vmatprep.subr.bf16.mxu0 0
    %8102 = vmatpush1.bf16.xpose.msra.mxu0 0
    %8103 = vmatprep.subr.bf16.mxu0 0
    %8104 = vmatpush1.bf16.xpose.msra.mxu0 0
    %8105 = vmatprep.subr.bf16.mxu0 0
    %8106 = vmatpush1.bf16.xpose.msra.mxu0 0
    %8107 = vmatprep.mubr.bf16.mxu0 0
    %8108 = vmatmul.mubr.bf16.gmra.mrb[0].mxu0 %v8070
    %v8109 = vpop.f32.mrb[0].mxu0
    %v8110 = vadd.f32 0.0, %v8109
    %v8111 = vpop.f32.mrb[0].mxu0
    %v8112 = vpop.f32.mrb[0].mxu0
    %v8113 = vpop.f32.mrb[0].mxu0
    %8114 = vdwg.mxu0
    %v8116 = vsel %vm308, %v8064, 0
    %v8119 = vsel %vm308, %v8066, 0
    %8121 = vmatprep.subr.bf16.mxu0 0
    %8122 = vmatpush1.bf16.xpose.msra.mxu0 %v8119
    %8123 = vmatprep.subr.bf16.mxu0 0
    %8124 = vmatpush1.bf16.xpose.msra.mxu0 0
    %8125 = vmatprep.subr.bf16.mxu0 0
    %8126 = vmatpush1.bf16.xpose.msra.mxu0 0
    %8127 = vmatprep.subr.bf16.mxu0 0
    %8128 = vmatpush1.bf16.xpose.msra.mxu0 0
    %8129 = vmatprep.subr.bf16.mxu0 0
    %8130 = vmatpush1.bf16.xpose.msra.mxu0 0
    %8131 = vmatprep.subr.bf16.mxu0 0
    %8132 = vmatpush1.bf16.xpose.msra.mxu0 0
    %8133 = vmatprep.subr.bf16.mxu0 0
    %8134 = vmatpush1.bf16.xpose.msra.mxu0 0
    %8135 = vmatprep.subr.bf16.mxu0 0
    %8136 = vmatpush1.bf16.xpose.msra.mxu0 0
    %8137 = vmatprep.subr.bf16.mxu0 0
    %8138 = vmatpush1.bf16.xpose.msra.mxu0 0
    %8139 = vmatprep.subr.bf16.mxu0 0
    %8140 = vmatpush1.bf16.xpose.msra.mxu0 0
    %8141 = vmatprep.subr.bf16.mxu0 0
    %8142 = vmatpush1.bf16.xpose.msra.mxu0 0
    %8143 = vmatprep.subr.bf16.mxu0 0
    %8144 = vmatpush1.bf16.xpose.msra.mxu0 0
    %8145 = vmatprep.subr.bf16.mxu0 0
    %8146 = vmatpush1.bf16.xpose.msra.mxu0 0
    %8147 = vmatprep.subr.bf16.mxu0 0
    %8148 = vmatpush1.bf16.xpose.msra.mxu0 0
    %8149 = vmatprep.subr.bf16.mxu0 0
    %8150 = vmatpush1.bf16.xpose.msra.mxu0 0
    %8151 = vmatprep.subr.bf16.mxu0 0
    %8152 = vmatpush1.bf16.xpose.msra.mxu0 0
    %8153 = vmatprep.mubr.bf16.mxu0 0
    %8154 = vmatmul.mubr.bf16.gmra.mrb[0].mxu0 %v8116
    %v8155 = vpop.f32.mrb[0].mxu0
    %v8156 = vadd.f32 0.0, %v8155
    %v8157 = vpop.f32.mrb[0].mxu0
    %v8158 = vpop.f32.mrb[0].mxu0
    %v8159 = vpop.f32.mrb[0].mxu0
    %8160 = vdwg.mxu0
    %v8161 = vmul.f32 %v8110, 0.35355338
    %v8162 = vmul.f32 %v8156, 0.35355338
    %v8163 = vsel %vm2113, %v8161, -1e+09
    %v8164 = vsel %vm2114, %v8162, -1e+09
    %v8165 = vsel %vm2440, %v8163, -inf
    %8166 = vmax.xlane.f32.xlu0 %v8165
    %v8167 = vpop.xlane.xlu0 %8166
    %v8168 = vsel %vm2440, %v8164, -inf
    %8169 = vmax.xlane.f32.xlu0 %v8168
    %v8170 = vpop.xlane.xlu0 %8169
    %v8171 = vsub.f32 %v8163, %v8167
    %v8172 = vsub.f32 %v8164, %v8170
    %v8173 = vmul.f32 %v8171, 1.442695
    %v8174 = vpow.pop %v8173
    %v8175 = vmul.f32 %v8172, 1.442695
    %v8176 = vpow.pop %v8175
    %v8177 = vsel %vm2440, %v8174, 0.0
    %8178 = vadd.xlane.f32.xlu0 %v8177
    %v8179 = vpop.xlane.xlu0 %8178
    %v8180 = vsel %vm2440, %v8176, 0.0
    %8181 = vadd.xlane.f32.xlu0 %v8180
    %v8182 = vpop.xlane.xlu0 %8181
    %v8183 = vrcp.pop %v8179
    %v8184 = vrcp.pop %v8182
    %v8185 = vmul.f32 %v8174, %v8183
    %v8186 = vmul.f32 %v8176, %v8184
    %v8187 = vpack.c.bf16 %v8185, %v8185
    %v8188 = vpack.c.bf16 %v8186, %v8186
    %v8190 = vsel %vm2440, %v8187, 0
    %8192 = vmatprep.subr.bf16.mxu0 0
    %8193 = vmatpush1.bf16.msra.mxu0 %v8067
    %8194 = vmatprep.subr.bf16.mxu0 0
    %8195 = vmatpush1.bf16.msra.mxu0 0
    %8196 = vmatprep.subr.bf16.mxu0 0
    %8197 = vmatpush1.bf16.msra.mxu0 0
    %8198 = vmatprep.subr.bf16.mxu0 0
    %8199 = vmatpush1.bf16.msra.mxu0 0
    %8200 = vmatprep.subr.bf16.mxu0 0
    %8201 = vmatpush1.bf16.msra.mxu0 0
    %8202 = vmatprep.subr.bf16.mxu0 0
    %8203 = vmatpush1.bf16.msra.mxu0 0
    %8204 = vmatprep.subr.bf16.mxu0 0
    %8205 = vmatpush1.bf16.msra.mxu0 0
    %8206 = vmatprep.subr.bf16.mxu0 0
    %8207 = vmatpush1.bf16.msra.mxu0 0
    %8208 = vmatprep.subr.bf16.mxu0 0
    %8209 = vmatpush1.bf16.msra.mxu0 0
    %8210 = vmatprep.subr.bf16.mxu0 0
    %8211 = vmatpush1.bf16.msra.mxu0 0
    %8212 = vmatprep.subr.bf16.mxu0 0
    %8213 = vmatpush1.bf16.msra.mxu0 0
    %8214 = vmatprep.subr.bf16.mxu0 0
    %8215 = vmatpush1.bf16.msra.mxu0 0
    %8216 = vmatprep.subr.bf16.mxu0 0
    %8217 = vmatpush1.bf16.msra.mxu0 0
    %8218 = vmatprep.subr.bf16.mxu0 0
    %8219 = vmatpush1.bf16.msra.mxu0 0
    %8220 = vmatprep.subr.bf16.mxu0 0
    %8221 = vmatpush1.bf16.msra.mxu0 0
    %8222 = vmatprep.subr.bf16.mxu0 0
    %8223 = vmatpush1.bf16.msra.mxu0 0
    %8224 = vmatprep.mubr.bf16.mxu0 0
    %8225 = vmatmul.mubr.bf16.gmra.mrb[0].mxu0 %v8190
    %v8226 = vpop.f32.mrb[0].mxu0
    %v8227 = vadd.f32 0.0, %v8226
    %v8228 = vpop.f32.mrb[0].mxu0
    %v8229 = vpop.f32.mrb[0].mxu0
    %v8230 = vpop.f32.mrb[0].mxu0
    %8231 = vdwg.mxu0
    %v8233 = vsel %vm2440, %v8188, 0
    %8235 = vmatprep.subr.bf16.mxu0 0
    %8236 = vmatpush1.bf16.msra.mxu0 %v8068
    %8237 = vmatprep.subr.bf16.mxu0 0
    %8238 = vmatpush1.bf16.msra.mxu0 0
    %8239 = vmatprep.subr.bf16.mxu0 0
    %8240 = vmatpush1.bf16.msra.mxu0 0
    %8241 = vmatprep.subr.bf16.mxu0 0
    %8242 = vmatpush1.bf16.msra.mxu0 0
    %8243 = vmatprep.subr.bf16.mxu0 0
    %8244 = vmatpush1.bf16.msra.mxu0 0
    %8245 = vmatprep.subr.bf16.mxu0 0
    %8246 = vmatpush1.bf16.msra.mxu0 0
    %8247 = vmatprep.subr.bf16.mxu0 0
    %8248 = vmatpush1.bf16.msra.mxu0 0
    %8249 = vmatprep.subr.bf16.mxu0 0
    %8250 = vmatpush1.bf16.msra.mxu0 0
    %8251 = vmatprep.subr.bf16.mxu0 0
    %8252 = vmatpush1.bf16.msra.mxu0 0
    %8253 = vmatprep.subr.bf16.mxu0 0
    %8254 = vmatpush1.bf16.msra.mxu0 0
    %8255 = vmatprep.subr.bf16.mxu0 0
    %8256 = vmatpush1.bf16.msra.mxu0 0
    %8257 = vmatprep.subr.bf16.mxu0 0
    %8258 = vmatpush1.bf16.msra.mxu0 0
    %8259 = vmatprep.subr.bf16.mxu0 0
    %8260 = vmatpush1.bf16.msra.mxu0 0
    %8261 = vmatprep.subr.bf16.mxu0 0
    %8262 = vmatpush1.bf16.msra.mxu0 0
    %8263 = vmatprep.subr.bf16.mxu0 0
    %8264 = vmatpush1.bf16.msra.mxu0 0
    %8265 = vmatprep.subr.bf16.mxu0 0
    %8266 = vmatpush1.bf16.msra.mxu0 0
    %8267 = vmatprep.mubr.bf16.mxu0 0
    %8268 = vmatmul.mubr.bf16.gmra.mrb[0].mxu0 %v8233
    %v8269 = vpop.f32.mrb[0].mxu0
    %v8270 = vadd.f32 0.0, %v8269
    %v8271 = vpop.f32.mrb[0].mxu0
    %v8272 = vpop.f32.mrb[0].mxu0
    %v8273 = vpop.f32.mrb[0].mxu0
    %8274 = vdwg.mxu0
    %v8275 = vpack.c.bf16 %v8270, %v8227
    %s8276 = scalar_lea.vmem %s4, 1008
    %v8277 = vld [vmem:[%s8276] sm:$0xf]
    %v8278 = vld [vmem:[%s8276 + $0x4] sm:$0xf]
    %v8279 = vld [vmem:[%s8276 + $0x8] sm:$0xf]
    %v8280 = vld [vmem:[%s8276 + $0xc] sm:$0xf]
    %v8285 = vunpack.c.l.b16 %v8277
    %v8286 = vunpack.c.l.b16 %v8278
    %v8287 = vunpack.c.l.b16 %v8279
    %v8288 = vunpack.c.l.b16 %v8280
    %v8289 = vpack.c.b16 %v8286, %v8285
    %v8290 = vpack.c.b16 %v8288, %v8287
    %v8292 = vsel %vm308, %v8275, 0
    %v8295 = vsel %vm308, %v8289, 0
    %v8298 = vsel %vm308, %v8290, 0
    %8300 = vmatprep.subr.bf16.mxu0 0
    %8301 = vmatpush1.bf16.xpose.msra.mxu0 %v8295
    %8302 = vmatprep.subr.bf16.mxu0 0
    %8303 = vmatpush1.bf16.xpose.msra.mxu0 %v8298
    %8304 = vmatprep.subr.bf16.mxu0 0
    %8305 = vmatpush1.bf16.xpose.msra.mxu0 0
    %8306 = vmatprep.subr.bf16.mxu0 0
    %8307 = vmatpush1.bf16.xpose.msra.mxu0 0
    %8308 = vmatprep.subr.bf16.mxu0 0
    %8309 = vmatpush1.bf16.xpose.msra.mxu0 0
    %8310 = vmatprep.subr.bf16.mxu0 0
    %8311 = vmatpush1.bf16.xpose.msra.mxu0 0
    %8312 = vmatprep.subr.bf16.mxu0 0
    %8313 = vmatpush1.bf16.xpose.msra.mxu0 0
    %8314 = vmatprep.subr.bf16.mxu0 0
    %8315 = vmatpush1.bf16.xpose.msra.mxu0 0
    %8316 = vmatprep.subr.bf16.mxu0 0
    %8317 = vmatpush1.bf16.xpose.msra.mxu0 0
    %8318 = vmatprep.subr.bf16.mxu0 0
    %8319 = vmatpush1.bf16.xpose.msra.mxu0 0
    %8320 = vmatprep.subr.bf16.mxu0 0
    %8321 = vmatpush1.bf16.xpose.msra.mxu0 0
    %8322 = vmatprep.subr.bf16.mxu0 0
    %8323 = vmatpush1.bf16.xpose.msra.mxu0 0
    %8324 = vmatprep.subr.bf16.mxu0 0
    %8325 = vmatpush1.bf16.xpose.msra.mxu0 0
    %8326 = vmatprep.subr.bf16.mxu0 0
    %8327 = vmatpush1.bf16.xpose.msra.mxu0 0
    %8328 = vmatprep.subr.bf16.mxu0 0
    %8329 = vmatpush1.bf16.xpose.msra.mxu0 0
    %8330 = vmatprep.subr.bf16.mxu0 0
    %8331 = vmatpush1.bf16.xpose.msra.mxu0 0
    %8332 = vmatprep.mubr.bf16.mxu0 0
    %8333 = vmatmul.mubr.bf16.gmra.mrb[0].mxu0 %v8292
    %v8334 = vpop.f32.mrb[0].mxu0
    %v8335 = vadd.f32 0.0, %v8334
    %v8336 = vpop.f32.mrb[0].mxu0
    %v8337 = vpop.f32.mrb[0].mxu0
    %v8338 = vadd.f32 0.0, %v8337
    %v8339 = vpop.f32.mrb[0].mxu0
    %8340 = vdwg.mxu0
    %v8341 = vadd.f32 %v7847, %v8335
    %v8342 = vadd.f32 %v7848, %v8338
    %s8343 = scalar_lea.vmem %s9, 16
    %v8344 = vld [vmem:[%s8343] sm:$0x1]
    %v8346 = vlaneseq
    %v8347 = vshrl.u32 %v8346, 7
    %v8348 = vsub.s32 0, %v8347
    %v8349 = vrot.slane %v8344, %v8348
    %v8351 = vadd.f32 %v8341, %v8349
    %v8352 = vadd.f32 %v8342, %v8349
    %v8353 = vadd.f32 %v6315, %v8351
    %v8354 = vadd.f32 %v6316, %v8352
    %v8355 = vsel %vm49, %v8353, 0.0
    %8356 = vadd.xlane.f32.xlu0 %v8355
    %v8357 = vpop.xlane.xlu0 %8356
    %v8358 = vsel %vm49, %v8354, 0.0
    %8359 = vadd.xlane.f32.xlu0 %v8358
    %v8360 = vpop.xlane.xlu0 %8359
    %v8361 = vmul.f32 %v8357, %v56
    %v8362 = vmul.f32 %v8360, %v56
    %v8363 = vmul.f32 %v8353, %v8353
    %v8364 = vmul.f32 %v8354, %v8354
    %v8365 = vsel %vm49, %v8363, 0.0
    %8366 = vadd.xlane.f32.xlu0 %v8365
    %v8367 = vpop.xlane.xlu0 %8366
    %v8368 = vsel %vm49, %v8364, 0.0
    %8369 = vadd.xlane.f32.xlu0 %v8368
    %v8370 = vpop.xlane.xlu0 %8369
    %v8371 = vmul.f32 %v8367, %v56
    %v8372 = vmul.f32 %v8370, %v56
    %v8373 = vmul.f32 %v8361, %v8361
    %v8374 = vmul.f32 %v8362, %v8362
    %v8375 = vsub.f32 %v8371, %v8373
    %v8376 = vsub.f32 %v8372, %v8374
    %v8377 = vsub.f32 %v8353, %v8361
    %v8378 = vsub.f32 %v8354, %v8362
    %v8379 = vadd.f32 %v8375, 1e-06
    %v8380 = vadd.f32 %v8376, 1e-06
    %v8381 = vrsqrt.pop %v8379
    %v8382 = vrsqrt.pop %v8380
    %v8383 = vmul.f32 %v8377, %v8381
    %v8384 = vmul.f32 %v8378, %v8382
    %s8385 = scalar_lea.vmem %s9, 13
    %v8386 = vld [vmem:[%s8385] sm:$0x1]
    %v8388 = vlaneseq
    %v8389 = vshrl.u32 %v8388, 7
    %v8390 = vsub.s32 0, %v8389
    %v8391 = vrot.slane %v8386, %v8390
    %v8393 = vmul.f32 %v8383, %v8391
    %v8394 = vmul.f32 %v8384, %v8391
    %s8395 = scalar_lea.vmem %s9, 14
    %v8396 = vld [vmem:[%s8395] sm:$0x1]
    %v8398 = vlaneseq
    %v8399 = vshrl.u32 %v8398, 7
    %v8400 = vsub.s32 0, %v8399
    %v8401 = vrot.slane %v8396, %v8400
    %v8403 = vadd.f32 %v8393, %v8401
    %v8404 = vadd.f32 %v8394, %v8401
    %v8405 = vpack.c.bf16 %v8404, %v8403
    %s8406 = scalar_lea.vmem %s5, 16
    %v8407 = vld [vmem:[%s8406] sm:$0xf]
    %v8408 = vld [vmem:[%s8406 + $0x4] sm:$0xf]
    %v8409 = vld [vmem:[%s8406 + $0x8] sm:$0xf]
    %v8410 = vld [vmem:[%s8406 + $0xc] sm:$0xf]
    %s8411 = scalar_lea.vmem %s8, 1
    %v8412 = vld [vmem:[%s8411] sm:$0x1]
    %v8414 = vlaneseq
    %v8415 = vshrl.u32 %v8414, 7
    %v8416 = vsub.s32 0, %v8415
    %v8417 = vrot.slane %v8412, %v8416
    %v8423 = vunpack.c.l.b16 %v8407
    %v8424 = vunpack.c.l.b16 %v8408
    %v8425 = vunpack.c.l.b16 %v8409
    %v8426 = vunpack.c.l.b16 %v8410
    %v8427 = vpack.c.b16 %v8424, %v8423
    %v8428 = vpack.c.b16 %v8426, %v8425
    %v8432 = vsel %vm49, %v8405, 0
    %8434 = vmatprep.subr.bf16.mxu0 0
    %8435 = vmatpush1.bf16.msra.mxu0 %v8427
    %8436 = vmatprep.subr.bf16.mxu0 0
    %8437 = vmatpush1.bf16.msra.mxu0 %v8428
    %8438 = vmatprep.subr.bf16.mxu0 0
    %8439 = vmatpush1.bf16.msra.mxu0 0
    %8440 = vmatprep.subr.bf16.mxu0 0
    %8441 = vmatpush1.bf16.msra.mxu0 0
    %8442 = vmatprep.subr.bf16.mxu0 0
    %8443 = vmatpush1.bf16.msra.mxu0 0
    %8444 = vmatprep.subr.bf16.mxu0 0
    %8445 = vmatpush1.bf16.msra.mxu0 0
    %8446 = vmatprep.subr.bf16.mxu0 0
    %8447 = vmatpush1.bf16.msra.mxu0 0
    %8448 = vmatprep.subr.bf16.mxu0 0
    %8449 = vmatpush1.bf16.msra.mxu0 0
    %8450 = vmatprep.subr.bf16.mxu0 0
    %8451 = vmatpush1.bf16.msra.mxu0 0
    %8452 = vmatprep.subr.bf16.mxu0 0
    %8453 = vmatpush1.bf16.msra.mxu0 0
    %8454 = vmatprep.subr.bf16.mxu0 0
    %8455 = vmatpush1.bf16.msra.mxu0 0
    %8456 = vmatprep.subr.bf16.mxu0 0
    %8457 = vmatpush1.bf16.msra.mxu0 0
    %8458 = vmatprep.subr.bf16.mxu0 0
    %8459 = vmatpush1.bf16.msra.mxu0 0
    %8460 = vmatprep.subr.bf16.mxu0 0
    %8461 = vmatpush1.bf16.msra.mxu0 0
    %8462 = vmatprep.subr.bf16.mxu0 0
    %8463 = vmatpush1.bf16.msra.mxu0 0
    %8464 = vmatprep.subr.bf16.mxu0 0
    %8465 = vmatpush1.bf16.msra.mxu0 0
    %8466 = vmatprep.mubr.bf16.mxu0 0
    %8467 = vmatmul.mubr.bf16.gmra.mrb[0].mxu0 %v8432
    %v8468 = vpop.f32.mrb[0].mxu0
    %v8469 = vadd.f32 %v8417, %v8468
    %v8470 = vpop.f32.mrb[0].mxu0
    %v8471 = vpop.f32.mrb[0].mxu0
    %v8472 = vadd.f32 %v8417, %v8471
    %v8473 = vpop.f32.mrb[0].mxu0
    %8474 = vdwg.mxu0
    %v8475 = vmax.f32 %v8469, 0.0
    %v8476 = vmax.f32 %v8472, 0.0
    %v8477 = vpack.c.bf16 %v8476, %v8475
    %s8478 = scalar_lea.vmem %s6, 32
    %v8479 = vld [vmem:[%s8478] sm:$0xf]
    %v8480 = vld [vmem:[%s8478 + $0x4] sm:$0xf]
    %v8481 = vld [vmem:[%s8478 + $0x8] sm:$0xf]
    %v8482 = vld [vmem:[%s8478 + $0xc] sm:$0xf]
    %v8483 = vld [vmem:[%s8478 + $0x10] sm:$0xf]
    %v8484 = vld [vmem:[%s8478 + $0x14] sm:$0xf]
    %v8485 = vld [vmem:[%s8478 + $0x18] sm:$0xf]
    %v8486 = vld [vmem:[%s8478 + $0x1c] sm:$0xf]
    %v8495 = vunpack.c.l.b16 %v8479
    %v8496 = vunpack.c.l.b16 %v8480
    %v8497 = vunpack.c.l.b16 %v8481
    %v8498 = vunpack.c.l.b16 %v8482
    %v8499 = vunpack.c.l.b16 %v8483
    %v8500 = vunpack.c.l.b16 %v8484
    %v8501 = vunpack.c.l.b16 %v8485
    %v8502 = vunpack.c.l.b16 %v8486
    %v8503 = vpack.c.b16 %v8496, %v8495
    %v8504 = vpack.c.b16 %v8498, %v8497
    %v8505 = vpack.c.b16 %v8500, %v8499
    %v8506 = vpack.c.b16 %v8502, %v8501
    %v8512 = vsel %vm4262, %v8477, 0
    %8514 = vmatprep.subr.bf16.mxu0 0
    %8515 = vmatpush1.bf16.msra.mxu0 %v8503
    %8516 = vmatprep.subr.bf16.mxu0 0
    %8517 = vmatpush1.bf16.msra.mxu0 %v8504
    %8518 = vmatprep.subr.bf16.mxu0 0
    %8519 = vmatpush1.bf16.msra.mxu0 %v8505
    %8520 = vmatprep.subr.bf16.mxu0 0
    %8521 = vmatpush1.bf16.msra.mxu0 %v8506
    %8522 = vmatprep.subr.bf16.mxu0 0
    %8523 = vmatpush1.bf16.msra.mxu0 0
    %8524 = vmatprep.subr.bf16.mxu0 0
    %8525 = vmatpush1.bf16.msra.mxu0 0
    %8526 = vmatprep.subr.bf16.mxu0 0
    %8527 = vmatpush1.bf16.msra.mxu0 0
    %8528 = vmatprep.subr.bf16.mxu0 0
    %8529 = vmatpush1.bf16.msra.mxu0 0
    %8530 = vmatprep.subr.bf16.mxu0 0
    %8531 = vmatpush1.bf16.msra.mxu0 0
    %8532 = vmatprep.subr.bf16.mxu0 0
    %8533 = vmatpush1.bf16.msra.mxu0 0
    %8534 = vmatprep.subr.bf16.mxu0 0
    %8535 = vmatpush1.bf16.msra.mxu0 0
    %8536 = vmatprep.subr.bf16.mxu0 0
    %8537 = vmatpush1.bf16.msra.mxu0 0
    %8538 = vmatprep.subr.bf16.mxu0 0
    %8539 = vmatpush1.bf16.msra.mxu0 0
    %8540 = vmatprep.subr.bf16.mxu0 0
    %8541 = vmatpush1.bf16.msra.mxu0 0
    %8542 = vmatprep.subr.bf16.mxu0 0
    %8543 = vmatpush1.bf16.msra.mxu0 0
    %8544 = vmatprep.subr.bf16.mxu0 0
    %8545 = vmatpush1.bf16.msra.mxu0 0
    %8546 = vmatprep.mubr.bf16.mxu0 0
    %8547 = vmatmul.mubr.bf16.gmra.mrb[0].mxu0 %v8512
    %v8548 = vpop.f32.mrb[0].mxu0
    %v8549 = vadd.f32 0.0, %v8548
    %v8550 = vpop.f32.mrb[0].mxu0
    %v8551 = vpop.f32.mrb[0].mxu0
    %v8552 = vadd.f32 0.0, %v8551
    %v8553 = vpop.f32.mrb[0].mxu0
    %8554 = vdwg.mxu0
    %v8555 = vadd.f32 %v8353, %v8549
    %v8556 = vadd.f32 %v8354, %v8552
    %s8557 = scalar_lea.vmem %s9, 17
    %v8558 = vld [vmem:[%s8557] sm:$0x1]
    %v8560 = vlaneseq
    %v8561 = vshrl.u32 %v8560, 7
    %v8562 = vsub.s32 0, %v8561
    %v8563 = vrot.slane %v8558, %v8562
    %v8565 = vadd.f32 %v8555, %v8563
    %v8566 = vadd.f32 %v8556, %v8563
    %v8567 = vsel %vm49, %v8565, 0.0
    %8568 = vadd.xlane.f32.xlu0 %v8567
    %v8569 = vpop.xlane.xlu0 %8568
    %v8570 = vsel %vm49, %v8566, 0.0
    %8571 = vadd.xlane.f32.xlu0 %v8570
    %v8572 = vpop.xlane.xlu0 %8571
    %v8573 = vmul.f32 %v8569, %v56
    %v8574 = vmul.f32 %v8572, %v56
    %v8575 = vmul.f32 %v8565, %v8565
    %v8576 = vmul.f32 %v8566, %v8566
    %v8577 = vsel %vm49, %v8575, 0.0
    %8578 = vadd.xlane.f32.xlu0 %v8577
    %v8579 = vpop.xlane.xlu0 %8578
    %v8580 = vsel %vm49, %v8576, 0.0
    %8581 = vadd.xlane.f32.xlu0 %v8580
    %v8582 = vpop.xlane.xlu0 %8581
    %v8583 = vmul.f32 %v8579, %v56
    %v8584 = vmul.f32 %v8582, %v56
    %v8585 = vmul.f32 %v8573, %v8573
    %v8586 = vmul.f32 %v8574, %v8574
    %v8587 = vsub.f32 %v8583, %v8585
    %v8588 = vsub.f32 %v8584, %v8586
    %v8589 = vsub.f32 %v8565, %v8573
    %v8590 = vsub.f32 %v8566, %v8574
    %v8591 = vadd.f32 %v8587, 1e-06
    %v8592 = vadd.f32 %v8588, 1e-06
    %v8593 = vrsqrt.pop %v8591
    %v8594 = vrsqrt.pop %v8592
    %v8595 = vmul.f32 %v8589, %v8593
    %v8596 = vmul.f32 %v8590, %v8594
    %s8597 = scalar_lea.vmem %s9, 18
    %v8598 = vld [vmem:[%s8597] sm:$0x1]
    %v8600 = vlaneseq
    %v8601 = vshrl.u32 %v8600, 7
    %v8602 = vsub.s32 0, %v8601
    %v8603 = vrot.slane %v8598, %v8602
    %v8605 = vmul.f32 %v8595, %v8603
    %v8606 = vmul.f32 %v8596, %v8603
    %s8607 = scalar_lea.vmem %s9, 19
    %v8608 = vld [vmem:[%s8607] sm:$0x1]
    %v8610 = vlaneseq
    %v8611 = vshrl.u32 %v8610, 7
    %v8612 = vsub.s32 0, %v8611
    %v8613 = vrot.slane %v8608, %v8612
    %v8615 = vadd.f32 %v8605, %v8613
    %v8616 = vadd.f32 %v8606, %v8613
    %8617 = vst.msk [vmem:[#allocation2] sm:$0xff] %vm49, %v8615
    %8618 = vst.msk [vmem:[#allocation2 + $0x8] sm:$0xff] %vm49, %v8616
    // Predicated region
    $region42: #{decoder_forward.1} parent=1 // pred_check
      _
    $region43: #{decoder_forward.1} parent=1 // pred_check_branch
      %8620 = sbr.rel (0) target = $region45
    $region44: #{decoder_forward.1} parent=1 // pred_region
      %s8622 = ssub.s32 256, 256
      %8623 = vsyncadd [#allocation3], %s8622
      %s8624 = sshll.u32 [#allocation2], 4
      %s8625 = int_to_ptr.vmem [resolvable:$true] %s8624
      %8630 = dma.vmem_to_hbm [thread:$0]  %s8625, 256, %s10, [#allocation3], 128, 128, 8
    $region45: #{decoder_forward.1} parent=1 // pred_fallthru
      _
    // Predicated region
    $region46: #{decoder_forward.1} parent=1 // pred_check
      _
    $region47: #{decoder_forward.1} parent=1 // pred_check_branch
      %8632 = sbr.rel (0) target = $region49
    $region48: #{decoder_forward.1} parent=1 // pred_region
      %8633 = dma.done [#allocation3], 256
    $region49: #{decoder_forward.1} parent=1 // pred_fallthru
      _
    %8634 = vsyncpa [#allocation3], 1

</llo_original>
